<compile_context>
chip_gen: v6e
topology: v6e:2x2x1
jax: 0.10.0
libtpu: 0.0.40
codegen_flags: <defaults>
</compile_context>

<pallas_src>
import math
from functools import partial

import jax
import jax.numpy as jnp
from jax.experimental import pallas as pl
from jax.experimental.pallas import tpu as pltpu


# ----------------------------------------------------------------------------
# Pallas kernel: one lane-dense slab of M = BW*N rows per grid step.
# ----------------------------------------------------------------------------
def window_attention_kernel(x_ref, wqkv_ref, bqkv_ref, scale_ref, rpb_ref,
                            wproj_ref, bproj_ref, o_ref,
                            *, num_heads, head_dim, win):
    H, d, N = num_heads, head_dim, win
    C = H * d
    M = x_ref.shape[0]
    BW = M // N                                                    # windows this step

    x2 = x_ref[...]                                                # (M, C)

    # --- fused QKV projection: single (M,C) x (C,3C) MXU matmul -------------
    qkv = jnp.dot(x2, wqkv_ref[...],
                  preferred_element_type=jnp.float32) + bqkv_ref[...]   # (M, 3C)

    def split_heads(base):
        # (M, 3C) -> (H*BW, N, d): static 8-lane extracts + leading-dim stack.
        parts = [qkv[:, base + h * d: base + (h + 1) * d] for h in range(H)]
        return jnp.stack(parts, axis=0).reshape(H * BW, N, d)

    q3 = split_heads(0 * C)
    k3 = split_heads(1 * C)
    v3 = split_heads(2 * C)

    # --- cosine attention: F.normalize (eps=1e-12) on q and k ---------------
    qn = q3 / jnp.maximum(jnp.sqrt(jnp.sum(q3 * q3, -1, keepdims=True)), 1e-12)
    kn = k3 / jnp.maximum(jnp.sqrt(jnp.sum(k3 * k3, -1, keepdims=True)), 1e-12)

    # Batched over heads*windows: (H*BW, N, d) x (H*BW, N, d) -> (H*BW, N, N)
    logits = jnp.einsum('bnd,bmd->bnm', qn, kn,
                        preferred_element_type=jnp.float32)

    # Per-head logit scale (applied AFTER the matmul, like the reference) and
    # relative position bias, broadcast over the window sub-axis.
    l4 = logits.reshape(H, BW, N, N)
    l4 = l4 * scale_ref[...][:, None] + rpb_ref[...][:, None]
    logits = l4.reshape(H * BW, N, N)

    # softmax over keys (exact division -> matches reference numerics)
    mmax = jnp.max(logits, axis=-1, keepdims=True)
    e = jnp.exp(logits - mmax)
    p = e / jnp.sum(e, axis=-1, keepdims=True)

    out = jnp.einsum('bnm,bmd->bnd', p, v3,
                     preferred_element_type=jnp.float32)           # (H*BW, N, d)

    # Lane-concatenate heads back to (M, C) and run one fused output proj.
    out_hm = out.reshape(H, M, d)                                  # free leading merge
    out2 = jnp.concatenate([out_hm[h] for h in range(H)], axis=-1) # (M, C)
    y = jnp.dot(out2, wproj_ref[...],
                preferred_element_type=jnp.float32) + bproj_ref[...]
    o_ref[...] = y.astype(o_ref.dtype)


# ----------------------------------------------------------------------------
# Parameter-side preprocessing (plain JAX glue, independent of x).
# ----------------------------------------------------------------------------
def compute_relative_position_bias(params, window_size, num_heads):
    Wh = window_size
    t = jnp.arange(-(Wh - 1), Wh, dtype=jnp.float32)
    t = t / float(Wh - 1)
    t = t * 8.0
    t = jnp.sign(t) * jnp.log2(jnp.abs(t) + 1.0) / math.log2(8.0)
    t = t[:, None]                                                 # (2Wh-1, 1)

    # cpb_mlp: Linear(1, cbp_dim) -> ReLU -> Linear(cbp_dim, num_heads, bias=False)
    h1 = jnp.maximum(t @ params["cpb_w1"].T + params["cpb_b1"], 0.0)
    table = h1 @ params["cpb_w2"].T                                # (2Wh-1, H)

    coords = jnp.arange(Wh)
    idx = coords[:, None] - coords[None, :] + (Wh - 1)             # (Wh, Wh)
    rpb = table[idx.reshape(-1)].reshape(Wh, Wh, num_heads)
    rpb = jnp.transpose(rpb, (2, 0, 1))                            # (H, Wh, Wh)
    rpb = 16.0 * jax.nn.sigmoid(rpb)
    return rpb


def window_attention_1d(x, params, num_heads):
    # TODO(synk): shifted-window `mask` path not implemented (forward default mask=None).
    B_, N, C = x.shape
    assert C % num_heads == 0
    H = num_heads
    d = C // H
    M = B_ * N

    # HBM-side reshape: present a lane-dense (M, C) slab to the kernel.
    x2 = x.reshape(M, C)

    # Lane-dense operand layouts (last dims >= 32).
    wqkv_t = params["wqkv"].T                                      # (C, 3C)
    bqkv = jnp.concatenate(
        [params["q_bias"],
         jnp.zeros((C,), params["v_bias"].dtype),
         params["v_bias"]]).reshape(1, 3 * C)                      # (1, 3C)
    wproj_t = params["wproj"].T                                    # (C, C)
    bproj = params["bproj"].reshape(1, C)                          # (1, C)

    # logit scale: clamp(log-scale, max=log(1/0.01)).exp()
    scale = jnp.exp(
        jnp.minimum(params["logit_scale"].reshape(H), math.log(1.0 / 0.01)))
    scale_hnn = jnp.broadcast_to(
        scale.reshape(H, 1, 1), (H, N, N)).astype(jnp.float32)     # (H, N, N)

    rpb = compute_relative_position_bias(params, N, H).astype(jnp.float32)  # (H,N,N)

    # Grid sizing: one step on single-TC v5e/v6e and for small shapes; split
    # across v7x's two TensorCores only when each half still has >=256 rows.
    steps = 2 if (B_ % 2 == 0 and (B_ // 2) * N >= 256) else 1
    Ms = M // steps

    kernel = partial(window_attention_kernel, num_heads=H, head_dim=d, win=N)

    def nbytes(a):
        return int(a.size) * a.dtype.itemsize

    cost = pl.CostEstimate(
        flops=int(2 * M * C * 3 * C            # fused qkv projection
                  + 4 * H * B_ * N * N * d     # q@k^T and attn@v
                  + 2 * M * C * C),            # fused output projection
        transcendentals=int(H * B_ * N * (N + 3)),
        bytes_accessed=int(2 * nbytes(x2) + nbytes(wqkv_t) + nbytes(bqkv)
                           + nbytes(scale_hnn) + nbytes(rpb)
                           + nbytes(wproj_t) + nbytes(bproj)),
    )

    # TODO(synk): optional bf16 cast of the MXU operands (x slab, wqkv, p, v,
    # wproj) for v6e/v7x when shapes grow; kept f32 to preserve numerics here.
    out2 = pl.pallas_call(
        kernel,
        out_shape=jax.ShapeDtypeStruct((M, C), x.dtype),
        grid_spec=pltpu.PrefetchScalarGridSpec(
            num_scalar_prefetch=0,
            grid=(steps,),
            in_specs=[
                pl.BlockSpec((Ms, C), lambda i: (i, 0)),           # x slab
                pl.BlockSpec((C, 3 * C), lambda i: (0, 0)),        # fused qkv weight
                pl.BlockSpec((1, 3 * C), lambda i: (0, 0)),        # fused qkv bias
                pl.BlockSpec((H, N, N), lambda i: (0, 0, 0)),      # per-head scale
                pl.BlockSpec((H, N, N), lambda i: (0, 0, 0)),      # rel. pos. bias
                pl.BlockSpec((C, C), lambda i: (0, 0)),            # proj weight
                pl.BlockSpec((1, C), lambda i: (0, 0)),            # proj bias
            ],
            out_specs=pl.BlockSpec((Ms, C), lambda i: (i, 0)),
        ),
        compiler_params=pltpu.CompilerParams(dimension_semantics=("parallel",)),
        cost_estimate=cost,
    )(x2, wqkv_t, bqkv, scale_hnn, rpb, wproj_t, bproj)

    return out2.reshape(B_, N, C)


# ----------------------------------------------------------------------------
# Pure-JAX reference (mirrors the torch forward with mask=None, eval mode).
# ----------------------------------------------------------------------------
def reference_forward(x, params, num_heads):
    B_, N, C = x.shape
    d = C // num_heads
    bqkv = jnp.concatenate(
        [params["q_bias"], jnp.zeros_like(params["v_bias"]), params["v_bias"]])
    qkv = x @ params["wqkv"].T + bqkv
    qkv = qkv.reshape(B_, N, 3, num_heads, d).transpose(2, 0, 3, 1, 4)
    q, k, v = qkv[0], qkv[1], qkv[2]                               # (B_, H, N, d)

    qn = q / jnp.maximum(jnp.sqrt(jnp.sum(q * q, -1, keepdims=True)), 1e-12)
    kn = k / jnp.maximum(jnp.sqrt(jnp.sum(k * k, -1, keepdims=True)), 1e-12)
    attn = qn @ jnp.swapaxes(kn, -2, -1)                           # (B_, H, N, N)

    scale = jnp.exp(
        jnp.minimum(params["logit_scale"].reshape(num_heads), math.log(1.0 / 0.01)))
    attn = attn * scale[None, :, None, None]

    rpb = compute_relative_position_bias(params, N, num_heads)
    attn = attn + rpb[None]
    attn = jax.nn.softmax(attn, axis=-1)

    out = attn @ v                                                 # (B_, H, N, d)
    out = jnp.transpose(out, (0, 2, 1, 3)).reshape(B_, N, C)
    out = out @ params["wproj"].T + params["bproj"]
    return out


# ----------------------------------------------------------------------------
if __name__ == "__main__":
    dim = 32
    num_heads = 4
    window_size = 8            # N = window_size (1-D window)
    batch = 2
    num_windows = 4
    B_ = batch * num_windows   # (num_windows * B, N, C)
    cbp_dim = 128

    key = jax.random.PRNGKey(0)
    ks = jax.random.split(key, 9)

    params = {
        "wqkv": 0.1 * jax.random.normal(ks[0], (3 * dim, dim), jnp.float32),
        "q_bias": 0.1 * jax.random.normal(ks[1], (dim,), jnp.float32),
        "v_bias": 0.1 * jax.random.normal(ks[2], (dim,), jnp.float32),
        "wproj": 0.1 * jax.random.normal(ks[3], (dim, dim), jnp.float32),
        "bproj": 0.1 * jax.random.normal(ks[4], (dim,), jnp.float32),
        "logit_scale": jnp.log(10.0 * jnp.ones((num_heads, 1, 1), jnp.float32)),
        "cpb_w1": 0.1 * jax.random.normal(ks[5], (cbp_dim, 1), jnp.float32),
        "cpb_b1": 0.1 * jax.random.normal(ks[6], (cbp_dim,), jnp.float32),
        "cpb_w2": 0.1 * jax.random.normal(ks[7], (num_heads, cbp_dim), jnp.float32),
    }

    x = jax.random.normal(ks[8], (B_, window_size, dim), jnp.float32)

    out = window_attention_1d(x, params, num_heads)
    out = jax.block_until_ready(out)

    ref = reference_forward(x, params, num_heads)
    ref = jax.block_until_ready(ref)

    assert out.shape == (B_, window_size, dim)
    assert jnp.allclose(out, ref, atol=2e-3, rtol=2e-3), (
        f"max abs diff = {jnp.max(jnp.abs(out - ref))}")

    print("KERNEL_OK")
</pallas_src>

<mosaic_0001>
module attributes {stable_mosaic.version = 11 : i64} {
  func.func @window_attention_kernel(%arg0: i32, %arg1: memref<64x32xf32, #tpu.memory_space<vmem>>, %arg2: memref<32x96xf32, #tpu.memory_space<vmem>>, %arg3: memref<1x96xf32, #tpu.memory_space<vmem>>, %arg4: memref<4x8x8xf32, #tpu.memory_space<vmem>>, %arg5: memref<4x8x8xf32, #tpu.memory_space<vmem>>, %arg6: memref<32x32xf32, #tpu.memory_space<vmem>>, %arg7: memref<1x32xf32, #tpu.memory_space<vmem>>, %arg8: memref<64x32xf32, #tpu.memory_space<vmem>>) attributes {dimension_semantics = [#tpu.dimension_semantics<parallel>], iteration_bounds = array<i64: 1>, scalar_prefetch = 0 : i64, scratch_operands = 0 : i64, tpu.core_type = #tpu.core_type<tc>, window_params = [{transform_indices = @transform_0, window_bounds = array<i64: 64, 32>}, {pipeline_mode = #tpu.pipeline_mode<synchronous>, transform_indices = @transform_1, window_bounds = array<i64: 32, 96>}, {pipeline_mode = #tpu.pipeline_mode<synchronous>, transform_indices = @transform_2, window_bounds = array<i64: 1, 96>}, {pipeline_mode = #tpu.pipeline_mode<synchronous>, transform_indices = @transform_3, window_bounds = array<i64: 4, 8, 8>}, {pipeline_mode = #tpu.pipeline_mode<synchronous>, transform_indices = @transform_4, window_bounds = array<i64: 4, 8, 8>}, {pipeline_mode = #tpu.pipeline_mode<synchronous>, transform_indices = @transform_5, window_bounds = array<i64: 32, 32>}, {pipeline_mode = #tpu.pipeline_mode<synchronous>, transform_indices = @transform_6, window_bounds = array<i64: 1, 32>}, {transform_indices = @transform_7, window_bounds = array<i64: 64, 32>}]} {
    %c0 = arith.constant 0 : index
    %c0_0 = arith.constant 0 : index
    %0 = vector.load %arg1[%c0, %c0_0] : memref<64x32xf32, #tpu.memory_space<vmem>>, vector<64x32xf32>
    %c0_1 = arith.constant 0 : index
    %c0_2 = arith.constant 0 : index
    %1 = vector.load %arg2[%c0_1, %c0_2] : memref<32x96xf32, #tpu.memory_space<vmem>>, vector<32x96xf32>
    %cst = arith.constant dense<0.000000e+00> : vector<64x96xf32>
    %2 = tpu.matmul %0, %1, %cst {dimension_numbers = #tpu.dot_dimension_numbers<[1], [0], [0], [1], [0, 0, 1, 1], [], []>} : vector<64x32xf32>, vector<32x96xf32>, vector<64x96xf32> -> vector<64x96xf32>
    %c0_3 = arith.constant 0 : index
    %c0_4 = arith.constant 0 : index
    %3 = vector.load %arg3[%c0_3, %c0_4] : memref<1x96xf32, #tpu.memory_space<vmem>>, vector<1x96xf32>
    %4 = vector.broadcast %3 : vector<1x96xf32> to vector<64x96xf32>
    %5 = arith.addf %2, %4 : vector<64x96xf32>
    %6 = vector.extract_strided_slice %5 {offsets = [0, 0], sizes = [64, 8], strides = [1, 1]} : vector<64x96xf32> to vector<64x8xf32>
    %7 = vector.extract_strided_slice %5 {offsets = [0, 8], sizes = [64, 8], strides = [1, 1]} : vector<64x96xf32> to vector<64x8xf32>
    %8 = vector.extract_strided_slice %5 {offsets = [0, 16], sizes = [64, 8], strides = [1, 1]} : vector<64x96xf32> to vector<64x8xf32>
    %9 = vector.extract_strided_slice %5 {offsets = [0, 24], sizes = [64, 8], strides = [1, 1]} : vector<64x96xf32> to vector<64x8xf32>
    %10 = vector.shape_cast %6 : vector<64x8xf32> to vector<1x64x8xf32>
    %11 = vector.shape_cast %7 : vector<64x8xf32> to vector<1x64x8xf32>
    %12 = vector.shape_cast %8 : vector<64x8xf32> to vector<1x64x8xf32>
    %13 = vector.shape_cast %9 : vector<64x8xf32> to vector<1x64x8xf32>
    %14 = tpu.concatenate %10, %11, %12, %13 in 0 : vector<1x64x8xf32>, vector<1x64x8xf32>, vector<1x64x8xf32>, vector<1x64x8xf32> -> vector<4x64x8xf32>
    %15 = vector.shape_cast %14 : vector<4x64x8xf32> to vector<32x8x8xf32>
    %16 = vector.extract_strided_slice %5 {offsets = [0, 32], sizes = [64, 8], strides = [1, 1]} : vector<64x96xf32> to vector<64x8xf32>
    %17 = vector.extract_strided_slice %5 {offsets = [0, 40], sizes = [64, 8], strides = [1, 1]} : vector<64x96xf32> to vector<64x8xf32>
    %18 = vector.extract_strided_slice %5 {offsets = [0, 48], sizes = [64, 8], strides = [1, 1]} : vector<64x96xf32> to vector<64x8xf32>
    %19 = vector.extract_strided_slice %5 {offsets = [0, 56], sizes = [64, 8], strides = [1, 1]} : vector<64x96xf32> to vector<64x8xf32>
    %20 = vector.shape_cast %16 : vector<64x8xf32> to vector<1x64x8xf32>
    %21 = vector.shape_cast %17 : vector<64x8xf32> to vector<1x64x8xf32>
    %22 = vector.shape_cast %18 : vector<64x8xf32> to vector<1x64x8xf32>
    %23 = vector.shape_cast %19 : vector<64x8xf32> to vector<1x64x8xf32>
    %24 = tpu.concatenate %20, %21, %22, %23 in 0 : vector<1x64x8xf32>, vector<1x64x8xf32>, vector<1x64x8xf32>, vector<1x64x8xf32> -> vector<4x64x8xf32>
    %25 = vector.shape_cast %24 : vector<4x64x8xf32> to vector<32x8x8xf32>
    %26 = vector.extract_strided_slice %5 {offsets = [0, 64], sizes = [64, 8], strides = [1, 1]} : vector<64x96xf32> to vector<64x8xf32>
    %27 = vector.extract_strided_slice %5 {offsets = [0, 72], sizes = [64, 8], strides = [1, 1]} : vector<64x96xf32> to vector<64x8xf32>
    %28 = vector.extract_strided_slice %5 {offsets = [0, 80], sizes = [64, 8], strides = [1, 1]} : vector<64x96xf32> to vector<64x8xf32>
    %29 = vector.extract_strided_slice %5 {offsets = [0, 88], sizes = [64, 8], strides = [1, 1]} : vector<64x96xf32> to vector<64x8xf32>
    %30 = vector.shape_cast %26 : vector<64x8xf32> to vector<1x64x8xf32>
    %31 = vector.shape_cast %27 : vector<64x8xf32> to vector<1x64x8xf32>
    %32 = vector.shape_cast %28 : vector<64x8xf32> to vector<1x64x8xf32>
    %33 = vector.shape_cast %29 : vector<64x8xf32> to vector<1x64x8xf32>
    %34 = tpu.concatenate %30, %31, %32, %33 in 0 : vector<1x64x8xf32>, vector<1x64x8xf32>, vector<1x64x8xf32>, vector<1x64x8xf32> -> vector<4x64x8xf32>
    %35 = vector.shape_cast %34 : vector<4x64x8xf32> to vector<32x8x8xf32>
    %36 = arith.mulf %15, %15 : vector<32x8x8xf32>
    %cst_5 = arith.constant dense<0.000000e+00> : vector<32x8xf32>
    %37 = vector.multi_reduction <add>, %36, %cst_5 [2] : vector<32x8x8xf32> to vector<32x8xf32>
    %38 = vector.shape_cast %37 : vector<32x8xf32> to vector<32x8x1xf32>
    %39 = math.sqrt %38 : vector<32x8x1xf32>
    %cst_6 = arith.constant 9.99999996E-13 : f32
    %40 = vector.broadcast %cst_6 : f32 to vector<32x8x1xf32>
    %41 = arith.maximumf %39, %40 : vector<32x8x1xf32>
    %42 = vector.broadcast %41 : vector<32x8x1xf32> to vector<32x8x8xf32>
    %43 = arith.divf %15, %42 : vector<32x8x8xf32>
    %44 = arith.mulf %25, %25 : vector<32x8x8xf32>
    %cst_7 = arith.constant dense<0.000000e+00> : vector<32x8xf32>
    %45 = vector.multi_reduction <add>, %44, %cst_7 [2] : vector<32x8x8xf32> to vector<32x8xf32>
    %46 = vector.shape_cast %45 : vector<32x8xf32> to vector<32x8x1xf32>
    %47 = math.sqrt %46 : vector<32x8x1xf32>
    %cst_8 = arith.constant 9.99999996E-13 : f32
    %48 = vector.broadcast %cst_8 : f32 to vector<32x8x1xf32>
    %49 = arith.maximumf %47, %48 : vector<32x8x1xf32>
    %50 = vector.broadcast %49 : vector<32x8x1xf32> to vector<32x8x8xf32>
    %51 = arith.divf %25, %50 : vector<32x8x8xf32>
    "tpu.trace_start"() <{level = 10 : i32, message = "bnd,bmd->bnm"}> : () -> ()
    %cst_9 = arith.constant dense<0.000000e+00> : vector<32x8x8xf32>
    %52 = tpu.matmul %43, %51, %cst_9 {dimension_numbers = #tpu.dot_dimension_numbers<[2], [2], [1], [1], [0, 0, 0, 1, 1, 1], [0], [0]>} : vector<32x8x8xf32>, vector<32x8x8xf32>, vector<32x8x8xf32> -> vector<32x8x8xf32>
    "tpu.trace_stop"() : () -> ()
    %53 = vector.shape_cast %52 : vector<32x8x8xf32> to vector<4x8x8x8xf32>
    %c0_10 = arith.constant 0 : index
    %c0_11 = arith.constant 0 : index
    %c0_12 = arith.constant 0 : index
    %54 = vector.load %arg4[%c0_10, %c0_11, %c0_12] : memref<4x8x8xf32, #tpu.memory_space<vmem>>, vector<4x8x8xf32>
    %55 = vector.shape_cast %54 : vector<4x8x8xf32> to vector<4x1x8x8xf32>
    %56 = vector.broadcast %55 : vector<4x1x8x8xf32> to vector<4x8x8x8xf32>
    %57 = arith.mulf %53, %56 : vector<4x8x8x8xf32>
    %c0_13 = arith.constant 0 : index
    %c0_14 = arith.constant 0 : index
    %c0_15 = arith.constant 0 : index
    %58 = vector.load %arg5[%c0_13, %c0_14, %c0_15] : memref<4x8x8xf32, #tpu.memory_space<vmem>>, vector<4x8x8xf32>
    %59 = vector.shape_cast %58 : vector<4x8x8xf32> to vector<4x1x8x8xf32>
    %60 = vector.broadcast %59 : vector<4x1x8x8xf32> to vector<4x8x8x8xf32>
    %61 = arith.addf %57, %60 : vector<4x8x8x8xf32>
    %62 = vector.shape_cast %61 : vector<4x8x8x8xf32> to vector<32x8x8xf32>
    %cst_16 = arith.constant dense<0xFF800000> : vector<32x8xf32>
    %63 = vector.multi_reduction <maximumf>, %62, %cst_16 [2] : vector<32x8x8xf32> to vector<32x8xf32>
    %64 = vector.shape_cast %63 : vector<32x8xf32> to vector<32x8x1xf32>
    %65 = vector.broadcast %64 : vector<32x8x1xf32> to vector<32x8x8xf32>
    %66 = arith.subf %62, %65 : vector<32x8x8xf32>
    %67 = math.exp %66 : vector<32x8x8xf32>
    %cst_17 = arith.constant dense<0.000000e+00> : vector<32x8xf32>
    %68 = vector.multi_reduction <add>, %67, %cst_17 [2] : vector<32x8x8xf32> to vector<32x8xf32>
    %69 = vector.shape_cast %68 : vector<32x8xf32> to vector<32x8x1xf32>
    %70 = vector.broadcast %69 : vector<32x8x1xf32> to vector<32x8x8xf32>
    %71 = arith.divf %67, %70 : vector<32x8x8xf32>
    "tpu.trace_start"() <{level = 10 : i32, message = "bnm,bmd->bnd"}> : () -> ()
    %cst_18 = arith.constant dense<0.000000e+00> : vector<32x8x8xf32>
    %72 = tpu.matmul %71, %35, %cst_18 {dimension_numbers = #tpu.dot_dimension_numbers<[2], [1], [1], [2], [0, 0, 0, 1, 1, 2], [0], [0]>} : vector<32x8x8xf32>, vector<32x8x8xf32>, vector<32x8x8xf32> -> vector<32x8x8xf32>
    "tpu.trace_stop"() : () -> ()
    %73 = vector.shape_cast %72 : vector<32x8x8xf32> to vector<4x64x8xf32>
    %74 = vector.extract_strided_slice %73 {offsets = [0, 0, 0], sizes = [1, 64, 8], strides = [1, 1, 1]} : vector<4x64x8xf32> to vector<1x64x8xf32>
    %75 = vector.shape_cast %74 : vector<1x64x8xf32> to vector<64x8xf32>
    %76 = vector.extract_strided_slice %73 {offsets = [1, 0, 0], sizes = [1, 64, 8], strides = [1, 1, 1]} : vector<4x64x8xf32> to vector<1x64x8xf32>
    %77 = vector.shape_cast %76 : vector<1x64x8xf32> to vector<64x8xf32>
    %78 = vector.extract_strided_slice %73 {offsets = [2, 0, 0], sizes = [1, 64, 8], strides = [1, 1, 1]} : vector<4x64x8xf32> to vector<1x64x8xf32>
    %79 = vector.shape_cast %78 : vector<1x64x8xf32> to vector<64x8xf32>
    %80 = vector.extract_strided_slice %73 {offsets = [3, 0, 0], sizes = [1, 64, 8], strides = [1, 1, 1]} : vector<4x64x8xf32> to vector<1x64x8xf32>
    %81 = vector.shape_cast %80 : vector<1x64x8xf32> to vector<64x8xf32>
    %82 = tpu.concatenate %75, %77, %79, %81 in 1 : vector<64x8xf32>, vector<64x8xf32>, vector<64x8xf32>, vector<64x8xf32> -> vector<64x32xf32>
    %c0_19 = arith.constant 0 : index
    %c0_20 = arith.constant 0 : index
    %83 = vector.load %arg6[%c0_19, %c0_20] : memref<32x32xf32, #tpu.memory_space<vmem>>, vector<32x32xf32>
    %cst_21 = arith.constant dense<0.000000e+00> : vector<64x32xf32>
    %84 = tpu.matmul %82, %83, %cst_21 {dimension_numbers = #tpu.dot_dimension_numbers<[1], [0], [0], [1], [0, 0, 1, 1], [], []>} : vector<64x32xf32>, vector<32x32xf32>, vector<64x32xf32> -> vector<64x32xf32>
    %c0_22 = arith.constant 0 : index
    %c0_23 = arith.constant 0 : index
    %85 = vector.load %arg7[%c0_22, %c0_23] : memref<1x32xf32, #tpu.memory_space<vmem>>, vector<1x32xf32>
    %86 = vector.broadcast %85 : vector<1x32xf32> to vector<64x32xf32>
    %87 = arith.addf %84, %86 : vector<64x32xf32>
    %c0_24 = arith.constant 0 : index
    %c0_25 = arith.constant 0 : index
    %88 = vector.load %arg8[%c0_24, %c0_25] : memref<64x32xf32, #tpu.memory_space<vmem>>, vector<64x32xf32>
    tpu.vector_store %arg8[%c0_24, %c0_25], %87 {strides = array<i32>} : memref<64x32xf32, #tpu.memory_space<vmem>>, vector<64x32xf32>,
    return
  }
  func.func @transform_0(%arg0: i32) -> (i32, i32) {
    %c0_i32 = arith.constant 0 : i32
    %c0_i32_0 = arith.constant 0 : i32
    return %arg0, %c0_i32 : i32, i32
  }
  func.func @transform_1(%arg0: i32) -> (i32, i32) {
    %c0_i32 = arith.constant 0 : i32
    %c0_i32_0 = arith.constant 0 : i32
    %c0_i32_1 = arith.constant 0 : i32
    return %c0_i32, %c0_i32_0 : i32, i32
  }
  func.func @transform_2(%arg0: i32) -> (i32, i32) {
    %c0_i32 = arith.constant 0 : i32
    %c0_i32_0 = arith.constant 0 : i32
    %c0_i32_1 = arith.constant 0 : i32
    return %c0_i32, %c0_i32_0 : i32, i32
  }
  func.func @transform_3(%arg0: i32) -> (i32, i32, i32) {
    %c0_i32 = arith.constant 0 : i32
    %c0_i32_0 = arith.constant 0 : i32
    %c0_i32_1 = arith.constant 0 : i32
    %c0_i32_2 = arith.constant 0 : i32
    return %c0_i32, %c0_i32_0, %c0_i32_1 : i32, i32, i32
  }
  func.func @transform_4(%arg0: i32) -> (i32, i32, i32) {
    %c0_i32 = arith.constant 0 : i32
    %c0_i32_0 = arith.constant 0 : i32
    %c0_i32_1 = arith.constant 0 : i32
    %c0_i32_2 = arith.constant 0 : i32
    return %c0_i32, %c0_i32_0, %c0_i32_1 : i32, i32, i32
  }
  func.func @transform_5(%arg0: i32) -> (i32, i32) {
    %c0_i32 = arith.constant 0 : i32
    %c0_i32_0 = arith.constant 0 : i32
    %c0_i32_1 = arith.constant 0 : i32
    return %c0_i32, %c0_i32_0 : i32, i32
  }
  func.func @transform_6(%arg0: i32) -> (i32, i32) {
    %c0_i32 = arith.constant 0 : i32
    %c0_i32_0 = arith.constant 0 : i32
    %c0_i32_1 = arith.constant 0 : i32
    return %c0_i32, %c0_i32_0 : i32, i32
  }
  func.func @transform_7(%arg0: i32) -> (i32, i32) {
    %c0_i32 = arith.constant 0 : i32
    %c0_i32_0 = arith.constant 0 : i32
    return %arg0, %c0_i32 : i32, i32
  }
}

</mosaic_0001>

<llo_original>
// kernel: tpu_custom_call.1
$region0: #{tpu_custom_call.1}
  #allocation0 [shape = 'u32[]', space=smem, size = 0x4, offset = 0x4, fixed_abs, tag = 'smem constant byte address 0x4 - core index']
  #allocation1 [shape = 'u32[144,128]{1,0:T(1,128)}', space=vmem, size = 0x12000, scoped, tag = 'internal scratch']
  %s0 = inlined_call_operand.vmem [shape: f32[64,32], index: 0, kind: input, shape index: {}]
  %s1 = inlined_call_operand.vmem [shape: f32[32,96], index: 1, kind: input, shape index: {}]
  %s2 = inlined_call_operand.vmem [shape: f32[1,96], index: 2, kind: input, shape index: {}]
  %s3 = inlined_call_operand.vmem [shape: f32[4,8,8], index: 3, kind: input, shape index: {}]
  %s4 = inlined_call_operand.vmem [shape: f32[4,8,8], index: 4, kind: input, shape index: {}]
  %s5 = inlined_call_operand.hbm [shape: f32[32,32], index: 5, kind: input, shape index: {}]
  %s6 = inlined_call_operand.vmem [shape: f32[1,32], index: 6, kind: input, shape index: {}]
  %s7 = inlined_call_operand.vmem [shape: f32[64,32], index: 7, kind: output, shape index: {}]
  %s8 = sld [smem:[#allocation0]]
  $region42: #{tpu_custom_call.1} parent=0
    _
  %s10 = ssub.s32 1, %s8
  %s11 = scalar_select 0, %s10, %s8
  $region1: #{tpu_custom_call.1} parent=0
    #allocation2 [shape = 'u8[16384]{0}', space=vmem, size = 0x4000, scoped, tag = 'input window, operand 5, single buffered']
    #allocation3 [shape = 's32[1]{0}', space=sflag, size = 0x4, scoped, tag = 'scoped memory for tpu_custom_call.1']
    %12 = vsyncpa [#allocation3], 0
    // Predicated region
    $region2: #{tpu_custom_call.1} parent=1 // pred_check
      _
    $region3: #{tpu_custom_call.1} parent=1 // pred_check_branch
      %14 = sbr.rel (0) target = $region5
    $region4: #{tpu_custom_call.1} parent=1 // pred_region
      _
    $region5: #{tpu_custom_call.1} parent=1 // pred_fallthru
      _
    // Predicated region
    $region6: #{tpu_custom_call.1} parent=1 // pred_check
      _
    $region7: #{tpu_custom_call.1} parent=1 // pred_check_branch
      %16 = sbr.rel (0) target = $region9
    $region8: #{tpu_custom_call.1} parent=1 // pred_region
      _
    $region9: #{tpu_custom_call.1} parent=1 // pred_fallthru
      _
    // Predicated region
    $region10: #{tpu_custom_call.1} parent=1 // pred_check
      _
    $region11: #{tpu_custom_call.1} parent=1 // pred_check_branch
      %18 = sbr.rel (0) target = $region13
    $region12: #{tpu_custom_call.1} parent=1 // pred_region
      _
    $region13: #{tpu_custom_call.1} parent=1 // pred_fallthru
      _
    // Predicated region
    $region14: #{tpu_custom_call.1} parent=1 // pred_check
      _
    $region15: #{tpu_custom_call.1} parent=1 // pred_check_branch
      %20 = sbr.rel (0) target = $region17
    $region16: #{tpu_custom_call.1} parent=1 // pred_region
      _
    $region17: #{tpu_custom_call.1} parent=1 // pred_fallthru
      _
    // Predicated region
    $region18: #{tpu_custom_call.1} parent=1 // pred_check
      _
    $region19: #{tpu_custom_call.1} parent=1 // pred_check_branch
      %22 = sbr.rel (0) target = $region21
    $region20: #{tpu_custom_call.1} parent=1 // pred_region
      _
    $region21: #{tpu_custom_call.1} parent=1 // pred_fallthru
      _
    // Predicated region
    $region22: #{tpu_custom_call.1} parent=1 // pred_check
      _
    $region23: #{tpu_custom_call.1} parent=1 // pred_check_branch
      %24 = sbr.rel (0) target = $region25
    $region24: #{tpu_custom_call.1} parent=1 // pred_region
      %s26 = ssub.s32 512, 512
      %27 = vsyncadd [#allocation3], %s26
      %s28 = sshll.u32 [#allocation2], 4
      %s29 = int_to_ptr.vmem [resolvable:$true] %s28
      %34 = dma.hbm_to_vmem [thread:$0]  %s5, 512, %s29, [#allocation3], 128, 128, 8
    $region25: #{tpu_custom_call.1} parent=1 // pred_fallthru
      _
    // Predicated region
    $region26: #{tpu_custom_call.1} parent=1 // pred_check
      _
    $region27: #{tpu_custom_call.1} parent=1 // pred_check_branch
      %36 = sbr.rel (0) target = $region29
    $region28: #{tpu_custom_call.1} parent=1 // pred_region
      _
    $region29: #{tpu_custom_call.1} parent=1 // pred_fallthru
      _
    // Predicated region
    $region30: #{tpu_custom_call.1} parent=1 // pred_check
      _
    $region31: #{tpu_custom_call.1} parent=1 // pred_check_branch
      %38 = sbr.rel (0) target = $region33
    $region32: #{tpu_custom_call.1} parent=1 // pred_region
      %39 = dma.done [#allocation3], 512
    $region33: #{tpu_custom_call.1} parent=1 // pred_fallthru
      _
    %v40 = vld [vmem:[%s0] sm:$0xff]
    %v41 = vld [vmem:[%s0 + $0x8] sm:$0xff]
    %v42 = vld [vmem:[%s0 + $0x10] sm:$0xff]
    %v43 = vld [vmem:[%s0 + $0x18] sm:$0xff]
    %v44 = vld [vmem:[%s0 + $0x20] sm:$0xff]
    %v45 = vld [vmem:[%s0 + $0x28] sm:$0xff]
    %v46 = vld [vmem:[%s0 + $0x30] sm:$0xff]
    %v47 = vld [vmem:[%s0 + $0x38] sm:$0xff]
    %v48 = vld [vmem:[%s1] sm:$0xff]
    %v49 = vld [vmem:[%s1 + $0x8] sm:$0xff]
    %v50 = vld [vmem:[%s1 + $0x10] sm:$0xff]
    %v51 = vld [vmem:[%s1 + $0x18] sm:$0xff]
    %v52 = vld [vmem:[%s2] sm:$0x1]
    %v54 = vlaneseq
    %v55 = vshrl.u32 %v54, 7
    %v56 = vsub.s32 0, %v55
    %v57 = vrot.slane %v52, %v56
    %vm59 = vcmask 261120
    %v61 = vsel %vm59, %v40, 0
    %v64 = vsel %vm59, %v41, 0
    %v67 = vsel %vm59, %v42, 0
    %v70 = vsel %vm59, %v43, 0
    %v73 = vsel %vm59, %v44, 0
    %v76 = vsel %vm59, %v45, 0
    %v79 = vsel %vm59, %v46, 0
    %v82 = vsel %vm59, %v47, 0
    %84 = vmatprep.subr.mxu0 0.0
    %85 = vmatpush1.msra.mxu0 0.0
    %86 = vmatprep.subr.mxu0 0.0
    %87 = vmatpush1.msra.mxu0 0.0
    %88 = vmatprep.subr.mxu0 0.0
    %89 = vmatpush1.msra.mxu0 0.0
    %90 = vmatprep.subr.mxu0 0.0
    %91 = vmatpush1.msra.mxu0 0.0
    %92 = vmatprep.subr.mxu0 0.0
    %93 = vmatpush1.msra.mxu0 0.0
    %94 = vmatprep.subr.mxu0 0.0
    %95 = vmatpush1.msra.mxu0 0.0
    %96 = vmatprep.subr.mxu0 0.0
    %97 = vmatpush1.msra.mxu0 0.0
    %98 = vmatprep.subr.mxu0 0.0
    %99 = vmatpush1.msra.mxu0 0.0
    %100 = vmatprep.subr.mxu0 0.0
    %101 = vmatpush1.msra.mxu0 0.0
    %102 = vmatprep.subr.mxu0 0.0
    %103 = vmatpush1.msra.mxu0 0.0
    %104 = vmatprep.subr.mxu0 0.0
    %105 = vmatpush1.msra.mxu0 0.0
    %106 = vmatprep.subr.mxu0 0.0
    %107 = vmatpush1.msra.mxu0 0.0
    %108 = vmatprep.subr.mxu0 0.0
    %109 = vmatpush1.msra.mxu0 %v51
    %110 = vmatprep.subr.mxu0 0.0
    %111 = vmatpush1.msra.mxu0 %v50
    %112 = vmatprep.subr.mxu0 0.0
    %113 = vmatpush1.msra.mxu0 %v49
    %114 = vmatprep.subr.mxu0 0.0
    %115 = vmatpush1.msra.mxu0 %v48
    %116 = vmatprep.subr.mxu0 0.0
    %117 = vmatpush2.msra.mxu0 0.0
    %118 = vmatprep.subr.mxu0 0.0
    %119 = vmatpush2.msra.mxu0 0.0
    %120 = vmatprep.subr.mxu0 0.0
    %121 = vmatpush2.msra.mxu0 0.0
    %122 = vmatprep.subr.mxu0 0.0
    %123 = vmatpush2.msra.mxu0 0.0
    %124 = vmatprep.subr.mxu0 0.0
    %125 = vmatpush2.msra.mxu0 0.0
    %126 = vmatprep.subr.mxu0 0.0
    %127 = vmatpush2.msra.mxu0 0.0
    %128 = vmatprep.subr.mxu0 0.0
    %129 = vmatpush2.msra.mxu0 0.0
    %130 = vmatprep.subr.mxu0 0.0
    %131 = vmatpush2.msra.mxu0 0.0
    %132 = vmatprep.subr.mxu0 0.0
    %133 = vmatpush2.msra.mxu0 0.0
    %134 = vmatprep.subr.mxu0 0.0
    %135 = vmatpush2.msra.mxu0 0.0
    %136 = vmatprep.subr.mxu0 0.0
    %137 = vmatpush2.msra.mxu0 0.0
    %138 = vmatprep.subr.mxu0 0.0
    %139 = vmatpush2.msra.mxu0 0.0
    %140 = vmatprep.subr.mxu0 0.0
    %141 = vmatpush2.msra.mxu0 0.0
    %142 = vmatprep.subr.mxu0 0.0
    %143 = vmatpush2.msra.mxu0 0.0
    %144 = vmatprep.subr.mxu0 0.0
    %145 = vmatpush2.msra.mxu0 0.0
    %146 = vmatprep.subr.mxu0 0.0
    %147 = vmatpush2.msra.mxu0 0.0
    %148 = vmatprep.mubr.f32.mxu0 0.0
    %149 = vmatmul.mubr.f32.gmra.mxu0 %v61
    %v150 = vpop.f32.mrf.mxu0
    %v151 = vadd.f32 %v57, %v150
    %v152 = vpop.f32.mrf.mxu0
    %153 = vmatprep.mubr.f32.mxu0 0.0
    %154 = vmatmul.mubr.f32.gmra.mxu0 %v64
    %v155 = vpop.f32.mrf.mxu0
    %v156 = vadd.f32 %v57, %v155
    %v157 = vpop.f32.mrf.mxu0
    %158 = vmatprep.mubr.f32.mxu0 0.0
    %159 = vmatmul.mubr.f32.gmra.mxu0 %v67
    %v160 = vpop.f32.mrf.mxu0
    %v161 = vadd.f32 %v57, %v160
    %v162 = vpop.f32.mrf.mxu0
    %163 = vmatprep.mubr.f32.mxu0 0.0
    %164 = vmatmul.mubr.f32.gmra.mxu0 %v70
    %v165 = vpop.f32.mrf.mxu0
    %v166 = vadd.f32 %v57, %v165
    %v167 = vpop.f32.mrf.mxu0
    %168 = vmatprep.mubr.f32.mxu0 0.0
    %169 = vmatmul.mubr.f32.gmra.mxu0 %v73
    %v170 = vpop.f32.mrf.mxu0
    %v171 = vadd.f32 %v57, %v170
    %v172 = vpop.f32.mrf.mxu0
    %173 = vmatprep.mubr.f32.mxu0 0.0
    %174 = vmatmul.mubr.f32.gmra.mxu0 %v76
    %v175 = vpop.f32.mrf.mxu0
    %v176 = vadd.f32 %v57, %v175
    %v177 = vpop.f32.mrf.mxu0
    %178 = vmatprep.mubr.f32.mxu0 0.0
    %179 = vmatmul.mubr.f32.gmra.mxu0 %v79
    %v180 = vpop.f32.mrf.mxu0
    %v181 = vadd.f32 %v57, %v180
    %v182 = vpop.f32.mrf.mxu0
    %183 = vmatprep.mubr.f32.mxu0 0.0
    %184 = vmatmul.mubr.f32.gmra.mxu0 %v82
    %v185 = vpop.f32.mrf.mxu0
    %v186 = vadd.f32 %v57, %v185
    %v187 = vpop.f32.mrf.mxu0
    %188 = vdwg.mxu0
    %197 = vrot.lane.b32.xlu0 %v151, 120
    %v198 = vpop.permute.xlu0 %197
    %199 = vrot.lane.b32.xlu0 %v156, 120
    %v200 = vpop.permute.xlu0 %199
    %201 = vrot.lane.b32.xlu0 %v161, 120
    %v202 = vpop.permute.xlu0 %201
    %203 = vrot.lane.b32.xlu0 %v166, 120
    %v204 = vpop.permute.xlu0 %203
    %205 = vrot.lane.b32.xlu0 %v171, 120
    %v206 = vpop.permute.xlu0 %205
    %207 = vrot.lane.b32.xlu0 %v176, 120
    %v208 = vpop.permute.xlu0 %207
    %209 = vrot.lane.b32.xlu0 %v181, 120
    %v210 = vpop.permute.xlu0 %209
    %211 = vrot.lane.b32.xlu0 %v186, 120
    %v212 = vpop.permute.xlu0 %211
    %221 = vrot.lane.b32.xlu0 %v151, 112
    %v222 = vpop.permute.xlu0 %221
    %223 = vrot.lane.b32.xlu0 %v156, 112
    %v224 = vpop.permute.xlu0 %223
    %225 = vrot.lane.b32.xlu0 %v161, 112
    %v226 = vpop.permute.xlu0 %225
    %227 = vrot.lane.b32.xlu0 %v166, 112
    %v228 = vpop.permute.xlu0 %227
    %229 = vrot.lane.b32.xlu0 %v171, 112
    %v230 = vpop.permute.xlu0 %229
    %231 = vrot.lane.b32.xlu0 %v176, 112
    %v232 = vpop.permute.xlu0 %231
    %233 = vrot.lane.b32.xlu0 %v181, 112
    %v234 = vpop.permute.xlu0 %233
    %235 = vrot.lane.b32.xlu0 %v186, 112
    %v236 = vpop.permute.xlu0 %235
    %245 = vrot.lane.b32.xlu0 %v151, 104
    %v246 = vpop.permute.xlu0 %245
    %247 = vrot.lane.b32.xlu0 %v156, 104
    %v248 = vpop.permute.xlu0 %247
    %249 = vrot.lane.b32.xlu0 %v161, 104
    %v250 = vpop.permute.xlu0 %249
    %251 = vrot.lane.b32.xlu0 %v166, 104
    %v252 = vpop.permute.xlu0 %251
    %253 = vrot.lane.b32.xlu0 %v171, 104
    %v254 = vpop.permute.xlu0 %253
    %255 = vrot.lane.b32.xlu0 %v176, 104
    %v256 = vpop.permute.xlu0 %255
    %257 = vrot.lane.b32.xlu0 %v181, 104
    %v258 = vpop.permute.xlu0 %257
    %259 = vrot.lane.b32.xlu0 %v186, 104
    %v260 = vpop.permute.xlu0 %259
    %v269 = vmul.f32 %v151, %v151
    %v270 = vmul.f32 %v156, %v156
    %v271 = vmul.f32 %v161, %v161
    %v272 = vmul.f32 %v166, %v166
    %v273 = vmul.f32 %v171, %v171
    %v274 = vmul.f32 %v176, %v176
    %v275 = vmul.f32 %v181, %v181
    %v276 = vmul.f32 %v186, %v186
    %v277 = vmul.f32 %v198, %v198
    %v278 = vmul.f32 %v200, %v200
    %v279 = vmul.f32 %v202, %v202
    %v280 = vmul.f32 %v204, %v204
    %v281 = vmul.f32 %v206, %v206
    %v282 = vmul.f32 %v208, %v208
    %v283 = vmul.f32 %v210, %v210
    %v284 = vmul.f32 %v212, %v212
    %v285 = vmul.f32 %v222, %v222
    %v286 = vmul.f32 %v224, %v224
    %v287 = vmul.f32 %v226, %v226
    %v288 = vmul.f32 %v228, %v228
    %v289 = vmul.f32 %v230, %v230
    %v290 = vmul.f32 %v232, %v232
    %v291 = vmul.f32 %v234, %v234
    %v292 = vmul.f32 %v236, %v236
    %v293 = vmul.f32 %v246, %v246
    %v294 = vmul.f32 %v248, %v248
    %v295 = vmul.f32 %v250, %v250
    %v296 = vmul.f32 %v252, %v252
    %v297 = vmul.f32 %v254, %v254
    %v298 = vmul.f32 %v256, %v256
    %v299 = vmul.f32 %v258, %v258
    %v300 = vmul.f32 %v260, %v260
    %vm301 = vcmask 64512
    %v302 = vsel %vm301, %v269, 0.0
    %303 = vadd.xlane.f32.xlu0 %v302
    %v304 = vpop.xlane.xlu0 %303
    %v305 = vsel %vm301, %v270, 0.0
    %306 = vadd.xlane.f32.xlu0 %v305
    %v307 = vpop.xlane.xlu0 %306
    %v308 = vsel %vm301, %v271, 0.0
    %309 = vadd.xlane.f32.xlu0 %v308
    %v310 = vpop.xlane.xlu0 %309
    %v311 = vsel %vm301, %v272, 0.0
    %312 = vadd.xlane.f32.xlu0 %v311
    %v313 = vpop.xlane.xlu0 %312
    %v314 = vsel %vm301, %v273, 0.0
    %315 = vadd.xlane.f32.xlu0 %v314
    %v316 = vpop.xlane.xlu0 %315
    %v317 = vsel %vm301, %v274, 0.0
    %318 = vadd.xlane.f32.xlu0 %v317
    %v319 = vpop.xlane.xlu0 %318
    %v320 = vsel %vm301, %v275, 0.0
    %321 = vadd.xlane.f32.xlu0 %v320
    %v322 = vpop.xlane.xlu0 %321
    %v323 = vsel %vm301, %v276, 0.0
    %324 = vadd.xlane.f32.xlu0 %v323
    %v325 = vpop.xlane.xlu0 %324
    %v326 = vsel %vm301, %v277, 0.0
    %327 = vadd.xlane.f32.xlu0 %v326
    %v328 = vpop.xlane.xlu0 %327
    %v329 = vsel %vm301, %v278, 0.0
    %330 = vadd.xlane.f32.xlu0 %v329
    %v331 = vpop.xlane.xlu0 %330
    %v332 = vsel %vm301, %v279, 0.0
    %333 = vadd.xlane.f32.xlu0 %v332
    %v334 = vpop.xlane.xlu0 %333
    %v335 = vsel %vm301, %v280, 0.0
    %336 = vadd.xlane.f32.xlu0 %v335
    %v337 = vpop.xlane.xlu0 %336
    %v338 = vsel %vm301, %v281, 0.0
    %339 = vadd.xlane.f32.xlu0 %v338
    %v340 = vpop.xlane.xlu0 %339
    %v341 = vsel %vm301, %v282, 0.0
    %342 = vadd.xlane.f32.xlu0 %v341
    %v343 = vpop.xlane.xlu0 %342
    %v344 = vsel %vm301, %v283, 0.0
    %345 = vadd.xlane.f32.xlu0 %v344
    %v346 = vpop.xlane.xlu0 %345
    %v347 = vsel %vm301, %v284, 0.0
    %348 = vadd.xlane.f32.xlu0 %v347
    %v349 = vpop.xlane.xlu0 %348
    %v350 = vsel %vm301, %v285, 0.0
    %351 = vadd.xlane.f32.xlu0 %v350
    %v352 = vpop.xlane.xlu0 %351
    %v353 = vsel %vm301, %v286, 0.0
    %354 = vadd.xlane.f32.xlu0 %v353
    %v355 = vpop.xlane.xlu0 %354
    %v356 = vsel %vm301, %v287, 0.0
    %357 = vadd.xlane.f32.xlu0 %v356
    %v358 = vpop.xlane.xlu0 %357
    %v359 = vsel %vm301, %v288, 0.0
    %360 = vadd.xlane.f32.xlu0 %v359
    %v361 = vpop.xlane.xlu0 %360
    %v362 = vsel %vm301, %v289, 0.0
    %363 = vadd.xlane.f32.xlu0 %v362
    %v364 = vpop.xlane.xlu0 %363
    %v365 = vsel %vm301, %v290, 0.0
    %366 = vadd.xlane.f32.xlu0 %v365
    %v367 = vpop.xlane.xlu0 %366
    %v368 = vsel %vm301, %v291, 0.0
    %369 = vadd.xlane.f32.xlu0 %v368
    %v370 = vpop.xlane.xlu0 %369
    %v371 = vsel %vm301, %v292, 0.0
    %372 = vadd.xlane.f32.xlu0 %v371
    %v373 = vpop.xlane.xlu0 %372
    %v374 = vsel %vm301, %v293, 0.0
    %375 = vadd.xlane.f32.xlu0 %v374
    %v376 = vpop.xlane.xlu0 %375
    %v377 = vsel %vm301, %v294, 0.0
    %378 = vadd.xlane.f32.xlu0 %v377
    %v379 = vpop.xlane.xlu0 %378
    %v380 = vsel %vm301, %v295, 0.0
    %381 = vadd.xlane.f32.xlu0 %v380
    %v382 = vpop.xlane.xlu0 %381
    %v383 = vsel %vm301, %v296, 0.0
    %384 = vadd.xlane.f32.xlu0 %v383
    %v385 = vpop.xlane.xlu0 %384
    %v386 = vsel %vm301, %v297, 0.0
    %387 = vadd.xlane.f32.xlu0 %v386
    %v388 = vpop.xlane.xlu0 %387
    %v389 = vsel %vm301, %v298, 0.0
    %390 = vadd.xlane.f32.xlu0 %v389
    %v391 = vpop.xlane.xlu0 %390
    %v392 = vsel %vm301, %v299, 0.0
    %393 = vadd.xlane.f32.xlu0 %v392
    %v394 = vpop.xlane.xlu0 %393
    %v395 = vsel %vm301, %v300, 0.0
    %396 = vadd.xlane.f32.xlu0 %v395
    %v397 = vpop.xlane.xlu0 %396
    %v398 = vrsqrt.pop %v304
    %v399 = vmul.f32 %v304, %v398
    %vm400 = vcmp.eq.f32.partialorder %v304, inf
    %v401 = vsel %vm400, %v304, %v399
    %vm402 = vcmp.eq.f32.partialorder %v304, 0.0
    %v403 = vand.u32 %v304, 2147483648
    %v404 = vsel %vm402, %v403, %v401
    %v405 = vrsqrt.pop %v307
    %v406 = vmul.f32 %v307, %v405
    %vm407 = vcmp.eq.f32.partialorder %v307, inf
    %v408 = vsel %vm407, %v307, %v406
    %vm409 = vcmp.eq.f32.partialorder %v307, 0.0
    %v410 = vand.u32 %v307, 2147483648
    %v411 = vsel %vm409, %v410, %v408
    %v412 = vrsqrt.pop %v310
    %v413 = vmul.f32 %v310, %v412
    %vm414 = vcmp.eq.f32.partialorder %v310, inf
    %v415 = vsel %vm414, %v310, %v413
    %vm416 = vcmp.eq.f32.partialorder %v310, 0.0
    %v417 = vand.u32 %v310, 2147483648
    %v418 = vsel %vm416, %v417, %v415
    %v419 = vrsqrt.pop %v313
    %v420 = vmul.f32 %v313, %v419
    %vm421 = vcmp.eq.f32.partialorder %v313, inf
    %v422 = vsel %vm421, %v313, %v420
    %vm423 = vcmp.eq.f32.partialorder %v313, 0.0
    %v424 = vand.u32 %v313, 2147483648
    %v425 = vsel %vm423, %v424, %v422
    %v426 = vrsqrt.pop %v316
    %v427 = vmul.f32 %v316, %v426
    %vm428 = vcmp.eq.f32.partialorder %v316, inf
    %v429 = vsel %vm428, %v316, %v427
    %vm430 = vcmp.eq.f32.partialorder %v316, 0.0
    %v431 = vand.u32 %v316, 2147483648
    %v432 = vsel %vm430, %v431, %v429
    %v433 = vrsqrt.pop %v319
    %v434 = vmul.f32 %v319, %v433
    %vm435 = vcmp.eq.f32.partialorder %v319, inf
    %v436 = vsel %vm435, %v319, %v434
    %vm437 = vcmp.eq.f32.partialorder %v319, 0.0
    %v438 = vand.u32 %v319, 2147483648
    %v439 = vsel %vm437, %v438, %v436
    %v440 = vrsqrt.pop %v322
    %v441 = vmul.f32 %v322, %v440
    %vm442 = vcmp.eq.f32.partialorder %v322, inf
    %v443 = vsel %vm442, %v322, %v441
    %vm444 = vcmp.eq.f32.partialorder %v322, 0.0
    %v445 = vand.u32 %v322, 2147483648
    %v446 = vsel %vm444, %v445, %v443
    %v447 = vrsqrt.pop %v325
    %v448 = vmul.f32 %v325, %v447
    %vm449 = vcmp.eq.f32.partialorder %v325, inf
    %v450 = vsel %vm449, %v325, %v448
    %vm451 = vcmp.eq.f32.partialorder %v325, 0.0
    %v452 = vand.u32 %v325, 2147483648
    %v453 = vsel %vm451, %v452, %v450
    %v454 = vrsqrt.pop %v328
    %v455 = vmul.f32 %v328, %v454
    %vm456 = vcmp.eq.f32.partialorder %v328, inf
    %v457 = vsel %vm456, %v328, %v455
    %vm458 = vcmp.eq.f32.partialorder %v328, 0.0
    %v459 = vand.u32 %v328, 2147483648
    %v460 = vsel %vm458, %v459, %v457
    %v461 = vrsqrt.pop %v331
    %v462 = vmul.f32 %v331, %v461
    %vm463 = vcmp.eq.f32.partialorder %v331, inf
    %v464 = vsel %vm463, %v331, %v462
    %vm465 = vcmp.eq.f32.partialorder %v331, 0.0
    %v466 = vand.u32 %v331, 2147483648
    %v467 = vsel %vm465, %v466, %v464
    %v468 = vrsqrt.pop %v334
    %v469 = vmul.f32 %v334, %v468
    %vm470 = vcmp.eq.f32.partialorder %v334, inf
    %v471 = vsel %vm470, %v334, %v469
    %vm472 = vcmp.eq.f32.partialorder %v334, 0.0
    %v473 = vand.u32 %v334, 2147483648
    %v474 = vsel %vm472, %v473, %v471
    %v475 = vrsqrt.pop %v337
    %v476 = vmul.f32 %v337, %v475
    %vm477 = vcmp.eq.f32.partialorder %v337, inf
    %v478 = vsel %vm477, %v337, %v476
    %vm479 = vcmp.eq.f32.partialorder %v337, 0.0
    %v480 = vand.u32 %v337, 2147483648
    %v481 = vsel %vm479, %v480, %v478
    %v482 = vrsqrt.pop %v340
    %v483 = vmul.f32 %v340, %v482
    %vm484 = vcmp.eq.f32.partialorder %v340, inf
    %v485 = vsel %vm484, %v340, %v483
    %vm486 = vcmp.eq.f32.partialorder %v340, 0.0
    %v487 = vand.u32 %v340, 2147483648
    %v488 = vsel %vm486, %v487, %v485
    %v489 = vrsqrt.pop %v343
    %v490 = vmul.f32 %v343, %v489
    %vm491 = vcmp.eq.f32.partialorder %v343, inf
    %v492 = vsel %vm491, %v343, %v490
    %vm493 = vcmp.eq.f32.partialorder %v343, 0.0
    %v494 = vand.u32 %v343, 2147483648
    %v495 = vsel %vm493, %v494, %v492
    %v496 = vrsqrt.pop %v346
    %v497 = vmul.f32 %v346, %v496
    %vm498 = vcmp.eq.f32.partialorder %v346, inf
    %v499 = vsel %vm498, %v346, %v497
    %vm500 = vcmp.eq.f32.partialorder %v346, 0.0
    %v501 = vand.u32 %v346, 2147483648
    %v502 = vsel %vm500, %v501, %v499
    %v503 = vrsqrt.pop %v349
    %v504 = vmul.f32 %v349, %v503
    %vm505 = vcmp.eq.f32.partialorder %v349, inf
    %v506 = vsel %vm505, %v349, %v504
    %vm507 = vcmp.eq.f32.partialorder %v349, 0.0
    %v508 = vand.u32 %v349, 2147483648
    %v509 = vsel %vm507, %v508, %v506
    %v510 = vrsqrt.pop %v352
    %v511 = vmul.f32 %v352, %v510
    %vm512 = vcmp.eq.f32.partialorder %v352, inf
    %v513 = vsel %vm512, %v352, %v511
    %vm514 = vcmp.eq.f32.partialorder %v352, 0.0
    %v515 = vand.u32 %v352, 2147483648
    %v516 = vsel %vm514, %v515, %v513
    %v517 = vrsqrt.pop %v355
    %v518 = vmul.f32 %v355, %v517
    %vm519 = vcmp.eq.f32.partialorder %v355, inf
    %v520 = vsel %vm519, %v355, %v518
    %vm521 = vcmp.eq.f32.partialorder %v355, 0.0
    %v522 = vand.u32 %v355, 2147483648
    %v523 = vsel %vm521, %v522, %v520
    %v524 = vrsqrt.pop %v358
    %v525 = vmul.f32 %v358, %v524
    %vm526 = vcmp.eq.f32.partialorder %v358, inf
    %v527 = vsel %vm526, %v358, %v525
    %vm528 = vcmp.eq.f32.partialorder %v358, 0.0
    %v529 = vand.u32 %v358, 2147483648
    %v530 = vsel %vm528, %v529, %v527
    %v531 = vrsqrt.pop %v361
    %v532 = vmul.f32 %v361, %v531
    %vm533 = vcmp.eq.f32.partialorder %v361, inf
    %v534 = vsel %vm533, %v361, %v532
    %vm535 = vcmp.eq.f32.partialorder %v361, 0.0
    %v536 = vand.u32 %v361, 2147483648
    %v537 = vsel %vm535, %v536, %v534
    %v538 = vrsqrt.pop %v364
    %v539 = vmul.f32 %v364, %v538
    %vm540 = vcmp.eq.f32.partialorder %v364, inf
    %v541 = vsel %vm540, %v364, %v539
    %vm542 = vcmp.eq.f32.partialorder %v364, 0.0
    %v543 = vand.u32 %v364, 2147483648
    %v544 = vsel %vm542, %v543, %v541
    %v545 = vrsqrt.pop %v367
    %v546 = vmul.f32 %v367, %v545
    %vm547 = vcmp.eq.f32.partialorder %v367, inf
    %v548 = vsel %vm547, %v367, %v546
    %vm549 = vcmp.eq.f32.partialorder %v367, 0.0
    %v550 = vand.u32 %v367, 2147483648
    %v551 = vsel %vm549, %v550, %v548
    %v552 = vrsqrt.pop %v370
    %v553 = vmul.f32 %v370, %v552
    %vm554 = vcmp.eq.f32.partialorder %v370, inf
    %v555 = vsel %vm554, %v370, %v553
    %vm556 = vcmp.eq.f32.partialorder %v370, 0.0
    %v557 = vand.u32 %v370, 2147483648
    %v558 = vsel %vm556, %v557, %v555
    %v559 = vrsqrt.pop %v373
    %v560 = vmul.f32 %v373, %v559
    %vm561 = vcmp.eq.f32.partialorder %v373, inf
    %v562 = vsel %vm561, %v373, %v560
    %vm563 = vcmp.eq.f32.partialorder %v373, 0.0
    %v564 = vand.u32 %v373, 2147483648
    %v565 = vsel %vm563, %v564, %v562
    %v566 = vrsqrt.pop %v376
    %v567 = vmul.f32 %v376, %v566
    %vm568 = vcmp.eq.f32.partialorder %v376, inf
    %v569 = vsel %vm568, %v376, %v567
    %vm570 = vcmp.eq.f32.partialorder %v376, 0.0
    %v571 = vand.u32 %v376, 2147483648
    %v572 = vsel %vm570, %v571, %v569
    %v573 = vrsqrt.pop %v379
    %v574 = vmul.f32 %v379, %v573
    %vm575 = vcmp.eq.f32.partialorder %v379, inf
    %v576 = vsel %vm575, %v379, %v574
    %vm577 = vcmp.eq.f32.partialorder %v379, 0.0
    %v578 = vand.u32 %v379, 2147483648
    %v579 = vsel %vm577, %v578, %v576
    %v580 = vrsqrt.pop %v382
    %v581 = vmul.f32 %v382, %v580
    %vm582 = vcmp.eq.f32.partialorder %v382, inf
    %v583 = vsel %vm582, %v382, %v581
    %vm584 = vcmp.eq.f32.partialorder %v382, 0.0
    %v585 = vand.u32 %v382, 2147483648
    %v586 = vsel %vm584, %v585, %v583
    %v587 = vrsqrt.pop %v385
    %v588 = vmul.f32 %v385, %v587
    %vm589 = vcmp.eq.f32.partialorder %v385, inf
    %v590 = vsel %vm589, %v385, %v588
    %vm591 = vcmp.eq.f32.partialorder %v385, 0.0
    %v592 = vand.u32 %v385, 2147483648
    %v593 = vsel %vm591, %v592, %v590
    %v594 = vrsqrt.pop %v388
    %v595 = vmul.f32 %v388, %v594
    %vm596 = vcmp.eq.f32.partialorder %v388, inf
    %v597 = vsel %vm596, %v388, %v595
    %vm598 = vcmp.eq.f32.partialorder %v388, 0.0
    %v599 = vand.u32 %v388, 2147483648
    %v600 = vsel %vm598, %v599, %v597
    %v601 = vrsqrt.pop %v391
    %v602 = vmul.f32 %v391, %v601
    %vm603 = vcmp.eq.f32.partialorder %v391, inf
    %v604 = vsel %vm603, %v391, %v602
    %vm605 = vcmp.eq.f32.partialorder %v391, 0.0
    %v606 = vand.u32 %v391, 2147483648
    %v607 = vsel %vm605, %v606, %v604
    %v608 = vrsqrt.pop %v394
    %v609 = vmul.f32 %v394, %v608
    %vm610 = vcmp.eq.f32.partialorder %v394, inf
    %v611 = vsel %vm610, %v394, %v609
    %vm612 = vcmp.eq.f32.partialorder %v394, 0.0
    %v613 = vand.u32 %v394, 2147483648
    %v614 = vsel %vm612, %v613, %v611
    %v615 = vrsqrt.pop %v397
    %v616 = vmul.f32 %v397, %v615
    %vm617 = vcmp.eq.f32.partialorder %v397, inf
    %v618 = vsel %vm617, %v397, %v616
    %vm619 = vcmp.eq.f32.partialorder %v397, 0.0
    %v620 = vand.u32 %v397, 2147483648
    %v621 = vsel %vm619, %v620, %v618
    %v622 = vmax.f32 %v404, 1e-12
    %v623 = vmax.f32 %v411, 1e-12
    %v624 = vmax.f32 %v418, 1e-12
    %v625 = vmax.f32 %v425, 1e-12
    %v626 = vmax.f32 %v432, 1e-12
    %v627 = vmax.f32 %v439, 1e-12
    %v628 = vmax.f32 %v446, 1e-12
    %v629 = vmax.f32 %v453, 1e-12
    %v630 = vmax.f32 %v460, 1e-12
    %v631 = vmax.f32 %v467, 1e-12
    %v632 = vmax.f32 %v474, 1e-12
    %v633 = vmax.f32 %v481, 1e-12
    %v634 = vmax.f32 %v488, 1e-12
    %v635 = vmax.f32 %v495, 1e-12
    %v636 = vmax.f32 %v502, 1e-12
    %v637 = vmax.f32 %v509, 1e-12
    %v638 = vmax.f32 %v516, 1e-12
    %v639 = vmax.f32 %v523, 1e-12
    %v640 = vmax.f32 %v530, 1e-12
    %v641 = vmax.f32 %v537, 1e-12
    %v642 = vmax.f32 %v544, 1e-12
    %v643 = vmax.f32 %v551, 1e-12
    %v644 = vmax.f32 %v558, 1e-12
    %v645 = vmax.f32 %v565, 1e-12
    %v646 = vmax.f32 %v572, 1e-12
    %v647 = vmax.f32 %v579, 1e-12
    %v648 = vmax.f32 %v586, 1e-12
    %v649 = vmax.f32 %v593, 1e-12
    %v650 = vmax.f32 %v600, 1e-12
    %v651 = vmax.f32 %v607, 1e-12
    %v652 = vmax.f32 %v614, 1e-12
    %v653 = vmax.f32 %v621, 1e-12
    %v654 = vrcp.pop %v622
    %v655 = vmul.f32 %v151, %v654
    %v656 = vrcp.pop %v623
    %v657 = vmul.f32 %v156, %v656
    %v658 = vrcp.pop %v624
    %v659 = vmul.f32 %v161, %v658
    %v660 = vrcp.pop %v625
    %v661 = vmul.f32 %v166, %v660
    %v662 = vrcp.pop %v626
    %v663 = vmul.f32 %v171, %v662
    %v664 = vrcp.pop %v627
    %v665 = vmul.f32 %v176, %v664
    %v666 = vrcp.pop %v628
    %v667 = vmul.f32 %v181, %v666
    %v668 = vrcp.pop %v629
    %v669 = vmul.f32 %v186, %v668
    %v670 = vrcp.pop %v630
    %v671 = vmul.f32 %v198, %v670
    %v672 = vrcp.pop %v631
    %v673 = vmul.f32 %v200, %v672
    %v674 = vrcp.pop %v632
    %v675 = vmul.f32 %v202, %v674
    %v676 = vrcp.pop %v633
    %v677 = vmul.f32 %v204, %v676
    %v678 = vrcp.pop %v634
    %v679 = vmul.f32 %v206, %v678
    %v680 = vrcp.pop %v635
    %v681 = vmul.f32 %v208, %v680
    %v682 = vrcp.pop %v636
    %v683 = vmul.f32 %v210, %v682
    %v684 = vrcp.pop %v637
    %v685 = vmul.f32 %v212, %v684
    %v686 = vrcp.pop %v638
    %v687 = vmul.f32 %v222, %v686
    %v688 = vrcp.pop %v639
    %v689 = vmul.f32 %v224, %v688
    %v690 = vrcp.pop %v640
    %v691 = vmul.f32 %v226, %v690
    %v692 = vrcp.pop %v641
    %v693 = vmul.f32 %v228, %v692
    %v694 = vrcp.pop %v642
    %v695 = vmul.f32 %v230, %v694
    %v696 = vrcp.pop %v643
    %v697 = vmul.f32 %v232, %v696
    %v698 = vrcp.pop %v644
    %v699 = vmul.f32 %v234, %v698
    %v700 = vrcp.pop %v645
    %v701 = vmul.f32 %v236, %v700
    %v702 = vrcp.pop %v646
    %v703 = vmul.f32 %v246, %v702
    %v704 = vrcp.pop %v647
    %v705 = vmul.f32 %v248, %v704
    %v706 = vrcp.pop %v648
    %v707 = vmul.f32 %v250, %v706
    %v708 = vrcp.pop %v649
    %v709 = vmul.f32 %v252, %v708
    %v710 = vrcp.pop %v650
    %v711 = vmul.f32 %v254, %v710
    %v712 = vrcp.pop %v651
    %v713 = vmul.f32 %v256, %v712
    %v714 = vrcp.pop %v652
    %v715 = vmul.f32 %v258, %v714
    %v716 = vrcp.pop %v653
    %v717 = vmul.f32 %v260, %v716
    %750 = vrot.lane.b32.xlu0 %v269, 96
    %v751 = vpop.permute.xlu0 %750
    %752 = vrot.lane.b32.xlu0 %v270, 96
    %v753 = vpop.permute.xlu0 %752
    %754 = vrot.lane.b32.xlu0 %v271, 96
    %v755 = vpop.permute.xlu0 %754
    %756 = vrot.lane.b32.xlu0 %v272, 96
    %v757 = vpop.permute.xlu0 %756
    %758 = vrot.lane.b32.xlu0 %v273, 96
    %v759 = vpop.permute.xlu0 %758
    %760 = vrot.lane.b32.xlu0 %v274, 96
    %v761 = vpop.permute.xlu0 %760
    %762 = vrot.lane.b32.xlu0 %v275, 96
    %v763 = vpop.permute.xlu0 %762
    %764 = vrot.lane.b32.xlu0 %v276, 96
    %v765 = vpop.permute.xlu0 %764
    %766 = vrot.lane.b32.xlu0 %v277, 96
    %v767 = vpop.permute.xlu0 %766
    %768 = vrot.lane.b32.xlu0 %v278, 96
    %v769 = vpop.permute.xlu0 %768
    %770 = vrot.lane.b32.xlu0 %v279, 96
    %v771 = vpop.permute.xlu0 %770
    %772 = vrot.lane.b32.xlu0 %v280, 96
    %v773 = vpop.permute.xlu0 %772
    %774 = vrot.lane.b32.xlu0 %v281, 96
    %v775 = vpop.permute.xlu0 %774
    %776 = vrot.lane.b32.xlu0 %v282, 96
    %v777 = vpop.permute.xlu0 %776
    %778 = vrot.lane.b32.xlu0 %v283, 96
    %v779 = vpop.permute.xlu0 %778
    %780 = vrot.lane.b32.xlu0 %v284, 96
    %v781 = vpop.permute.xlu0 %780
    %782 = vrot.lane.b32.xlu0 %v285, 96
    %v783 = vpop.permute.xlu0 %782
    %784 = vrot.lane.b32.xlu0 %v286, 96
    %v785 = vpop.permute.xlu0 %784
    %786 = vrot.lane.b32.xlu0 %v287, 96
    %v787 = vpop.permute.xlu0 %786
    %788 = vrot.lane.b32.xlu0 %v288, 96
    %v789 = vpop.permute.xlu0 %788
    %790 = vrot.lane.b32.xlu0 %v289, 96
    %v791 = vpop.permute.xlu0 %790
    %792 = vrot.lane.b32.xlu0 %v290, 96
    %v793 = vpop.permute.xlu0 %792
    %794 = vrot.lane.b32.xlu0 %v291, 96
    %v795 = vpop.permute.xlu0 %794
    %796 = vrot.lane.b32.xlu0 %v292, 96
    %v797 = vpop.permute.xlu0 %796
    %798 = vrot.lane.b32.xlu0 %v293, 96
    %v799 = vpop.permute.xlu0 %798
    %800 = vrot.lane.b32.xlu0 %v294, 96
    %v801 = vpop.permute.xlu0 %800
    %802 = vrot.lane.b32.xlu0 %v295, 96
    %v803 = vpop.permute.xlu0 %802
    %804 = vrot.lane.b32.xlu0 %v296, 96
    %v805 = vpop.permute.xlu0 %804
    %806 = vrot.lane.b32.xlu0 %v297, 96
    %v807 = vpop.permute.xlu0 %806
    %808 = vrot.lane.b32.xlu0 %v298, 96
    %v809 = vpop.permute.xlu0 %808
    %810 = vrot.lane.b32.xlu0 %v299, 96
    %v811 = vpop.permute.xlu0 %810
    %812 = vrot.lane.b32.xlu0 %v300, 96
    %v813 = vpop.permute.xlu0 %812
    %v846 = vsel %vm301, %v751, 0.0
    %847 = vadd.xlane.f32.xlu0 %v846
    %v848 = vpop.xlane.xlu0 %847
    %v849 = vsel %vm301, %v753, 0.0
    %850 = vadd.xlane.f32.xlu0 %v849
    %v851 = vpop.xlane.xlu0 %850
    %v852 = vsel %vm301, %v755, 0.0
    %853 = vadd.xlane.f32.xlu0 %v852
    %v854 = vpop.xlane.xlu0 %853
    %v855 = vsel %vm301, %v757, 0.0
    %856 = vadd.xlane.f32.xlu0 %v855
    %v857 = vpop.xlane.xlu0 %856
    %v858 = vsel %vm301, %v759, 0.0
    %859 = vadd.xlane.f32.xlu0 %v858
    %v860 = vpop.xlane.xlu0 %859
    %v861 = vsel %vm301, %v761, 0.0
    %862 = vadd.xlane.f32.xlu0 %v861
    %v863 = vpop.xlane.xlu0 %862
    %v864 = vsel %vm301, %v763, 0.0
    %865 = vadd.xlane.f32.xlu0 %v864
    %v866 = vpop.xlane.xlu0 %865
    %v867 = vsel %vm301, %v765, 0.0
    %868 = vadd.xlane.f32.xlu0 %v867
    %v869 = vpop.xlane.xlu0 %868
    %v870 = vsel %vm301, %v767, 0.0
    %871 = vadd.xlane.f32.xlu0 %v870
    %v872 = vpop.xlane.xlu0 %871
    %v873 = vsel %vm301, %v769, 0.0
    %874 = vadd.xlane.f32.xlu0 %v873
    %v875 = vpop.xlane.xlu0 %874
    %v876 = vsel %vm301, %v771, 0.0
    %877 = vadd.xlane.f32.xlu0 %v876
    %v878 = vpop.xlane.xlu0 %877
    %v879 = vsel %vm301, %v773, 0.0
    %880 = vadd.xlane.f32.xlu0 %v879
    %v881 = vpop.xlane.xlu0 %880
    %v882 = vsel %vm301, %v775, 0.0
    %883 = vadd.xlane.f32.xlu0 %v882
    %v884 = vpop.xlane.xlu0 %883
    %v885 = vsel %vm301, %v777, 0.0
    %886 = vadd.xlane.f32.xlu0 %v885
    %v887 = vpop.xlane.xlu0 %886
    %v888 = vsel %vm301, %v779, 0.0
    %889 = vadd.xlane.f32.xlu0 %v888
    %v890 = vpop.xlane.xlu0 %889
    %v891 = vsel %vm301, %v781, 0.0
    %892 = vadd.xlane.f32.xlu0 %v891
    %v893 = vpop.xlane.xlu0 %892
    %v894 = vsel %vm301, %v783, 0.0
    %895 = vadd.xlane.f32.xlu0 %v894
    %v896 = vpop.xlane.xlu0 %895
    %v897 = vsel %vm301, %v785, 0.0
    %898 = vadd.xlane.f32.xlu0 %v897
    %v899 = vpop.xlane.xlu0 %898
    %v900 = vsel %vm301, %v787, 0.0
    %901 = vadd.xlane.f32.xlu0 %v900
    %v902 = vpop.xlane.xlu0 %901
    %v903 = vsel %vm301, %v789, 0.0
    %904 = vadd.xlane.f32.xlu0 %v903
    %v905 = vpop.xlane.xlu0 %904
    %v906 = vsel %vm301, %v791, 0.0
    %907 = vadd.xlane.f32.xlu0 %v906
    %v908 = vpop.xlane.xlu0 %907
    %v909 = vsel %vm301, %v793, 0.0
    %910 = vadd.xlane.f32.xlu0 %v909
    %v911 = vpop.xlane.xlu0 %910
    %v912 = vsel %vm301, %v795, 0.0
    %913 = vadd.xlane.f32.xlu0 %v912
    %v914 = vpop.xlane.xlu0 %913
    %v915 = vsel %vm301, %v797, 0.0
    %916 = vadd.xlane.f32.xlu0 %v915
    %v917 = vpop.xlane.xlu0 %916
    %v918 = vsel %vm301, %v799, 0.0
    %919 = vadd.xlane.f32.xlu0 %v918
    %v920 = vpop.xlane.xlu0 %919
    %v921 = vsel %vm301, %v801, 0.0
    %922 = vadd.xlane.f32.xlu0 %v921
    %v923 = vpop.xlane.xlu0 %922
    %v924 = vsel %vm301, %v803, 0.0
    %925 = vadd.xlane.f32.xlu0 %v924
    %v926 = vpop.xlane.xlu0 %925
    %v927 = vsel %vm301, %v805, 0.0
    %928 = vadd.xlane.f32.xlu0 %v927
    %v929 = vpop.xlane.xlu0 %928
    %v930 = vsel %vm301, %v807, 0.0
    %931 = vadd.xlane.f32.xlu0 %v930
    %v932 = vpop.xlane.xlu0 %931
    %v933 = vsel %vm301, %v809, 0.0
    %934 = vadd.xlane.f32.xlu0 %v933
    %v935 = vpop.xlane.xlu0 %934
    %v936 = vsel %vm301, %v811, 0.0
    %937 = vadd.xlane.f32.xlu0 %v936
    %v938 = vpop.xlane.xlu0 %937
    %v939 = vsel %vm301, %v813, 0.0
    %940 = vadd.xlane.f32.xlu0 %v939
    %v941 = vpop.xlane.xlu0 %940
    %v942 = vrsqrt.pop %v848
    %v943 = vmul.f32 %v848, %v942
    %vm944 = vcmp.eq.f32.partialorder %v848, inf
    %v945 = vsel %vm944, %v848, %v943
    %vm946 = vcmp.eq.f32.partialorder %v848, 0.0
    %v947 = vand.u32 %v848, 2147483648
    %v948 = vsel %vm946, %v947, %v945
    %v949 = vrsqrt.pop %v851
    %v950 = vmul.f32 %v851, %v949
    %vm951 = vcmp.eq.f32.partialorder %v851, inf
    %v952 = vsel %vm951, %v851, %v950
    %vm953 = vcmp.eq.f32.partialorder %v851, 0.0
    %v954 = vand.u32 %v851, 2147483648
    %v955 = vsel %vm953, %v954, %v952
    %v956 = vrsqrt.pop %v854
    %v957 = vmul.f32 %v854, %v956
    %vm958 = vcmp.eq.f32.partialorder %v854, inf
    %v959 = vsel %vm958, %v854, %v957
    %vm960 = vcmp.eq.f32.partialorder %v854, 0.0
    %v961 = vand.u32 %v854, 2147483648
    %v962 = vsel %vm960, %v961, %v959
    %v963 = vrsqrt.pop %v857
    %v964 = vmul.f32 %v857, %v963
    %vm965 = vcmp.eq.f32.partialorder %v857, inf
    %v966 = vsel %vm965, %v857, %v964
    %vm967 = vcmp.eq.f32.partialorder %v857, 0.0
    %v968 = vand.u32 %v857, 2147483648
    %v969 = vsel %vm967, %v968, %v966
    %v970 = vrsqrt.pop %v860
    %v971 = vmul.f32 %v860, %v970
    %vm972 = vcmp.eq.f32.partialorder %v860, inf
    %v973 = vsel %vm972, %v860, %v971
    %vm974 = vcmp.eq.f32.partialorder %v860, 0.0
    %v975 = vand.u32 %v860, 2147483648
    %v976 = vsel %vm974, %v975, %v973
    %v977 = vrsqrt.pop %v863
    %v978 = vmul.f32 %v863, %v977
    %vm979 = vcmp.eq.f32.partialorder %v863, inf
    %v980 = vsel %vm979, %v863, %v978
    %vm981 = vcmp.eq.f32.partialorder %v863, 0.0
    %v982 = vand.u32 %v863, 2147483648
    %v983 = vsel %vm981, %v982, %v980
    %v984 = vrsqrt.pop %v866
    %v985 = vmul.f32 %v866, %v984
    %vm986 = vcmp.eq.f32.partialorder %v866, inf
    %v987 = vsel %vm986, %v866, %v985
    %vm988 = vcmp.eq.f32.partialorder %v866, 0.0
    %v989 = vand.u32 %v866, 2147483648
    %v990 = vsel %vm988, %v989, %v987
    %v991 = vrsqrt.pop %v869
    %v992 = vmul.f32 %v869, %v991
    %vm993 = vcmp.eq.f32.partialorder %v869, inf
    %v994 = vsel %vm993, %v869, %v992
    %vm995 = vcmp.eq.f32.partialorder %v869, 0.0
    %v996 = vand.u32 %v869, 2147483648
    %v997 = vsel %vm995, %v996, %v994
    %v998 = vrsqrt.pop %v872
    %v999 = vmul.f32 %v872, %v998
    %vm1000 = vcmp.eq.f32.partialorder %v872, inf
    %v1001 = vsel %vm1000, %v872, %v999
    %vm1002 = vcmp.eq.f32.partialorder %v872, 0.0
    %v1003 = vand.u32 %v872, 2147483648
    %v1004 = vsel %vm1002, %v1003, %v1001
    %v1005 = vrsqrt.pop %v875
    %v1006 = vmul.f32 %v875, %v1005
    %vm1007 = vcmp.eq.f32.partialorder %v875, inf
    %v1008 = vsel %vm1007, %v875, %v1006
    %vm1009 = vcmp.eq.f32.partialorder %v875, 0.0
    %v1010 = vand.u32 %v875, 2147483648
    %v1011 = vsel %vm1009, %v1010, %v1008
    %v1012 = vrsqrt.pop %v878
    %v1013 = vmul.f32 %v878, %v1012
    %vm1014 = vcmp.eq.f32.partialorder %v878, inf
    %v1015 = vsel %vm1014, %v878, %v1013
    %vm1016 = vcmp.eq.f32.partialorder %v878, 0.0
    %v1017 = vand.u32 %v878, 2147483648
    %v1018 = vsel %vm1016, %v1017, %v1015
    %v1019 = vrsqrt.pop %v881
    %v1020 = vmul.f32 %v881, %v1019
    %vm1021 = vcmp.eq.f32.partialorder %v881, inf
    %v1022 = vsel %vm1021, %v881, %v1020
    %vm1023 = vcmp.eq.f32.partialorder %v881, 0.0
    %v1024 = vand.u32 %v881, 2147483648
    %v1025 = vsel %vm1023, %v1024, %v1022
    %v1026 = vrsqrt.pop %v884
    %v1027 = vmul.f32 %v884, %v1026
    %vm1028 = vcmp.eq.f32.partialorder %v884, inf
    %v1029 = vsel %vm1028, %v884, %v1027
    %vm1030 = vcmp.eq.f32.partialorder %v884, 0.0
    %v1031 = vand.u32 %v884, 2147483648
    %v1032 = vsel %vm1030, %v1031, %v1029
    %v1033 = vrsqrt.pop %v887
    %v1034 = vmul.f32 %v887, %v1033
    %vm1035 = vcmp.eq.f32.partialorder %v887, inf
    %v1036 = vsel %vm1035, %v887, %v1034
    %vm1037 = vcmp.eq.f32.partialorder %v887, 0.0
    %v1038 = vand.u32 %v887, 2147483648
    %v1039 = vsel %vm1037, %v1038, %v1036
    %v1040 = vrsqrt.pop %v890
    %v1041 = vmul.f32 %v890, %v1040
    %vm1042 = vcmp.eq.f32.partialorder %v890, inf
    %v1043 = vsel %vm1042, %v890, %v1041
    %vm1044 = vcmp.eq.f32.partialorder %v890, 0.0
    %v1045 = vand.u32 %v890, 2147483648
    %v1046 = vsel %vm1044, %v1045, %v1043
    %v1047 = vrsqrt.pop %v893
    %v1048 = vmul.f32 %v893, %v1047
    %vm1049 = vcmp.eq.f32.partialorder %v893, inf
    %v1050 = vsel %vm1049, %v893, %v1048
    %vm1051 = vcmp.eq.f32.partialorder %v893, 0.0
    %v1052 = vand.u32 %v893, 2147483648
    %v1053 = vsel %vm1051, %v1052, %v1050
    %v1054 = vrsqrt.pop %v896
    %v1055 = vmul.f32 %v896, %v1054
    %vm1056 = vcmp.eq.f32.partialorder %v896, inf
    %v1057 = vsel %vm1056, %v896, %v1055
    %vm1058 = vcmp.eq.f32.partialorder %v896, 0.0
    %v1059 = vand.u32 %v896, 2147483648
    %v1060 = vsel %vm1058, %v1059, %v1057
    %v1061 = vrsqrt.pop %v899
    %v1062 = vmul.f32 %v899, %v1061
    %vm1063 = vcmp.eq.f32.partialorder %v899, inf
    %v1064 = vsel %vm1063, %v899, %v1062
    %vm1065 = vcmp.eq.f32.partialorder %v899, 0.0
    %v1066 = vand.u32 %v899, 2147483648
    %v1067 = vsel %vm1065, %v1066, %v1064
    %v1068 = vrsqrt.pop %v902
    %v1069 = vmul.f32 %v902, %v1068
    %vm1070 = vcmp.eq.f32.partialorder %v902, inf
    %v1071 = vsel %vm1070, %v902, %v1069
    %vm1072 = vcmp.eq.f32.partialorder %v902, 0.0
    %v1073 = vand.u32 %v902, 2147483648
    %v1074 = vsel %vm1072, %v1073, %v1071
    %v1075 = vrsqrt.pop %v905
    %v1076 = vmul.f32 %v905, %v1075
    %vm1077 = vcmp.eq.f32.partialorder %v905, inf
    %v1078 = vsel %vm1077, %v905, %v1076
    %vm1079 = vcmp.eq.f32.partialorder %v905, 0.0
    %v1080 = vand.u32 %v905, 2147483648
    %v1081 = vsel %vm1079, %v1080, %v1078
    %v1082 = vrsqrt.pop %v908
    %v1083 = vmul.f32 %v908, %v1082
    %vm1084 = vcmp.eq.f32.partialorder %v908, inf
    %v1085 = vsel %vm1084, %v908, %v1083
    %vm1086 = vcmp.eq.f32.partialorder %v908, 0.0
    %v1087 = vand.u32 %v908, 2147483648
    %v1088 = vsel %vm1086, %v1087, %v1085
    %v1089 = vrsqrt.pop %v911
    %v1090 = vmul.f32 %v911, %v1089
    %vm1091 = vcmp.eq.f32.partialorder %v911, inf
    %v1092 = vsel %vm1091, %v911, %v1090
    %vm1093 = vcmp.eq.f32.partialorder %v911, 0.0
    %v1094 = vand.u32 %v911, 2147483648
    %v1095 = vsel %vm1093, %v1094, %v1092
    %v1096 = vrsqrt.pop %v914
    %v1097 = vmul.f32 %v914, %v1096
    %vm1098 = vcmp.eq.f32.partialorder %v914, inf
    %v1099 = vsel %vm1098, %v914, %v1097
    %vm1100 = vcmp.eq.f32.partialorder %v914, 0.0
    %v1101 = vand.u32 %v914, 2147483648
    %v1102 = vsel %vm1100, %v1101, %v1099
    %v1103 = vrsqrt.pop %v917
    %v1104 = vmul.f32 %v917, %v1103
    %vm1105 = vcmp.eq.f32.partialorder %v917, inf
    %v1106 = vsel %vm1105, %v917, %v1104
    %vm1107 = vcmp.eq.f32.partialorder %v917, 0.0
    %v1108 = vand.u32 %v917, 2147483648
    %v1109 = vsel %vm1107, %v1108, %v1106
    %v1110 = vrsqrt.pop %v920
    %v1111 = vmul.f32 %v920, %v1110
    %vm1112 = vcmp.eq.f32.partialorder %v920, inf
    %v1113 = vsel %vm1112, %v920, %v1111
    %vm1114 = vcmp.eq.f32.partialorder %v920, 0.0
    %v1115 = vand.u32 %v920, 2147483648
    %v1116 = vsel %vm1114, %v1115, %v1113
    %v1117 = vrsqrt.pop %v923
    %v1118 = vmul.f32 %v923, %v1117
    %vm1119 = vcmp.eq.f32.partialorder %v923, inf
    %v1120 = vsel %vm1119, %v923, %v1118
    %vm1121 = vcmp.eq.f32.partialorder %v923, 0.0
    %v1122 = vand.u32 %v923, 2147483648
    %v1123 = vsel %vm1121, %v1122, %v1120
    %v1124 = vrsqrt.pop %v926
    %v1125 = vmul.f32 %v926, %v1124
    %vm1126 = vcmp.eq.f32.partialorder %v926, inf
    %v1127 = vsel %vm1126, %v926, %v1125
    %vm1128 = vcmp.eq.f32.partialorder %v926, 0.0
    %v1129 = vand.u32 %v926, 2147483648
    %v1130 = vsel %vm1128, %v1129, %v1127
    %v1131 = vrsqrt.pop %v929
    %v1132 = vmul.f32 %v929, %v1131
    %vm1133 = vcmp.eq.f32.partialorder %v929, inf
    %v1134 = vsel %vm1133, %v929, %v1132
    %vm1135 = vcmp.eq.f32.partialorder %v929, 0.0
    %v1136 = vand.u32 %v929, 2147483648
    %v1137 = vsel %vm1135, %v1136, %v1134
    %v1138 = vrsqrt.pop %v932
    %v1139 = vmul.f32 %v932, %v1138
    %vm1140 = vcmp.eq.f32.partialorder %v932, inf
    %v1141 = vsel %vm1140, %v932, %v1139
    %vm1142 = vcmp.eq.f32.partialorder %v932, 0.0
    %v1143 = vand.u32 %v932, 2147483648
    %v1144 = vsel %vm1142, %v1143, %v1141
    %v1145 = vrsqrt.pop %v935
    %v1146 = vmul.f32 %v935, %v1145
    %vm1147 = vcmp.eq.f32.partialorder %v935, inf
    %v1148 = vsel %vm1147, %v935, %v1146
    %vm1149 = vcmp.eq.f32.partialorder %v935, 0.0
    %v1150 = vand.u32 %v935, 2147483648
    %v1151 = vsel %vm1149, %v1150, %v1148
    %v1152 = vrsqrt.pop %v938
    %v1153 = vmul.f32 %v938, %v1152
    %vm1154 = vcmp.eq.f32.partialorder %v938, inf
    %v1155 = vsel %vm1154, %v938, %v1153
    %vm1156 = vcmp.eq.f32.partialorder %v938, 0.0
    %v1157 = vand.u32 %v938, 2147483648
    %v1158 = vsel %vm1156, %v1157, %v1155
    %v1159 = vrsqrt.pop %v941
    %v1160 = vmul.f32 %v941, %v1159
    %vm1161 = vcmp.eq.f32.partialorder %v941, inf
    %v1162 = vsel %vm1161, %v941, %v1160
    %vm1163 = vcmp.eq.f32.partialorder %v941, 0.0
    %v1164 = vand.u32 %v941, 2147483648
    %v1165 = vsel %vm1163, %v1164, %v1162
    %v1166 = vmax.f32 %v948, 1e-12
    %v1167 = vmax.f32 %v955, 1e-12
    %v1168 = vmax.f32 %v962, 1e-12
    %v1169 = vmax.f32 %v969, 1e-12
    %v1170 = vmax.f32 %v976, 1e-12
    %v1171 = vmax.f32 %v983, 1e-12
    %v1172 = vmax.f32 %v990, 1e-12
    %v1173 = vmax.f32 %v997, 1e-12
    %v1174 = vmax.f32 %v1004, 1e-12
    %v1175 = vmax.f32 %v1011, 1e-12
    %v1176 = vmax.f32 %v1018, 1e-12
    %v1177 = vmax.f32 %v1025, 1e-12
    %v1178 = vmax.f32 %v1032, 1e-12
    %v1179 = vmax.f32 %v1039, 1e-12
    %v1180 = vmax.f32 %v1046, 1e-12
    %v1181 = vmax.f32 %v1053, 1e-12
    %v1182 = vmax.f32 %v1060, 1e-12
    %v1183 = vmax.f32 %v1067, 1e-12
    %v1184 = vmax.f32 %v1074, 1e-12
    %v1185 = vmax.f32 %v1081, 1e-12
    %v1186 = vmax.f32 %v1088, 1e-12
    %v1187 = vmax.f32 %v1095, 1e-12
    %v1188 = vmax.f32 %v1102, 1e-12
    %v1189 = vmax.f32 %v1109, 1e-12
    %v1190 = vmax.f32 %v1116, 1e-12
    %v1191 = vmax.f32 %v1123, 1e-12
    %v1192 = vmax.f32 %v1130, 1e-12
    %v1193 = vmax.f32 %v1137, 1e-12
    %v1194 = vmax.f32 %v1144, 1e-12
    %v1195 = vmax.f32 %v1151, 1e-12
    %v1196 = vmax.f32 %v1158, 1e-12
    %v1197 = vmax.f32 %v1165, 1e-12
    %v1198 = vrcp.pop %v1166
    %v1199 = vmul.f32 %v151, %v1198
    %v1200 = vrcp.pop %v1167
    %v1201 = vmul.f32 %v156, %v1200
    %v1202 = vrcp.pop %v1168
    %v1203 = vmul.f32 %v161, %v1202
    %v1204 = vrcp.pop %v1169
    %v1205 = vmul.f32 %v166, %v1204
    %v1206 = vrcp.pop %v1170
    %v1207 = vmul.f32 %v171, %v1206
    %v1208 = vrcp.pop %v1171
    %v1209 = vmul.f32 %v176, %v1208
    %v1210 = vrcp.pop %v1172
    %v1211 = vmul.f32 %v181, %v1210
    %v1212 = vrcp.pop %v1173
    %v1213 = vmul.f32 %v186, %v1212
    %v1214 = vrcp.pop %v1174
    %v1215 = vmul.f32 %v198, %v1214
    %v1216 = vrcp.pop %v1175
    %v1217 = vmul.f32 %v200, %v1216
    %v1218 = vrcp.pop %v1176
    %v1219 = vmul.f32 %v202, %v1218
    %v1220 = vrcp.pop %v1177
    %v1221 = vmul.f32 %v204, %v1220
    %v1222 = vrcp.pop %v1178
    %v1223 = vmul.f32 %v206, %v1222
    %v1224 = vrcp.pop %v1179
    %v1225 = vmul.f32 %v208, %v1224
    %v1226 = vrcp.pop %v1180
    %v1227 = vmul.f32 %v210, %v1226
    %v1228 = vrcp.pop %v1181
    %v1229 = vmul.f32 %v212, %v1228
    %v1230 = vrcp.pop %v1182
    %v1231 = vmul.f32 %v222, %v1230
    %v1232 = vrcp.pop %v1183
    %v1233 = vmul.f32 %v224, %v1232
    %v1234 = vrcp.pop %v1184
    %v1235 = vmul.f32 %v226, %v1234
    %v1236 = vrcp.pop %v1185
    %v1237 = vmul.f32 %v228, %v1236
    %v1238 = vrcp.pop %v1186
    %v1239 = vmul.f32 %v230, %v1238
    %v1240 = vrcp.pop %v1187
    %v1241 = vmul.f32 %v232, %v1240
    %v1242 = vrcp.pop %v1188
    %v1243 = vmul.f32 %v234, %v1242
    %v1244 = vrcp.pop %v1189
    %v1245 = vmul.f32 %v236, %v1244
    %v1246 = vrcp.pop %v1190
    %v1247 = vmul.f32 %v246, %v1246
    %v1248 = vrcp.pop %v1191
    %v1249 = vmul.f32 %v248, %v1248
    %v1250 = vrcp.pop %v1192
    %v1251 = vmul.f32 %v250, %v1250
    %v1252 = vrcp.pop %v1193
    %v1253 = vmul.f32 %v252, %v1252
    %v1254 = vrcp.pop %v1194
    %v1255 = vmul.f32 %v254, %v1254
    %v1256 = vrcp.pop %v1195
    %v1257 = vmul.f32 %v256, %v1256
    %v1258 = vrcp.pop %v1196
    %v1259 = vmul.f32 %v258, %v1258
    %v1260 = vrcp.pop %v1197
    %v1261 = vmul.f32 %v260, %v1260
    %1263 = vrot.lane.b32.xlu0 %v1199, 96
    %v1264 = vpop.permute.xlu0 %1263
    %v1266 = vsel %vm301, %v655, 0
    %v1268 = vsel %vm301, %v1264, 0
    %1270 = vmatprep.subr.mxu0 0.0
    %1271 = vmatpush1.xpose.msra.mxu0 0.0
    %1272 = vmatprep.subr.mxu0 0.0
    %1273 = vmatpush1.xpose.msra.mxu0 0.0
    %1274 = vmatprep.subr.mxu0 0.0
    %1275 = vmatpush1.xpose.msra.mxu0 0.0
    %1276 = vmatprep.subr.mxu0 0.0
    %1277 = vmatpush1.xpose.msra.mxu0 0.0
    %1278 = vmatprep.subr.mxu0 0.0
    %1279 = vmatpush1.xpose.msra.mxu0 0.0
    %1280 = vmatprep.subr.mxu0 0.0
    %1281 = vmatpush1.xpose.msra.mxu0 0.0
    %1282 = vmatprep.subr.mxu0 0.0
    %1283 = vmatpush1.xpose.msra.mxu0 0.0
    %1284 = vmatprep.subr.mxu0 0.0
    %1285 = vmatpush1.xpose.msra.mxu0 0.0
    %1286 = vmatprep.subr.mxu0 0.0
    %1287 = vmatpush1.xpose.msra.mxu0 0.0
    %1288 = vmatprep.subr.mxu0 0.0
    %1289 = vmatpush1.xpose.msra.mxu0 0.0
    %1290 = vmatprep.subr.mxu0 0.0
    %1291 = vmatpush1.xpose.msra.mxu0 0.0
    %1292 = vmatprep.subr.mxu0 0.0
    %1293 = vmatpush1.xpose.msra.mxu0 0.0
    %1294 = vmatprep.subr.mxu0 0.0
    %1295 = vmatpush1.xpose.msra.mxu0 0.0
    %1296 = vmatprep.subr.mxu0 0.0
    %1297 = vmatpush1.xpose.msra.mxu0 0.0
    %1298 = vmatprep.subr.mxu0 0.0
    %1299 = vmatpush1.xpose.msra.mxu0 0.0
    %1300 = vmatprep.subr.mxu0 0.0
    %1301 = vmatpush1.xpose.msra.mxu0 %v1268
    %1302 = vmatprep.subr.mxu0 0.0
    %1303 = vmatpush2.xpose.msra.mxu0 0.0
    %1304 = vmatprep.subr.mxu0 0.0
    %1305 = vmatpush2.xpose.msra.mxu0 0.0
    %1306 = vmatprep.subr.mxu0 0.0
    %1307 = vmatpush2.xpose.msra.mxu0 0.0
    %1308 = vmatprep.subr.mxu0 0.0
    %1309 = vmatpush2.xpose.msra.mxu0 0.0
    %1310 = vmatprep.subr.mxu0 0.0
    %1311 = vmatpush2.xpose.msra.mxu0 0.0
    %1312 = vmatprep.subr.mxu0 0.0
    %1313 = vmatpush2.xpose.msra.mxu0 0.0
    %1314 = vmatprep.subr.mxu0 0.0
    %1315 = vmatpush2.xpose.msra.mxu0 0.0
    %1316 = vmatprep.subr.mxu0 0.0
    %1317 = vmatpush2.xpose.msra.mxu0 0.0
    %1318 = vmatprep.subr.mxu0 0.0
    %1319 = vmatpush2.xpose.msra.mxu0 0.0
    %1320 = vmatprep.subr.mxu0 0.0
    %1321 = vmatpush2.xpose.msra.mxu0 0.0
    %1322 = vmatprep.subr.mxu0 0.0
    %1323 = vmatpush2.xpose.msra.mxu0 0.0
    %1324 = vmatprep.subr.mxu0 0.0
    %1325 = vmatpush2.xpose.msra.mxu0 0.0
    %1326 = vmatprep.subr.mxu0 0.0
    %1327 = vmatpush2.xpose.msra.mxu0 0.0
    %1328 = vmatprep.subr.mxu0 0.0
    %1329 = vmatpush2.xpose.msra.mxu0 0.0
    %1330 = vmatprep.subr.mxu0 0.0
    %1331 = vmatpush2.xpose.msra.mxu0 0.0
    %1332 = vmatprep.subr.mxu0 0.0
    %1333 = vmatpush2.xpose.msra.mxu0 0.0
    %1334 = vmatprep.mubr.f32.mxu0 0.0
    %1335 = vmatmul.mubr.f32.gmra.mxu0 %v1266
    %v1336 = vpop.f32.mrf.mxu0
    %v1337 = vadd.f32 0.0, %v1336
    %v1338 = vpop.f32.mrf.mxu0
    %1339 = vdwg.mxu0
    %1341 = vrot.lane.b32.xlu0 %v1201, 96
    %v1342 = vpop.permute.xlu0 %1341
    %v1344 = vsel %vm301, %v657, 0
    %v1346 = vsel %vm301, %v1342, 0
    %1348 = vmatprep.subr.mxu0 0.0
    %1349 = vmatpush1.xpose.msra.mxu0 0.0
    %1350 = vmatprep.subr.mxu0 0.0
    %1351 = vmatpush1.xpose.msra.mxu0 0.0
    %1352 = vmatprep.subr.mxu0 0.0
    %1353 = vmatpush1.xpose.msra.mxu0 0.0
    %1354 = vmatprep.subr.mxu0 0.0
    %1355 = vmatpush1.xpose.msra.mxu0 0.0
    %1356 = vmatprep.subr.mxu0 0.0
    %1357 = vmatpush1.xpose.msra.mxu0 0.0
    %1358 = vmatprep.subr.mxu0 0.0
    %1359 = vmatpush1.xpose.msra.mxu0 0.0
    %1360 = vmatprep.subr.mxu0 0.0
    %1361 = vmatpush1.xpose.msra.mxu0 0.0
    %1362 = vmatprep.subr.mxu0 0.0
    %1363 = vmatpush1.xpose.msra.mxu0 0.0
    %1364 = vmatprep.subr.mxu0 0.0
    %1365 = vmatpush1.xpose.msra.mxu0 0.0
    %1366 = vmatprep.subr.mxu0 0.0
    %1367 = vmatpush1.xpose.msra.mxu0 0.0
    %1368 = vmatprep.subr.mxu0 0.0
    %1369 = vmatpush1.xpose.msra.mxu0 0.0
    %1370 = vmatprep.subr.mxu0 0.0
    %1371 = vmatpush1.xpose.msra.mxu0 0.0
    %1372 = vmatprep.subr.mxu0 0.0
    %1373 = vmatpush1.xpose.msra.mxu0 0.0
    %1374 = vmatprep.subr.mxu0 0.0
    %1375 = vmatpush1.xpose.msra.mxu0 0.0
    %1376 = vmatprep.subr.mxu0 0.0
    %1377 = vmatpush1.xpose.msra.mxu0 0.0
    %1378 = vmatprep.subr.mxu0 0.0
    %1379 = vmatpush1.xpose.msra.mxu0 %v1346
    %1380 = vmatprep.subr.mxu0 0.0
    %1381 = vmatpush2.xpose.msra.mxu0 0.0
    %1382 = vmatprep.subr.mxu0 0.0
    %1383 = vmatpush2.xpose.msra.mxu0 0.0
    %1384 = vmatprep.subr.mxu0 0.0
    %1385 = vmatpush2.xpose.msra.mxu0 0.0
    %1386 = vmatprep.subr.mxu0 0.0
    %1387 = vmatpush2.xpose.msra.mxu0 0.0
    %1388 = vmatprep.subr.mxu0 0.0
    %1389 = vmatpush2.xpose.msra.mxu0 0.0
    %1390 = vmatprep.subr.mxu0 0.0
    %1391 = vmatpush2.xpose.msra.mxu0 0.0
    %1392 = vmatprep.subr.mxu0 0.0
    %1393 = vmatpush2.xpose.msra.mxu0 0.0
    %1394 = vmatprep.subr.mxu0 0.0
    %1395 = vmatpush2.xpose.msra.mxu0 0.0
    %1396 = vmatprep.subr.mxu0 0.0
    %1397 = vmatpush2.xpose.msra.mxu0 0.0
    %1398 = vmatprep.subr.mxu0 0.0
    %1399 = vmatpush2.xpose.msra.mxu0 0.0
    %1400 = vmatprep.subr.mxu0 0.0
    %1401 = vmatpush2.xpose.msra.mxu0 0.0
    %1402 = vmatprep.subr.mxu0 0.0
    %1403 = vmatpush2.xpose.msra.mxu0 0.0
    %1404 = vmatprep.subr.mxu0 0.0
    %1405 = vmatpush2.xpose.msra.mxu0 0.0
    %1406 = vmatprep.subr.mxu0 0.0
    %1407 = vmatpush2.xpose.msra.mxu0 0.0
    %1408 = vmatprep.subr.mxu0 0.0
    %1409 = vmatpush2.xpose.msra.mxu0 0.0
    %1410 = vmatprep.subr.mxu0 0.0
    %1411 = vmatpush2.xpose.msra.mxu0 0.0
    %1412 = vmatprep.mubr.f32.mxu0 0.0
    %1413 = vmatmul.mubr.f32.gmra.mxu0 %v1344
    %v1414 = vpop.f32.mrf.mxu0
    %v1415 = vadd.f32 0.0, %v1414
    %v1416 = vpop.f32.mrf.mxu0
    %1417 = vdwg.mxu0
    %1419 = vrot.lane.b32.xlu0 %v1203, 96
    %v1420 = vpop.permute.xlu0 %1419
    %v1422 = vsel %vm301, %v659, 0
    %v1424 = vsel %vm301, %v1420, 0
    %1426 = vmatprep.subr.mxu0 0.0
    %1427 = vmatpush1.xpose.msra.mxu0 0.0
    %1428 = vmatprep.subr.mxu0 0.0
    %1429 = vmatpush1.xpose.msra.mxu0 0.0
    %1430 = vmatprep.subr.mxu0 0.0
    %1431 = vmatpush1.xpose.msra.mxu0 0.0
    %1432 = vmatprep.subr.mxu0 0.0
    %1433 = vmatpush1.xpose.msra.mxu0 0.0
    %1434 = vmatprep.subr.mxu0 0.0
    %1435 = vmatpush1.xpose.msra.mxu0 0.0
    %1436 = vmatprep.subr.mxu0 0.0
    %1437 = vmatpush1.xpose.msra.mxu0 0.0
    %1438 = vmatprep.subr.mxu0 0.0
    %1439 = vmatpush1.xpose.msra.mxu0 0.0
    %1440 = vmatprep.subr.mxu0 0.0
    %1441 = vmatpush1.xpose.msra.mxu0 0.0
    %1442 = vmatprep.subr.mxu0 0.0
    %1443 = vmatpush1.xpose.msra.mxu0 0.0
    %1444 = vmatprep.subr.mxu0 0.0
    %1445 = vmatpush1.xpose.msra.mxu0 0.0
    %1446 = vmatprep.subr.mxu0 0.0
    %1447 = vmatpush1.xpose.msra.mxu0 0.0
    %1448 = vmatprep.subr.mxu0 0.0
    %1449 = vmatpush1.xpose.msra.mxu0 0.0
    %1450 = vmatprep.subr.mxu0 0.0
    %1451 = vmatpush1.xpose.msra.mxu0 0.0
    %1452 = vmatprep.subr.mxu0 0.0
    %1453 = vmatpush1.xpose.msra.mxu0 0.0
    %1454 = vmatprep.subr.mxu0 0.0
    %1455 = vmatpush1.xpose.msra.mxu0 0.0
    %1456 = vmatprep.subr.mxu0 0.0
    %1457 = vmatpush1.xpose.msra.mxu0 %v1424
    %1458 = vmatprep.subr.mxu0 0.0
    %1459 = vmatpush2.xpose.msra.mxu0 0.0
    %1460 = vmatprep.subr.mxu0 0.0
    %1461 = vmatpush2.xpose.msra.mxu0 0.0
    %1462 = vmatprep.subr.mxu0 0.0
    %1463 = vmatpush2.xpose.msra.mxu0 0.0
    %1464 = vmatprep.subr.mxu0 0.0
    %1465 = vmatpush2.xpose.msra.mxu0 0.0
    %1466 = vmatprep.subr.mxu0 0.0
    %1467 = vmatpush2.xpose.msra.mxu0 0.0
    %1468 = vmatprep.subr.mxu0 0.0
    %1469 = vmatpush2.xpose.msra.mxu0 0.0
    %1470 = vmatprep.subr.mxu0 0.0
    %1471 = vmatpush2.xpose.msra.mxu0 0.0
    %1472 = vmatprep.subr.mxu0 0.0
    %1473 = vmatpush2.xpose.msra.mxu0 0.0
    %1474 = vmatprep.subr.mxu0 0.0
    %1475 = vmatpush2.xpose.msra.mxu0 0.0
    %1476 = vmatprep.subr.mxu0 0.0
    %1477 = vmatpush2.xpose.msra.mxu0 0.0
    %1478 = vmatprep.subr.mxu0 0.0
    %1479 = vmatpush2.xpose.msra.mxu0 0.0
    %1480 = vmatprep.subr.mxu0 0.0
    %1481 = vmatpush2.xpose.msra.mxu0 0.0
    %1482 = vmatprep.subr.mxu0 0.0
    %1483 = vmatpush2.xpose.msra.mxu0 0.0
    %1484 = vmatprep.subr.mxu0 0.0
    %1485 = vmatpush2.xpose.msra.mxu0 0.0
    %1486 = vmatprep.subr.mxu0 0.0
    %1487 = vmatpush2.xpose.msra.mxu0 0.0
    %1488 = vmatprep.subr.mxu0 0.0
    %1489 = vmatpush2.xpose.msra.mxu0 0.0
    %1490 = vmatprep.mubr.f32.mxu0 0.0
    %1491 = vmatmul.mubr.f32.gmra.mxu0 %v1422
    %v1492 = vpop.f32.mrf.mxu0
    %v1493 = vadd.f32 0.0, %v1492
    %v1494 = vpop.f32.mrf.mxu0
    %1495 = vdwg.mxu0
    %1497 = vrot.lane.b32.xlu0 %v1205, 96
    %v1498 = vpop.permute.xlu0 %1497
    %v1500 = vsel %vm301, %v661, 0
    %v1502 = vsel %vm301, %v1498, 0
    %1504 = vmatprep.subr.mxu0 0.0
    %1505 = vmatpush1.xpose.msra.mxu0 0.0
    %1506 = vmatprep.subr.mxu0 0.0
    %1507 = vmatpush1.xpose.msra.mxu0 0.0
    %1508 = vmatprep.subr.mxu0 0.0
    %1509 = vmatpush1.xpose.msra.mxu0 0.0
    %1510 = vmatprep.subr.mxu0 0.0
    %1511 = vmatpush1.xpose.msra.mxu0 0.0
    %1512 = vmatprep.subr.mxu0 0.0
    %1513 = vmatpush1.xpose.msra.mxu0 0.0
    %1514 = vmatprep.subr.mxu0 0.0
    %1515 = vmatpush1.xpose.msra.mxu0 0.0
    %1516 = vmatprep.subr.mxu0 0.0
    %1517 = vmatpush1.xpose.msra.mxu0 0.0
    %1518 = vmatprep.subr.mxu0 0.0
    %1519 = vmatpush1.xpose.msra.mxu0 0.0
    %1520 = vmatprep.subr.mxu0 0.0
    %1521 = vmatpush1.xpose.msra.mxu0 0.0
    %1522 = vmatprep.subr.mxu0 0.0
    %1523 = vmatpush1.xpose.msra.mxu0 0.0
    %1524 = vmatprep.subr.mxu0 0.0
    %1525 = vmatpush1.xpose.msra.mxu0 0.0
    %1526 = vmatprep.subr.mxu0 0.0
    %1527 = vmatpush1.xpose.msra.mxu0 0.0
    %1528 = vmatprep.subr.mxu0 0.0
    %1529 = vmatpush1.xpose.msra.mxu0 0.0
    %1530 = vmatprep.subr.mxu0 0.0
    %1531 = vmatpush1.xpose.msra.mxu0 0.0
    %1532 = vmatprep.subr.mxu0 0.0
    %1533 = vmatpush1.xpose.msra.mxu0 0.0
    %1534 = vmatprep.subr.mxu0 0.0
    %1535 = vmatpush1.xpose.msra.mxu0 %v1502
    %1536 = vmatprep.subr.mxu0 0.0
    %1537 = vmatpush2.xpose.msra.mxu0 0.0
    %1538 = vmatprep.subr.mxu0 0.0
    %1539 = vmatpush2.xpose.msra.mxu0 0.0
    %1540 = vmatprep.subr.mxu0 0.0
    %1541 = vmatpush2.xpose.msra.mxu0 0.0
    %1542 = vmatprep.subr.mxu0 0.0
    %1543 = vmatpush2.xpose.msra.mxu0 0.0
    %1544 = vmatprep.subr.mxu0 0.0
    %1545 = vmatpush2.xpose.msra.mxu0 0.0
    %1546 = vmatprep.subr.mxu0 0.0
    %1547 = vmatpush2.xpose.msra.mxu0 0.0
    %1548 = vmatprep.subr.mxu0 0.0
    %1549 = vmatpush2.xpose.msra.mxu0 0.0
    %1550 = vmatprep.subr.mxu0 0.0
    %1551 = vmatpush2.xpose.msra.mxu0 0.0
    %1552 = vmatprep.subr.mxu0 0.0
    %1553 = vmatpush2.xpose.msra.mxu0 0.0
    %1554 = vmatprep.subr.mxu0 0.0
    %1555 = vmatpush2.xpose.msra.mxu0 0.0
    %1556 = vmatprep.subr.mxu0 0.0
    %1557 = vmatpush2.xpose.msra.mxu0 0.0
    %1558 = vmatprep.subr.mxu0 0.0
    %1559 = vmatpush2.xpose.msra.mxu0 0.0
    %1560 = vmatprep.subr.mxu0 0.0
    %1561 = vmatpush2.xpose.msra.mxu0 0.0
    %1562 = vmatprep.subr.mxu0 0.0
    %1563 = vmatpush2.xpose.msra.mxu0 0.0
    %1564 = vmatprep.subr.mxu0 0.0
    %1565 = vmatpush2.xpose.msra.mxu0 0.0
    %1566 = vmatprep.subr.mxu0 0.0
    %1567 = vmatpush2.xpose.msra.mxu0 0.0
    %1568 = vmatprep.mubr.f32.mxu0 0.0
    %1569 = vmatmul.mubr.f32.gmra.mxu0 %v1500
    %v1570 = vpop.f32.mrf.mxu0
    %v1571 = vadd.f32 0.0, %v1570
    %v1572 = vpop.f32.mrf.mxu0
    %1573 = vdwg.mxu0
    %1575 = vrot.lane.b32.xlu0 %v1207, 96
    %v1576 = vpop.permute.xlu0 %1575
    %v1578 = vsel %vm301, %v663, 0
    %v1580 = vsel %vm301, %v1576, 0
    %1582 = vmatprep.subr.mxu0 0.0
    %1583 = vmatpush1.xpose.msra.mxu0 0.0
    %1584 = vmatprep.subr.mxu0 0.0
    %1585 = vmatpush1.xpose.msra.mxu0 0.0
    %1586 = vmatprep.subr.mxu0 0.0
    %1587 = vmatpush1.xpose.msra.mxu0 0.0
    %1588 = vmatprep.subr.mxu0 0.0
    %1589 = vmatpush1.xpose.msra.mxu0 0.0
    %1590 = vmatprep.subr.mxu0 0.0
    %1591 = vmatpush1.xpose.msra.mxu0 0.0
    %1592 = vmatprep.subr.mxu0 0.0
    %1593 = vmatpush1.xpose.msra.mxu0 0.0
    %1594 = vmatprep.subr.mxu0 0.0
    %1595 = vmatpush1.xpose.msra.mxu0 0.0
    %1596 = vmatprep.subr.mxu0 0.0
    %1597 = vmatpush1.xpose.msra.mxu0 0.0
    %1598 = vmatprep.subr.mxu0 0.0
    %1599 = vmatpush1.xpose.msra.mxu0 0.0
    %1600 = vmatprep.subr.mxu0 0.0
    %1601 = vmatpush1.xpose.msra.mxu0 0.0
    %1602 = vmatprep.subr.mxu0 0.0
    %1603 = vmatpush1.xpose.msra.mxu0 0.0
    %1604 = vmatprep.subr.mxu0 0.0
    %1605 = vmatpush1.xpose.msra.mxu0 0.0
    %1606 = vmatprep.subr.mxu0 0.0
    %1607 = vmatpush1.xpose.msra.mxu0 0.0
    %1608 = vmatprep.subr.mxu0 0.0
    %1609 = vmatpush1.xpose.msra.mxu0 0.0
    %1610 = vmatprep.subr.mxu0 0.0
    %1611 = vmatpush1.xpose.msra.mxu0 0.0
    %1612 = vmatprep.subr.mxu0 0.0
    %1613 = vmatpush1.xpose.msra.mxu0 %v1580
    %1614 = vmatprep.subr.mxu0 0.0
    %1615 = vmatpush2.xpose.msra.mxu0 0.0
    %1616 = vmatprep.subr.mxu0 0.0
    %1617 = vmatpush2.xpose.msra.mxu0 0.0
    %1618 = vmatprep.subr.mxu0 0.0
    %1619 = vmatpush2.xpose.msra.mxu0 0.0
    %1620 = vmatprep.subr.mxu0 0.0
    %1621 = vmatpush2.xpose.msra.mxu0 0.0
    %1622 = vmatprep.subr.mxu0 0.0
    %1623 = vmatpush2.xpose.msra.mxu0 0.0
    %1624 = vmatprep.subr.mxu0 0.0
    %1625 = vmatpush2.xpose.msra.mxu0 0.0
    %1626 = vmatprep.subr.mxu0 0.0
    %1627 = vmatpush2.xpose.msra.mxu0 0.0
    %1628 = vmatprep.subr.mxu0 0.0
    %1629 = vmatpush2.xpose.msra.mxu0 0.0
    %1630 = vmatprep.subr.mxu0 0.0
    %1631 = vmatpush2.xpose.msra.mxu0 0.0
    %1632 = vmatprep.subr.mxu0 0.0
    %1633 = vmatpush2.xpose.msra.mxu0 0.0
    %1634 = vmatprep.subr.mxu0 0.0
    %1635 = vmatpush2.xpose.msra.mxu0 0.0
    %1636 = vmatprep.subr.mxu0 0.0
    %1637 = vmatpush2.xpose.msra.mxu0 0.0
    %1638 = vmatprep.subr.mxu0 0.0
    %1639 = vmatpush2.xpose.msra.mxu0 0.0
    %1640 = vmatprep.subr.mxu0 0.0
    %1641 = vmatpush2.xpose.msra.mxu0 0.0
    %1642 = vmatprep.subr.mxu0 0.0
    %1643 = vmatpush2.xpose.msra.mxu0 0.0
    %1644 = vmatprep.subr.mxu0 0.0
    %1645 = vmatpush2.xpose.msra.mxu0 0.0
    %1646 = vmatprep.mubr.f32.mxu0 0.0
    %1647 = vmatmul.mubr.f32.gmra.mxu0 %v1578
    %v1648 = vpop.f32.mrf.mxu0
    %v1649 = vadd.f32 0.0, %v1648
    %v1650 = vpop.f32.mrf.mxu0
    %1651 = vdwg.mxu0
    %1653 = vrot.lane.b32.xlu0 %v1209, 96
    %v1654 = vpop.permute.xlu0 %1653
    %v1656 = vsel %vm301, %v665, 0
    %v1658 = vsel %vm301, %v1654, 0
    %1660 = vmatprep.subr.mxu0 0.0
    %1661 = vmatpush1.xpose.msra.mxu0 0.0
    %1662 = vmatprep.subr.mxu0 0.0
    %1663 = vmatpush1.xpose.msra.mxu0 0.0
    %1664 = vmatprep.subr.mxu0 0.0
    %1665 = vmatpush1.xpose.msra.mxu0 0.0
    %1666 = vmatprep.subr.mxu0 0.0
    %1667 = vmatpush1.xpose.msra.mxu0 0.0
    %1668 = vmatprep.subr.mxu0 0.0
    %1669 = vmatpush1.xpose.msra.mxu0 0.0
    %1670 = vmatprep.subr.mxu0 0.0
    %1671 = vmatpush1.xpose.msra.mxu0 0.0
    %1672 = vmatprep.subr.mxu0 0.0
    %1673 = vmatpush1.xpose.msra.mxu0 0.0
    %1674 = vmatprep.subr.mxu0 0.0
    %1675 = vmatpush1.xpose.msra.mxu0 0.0
    %1676 = vmatprep.subr.mxu0 0.0
    %1677 = vmatpush1.xpose.msra.mxu0 0.0
    %1678 = vmatprep.subr.mxu0 0.0
    %1679 = vmatpush1.xpose.msra.mxu0 0.0
    %1680 = vmatprep.subr.mxu0 0.0
    %1681 = vmatpush1.xpose.msra.mxu0 0.0
    %1682 = vmatprep.subr.mxu0 0.0
    %1683 = vmatpush1.xpose.msra.mxu0 0.0
    %1684 = vmatprep.subr.mxu0 0.0
    %1685 = vmatpush1.xpose.msra.mxu0 0.0
    %1686 = vmatprep.subr.mxu0 0.0
    %1687 = vmatpush1.xpose.msra.mxu0 0.0
    %1688 = vmatprep.subr.mxu0 0.0
    %1689 = vmatpush1.xpose.msra.mxu0 0.0
    %1690 = vmatprep.subr.mxu0 0.0
    %1691 = vmatpush1.xpose.msra.mxu0 %v1658
    %1692 = vmatprep.subr.mxu0 0.0
    %1693 = vmatpush2.xpose.msra.mxu0 0.0
    %1694 = vmatprep.subr.mxu0 0.0
    %1695 = vmatpush2.xpose.msra.mxu0 0.0
    %1696 = vmatprep.subr.mxu0 0.0
    %1697 = vmatpush2.xpose.msra.mxu0 0.0
    %1698 = vmatprep.subr.mxu0 0.0
    %1699 = vmatpush2.xpose.msra.mxu0 0.0
    %1700 = vmatprep.subr.mxu0 0.0
    %1701 = vmatpush2.xpose.msra.mxu0 0.0
    %1702 = vmatprep.subr.mxu0 0.0
    %1703 = vmatpush2.xpose.msra.mxu0 0.0
    %1704 = vmatprep.subr.mxu0 0.0
    %1705 = vmatpush2.xpose.msra.mxu0 0.0
    %1706 = vmatprep.subr.mxu0 0.0
    %1707 = vmatpush2.xpose.msra.mxu0 0.0
    %1708 = vmatprep.subr.mxu0 0.0
    %1709 = vmatpush2.xpose.msra.mxu0 0.0
    %1710 = vmatprep.subr.mxu0 0.0
    %1711 = vmatpush2.xpose.msra.mxu0 0.0
    %1712 = vmatprep.subr.mxu0 0.0
    %1713 = vmatpush2.xpose.msra.mxu0 0.0
    %1714 = vmatprep.subr.mxu0 0.0
    %1715 = vmatpush2.xpose.msra.mxu0 0.0
    %1716 = vmatprep.subr.mxu0 0.0
    %1717 = vmatpush2.xpose.msra.mxu0 0.0
    %1718 = vmatprep.subr.mxu0 0.0
    %1719 = vmatpush2.xpose.msra.mxu0 0.0
    %1720 = vmatprep.subr.mxu0 0.0
    %1721 = vmatpush2.xpose.msra.mxu0 0.0
    %1722 = vmatprep.subr.mxu0 0.0
    %1723 = vmatpush2.xpose.msra.mxu0 0.0
    %1724 = vmatprep.mubr.f32.mxu0 0.0
    %1725 = vmatmul.mubr.f32.gmra.mxu0 %v1656
    %v1726 = vpop.f32.mrf.mxu0
    %v1727 = vadd.f32 0.0, %v1726
    %v1728 = vpop.f32.mrf.mxu0
    %1729 = vdwg.mxu0
    %1731 = vrot.lane.b32.xlu0 %v1211, 96
    %v1732 = vpop.permute.xlu0 %1731
    %v1734 = vsel %vm301, %v667, 0
    %v1736 = vsel %vm301, %v1732, 0
    %1738 = vmatprep.subr.mxu0 0.0
    %1739 = vmatpush1.xpose.msra.mxu0 0.0
    %1740 = vmatprep.subr.mxu0 0.0
    %1741 = vmatpush1.xpose.msra.mxu0 0.0
    %1742 = vmatprep.subr.mxu0 0.0
    %1743 = vmatpush1.xpose.msra.mxu0 0.0
    %1744 = vmatprep.subr.mxu0 0.0
    %1745 = vmatpush1.xpose.msra.mxu0 0.0
    %1746 = vmatprep.subr.mxu0 0.0
    %1747 = vmatpush1.xpose.msra.mxu0 0.0
    %1748 = vmatprep.subr.mxu0 0.0
    %1749 = vmatpush1.xpose.msra.mxu0 0.0
    %1750 = vmatprep.subr.mxu0 0.0
    %1751 = vmatpush1.xpose.msra.mxu0 0.0
    %1752 = vmatprep.subr.mxu0 0.0
    %1753 = vmatpush1.xpose.msra.mxu0 0.0
    %1754 = vmatprep.subr.mxu0 0.0
    %1755 = vmatpush1.xpose.msra.mxu0 0.0
    %1756 = vmatprep.subr.mxu0 0.0
    %1757 = vmatpush1.xpose.msra.mxu0 0.0
    %1758 = vmatprep.subr.mxu0 0.0
    %1759 = vmatpush1.xpose.msra.mxu0 0.0
    %1760 = vmatprep.subr.mxu0 0.0
    %1761 = vmatpush1.xpose.msra.mxu0 0.0
    %1762 = vmatprep.subr.mxu0 0.0
    %1763 = vmatpush1.xpose.msra.mxu0 0.0
    %1764 = vmatprep.subr.mxu0 0.0
    %1765 = vmatpush1.xpose.msra.mxu0 0.0
    %1766 = vmatprep.subr.mxu0 0.0
    %1767 = vmatpush1.xpose.msra.mxu0 0.0
    %1768 = vmatprep.subr.mxu0 0.0
    %1769 = vmatpush1.xpose.msra.mxu0 %v1736
    %1770 = vmatprep.subr.mxu0 0.0
    %1771 = vmatpush2.xpose.msra.mxu0 0.0
    %1772 = vmatprep.subr.mxu0 0.0
    %1773 = vmatpush2.xpose.msra.mxu0 0.0
    %1774 = vmatprep.subr.mxu0 0.0
    %1775 = vmatpush2.xpose.msra.mxu0 0.0
    %1776 = vmatprep.subr.mxu0 0.0
    %1777 = vmatpush2.xpose.msra.mxu0 0.0
    %1778 = vmatprep.subr.mxu0 0.0
    %1779 = vmatpush2.xpose.msra.mxu0 0.0
    %1780 = vmatprep.subr.mxu0 0.0
    %1781 = vmatpush2.xpose.msra.mxu0 0.0
    %1782 = vmatprep.subr.mxu0 0.0
    %1783 = vmatpush2.xpose.msra.mxu0 0.0
    %1784 = vmatprep.subr.mxu0 0.0
    %1785 = vmatpush2.xpose.msra.mxu0 0.0
    %1786 = vmatprep.subr.mxu0 0.0
    %1787 = vmatpush2.xpose.msra.mxu0 0.0
    %1788 = vmatprep.subr.mxu0 0.0
    %1789 = vmatpush2.xpose.msra.mxu0 0.0
    %1790 = vmatprep.subr.mxu0 0.0
    %1791 = vmatpush2.xpose.msra.mxu0 0.0
    %1792 = vmatprep.subr.mxu0 0.0
    %1793 = vmatpush2.xpose.msra.mxu0 0.0
    %1794 = vmatprep.subr.mxu0 0.0
    %1795 = vmatpush2.xpose.msra.mxu0 0.0
    %1796 = vmatprep.subr.mxu0 0.0
    %1797 = vmatpush2.xpose.msra.mxu0 0.0
    %1798 = vmatprep.subr.mxu0 0.0
    %1799 = vmatpush2.xpose.msra.mxu0 0.0
    %1800 = vmatprep.subr.mxu0 0.0
    %1801 = vmatpush2.xpose.msra.mxu0 0.0
    %1802 = vmatprep.mubr.f32.mxu0 0.0
    %1803 = vmatmul.mubr.f32.gmra.mxu0 %v1734
    %v1804 = vpop.f32.mrf.mxu0
    %v1805 = vadd.f32 0.0, %v1804
    %v1806 = vpop.f32.mrf.mxu0
    %1807 = vdwg.mxu0
    %1809 = vrot.lane.b32.xlu0 %v1213, 96
    %v1810 = vpop.permute.xlu0 %1809
    %v1812 = vsel %vm301, %v669, 0
    %v1814 = vsel %vm301, %v1810, 0
    %1816 = vmatprep.subr.mxu0 0.0
    %1817 = vmatpush1.xpose.msra.mxu0 0.0
    %1818 = vmatprep.subr.mxu0 0.0
    %1819 = vmatpush1.xpose.msra.mxu0 0.0
    %1820 = vmatprep.subr.mxu0 0.0
    %1821 = vmatpush1.xpose.msra.mxu0 0.0
    %1822 = vmatprep.subr.mxu0 0.0
    %1823 = vmatpush1.xpose.msra.mxu0 0.0
    %1824 = vmatprep.subr.mxu0 0.0
    %1825 = vmatpush1.xpose.msra.mxu0 0.0
    %1826 = vmatprep.subr.mxu0 0.0
    %1827 = vmatpush1.xpose.msra.mxu0 0.0
    %1828 = vmatprep.subr.mxu0 0.0
    %1829 = vmatpush1.xpose.msra.mxu0 0.0
    %1830 = vmatprep.subr.mxu0 0.0
    %1831 = vmatpush1.xpose.msra.mxu0 0.0
    %1832 = vmatprep.subr.mxu0 0.0
    %1833 = vmatpush1.xpose.msra.mxu0 0.0
    %1834 = vmatprep.subr.mxu0 0.0
    %1835 = vmatpush1.xpose.msra.mxu0 0.0
    %1836 = vmatprep.subr.mxu0 0.0
    %1837 = vmatpush1.xpose.msra.mxu0 0.0
    %1838 = vmatprep.subr.mxu0 0.0
    %1839 = vmatpush1.xpose.msra.mxu0 0.0
    %1840 = vmatprep.subr.mxu0 0.0
    %1841 = vmatpush1.xpose.msra.mxu0 0.0
    %1842 = vmatprep.subr.mxu0 0.0
    %1843 = vmatpush1.xpose.msra.mxu0 0.0
    %1844 = vmatprep.subr.mxu0 0.0
    %1845 = vmatpush1.xpose.msra.mxu0 0.0
    %1846 = vmatprep.subr.mxu0 0.0
    %1847 = vmatpush1.xpose.msra.mxu0 %v1814
    %1848 = vmatprep.subr.mxu0 0.0
    %1849 = vmatpush2.xpose.msra.mxu0 0.0
    %1850 = vmatprep.subr.mxu0 0.0
    %1851 = vmatpush2.xpose.msra.mxu0 0.0
    %1852 = vmatprep.subr.mxu0 0.0
    %1853 = vmatpush2.xpose.msra.mxu0 0.0
    %1854 = vmatprep.subr.mxu0 0.0
    %1855 = vmatpush2.xpose.msra.mxu0 0.0
    %1856 = vmatprep.subr.mxu0 0.0
    %1857 = vmatpush2.xpose.msra.mxu0 0.0
    %1858 = vmatprep.subr.mxu0 0.0
    %1859 = vmatpush2.xpose.msra.mxu0 0.0
    %1860 = vmatprep.subr.mxu0 0.0
    %1861 = vmatpush2.xpose.msra.mxu0 0.0
    %1862 = vmatprep.subr.mxu0 0.0
    %1863 = vmatpush2.xpose.msra.mxu0 0.0
    %1864 = vmatprep.subr.mxu0 0.0
    %1865 = vmatpush2.xpose.msra.mxu0 0.0
    %1866 = vmatprep.subr.mxu0 0.0
    %1867 = vmatpush2.xpose.msra.mxu0 0.0
    %1868 = vmatprep.subr.mxu0 0.0
    %1869 = vmatpush2.xpose.msra.mxu0 0.0
    %1870 = vmatprep.subr.mxu0 0.0
    %1871 = vmatpush2.xpose.msra.mxu0 0.0
    %1872 = vmatprep.subr.mxu0 0.0
    %1873 = vmatpush2.xpose.msra.mxu0 0.0
    %1874 = vmatprep.subr.mxu0 0.0
    %1875 = vmatpush2.xpose.msra.mxu0 0.0
    %1876 = vmatprep.subr.mxu0 0.0
    %1877 = vmatpush2.xpose.msra.mxu0 0.0
    %1878 = vmatprep.subr.mxu0 0.0
    %1879 = vmatpush2.xpose.msra.mxu0 0.0
    %1880 = vmatprep.mubr.f32.mxu0 0.0
    %1881 = vmatmul.mubr.f32.gmra.mxu0 %v1812
    %v1882 = vpop.f32.mrf.mxu0
    %v1883 = vadd.f32 0.0, %v1882
    %v1884 = vpop.f32.mrf.mxu0
    %1885 = vdwg.mxu0
    %1887 = vrot.lane.b32.xlu0 %v1215, 96
    %v1888 = vpop.permute.xlu0 %1887
    %v1890 = vsel %vm301, %v671, 0
    %v1892 = vsel %vm301, %v1888, 0
    %1894 = vmatprep.subr.mxu0 0.0
    %1895 = vmatpush1.xpose.msra.mxu0 0.0
    %1896 = vmatprep.subr.mxu0 0.0
    %1897 = vmatpush1.xpose.msra.mxu0 0.0
    %1898 = vmatprep.subr.mxu0 0.0
    %1899 = vmatpush1.xpose.msra.mxu0 0.0
    %1900 = vmatprep.subr.mxu0 0.0
    %1901 = vmatpush1.xpose.msra.mxu0 0.0
    %1902 = vmatprep.subr.mxu0 0.0
    %1903 = vmatpush1.xpose.msra.mxu0 0.0
    %1904 = vmatprep.subr.mxu0 0.0
    %1905 = vmatpush1.xpose.msra.mxu0 0.0
    %1906 = vmatprep.subr.mxu0 0.0
    %1907 = vmatpush1.xpose.msra.mxu0 0.0
    %1908 = vmatprep.subr.mxu0 0.0
    %1909 = vmatpush1.xpose.msra.mxu0 0.0
    %1910 = vmatprep.subr.mxu0 0.0
    %1911 = vmatpush1.xpose.msra.mxu0 0.0
    %1912 = vmatprep.subr.mxu0 0.0
    %1913 = vmatpush1.xpose.msra.mxu0 0.0
    %1914 = vmatprep.subr.mxu0 0.0
    %1915 = vmatpush1.xpose.msra.mxu0 0.0
    %1916 = vmatprep.subr.mxu0 0.0
    %1917 = vmatpush1.xpose.msra.mxu0 0.0
    %1918 = vmatprep.subr.mxu0 0.0
    %1919 = vmatpush1.xpose.msra.mxu0 0.0
    %1920 = vmatprep.subr.mxu0 0.0
    %1921 = vmatpush1.xpose.msra.mxu0 0.0
    %1922 = vmatprep.subr.mxu0 0.0
    %1923 = vmatpush1.xpose.msra.mxu0 0.0
    %1924 = vmatprep.subr.mxu0 0.0
    %1925 = vmatpush1.xpose.msra.mxu0 %v1892
    %1926 = vmatprep.subr.mxu0 0.0
    %1927 = vmatpush2.xpose.msra.mxu0 0.0
    %1928 = vmatprep.subr.mxu0 0.0
    %1929 = vmatpush2.xpose.msra.mxu0 0.0
    %1930 = vmatprep.subr.mxu0 0.0
    %1931 = vmatpush2.xpose.msra.mxu0 0.0
    %1932 = vmatprep.subr.mxu0 0.0
    %1933 = vmatpush2.xpose.msra.mxu0 0.0
    %1934 = vmatprep.subr.mxu0 0.0
    %1935 = vmatpush2.xpose.msra.mxu0 0.0
    %1936 = vmatprep.subr.mxu0 0.0
    %1937 = vmatpush2.xpose.msra.mxu0 0.0
    %1938 = vmatprep.subr.mxu0 0.0
    %1939 = vmatpush2.xpose.msra.mxu0 0.0
    %1940 = vmatprep.subr.mxu0 0.0
    %1941 = vmatpush2.xpose.msra.mxu0 0.0
    %1942 = vmatprep.subr.mxu0 0.0
    %1943 = vmatpush2.xpose.msra.mxu0 0.0
    %1944 = vmatprep.subr.mxu0 0.0
    %1945 = vmatpush2.xpose.msra.mxu0 0.0
    %1946 = vmatprep.subr.mxu0 0.0
    %1947 = vmatpush2.xpose.msra.mxu0 0.0
    %1948 = vmatprep.subr.mxu0 0.0
    %1949 = vmatpush2.xpose.msra.mxu0 0.0
    %1950 = vmatprep.subr.mxu0 0.0
    %1951 = vmatpush2.xpose.msra.mxu0 0.0
    %1952 = vmatprep.subr.mxu0 0.0
    %1953 = vmatpush2.xpose.msra.mxu0 0.0
    %1954 = vmatprep.subr.mxu0 0.0
    %1955 = vmatpush2.xpose.msra.mxu0 0.0
    %1956 = vmatprep.subr.mxu0 0.0
    %1957 = vmatpush2.xpose.msra.mxu0 0.0
    %1958 = vmatprep.mubr.f32.mxu0 0.0
    %1959 = vmatmul.mubr.f32.gmra.mxu0 %v1890
    %v1960 = vpop.f32.mrf.mxu0
    %v1961 = vadd.f32 0.0, %v1960
    %v1962 = vpop.f32.mrf.mxu0
    %1963 = vdwg.mxu0
    %1965 = vrot.lane.b32.xlu0 %v1217, 96
    %v1966 = vpop.permute.xlu0 %1965
    %v1968 = vsel %vm301, %v673, 0
    %v1970 = vsel %vm301, %v1966, 0
    %1972 = vmatprep.subr.mxu0 0.0
    %1973 = vmatpush1.xpose.msra.mxu0 0.0
    %1974 = vmatprep.subr.mxu0 0.0
    %1975 = vmatpush1.xpose.msra.mxu0 0.0
    %1976 = vmatprep.subr.mxu0 0.0
    %1977 = vmatpush1.xpose.msra.mxu0 0.0
    %1978 = vmatprep.subr.mxu0 0.0
    %1979 = vmatpush1.xpose.msra.mxu0 0.0
    %1980 = vmatprep.subr.mxu0 0.0
    %1981 = vmatpush1.xpose.msra.mxu0 0.0
    %1982 = vmatprep.subr.mxu0 0.0
    %1983 = vmatpush1.xpose.msra.mxu0 0.0
    %1984 = vmatprep.subr.mxu0 0.0
    %1985 = vmatpush1.xpose.msra.mxu0 0.0
    %1986 = vmatprep.subr.mxu0 0.0
    %1987 = vmatpush1.xpose.msra.mxu0 0.0
    %1988 = vmatprep.subr.mxu0 0.0
    %1989 = vmatpush1.xpose.msra.mxu0 0.0
    %1990 = vmatprep.subr.mxu0 0.0
    %1991 = vmatpush1.xpose.msra.mxu0 0.0
    %1992 = vmatprep.subr.mxu0 0.0
    %1993 = vmatpush1.xpose.msra.mxu0 0.0
    %1994 = vmatprep.subr.mxu0 0.0
    %1995 = vmatpush1.xpose.msra.mxu0 0.0
    %1996 = vmatprep.subr.mxu0 0.0
    %1997 = vmatpush1.xpose.msra.mxu0 0.0
    %1998 = vmatprep.subr.mxu0 0.0
    %1999 = vmatpush1.xpose.msra.mxu0 0.0
    %2000 = vmatprep.subr.mxu0 0.0
    %2001 = vmatpush1.xpose.msra.mxu0 0.0
    %2002 = vmatprep.subr.mxu0 0.0
    %2003 = vmatpush1.xpose.msra.mxu0 %v1970
    %2004 = vmatprep.subr.mxu0 0.0
    %2005 = vmatpush2.xpose.msra.mxu0 0.0
    %2006 = vmatprep.subr.mxu0 0.0
    %2007 = vmatpush2.xpose.msra.mxu0 0.0
    %2008 = vmatprep.subr.mxu0 0.0
    %2009 = vmatpush2.xpose.msra.mxu0 0.0
    %2010 = vmatprep.subr.mxu0 0.0
    %2011 = vmatpush2.xpose.msra.mxu0 0.0
    %2012 = vmatprep.subr.mxu0 0.0
    %2013 = vmatpush2.xpose.msra.mxu0 0.0
    %2014 = vmatprep.subr.mxu0 0.0
    %2015 = vmatpush2.xpose.msra.mxu0 0.0
    %2016 = vmatprep.subr.mxu0 0.0
    %2017 = vmatpush2.xpose.msra.mxu0 0.0
    %2018 = vmatprep.subr.mxu0 0.0
    %2019 = vmatpush2.xpose.msra.mxu0 0.0
    %2020 = vmatprep.subr.mxu0 0.0
    %2021 = vmatpush2.xpose.msra.mxu0 0.0
    %2022 = vmatprep.subr.mxu0 0.0
    %2023 = vmatpush2.xpose.msra.mxu0 0.0
    %2024 = vmatprep.subr.mxu0 0.0
    %2025 = vmatpush2.xpose.msra.mxu0 0.0
    %2026 = vmatprep.subr.mxu0 0.0
    %2027 = vmatpush2.xpose.msra.mxu0 0.0
    %2028 = vmatprep.subr.mxu0 0.0
    %2029 = vmatpush2.xpose.msra.mxu0 0.0
    %2030 = vmatprep.subr.mxu0 0.0
    %2031 = vmatpush2.xpose.msra.mxu0 0.0
    %2032 = vmatprep.subr.mxu0 0.0
    %2033 = vmatpush2.xpose.msra.mxu0 0.0
    %2034 = vmatprep.subr.mxu0 0.0
    %2035 = vmatpush2.xpose.msra.mxu0 0.0
    %2036 = vmatprep.mubr.f32.mxu0 0.0
    %2037 = vmatmul.mubr.f32.gmra.mxu0 %v1968
    %v2038 = vpop.f32.mrf.mxu0
    %v2039 = vadd.f32 0.0, %v2038
    %v2040 = vpop.f32.mrf.mxu0
    %2041 = vdwg.mxu0
    %2043 = vrot.lane.b32.xlu0 %v1219, 96
    %v2044 = vpop.permute.xlu0 %2043
    %v2046 = vsel %vm301, %v675, 0
    %v2048 = vsel %vm301, %v2044, 0
    %2050 = vmatprep.subr.mxu0 0.0
    %2051 = vmatpush1.xpose.msra.mxu0 0.0
    %2052 = vmatprep.subr.mxu0 0.0
    %2053 = vmatpush1.xpose.msra.mxu0 0.0
    %2054 = vmatprep.subr.mxu0 0.0
    %2055 = vmatpush1.xpose.msra.mxu0 0.0
    %2056 = vmatprep.subr.mxu0 0.0
    %2057 = vmatpush1.xpose.msra.mxu0 0.0
    %2058 = vmatprep.subr.mxu0 0.0
    %2059 = vmatpush1.xpose.msra.mxu0 0.0
    %2060 = vmatprep.subr.mxu0 0.0
    %2061 = vmatpush1.xpose.msra.mxu0 0.0
    %2062 = vmatprep.subr.mxu0 0.0
    %2063 = vmatpush1.xpose.msra.mxu0 0.0
    %2064 = vmatprep.subr.mxu0 0.0
    %2065 = vmatpush1.xpose.msra.mxu0 0.0
    %2066 = vmatprep.subr.mxu0 0.0
    %2067 = vmatpush1.xpose.msra.mxu0 0.0
    %2068 = vmatprep.subr.mxu0 0.0
    %2069 = vmatpush1.xpose.msra.mxu0 0.0
    %2070 = vmatprep.subr.mxu0 0.0
    %2071 = vmatpush1.xpose.msra.mxu0 0.0
    %2072 = vmatprep.subr.mxu0 0.0
    %2073 = vmatpush1.xpose.msra.mxu0 0.0
    %2074 = vmatprep.subr.mxu0 0.0
    %2075 = vmatpush1.xpose.msra.mxu0 0.0
    %2076 = vmatprep.subr.mxu0 0.0
    %2077 = vmatpush1.xpose.msra.mxu0 0.0
    %2078 = vmatprep.subr.mxu0 0.0
    %2079 = vmatpush1.xpose.msra.mxu0 0.0
    %2080 = vmatprep.subr.mxu0 0.0
    %2081 = vmatpush1.xpose.msra.mxu0 %v2048
    %2082 = vmatprep.subr.mxu0 0.0
    %2083 = vmatpush2.xpose.msra.mxu0 0.0
    %2084 = vmatprep.subr.mxu0 0.0
    %2085 = vmatpush2.xpose.msra.mxu0 0.0
    %2086 = vmatprep.subr.mxu0 0.0
    %2087 = vmatpush2.xpose.msra.mxu0 0.0
    %2088 = vmatprep.subr.mxu0 0.0
    %2089 = vmatpush2.xpose.msra.mxu0 0.0
    %2090 = vmatprep.subr.mxu0 0.0
    %2091 = vmatpush2.xpose.msra.mxu0 0.0
    %2092 = vmatprep.subr.mxu0 0.0
    %2093 = vmatpush2.xpose.msra.mxu0 0.0
    %2094 = vmatprep.subr.mxu0 0.0
    %2095 = vmatpush2.xpose.msra.mxu0 0.0
    %2096 = vmatprep.subr.mxu0 0.0
    %2097 = vmatpush2.xpose.msra.mxu0 0.0
    %2098 = vmatprep.subr.mxu0 0.0
    %2099 = vmatpush2.xpose.msra.mxu0 0.0
    %2100 = vmatprep.subr.mxu0 0.0
    %2101 = vmatpush2.xpose.msra.mxu0 0.0
    %2102 = vmatprep.subr.mxu0 0.0
    %2103 = vmatpush2.xpose.msra.mxu0 0.0
    %2104 = vmatprep.subr.mxu0 0.0
    %2105 = vmatpush2.xpose.msra.mxu0 0.0
    %2106 = vmatprep.subr.mxu0 0.0
    %2107 = vmatpush2.xpose.msra.mxu0 0.0
    %2108 = vmatprep.subr.mxu0 0.0
    %2109 = vmatpush2.xpose.msra.mxu0 0.0
    %2110 = vmatprep.subr.mxu0 0.0
    %2111 = vmatpush2.xpose.msra.mxu0 0.0
    %2112 = vmatprep.subr.mxu0 0.0
    %2113 = vmatpush2.xpose.msra.mxu0 0.0
    %2114 = vmatprep.mubr.f32.mxu0 0.0
    %2115 = vmatmul.mubr.f32.gmra.mxu0 %v2046
    %v2116 = vpop.f32.mrf.mxu0
    %v2117 = vadd.f32 0.0, %v2116
    %v2118 = vpop.f32.mrf.mxu0
    %2119 = vdwg.mxu0
    %2121 = vrot.lane.b32.xlu0 %v1221, 96
    %v2122 = vpop.permute.xlu0 %2121
    %v2124 = vsel %vm301, %v677, 0
    %v2126 = vsel %vm301, %v2122, 0
    %2128 = vmatprep.subr.mxu0 0.0
    %2129 = vmatpush1.xpose.msra.mxu0 0.0
    %2130 = vmatprep.subr.mxu0 0.0
    %2131 = vmatpush1.xpose.msra.mxu0 0.0
    %2132 = vmatprep.subr.mxu0 0.0
    %2133 = vmatpush1.xpose.msra.mxu0 0.0
    %2134 = vmatprep.subr.mxu0 0.0
    %2135 = vmatpush1.xpose.msra.mxu0 0.0
    %2136 = vmatprep.subr.mxu0 0.0
    %2137 = vmatpush1.xpose.msra.mxu0 0.0
    %2138 = vmatprep.subr.mxu0 0.0
    %2139 = vmatpush1.xpose.msra.mxu0 0.0
    %2140 = vmatprep.subr.mxu0 0.0
    %2141 = vmatpush1.xpose.msra.mxu0 0.0
    %2142 = vmatprep.subr.mxu0 0.0
    %2143 = vmatpush1.xpose.msra.mxu0 0.0
    %2144 = vmatprep.subr.mxu0 0.0
    %2145 = vmatpush1.xpose.msra.mxu0 0.0
    %2146 = vmatprep.subr.mxu0 0.0
    %2147 = vmatpush1.xpose.msra.mxu0 0.0
    %2148 = vmatprep.subr.mxu0 0.0
    %2149 = vmatpush1.xpose.msra.mxu0 0.0
    %2150 = vmatprep.subr.mxu0 0.0
    %2151 = vmatpush1.xpose.msra.mxu0 0.0
    %2152 = vmatprep.subr.mxu0 0.0
    %2153 = vmatpush1.xpose.msra.mxu0 0.0
    %2154 = vmatprep.subr.mxu0 0.0
    %2155 = vmatpush1.xpose.msra.mxu0 0.0
    %2156 = vmatprep.subr.mxu0 0.0
    %2157 = vmatpush1.xpose.msra.mxu0 0.0
    %2158 = vmatprep.subr.mxu0 0.0
    %2159 = vmatpush1.xpose.msra.mxu0 %v2126
    %2160 = vmatprep.subr.mxu0 0.0
    %2161 = vmatpush2.xpose.msra.mxu0 0.0
    %2162 = vmatprep.subr.mxu0 0.0
    %2163 = vmatpush2.xpose.msra.mxu0 0.0
    %2164 = vmatprep.subr.mxu0 0.0
    %2165 = vmatpush2.xpose.msra.mxu0 0.0
    %2166 = vmatprep.subr.mxu0 0.0
    %2167 = vmatpush2.xpose.msra.mxu0 0.0
    %2168 = vmatprep.subr.mxu0 0.0
    %2169 = vmatpush2.xpose.msra.mxu0 0.0
    %2170 = vmatprep.subr.mxu0 0.0
    %2171 = vmatpush2.xpose.msra.mxu0 0.0
    %2172 = vmatprep.subr.mxu0 0.0
    %2173 = vmatpush2.xpose.msra.mxu0 0.0
    %2174 = vmatprep.subr.mxu0 0.0
    %2175 = vmatpush2.xpose.msra.mxu0 0.0
    %2176 = vmatprep.subr.mxu0 0.0
    %2177 = vmatpush2.xpose.msra.mxu0 0.0
    %2178 = vmatprep.subr.mxu0 0.0
    %2179 = vmatpush2.xpose.msra.mxu0 0.0
    %2180 = vmatprep.subr.mxu0 0.0
    %2181 = vmatpush2.xpose.msra.mxu0 0.0
    %2182 = vmatprep.subr.mxu0 0.0
    %2183 = vmatpush2.xpose.msra.mxu0 0.0
    %2184 = vmatprep.subr.mxu0 0.0
    %2185 = vmatpush2.xpose.msra.mxu0 0.0
    %2186 = vmatprep.subr.mxu0 0.0
    %2187 = vmatpush2.xpose.msra.mxu0 0.0
    %2188 = vmatprep.subr.mxu0 0.0
    %2189 = vmatpush2.xpose.msra.mxu0 0.0
    %2190 = vmatprep.subr.mxu0 0.0
    %2191 = vmatpush2.xpose.msra.mxu0 0.0
    %2192 = vmatprep.mubr.f32.mxu0 0.0
    %2193 = vmatmul.mubr.f32.gmra.mxu0 %v2124
    %v2194 = vpop.f32.mrf.mxu0
    %v2195 = vadd.f32 0.0, %v2194
    %v2196 = vpop.f32.mrf.mxu0
    %2197 = vdwg.mxu0
    %2199 = vrot.lane.b32.xlu0 %v1223, 96
    %v2200 = vpop.permute.xlu0 %2199
    %v2202 = vsel %vm301, %v679, 0
    %v2204 = vsel %vm301, %v2200, 0
    %2206 = vmatprep.subr.mxu0 0.0
    %2207 = vmatpush1.xpose.msra.mxu0 0.0
    %2208 = vmatprep.subr.mxu0 0.0
    %2209 = vmatpush1.xpose.msra.mxu0 0.0
    %2210 = vmatprep.subr.mxu0 0.0
    %2211 = vmatpush1.xpose.msra.mxu0 0.0
    %2212 = vmatprep.subr.mxu0 0.0
    %2213 = vmatpush1.xpose.msra.mxu0 0.0
    %2214 = vmatprep.subr.mxu0 0.0
    %2215 = vmatpush1.xpose.msra.mxu0 0.0
    %2216 = vmatprep.subr.mxu0 0.0
    %2217 = vmatpush1.xpose.msra.mxu0 0.0
    %2218 = vmatprep.subr.mxu0 0.0
    %2219 = vmatpush1.xpose.msra.mxu0 0.0
    %2220 = vmatprep.subr.mxu0 0.0
    %2221 = vmatpush1.xpose.msra.mxu0 0.0
    %2222 = vmatprep.subr.mxu0 0.0
    %2223 = vmatpush1.xpose.msra.mxu0 0.0
    %2224 = vmatprep.subr.mxu0 0.0
    %2225 = vmatpush1.xpose.msra.mxu0 0.0
    %2226 = vmatprep.subr.mxu0 0.0
    %2227 = vmatpush1.xpose.msra.mxu0 0.0
    %2228 = vmatprep.subr.mxu0 0.0
    %2229 = vmatpush1.xpose.msra.mxu0 0.0
    %2230 = vmatprep.subr.mxu0 0.0
    %2231 = vmatpush1.xpose.msra.mxu0 0.0
    %2232 = vmatprep.subr.mxu0 0.0
    %2233 = vmatpush1.xpose.msra.mxu0 0.0
    %2234 = vmatprep.subr.mxu0 0.0
    %2235 = vmatpush1.xpose.msra.mxu0 0.0
    %2236 = vmatprep.subr.mxu0 0.0
    %2237 = vmatpush1.xpose.msra.mxu0 %v2204
    %2238 = vmatprep.subr.mxu0 0.0
    %2239 = vmatpush2.xpose.msra.mxu0 0.0
    %2240 = vmatprep.subr.mxu0 0.0
    %2241 = vmatpush2.xpose.msra.mxu0 0.0
    %2242 = vmatprep.subr.mxu0 0.0
    %2243 = vmatpush2.xpose.msra.mxu0 0.0
    %2244 = vmatprep.subr.mxu0 0.0
    %2245 = vmatpush2.xpose.msra.mxu0 0.0
    %2246 = vmatprep.subr.mxu0 0.0
    %2247 = vmatpush2.xpose.msra.mxu0 0.0
    %2248 = vmatprep.subr.mxu0 0.0
    %2249 = vmatpush2.xpose.msra.mxu0 0.0
    %2250 = vmatprep.subr.mxu0 0.0
    %2251 = vmatpush2.xpose.msra.mxu0 0.0
    %2252 = vmatprep.subr.mxu0 0.0
    %2253 = vmatpush2.xpose.msra.mxu0 0.0
    %2254 = vmatprep.subr.mxu0 0.0
    %2255 = vmatpush2.xpose.msra.mxu0 0.0
    %2256 = vmatprep.subr.mxu0 0.0
    %2257 = vmatpush2.xpose.msra.mxu0 0.0
    %2258 = vmatprep.subr.mxu0 0.0
    %2259 = vmatpush2.xpose.msra.mxu0 0.0
    %2260 = vmatprep.subr.mxu0 0.0
    %2261 = vmatpush2.xpose.msra.mxu0 0.0
    %2262 = vmatprep.subr.mxu0 0.0
    %2263 = vmatpush2.xpose.msra.mxu0 0.0
    %2264 = vmatprep.subr.mxu0 0.0
    %2265 = vmatpush2.xpose.msra.mxu0 0.0
    %2266 = vmatprep.subr.mxu0 0.0
    %2267 = vmatpush2.xpose.msra.mxu0 0.0
    %2268 = vmatprep.subr.mxu0 0.0
    %2269 = vmatpush2.xpose.msra.mxu0 0.0
    %2270 = vmatprep.mubr.f32.mxu0 0.0
    %2271 = vmatmul.mubr.f32.gmra.mxu0 %v2202
    %v2272 = vpop.f32.mrf.mxu0
    %v2273 = vadd.f32 0.0, %v2272
    %v2274 = vpop.f32.mrf.mxu0
    %2275 = vdwg.mxu0
    %2277 = vrot.lane.b32.xlu0 %v1225, 96
    %v2278 = vpop.permute.xlu0 %2277
    %v2280 = vsel %vm301, %v681, 0
    %v2282 = vsel %vm301, %v2278, 0
    %2284 = vmatprep.subr.mxu0 0.0
    %2285 = vmatpush1.xpose.msra.mxu0 0.0
    %2286 = vmatprep.subr.mxu0 0.0
    %2287 = vmatpush1.xpose.msra.mxu0 0.0
    %2288 = vmatprep.subr.mxu0 0.0
    %2289 = vmatpush1.xpose.msra.mxu0 0.0
    %2290 = vmatprep.subr.mxu0 0.0
    %2291 = vmatpush1.xpose.msra.mxu0 0.0
    %2292 = vmatprep.subr.mxu0 0.0
    %2293 = vmatpush1.xpose.msra.mxu0 0.0
    %2294 = vmatprep.subr.mxu0 0.0
    %2295 = vmatpush1.xpose.msra.mxu0 0.0
    %2296 = vmatprep.subr.mxu0 0.0
    %2297 = vmatpush1.xpose.msra.mxu0 0.0
    %2298 = vmatprep.subr.mxu0 0.0
    %2299 = vmatpush1.xpose.msra.mxu0 0.0
    %2300 = vmatprep.subr.mxu0 0.0
    %2301 = vmatpush1.xpose.msra.mxu0 0.0
    %2302 = vmatprep.subr.mxu0 0.0
    %2303 = vmatpush1.xpose.msra.mxu0 0.0
    %2304 = vmatprep.subr.mxu0 0.0
    %2305 = vmatpush1.xpose.msra.mxu0 0.0
    %2306 = vmatprep.subr.mxu0 0.0
    %2307 = vmatpush1.xpose.msra.mxu0 0.0
    %2308 = vmatprep.subr.mxu0 0.0
    %2309 = vmatpush1.xpose.msra.mxu0 0.0
    %2310 = vmatprep.subr.mxu0 0.0
    %2311 = vmatpush1.xpose.msra.mxu0 0.0
    %2312 = vmatprep.subr.mxu0 0.0
    %2313 = vmatpush1.xpose.msra.mxu0 0.0
    %2314 = vmatprep.subr.mxu0 0.0
    %2315 = vmatpush1.xpose.msra.mxu0 %v2282
    %2316 = vmatprep.subr.mxu0 0.0
    %2317 = vmatpush2.xpose.msra.mxu0 0.0
    %2318 = vmatprep.subr.mxu0 0.0
    %2319 = vmatpush2.xpose.msra.mxu0 0.0
    %2320 = vmatprep.subr.mxu0 0.0
    %2321 = vmatpush2.xpose.msra.mxu0 0.0
    %2322 = vmatprep.subr.mxu0 0.0
    %2323 = vmatpush2.xpose.msra.mxu0 0.0
    %2324 = vmatprep.subr.mxu0 0.0
    %2325 = vmatpush2.xpose.msra.mxu0 0.0
    %2326 = vmatprep.subr.mxu0 0.0
    %2327 = vmatpush2.xpose.msra.mxu0 0.0
    %2328 = vmatprep.subr.mxu0 0.0
    %2329 = vmatpush2.xpose.msra.mxu0 0.0
    %2330 = vmatprep.subr.mxu0 0.0
    %2331 = vmatpush2.xpose.msra.mxu0 0.0
    %2332 = vmatprep.subr.mxu0 0.0
    %2333 = vmatpush2.xpose.msra.mxu0 0.0
    %2334 = vmatprep.subr.mxu0 0.0
    %2335 = vmatpush2.xpose.msra.mxu0 0.0
    %2336 = vmatprep.subr.mxu0 0.0
    %2337 = vmatpush2.xpose.msra.mxu0 0.0
    %2338 = vmatprep.subr.mxu0 0.0
    %2339 = vmatpush2.xpose.msra.mxu0 0.0
    %2340 = vmatprep.subr.mxu0 0.0
    %2341 = vmatpush2.xpose.msra.mxu0 0.0
    %2342 = vmatprep.subr.mxu0 0.0
    %2343 = vmatpush2.xpose.msra.mxu0 0.0
    %2344 = vmatprep.subr.mxu0 0.0
    %2345 = vmatpush2.xpose.msra.mxu0 0.0
    %2346 = vmatprep.subr.mxu0 0.0
    %2347 = vmatpush2.xpose.msra.mxu0 0.0
    %2348 = vmatprep.mubr.f32.mxu0 0.0
    %2349 = vmatmul.mubr.f32.gmra.mxu0 %v2280
    %v2350 = vpop.f32.mrf.mxu0
    %v2351 = vadd.f32 0.0, %v2350
    %v2352 = vpop.f32.mrf.mxu0
    %2353 = vdwg.mxu0
    %2355 = vrot.lane.b32.xlu0 %v1227, 96
    %v2356 = vpop.permute.xlu0 %2355
    %v2358 = vsel %vm301, %v683, 0
    %v2360 = vsel %vm301, %v2356, 0
    %2362 = vmatprep.subr.mxu0 0.0
    %2363 = vmatpush1.xpose.msra.mxu0 0.0
    %2364 = vmatprep.subr.mxu0 0.0
    %2365 = vmatpush1.xpose.msra.mxu0 0.0
    %2366 = vmatprep.subr.mxu0 0.0
    %2367 = vmatpush1.xpose.msra.mxu0 0.0
    %2368 = vmatprep.subr.mxu0 0.0
    %2369 = vmatpush1.xpose.msra.mxu0 0.0
    %2370 = vmatprep.subr.mxu0 0.0
    %2371 = vmatpush1.xpose.msra.mxu0 0.0
    %2372 = vmatprep.subr.mxu0 0.0
    %2373 = vmatpush1.xpose.msra.mxu0 0.0
    %2374 = vmatprep.subr.mxu0 0.0
    %2375 = vmatpush1.xpose.msra.mxu0 0.0
    %2376 = vmatprep.subr.mxu0 0.0
    %2377 = vmatpush1.xpose.msra.mxu0 0.0
    %2378 = vmatprep.subr.mxu0 0.0
    %2379 = vmatpush1.xpose.msra.mxu0 0.0
    %2380 = vmatprep.subr.mxu0 0.0
    %2381 = vmatpush1.xpose.msra.mxu0 0.0
    %2382 = vmatprep.subr.mxu0 0.0
    %2383 = vmatpush1.xpose.msra.mxu0 0.0
    %2384 = vmatprep.subr.mxu0 0.0
    %2385 = vmatpush1.xpose.msra.mxu0 0.0
    %2386 = vmatprep.subr.mxu0 0.0
    %2387 = vmatpush1.xpose.msra.mxu0 0.0
    %2388 = vmatprep.subr.mxu0 0.0
    %2389 = vmatpush1.xpose.msra.mxu0 0.0
    %2390 = vmatprep.subr.mxu0 0.0
    %2391 = vmatpush1.xpose.msra.mxu0 0.0
    %2392 = vmatprep.subr.mxu0 0.0
    %2393 = vmatpush1.xpose.msra.mxu0 %v2360
    %2394 = vmatprep.subr.mxu0 0.0
    %2395 = vmatpush2.xpose.msra.mxu0 0.0
    %2396 = vmatprep.subr.mxu0 0.0
    %2397 = vmatpush2.xpose.msra.mxu0 0.0
    %2398 = vmatprep.subr.mxu0 0.0
    %2399 = vmatpush2.xpose.msra.mxu0 0.0
    %2400 = vmatprep.subr.mxu0 0.0
    %2401 = vmatpush2.xpose.msra.mxu0 0.0
    %2402 = vmatprep.subr.mxu0 0.0
    %2403 = vmatpush2.xpose.msra.mxu0 0.0
    %2404 = vmatprep.subr.mxu0 0.0
    %2405 = vmatpush2.xpose.msra.mxu0 0.0
    %2406 = vmatprep.subr.mxu0 0.0
    %2407 = vmatpush2.xpose.msra.mxu0 0.0
    %2408 = vmatprep.subr.mxu0 0.0
    %2409 = vmatpush2.xpose.msra.mxu0 0.0
    %2410 = vmatprep.subr.mxu0 0.0
    %2411 = vmatpush2.xpose.msra.mxu0 0.0
    %2412 = vmatprep.subr.mxu0 0.0
    %2413 = vmatpush2.xpose.msra.mxu0 0.0
    %2414 = vmatprep.subr.mxu0 0.0
    %2415 = vmatpush2.xpose.msra.mxu0 0.0
    %2416 = vmatprep.subr.mxu0 0.0
    %2417 = vmatpush2.xpose.msra.mxu0 0.0
    %2418 = vmatprep.subr.mxu0 0.0
    %2419 = vmatpush2.xpose.msra.mxu0 0.0
    %2420 = vmatprep.subr.mxu0 0.0
    %2421 = vmatpush2.xpose.msra.mxu0 0.0
    %2422 = vmatprep.subr.mxu0 0.0
    %2423 = vmatpush2.xpose.msra.mxu0 0.0
    %2424 = vmatprep.subr.mxu0 0.0
    %2425 = vmatpush2.xpose.msra.mxu0 0.0
    %2426 = vmatprep.mubr.f32.mxu0 0.0
    %2427 = vmatmul.mubr.f32.gmra.mxu0 %v2358
    %v2428 = vpop.f32.mrf.mxu0
    %v2429 = vadd.f32 0.0, %v2428
    %v2430 = vpop.f32.mrf.mxu0
    %2431 = vdwg.mxu0
    %2433 = vrot.lane.b32.xlu0 %v1229, 96
    %v2434 = vpop.permute.xlu0 %2433
    %v2436 = vsel %vm301, %v685, 0
    %v2438 = vsel %vm301, %v2434, 0
    %2440 = vmatprep.subr.mxu0 0.0
    %2441 = vmatpush1.xpose.msra.mxu0 0.0
    %2442 = vmatprep.subr.mxu0 0.0
    %2443 = vmatpush1.xpose.msra.mxu0 0.0
    %2444 = vmatprep.subr.mxu0 0.0
    %2445 = vmatpush1.xpose.msra.mxu0 0.0
    %2446 = vmatprep.subr.mxu0 0.0
    %2447 = vmatpush1.xpose.msra.mxu0 0.0
    %2448 = vmatprep.subr.mxu0 0.0
    %2449 = vmatpush1.xpose.msra.mxu0 0.0
    %2450 = vmatprep.subr.mxu0 0.0
    %2451 = vmatpush1.xpose.msra.mxu0 0.0
    %2452 = vmatprep.subr.mxu0 0.0
    %2453 = vmatpush1.xpose.msra.mxu0 0.0
    %2454 = vmatprep.subr.mxu0 0.0
    %2455 = vmatpush1.xpose.msra.mxu0 0.0
    %2456 = vmatprep.subr.mxu0 0.0
    %2457 = vmatpush1.xpose.msra.mxu0 0.0
    %2458 = vmatprep.subr.mxu0 0.0
    %2459 = vmatpush1.xpose.msra.mxu0 0.0
    %2460 = vmatprep.subr.mxu0 0.0
    %2461 = vmatpush1.xpose.msra.mxu0 0.0
    %2462 = vmatprep.subr.mxu0 0.0
    %2463 = vmatpush1.xpose.msra.mxu0 0.0
    %2464 = vmatprep.subr.mxu0 0.0
    %2465 = vmatpush1.xpose.msra.mxu0 0.0
    %2466 = vmatprep.subr.mxu0 0.0
    %2467 = vmatpush1.xpose.msra.mxu0 0.0
    %2468 = vmatprep.subr.mxu0 0.0
    %2469 = vmatpush1.xpose.msra.mxu0 0.0
    %2470 = vmatprep.subr.mxu0 0.0
    %2471 = vmatpush1.xpose.msra.mxu0 %v2438
    %2472 = vmatprep.subr.mxu0 0.0
    %2473 = vmatpush2.xpose.msra.mxu0 0.0
    %2474 = vmatprep.subr.mxu0 0.0
    %2475 = vmatpush2.xpose.msra.mxu0 0.0
    %2476 = vmatprep.subr.mxu0 0.0
    %2477 = vmatpush2.xpose.msra.mxu0 0.0
    %2478 = vmatprep.subr.mxu0 0.0
    %2479 = vmatpush2.xpose.msra.mxu0 0.0
    %2480 = vmatprep.subr.mxu0 0.0
    %2481 = vmatpush2.xpose.msra.mxu0 0.0
    %2482 = vmatprep.subr.mxu0 0.0
    %2483 = vmatpush2.xpose.msra.mxu0 0.0
    %2484 = vmatprep.subr.mxu0 0.0
    %2485 = vmatpush2.xpose.msra.mxu0 0.0
    %2486 = vmatprep.subr.mxu0 0.0
    %2487 = vmatpush2.xpose.msra.mxu0 0.0
    %2488 = vmatprep.subr.mxu0 0.0
    %2489 = vmatpush2.xpose.msra.mxu0 0.0
    %2490 = vmatprep.subr.mxu0 0.0
    %2491 = vmatpush2.xpose.msra.mxu0 0.0
    %2492 = vmatprep.subr.mxu0 0.0
    %2493 = vmatpush2.xpose.msra.mxu0 0.0
    %2494 = vmatprep.subr.mxu0 0.0
    %2495 = vmatpush2.xpose.msra.mxu0 0.0
    %2496 = vmatprep.subr.mxu0 0.0
    %2497 = vmatpush2.xpose.msra.mxu0 0.0
    %2498 = vmatprep.subr.mxu0 0.0
    %2499 = vmatpush2.xpose.msra.mxu0 0.0
    %2500 = vmatprep.subr.mxu0 0.0
    %2501 = vmatpush2.xpose.msra.mxu0 0.0
    %2502 = vmatprep.subr.mxu0 0.0
    %2503 = vmatpush2.xpose.msra.mxu0 0.0
    %2504 = vmatprep.mubr.f32.mxu0 0.0
    %2505 = vmatmul.mubr.f32.gmra.mxu0 %v2436
    %v2506 = vpop.f32.mrf.mxu0
    %v2507 = vadd.f32 0.0, %v2506
    %v2508 = vpop.f32.mrf.mxu0
    %2509 = vdwg.mxu0
    %2511 = vrot.lane.b32.xlu0 %v1231, 96
    %v2512 = vpop.permute.xlu0 %2511
    %v2514 = vsel %vm301, %v687, 0
    %v2516 = vsel %vm301, %v2512, 0
    %2518 = vmatprep.subr.mxu0 0.0
    %2519 = vmatpush1.xpose.msra.mxu0 0.0
    %2520 = vmatprep.subr.mxu0 0.0
    %2521 = vmatpush1.xpose.msra.mxu0 0.0
    %2522 = vmatprep.subr.mxu0 0.0
    %2523 = vmatpush1.xpose.msra.mxu0 0.0
    %2524 = vmatprep.subr.mxu0 0.0
    %2525 = vmatpush1.xpose.msra.mxu0 0.0
    %2526 = vmatprep.subr.mxu0 0.0
    %2527 = vmatpush1.xpose.msra.mxu0 0.0
    %2528 = vmatprep.subr.mxu0 0.0
    %2529 = vmatpush1.xpose.msra.mxu0 0.0
    %2530 = vmatprep.subr.mxu0 0.0
    %2531 = vmatpush1.xpose.msra.mxu0 0.0
    %2532 = vmatprep.subr.mxu0 0.0
    %2533 = vmatpush1.xpose.msra.mxu0 0.0
    %2534 = vmatprep.subr.mxu0 0.0
    %2535 = vmatpush1.xpose.msra.mxu0 0.0
    %2536 = vmatprep.subr.mxu0 0.0
    %2537 = vmatpush1.xpose.msra.mxu0 0.0
    %2538 = vmatprep.subr.mxu0 0.0
    %2539 = vmatpush1.xpose.msra.mxu0 0.0
    %2540 = vmatprep.subr.mxu0 0.0
    %2541 = vmatpush1.xpose.msra.mxu0 0.0
    %2542 = vmatprep.subr.mxu0 0.0
    %2543 = vmatpush1.xpose.msra.mxu0 0.0
    %2544 = vmatprep.subr.mxu0 0.0
    %2545 = vmatpush1.xpose.msra.mxu0 0.0
    %2546 = vmatprep.subr.mxu0 0.0
    %2547 = vmatpush1.xpose.msra.mxu0 0.0
    %2548 = vmatprep.subr.mxu0 0.0
    %2549 = vmatpush1.xpose.msra.mxu0 %v2516
    %2550 = vmatprep.subr.mxu0 0.0
    %2551 = vmatpush2.xpose.msra.mxu0 0.0
    %2552 = vmatprep.subr.mxu0 0.0
    %2553 = vmatpush2.xpose.msra.mxu0 0.0
    %2554 = vmatprep.subr.mxu0 0.0
    %2555 = vmatpush2.xpose.msra.mxu0 0.0
    %2556 = vmatprep.subr.mxu0 0.0
    %2557 = vmatpush2.xpose.msra.mxu0 0.0
    %2558 = vmatprep.subr.mxu0 0.0
    %2559 = vmatpush2.xpose.msra.mxu0 0.0
    %2560 = vmatprep.subr.mxu0 0.0
    %2561 = vmatpush2.xpose.msra.mxu0 0.0
    %2562 = vmatprep.subr.mxu0 0.0
    %2563 = vmatpush2.xpose.msra.mxu0 0.0
    %2564 = vmatprep.subr.mxu0 0.0
    %2565 = vmatpush2.xpose.msra.mxu0 0.0
    %2566 = vmatprep.subr.mxu0 0.0
    %2567 = vmatpush2.xpose.msra.mxu0 0.0
    %2568 = vmatprep.subr.mxu0 0.0
    %2569 = vmatpush2.xpose.msra.mxu0 0.0
    %2570 = vmatprep.subr.mxu0 0.0
    %2571 = vmatpush2.xpose.msra.mxu0 0.0
    %2572 = vmatprep.subr.mxu0 0.0
    %2573 = vmatpush2.xpose.msra.mxu0 0.0
    %2574 = vmatprep.subr.mxu0 0.0
    %2575 = vmatpush2.xpose.msra.mxu0 0.0
    %2576 = vmatprep.subr.mxu0 0.0
    %2577 = vmatpush2.xpose.msra.mxu0 0.0
    %2578 = vmatprep.subr.mxu0 0.0
    %2579 = vmatpush2.xpose.msra.mxu0 0.0
    %2580 = vmatprep.subr.mxu0 0.0
    %2581 = vmatpush2.xpose.msra.mxu0 0.0
    %2582 = vmatprep.mubr.f32.mxu0 0.0
    %2583 = vmatmul.mubr.f32.gmra.mxu0 %v2514
    %v2584 = vpop.f32.mrf.mxu0
    %v2585 = vadd.f32 0.0, %v2584
    %v2586 = vpop.f32.mrf.mxu0
    %2587 = vdwg.mxu0
    %2589 = vrot.lane.b32.xlu0 %v1233, 96
    %v2590 = vpop.permute.xlu0 %2589
    %v2592 = vsel %vm301, %v689, 0
    %v2594 = vsel %vm301, %v2590, 0
    %2596 = vmatprep.subr.mxu0 0.0
    %2597 = vmatpush1.xpose.msra.mxu0 0.0
    %2598 = vmatprep.subr.mxu0 0.0
    %2599 = vmatpush1.xpose.msra.mxu0 0.0
    %2600 = vmatprep.subr.mxu0 0.0
    %2601 = vmatpush1.xpose.msra.mxu0 0.0
    %2602 = vmatprep.subr.mxu0 0.0
    %2603 = vmatpush1.xpose.msra.mxu0 0.0
    %2604 = vmatprep.subr.mxu0 0.0
    %2605 = vmatpush1.xpose.msra.mxu0 0.0
    %2606 = vmatprep.subr.mxu0 0.0
    %2607 = vmatpush1.xpose.msra.mxu0 0.0
    %2608 = vmatprep.subr.mxu0 0.0
    %2609 = vmatpush1.xpose.msra.mxu0 0.0
    %2610 = vmatprep.subr.mxu0 0.0
    %2611 = vmatpush1.xpose.msra.mxu0 0.0
    %2612 = vmatprep.subr.mxu0 0.0
    %2613 = vmatpush1.xpose.msra.mxu0 0.0
    %2614 = vmatprep.subr.mxu0 0.0
    %2615 = vmatpush1.xpose.msra.mxu0 0.0
    %2616 = vmatprep.subr.mxu0 0.0
    %2617 = vmatpush1.xpose.msra.mxu0 0.0
    %2618 = vmatprep.subr.mxu0 0.0
    %2619 = vmatpush1.xpose.msra.mxu0 0.0
    %2620 = vmatprep.subr.mxu0 0.0
    %2621 = vmatpush1.xpose.msra.mxu0 0.0
    %2622 = vmatprep.subr.mxu0 0.0
    %2623 = vmatpush1.xpose.msra.mxu0 0.0
    %2624 = vmatprep.subr.mxu0 0.0
    %2625 = vmatpush1.xpose.msra.mxu0 0.0
    %2626 = vmatprep.subr.mxu0 0.0
    %2627 = vmatpush1.xpose.msra.mxu0 %v2594
    %2628 = vmatprep.subr.mxu0 0.0
    %2629 = vmatpush2.xpose.msra.mxu0 0.0
    %2630 = vmatprep.subr.mxu0 0.0
    %2631 = vmatpush2.xpose.msra.mxu0 0.0
    %2632 = vmatprep.subr.mxu0 0.0
    %2633 = vmatpush2.xpose.msra.mxu0 0.0
    %2634 = vmatprep.subr.mxu0 0.0
    %2635 = vmatpush2.xpose.msra.mxu0 0.0
    %2636 = vmatprep.subr.mxu0 0.0
    %2637 = vmatpush2.xpose.msra.mxu0 0.0
    %2638 = vmatprep.subr.mxu0 0.0
    %2639 = vmatpush2.xpose.msra.mxu0 0.0
    %2640 = vmatprep.subr.mxu0 0.0
    %2641 = vmatpush2.xpose.msra.mxu0 0.0
    %2642 = vmatprep.subr.mxu0 0.0
    %2643 = vmatpush2.xpose.msra.mxu0 0.0
    %2644 = vmatprep.subr.mxu0 0.0
    %2645 = vmatpush2.xpose.msra.mxu0 0.0
    %2646 = vmatprep.subr.mxu0 0.0
    %2647 = vmatpush2.xpose.msra.mxu0 0.0
    %2648 = vmatprep.subr.mxu0 0.0
    %2649 = vmatpush2.xpose.msra.mxu0 0.0
    %2650 = vmatprep.subr.mxu0 0.0
    %2651 = vmatpush2.xpose.msra.mxu0 0.0
    %2652 = vmatprep.subr.mxu0 0.0
    %2653 = vmatpush2.xpose.msra.mxu0 0.0
    %2654 = vmatprep.subr.mxu0 0.0
    %2655 = vmatpush2.xpose.msra.mxu0 0.0
    %2656 = vmatprep.subr.mxu0 0.0
    %2657 = vmatpush2.xpose.msra.mxu0 0.0
    %2658 = vmatprep.subr.mxu0 0.0
    %2659 = vmatpush2.xpose.msra.mxu0 0.0
    %2660 = vmatprep.mubr.f32.mxu0 0.0
    %2661 = vmatmul.mubr.f32.gmra.mxu0 %v2592
    %v2662 = vpop.f32.mrf.mxu0
    %v2663 = vadd.f32 0.0, %v2662
    %v2664 = vpop.f32.mrf.mxu0
    %2665 = vdwg.mxu0
    %2667 = vrot.lane.b32.xlu0 %v1235, 96
    %v2668 = vpop.permute.xlu0 %2667
    %v2670 = vsel %vm301, %v691, 0
    %v2672 = vsel %vm301, %v2668, 0
    %2674 = vmatprep.subr.mxu0 0.0
    %2675 = vmatpush1.xpose.msra.mxu0 0.0
    %2676 = vmatprep.subr.mxu0 0.0
    %2677 = vmatpush1.xpose.msra.mxu0 0.0
    %2678 = vmatprep.subr.mxu0 0.0
    %2679 = vmatpush1.xpose.msra.mxu0 0.0
    %2680 = vmatprep.subr.mxu0 0.0
    %2681 = vmatpush1.xpose.msra.mxu0 0.0
    %2682 = vmatprep.subr.mxu0 0.0
    %2683 = vmatpush1.xpose.msra.mxu0 0.0
    %2684 = vmatprep.subr.mxu0 0.0
    %2685 = vmatpush1.xpose.msra.mxu0 0.0
    %2686 = vmatprep.subr.mxu0 0.0
    %2687 = vmatpush1.xpose.msra.mxu0 0.0
    %2688 = vmatprep.subr.mxu0 0.0
    %2689 = vmatpush1.xpose.msra.mxu0 0.0
    %2690 = vmatprep.subr.mxu0 0.0
    %2691 = vmatpush1.xpose.msra.mxu0 0.0
    %2692 = vmatprep.subr.mxu0 0.0
    %2693 = vmatpush1.xpose.msra.mxu0 0.0
    %2694 = vmatprep.subr.mxu0 0.0
    %2695 = vmatpush1.xpose.msra.mxu0 0.0
    %2696 = vmatprep.subr.mxu0 0.0
    %2697 = vmatpush1.xpose.msra.mxu0 0.0
    %2698 = vmatprep.subr.mxu0 0.0
    %2699 = vmatpush1.xpose.msra.mxu0 0.0
    %2700 = vmatprep.subr.mxu0 0.0
    %2701 = vmatpush1.xpose.msra.mxu0 0.0
    %2702 = vmatprep.subr.mxu0 0.0
    %2703 = vmatpush1.xpose.msra.mxu0 0.0
    %2704 = vmatprep.subr.mxu0 0.0
    %2705 = vmatpush1.xpose.msra.mxu0 %v2672
    %2706 = vmatprep.subr.mxu0 0.0
    %2707 = vmatpush2.xpose.msra.mxu0 0.0
    %2708 = vmatprep.subr.mxu0 0.0
    %2709 = vmatpush2.xpose.msra.mxu0 0.0
    %2710 = vmatprep.subr.mxu0 0.0
    %2711 = vmatpush2.xpose.msra.mxu0 0.0
    %2712 = vmatprep.subr.mxu0 0.0
    %2713 = vmatpush2.xpose.msra.mxu0 0.0
    %2714 = vmatprep.subr.mxu0 0.0
    %2715 = vmatpush2.xpose.msra.mxu0 0.0
    %2716 = vmatprep.subr.mxu0 0.0
    %2717 = vmatpush2.xpose.msra.mxu0 0.0
    %2718 = vmatprep.subr.mxu0 0.0
    %2719 = vmatpush2.xpose.msra.mxu0 0.0
    %2720 = vmatprep.subr.mxu0 0.0
    %2721 = vmatpush2.xpose.msra.mxu0 0.0
    %2722 = vmatprep.subr.mxu0 0.0
    %2723 = vmatpush2.xpose.msra.mxu0 0.0
    %2724 = vmatprep.subr.mxu0 0.0
    %2725 = vmatpush2.xpose.msra.mxu0 0.0
    %2726 = vmatprep.subr.mxu0 0.0
    %2727 = vmatpush2.xpose.msra.mxu0 0.0
    %2728 = vmatprep.subr.mxu0 0.0
    %2729 = vmatpush2.xpose.msra.mxu0 0.0
    %2730 = vmatprep.subr.mxu0 0.0
    %2731 = vmatpush2.xpose.msra.mxu0 0.0
    %2732 = vmatprep.subr.mxu0 0.0
    %2733 = vmatpush2.xpose.msra.mxu0 0.0
    %2734 = vmatprep.subr.mxu0 0.0
    %2735 = vmatpush2.xpose.msra.mxu0 0.0
    %2736 = vmatprep.subr.mxu0 0.0
    %2737 = vmatpush2.xpose.msra.mxu0 0.0
    %2738 = vmatprep.mubr.f32.mxu0 0.0
    %2739 = vmatmul.mubr.f32.gmra.mxu0 %v2670
    %v2740 = vpop.f32.mrf.mxu0
    %v2741 = vadd.f32 0.0, %v2740
    %v2742 = vpop.f32.mrf.mxu0
    %2743 = vdwg.mxu0
    %2745 = vrot.lane.b32.xlu0 %v1237, 96
    %v2746 = vpop.permute.xlu0 %2745
    %v2748 = vsel %vm301, %v693, 0
    %v2750 = vsel %vm301, %v2746, 0
    %2752 = vmatprep.subr.mxu0 0.0
    %2753 = vmatpush1.xpose.msra.mxu0 0.0
    %2754 = vmatprep.subr.mxu0 0.0
    %2755 = vmatpush1.xpose.msra.mxu0 0.0
    %2756 = vmatprep.subr.mxu0 0.0
    %2757 = vmatpush1.xpose.msra.mxu0 0.0
    %2758 = vmatprep.subr.mxu0 0.0
    %2759 = vmatpush1.xpose.msra.mxu0 0.0
    %2760 = vmatprep.subr.mxu0 0.0
    %2761 = vmatpush1.xpose.msra.mxu0 0.0
    %2762 = vmatprep.subr.mxu0 0.0
    %2763 = vmatpush1.xpose.msra.mxu0 0.0
    %2764 = vmatprep.subr.mxu0 0.0
    %2765 = vmatpush1.xpose.msra.mxu0 0.0
    %2766 = vmatprep.subr.mxu0 0.0
    %2767 = vmatpush1.xpose.msra.mxu0 0.0
    %2768 = vmatprep.subr.mxu0 0.0
    %2769 = vmatpush1.xpose.msra.mxu0 0.0
    %2770 = vmatprep.subr.mxu0 0.0
    %2771 = vmatpush1.xpose.msra.mxu0 0.0
    %2772 = vmatprep.subr.mxu0 0.0
    %2773 = vmatpush1.xpose.msra.mxu0 0.0
    %2774 = vmatprep.subr.mxu0 0.0
    %2775 = vmatpush1.xpose.msra.mxu0 0.0
    %2776 = vmatprep.subr.mxu0 0.0
    %2777 = vmatpush1.xpose.msra.mxu0 0.0
    %2778 = vmatprep.subr.mxu0 0.0
    %2779 = vmatpush1.xpose.msra.mxu0 0.0
    %2780 = vmatprep.subr.mxu0 0.0
    %2781 = vmatpush1.xpose.msra.mxu0 0.0
    %2782 = vmatprep.subr.mxu0 0.0
    %2783 = vmatpush1.xpose.msra.mxu0 %v2750
    %2784 = vmatprep.subr.mxu0 0.0
    %2785 = vmatpush2.xpose.msra.mxu0 0.0
    %2786 = vmatprep.subr.mxu0 0.0
    %2787 = vmatpush2.xpose.msra.mxu0 0.0
    %2788 = vmatprep.subr.mxu0 0.0
    %2789 = vmatpush2.xpose.msra.mxu0 0.0
    %2790 = vmatprep.subr.mxu0 0.0
    %2791 = vmatpush2.xpose.msra.mxu0 0.0
    %2792 = vmatprep.subr.mxu0 0.0
    %2793 = vmatpush2.xpose.msra.mxu0 0.0
    %2794 = vmatprep.subr.mxu0 0.0
    %2795 = vmatpush2.xpose.msra.mxu0 0.0
    %2796 = vmatprep.subr.mxu0 0.0
    %2797 = vmatpush2.xpose.msra.mxu0 0.0
    %2798 = vmatprep.subr.mxu0 0.0
    %2799 = vmatpush2.xpose.msra.mxu0 0.0
    %2800 = vmatprep.subr.mxu0 0.0
    %2801 = vmatpush2.xpose.msra.mxu0 0.0
    %2802 = vmatprep.subr.mxu0 0.0
    %2803 = vmatpush2.xpose.msra.mxu0 0.0
    %2804 = vmatprep.subr.mxu0 0.0
    %2805 = vmatpush2.xpose.msra.mxu0 0.0
    %2806 = vmatprep.subr.mxu0 0.0
    %2807 = vmatpush2.xpose.msra.mxu0 0.0
    %2808 = vmatprep.subr.mxu0 0.0
    %2809 = vmatpush2.xpose.msra.mxu0 0.0
    %2810 = vmatprep.subr.mxu0 0.0
    %2811 = vmatpush2.xpose.msra.mxu0 0.0
    %2812 = vmatprep.subr.mxu0 0.0
    %2813 = vmatpush2.xpose.msra.mxu0 0.0
    %2814 = vmatprep.subr.mxu0 0.0
    %2815 = vmatpush2.xpose.msra.mxu0 0.0
    %2816 = vmatprep.mubr.f32.mxu0 0.0
    %2817 = vmatmul.mubr.f32.gmra.mxu0 %v2748
    %v2818 = vpop.f32.mrf.mxu0
    %v2819 = vadd.f32 0.0, %v2818
    %v2820 = vpop.f32.mrf.mxu0
    %2821 = vdwg.mxu0
    %2823 = vrot.lane.b32.xlu0 %v1239, 96
    %v2824 = vpop.permute.xlu0 %2823
    %v2826 = vsel %vm301, %v695, 0
    %v2828 = vsel %vm301, %v2824, 0
    %2830 = vmatprep.subr.mxu0 0.0
    %2831 = vmatpush1.xpose.msra.mxu0 0.0
    %2832 = vmatprep.subr.mxu0 0.0
    %2833 = vmatpush1.xpose.msra.mxu0 0.0
    %2834 = vmatprep.subr.mxu0 0.0
    %2835 = vmatpush1.xpose.msra.mxu0 0.0
    %2836 = vmatprep.subr.mxu0 0.0
    %2837 = vmatpush1.xpose.msra.mxu0 0.0
    %2838 = vmatprep.subr.mxu0 0.0
    %2839 = vmatpush1.xpose.msra.mxu0 0.0
    %2840 = vmatprep.subr.mxu0 0.0
    %2841 = vmatpush1.xpose.msra.mxu0 0.0
    %2842 = vmatprep.subr.mxu0 0.0
    %2843 = vmatpush1.xpose.msra.mxu0 0.0
    %2844 = vmatprep.subr.mxu0 0.0
    %2845 = vmatpush1.xpose.msra.mxu0 0.0
    %2846 = vmatprep.subr.mxu0 0.0
    %2847 = vmatpush1.xpose.msra.mxu0 0.0
    %2848 = vmatprep.subr.mxu0 0.0
    %2849 = vmatpush1.xpose.msra.mxu0 0.0
    %2850 = vmatprep.subr.mxu0 0.0
    %2851 = vmatpush1.xpose.msra.mxu0 0.0
    %2852 = vmatprep.subr.mxu0 0.0
    %2853 = vmatpush1.xpose.msra.mxu0 0.0
    %2854 = vmatprep.subr.mxu0 0.0
    %2855 = vmatpush1.xpose.msra.mxu0 0.0
    %2856 = vmatprep.subr.mxu0 0.0
    %2857 = vmatpush1.xpose.msra.mxu0 0.0
    %2858 = vmatprep.subr.mxu0 0.0
    %2859 = vmatpush1.xpose.msra.mxu0 0.0
    %2860 = vmatprep.subr.mxu0 0.0
    %2861 = vmatpush1.xpose.msra.mxu0 %v2828
    %2862 = vmatprep.subr.mxu0 0.0
    %2863 = vmatpush2.xpose.msra.mxu0 0.0
    %2864 = vmatprep.subr.mxu0 0.0
    %2865 = vmatpush2.xpose.msra.mxu0 0.0
    %2866 = vmatprep.subr.mxu0 0.0
    %2867 = vmatpush2.xpose.msra.mxu0 0.0
    %2868 = vmatprep.subr.mxu0 0.0
    %2869 = vmatpush2.xpose.msra.mxu0 0.0
    %2870 = vmatprep.subr.mxu0 0.0
    %2871 = vmatpush2.xpose.msra.mxu0 0.0
    %2872 = vmatprep.subr.mxu0 0.0
    %2873 = vmatpush2.xpose.msra.mxu0 0.0
    %2874 = vmatprep.subr.mxu0 0.0
    %2875 = vmatpush2.xpose.msra.mxu0 0.0
    %2876 = vmatprep.subr.mxu0 0.0
    %2877 = vmatpush2.xpose.msra.mxu0 0.0
    %2878 = vmatprep.subr.mxu0 0.0
    %2879 = vmatpush2.xpose.msra.mxu0 0.0
    %2880 = vmatprep.subr.mxu0 0.0
    %2881 = vmatpush2.xpose.msra.mxu0 0.0
    %2882 = vmatprep.subr.mxu0 0.0
    %2883 = vmatpush2.xpose.msra.mxu0 0.0
    %2884 = vmatprep.subr.mxu0 0.0
    %2885 = vmatpush2.xpose.msra.mxu0 0.0
    %2886 = vmatprep.subr.mxu0 0.0
    %2887 = vmatpush2.xpose.msra.mxu0 0.0
    %2888 = vmatprep.subr.mxu0 0.0
    %2889 = vmatpush2.xpose.msra.mxu0 0.0
    %2890 = vmatprep.subr.mxu0 0.0
    %2891 = vmatpush2.xpose.msra.mxu0 0.0
    %2892 = vmatprep.subr.mxu0 0.0
    %2893 = vmatpush2.xpose.msra.mxu0 0.0
    %2894 = vmatprep.mubr.f32.mxu0 0.0
    %2895 = vmatmul.mubr.f32.gmra.mxu0 %v2826
    %v2896 = vpop.f32.mrf.mxu0
    %v2897 = vadd.f32 0.0, %v2896
    %v2898 = vpop.f32.mrf.mxu0
    %2899 = vdwg.mxu0
    %2901 = vrot.lane.b32.xlu0 %v1241, 96
    %v2902 = vpop.permute.xlu0 %2901
    %v2904 = vsel %vm301, %v697, 0
    %v2906 = vsel %vm301, %v2902, 0
    %2908 = vmatprep.subr.mxu0 0.0
    %2909 = vmatpush1.xpose.msra.mxu0 0.0
    %2910 = vmatprep.subr.mxu0 0.0
    %2911 = vmatpush1.xpose.msra.mxu0 0.0
    %2912 = vmatprep.subr.mxu0 0.0
    %2913 = vmatpush1.xpose.msra.mxu0 0.0
    %2914 = vmatprep.subr.mxu0 0.0
    %2915 = vmatpush1.xpose.msra.mxu0 0.0
    %2916 = vmatprep.subr.mxu0 0.0
    %2917 = vmatpush1.xpose.msra.mxu0 0.0
    %2918 = vmatprep.subr.mxu0 0.0
    %2919 = vmatpush1.xpose.msra.mxu0 0.0
    %2920 = vmatprep.subr.mxu0 0.0
    %2921 = vmatpush1.xpose.msra.mxu0 0.0
    %2922 = vmatprep.subr.mxu0 0.0
    %2923 = vmatpush1.xpose.msra.mxu0 0.0
    %2924 = vmatprep.subr.mxu0 0.0
    %2925 = vmatpush1.xpose.msra.mxu0 0.0
    %2926 = vmatprep.subr.mxu0 0.0
    %2927 = vmatpush1.xpose.msra.mxu0 0.0
    %2928 = vmatprep.subr.mxu0 0.0
    %2929 = vmatpush1.xpose.msra.mxu0 0.0
    %2930 = vmatprep.subr.mxu0 0.0
    %2931 = vmatpush1.xpose.msra.mxu0 0.0
    %2932 = vmatprep.subr.mxu0 0.0
    %2933 = vmatpush1.xpose.msra.mxu0 0.0
    %2934 = vmatprep.subr.mxu0 0.0
    %2935 = vmatpush1.xpose.msra.mxu0 0.0
    %2936 = vmatprep.subr.mxu0 0.0
    %2937 = vmatpush1.xpose.msra.mxu0 0.0
    %2938 = vmatprep.subr.mxu0 0.0
    %2939 = vmatpush1.xpose.msra.mxu0 %v2906
    %2940 = vmatprep.subr.mxu0 0.0
    %2941 = vmatpush2.xpose.msra.mxu0 0.0
    %2942 = vmatprep.subr.mxu0 0.0
    %2943 = vmatpush2.xpose.msra.mxu0 0.0
    %2944 = vmatprep.subr.mxu0 0.0
    %2945 = vmatpush2.xpose.msra.mxu0 0.0
    %2946 = vmatprep.subr.mxu0 0.0
    %2947 = vmatpush2.xpose.msra.mxu0 0.0
    %2948 = vmatprep.subr.mxu0 0.0
    %2949 = vmatpush2.xpose.msra.mxu0 0.0
    %2950 = vmatprep.subr.mxu0 0.0
    %2951 = vmatpush2.xpose.msra.mxu0 0.0
    %2952 = vmatprep.subr.mxu0 0.0
    %2953 = vmatpush2.xpose.msra.mxu0 0.0
    %2954 = vmatprep.subr.mxu0 0.0
    %2955 = vmatpush2.xpose.msra.mxu0 0.0
    %2956 = vmatprep.subr.mxu0 0.0
    %2957 = vmatpush2.xpose.msra.mxu0 0.0
    %2958 = vmatprep.subr.mxu0 0.0
    %2959 = vmatpush2.xpose.msra.mxu0 0.0
    %2960 = vmatprep.subr.mxu0 0.0
    %2961 = vmatpush2.xpose.msra.mxu0 0.0
    %2962 = vmatprep.subr.mxu0 0.0
    %2963 = vmatpush2.xpose.msra.mxu0 0.0
    %2964 = vmatprep.subr.mxu0 0.0
    %2965 = vmatpush2.xpose.msra.mxu0 0.0
    %2966 = vmatprep.subr.mxu0 0.0
    %2967 = vmatpush2.xpose.msra.mxu0 0.0
    %2968 = vmatprep.subr.mxu0 0.0
    %2969 = vmatpush2.xpose.msra.mxu0 0.0
    %2970 = vmatprep.subr.mxu0 0.0
    %2971 = vmatpush2.xpose.msra.mxu0 0.0
    %2972 = vmatprep.mubr.f32.mxu0 0.0
    %2973 = vmatmul.mubr.f32.gmra.mxu0 %v2904
    %v2974 = vpop.f32.mrf.mxu0
    %v2975 = vadd.f32 0.0, %v2974
    %v2976 = vpop.f32.mrf.mxu0
    %2977 = vdwg.mxu0
    %2979 = vrot.lane.b32.xlu0 %v1243, 96
    %v2980 = vpop.permute.xlu0 %2979
    %v2982 = vsel %vm301, %v699, 0
    %v2984 = vsel %vm301, %v2980, 0
    %2986 = vmatprep.subr.mxu0 0.0
    %2987 = vmatpush1.xpose.msra.mxu0 0.0
    %2988 = vmatprep.subr.mxu0 0.0
    %2989 = vmatpush1.xpose.msra.mxu0 0.0
    %2990 = vmatprep.subr.mxu0 0.0
    %2991 = vmatpush1.xpose.msra.mxu0 0.0
    %2992 = vmatprep.subr.mxu0 0.0
    %2993 = vmatpush1.xpose.msra.mxu0 0.0
    %2994 = vmatprep.subr.mxu0 0.0
    %2995 = vmatpush1.xpose.msra.mxu0 0.0
    %2996 = vmatprep.subr.mxu0 0.0
    %2997 = vmatpush1.xpose.msra.mxu0 0.0
    %2998 = vmatprep.subr.mxu0 0.0
    %2999 = vmatpush1.xpose.msra.mxu0 0.0
    %3000 = vmatprep.subr.mxu0 0.0
    %3001 = vmatpush1.xpose.msra.mxu0 0.0
    %3002 = vmatprep.subr.mxu0 0.0
    %3003 = vmatpush1.xpose.msra.mxu0 0.0
    %3004 = vmatprep.subr.mxu0 0.0
    %3005 = vmatpush1.xpose.msra.mxu0 0.0
    %3006 = vmatprep.subr.mxu0 0.0
    %3007 = vmatpush1.xpose.msra.mxu0 0.0
    %3008 = vmatprep.subr.mxu0 0.0
    %3009 = vmatpush1.xpose.msra.mxu0 0.0
    %3010 = vmatprep.subr.mxu0 0.0
    %3011 = vmatpush1.xpose.msra.mxu0 0.0
    %3012 = vmatprep.subr.mxu0 0.0
    %3013 = vmatpush1.xpose.msra.mxu0 0.0
    %3014 = vmatprep.subr.mxu0 0.0
    %3015 = vmatpush1.xpose.msra.mxu0 0.0
    %3016 = vmatprep.subr.mxu0 0.0
    %3017 = vmatpush1.xpose.msra.mxu0 %v2984
    %3018 = vmatprep.subr.mxu0 0.0
    %3019 = vmatpush2.xpose.msra.mxu0 0.0
    %3020 = vmatprep.subr.mxu0 0.0
    %3021 = vmatpush2.xpose.msra.mxu0 0.0
    %3022 = vmatprep.subr.mxu0 0.0
    %3023 = vmatpush2.xpose.msra.mxu0 0.0
    %3024 = vmatprep.subr.mxu0 0.0
    %3025 = vmatpush2.xpose.msra.mxu0 0.0
    %3026 = vmatprep.subr.mxu0 0.0
    %3027 = vmatpush2.xpose.msra.mxu0 0.0
    %3028 = vmatprep.subr.mxu0 0.0
    %3029 = vmatpush2.xpose.msra.mxu0 0.0
    %3030 = vmatprep.subr.mxu0 0.0
    %3031 = vmatpush2.xpose.msra.mxu0 0.0
    %3032 = vmatprep.subr.mxu0 0.0
    %3033 = vmatpush2.xpose.msra.mxu0 0.0
    %3034 = vmatprep.subr.mxu0 0.0
    %3035 = vmatpush2.xpose.msra.mxu0 0.0
    %3036 = vmatprep.subr.mxu0 0.0
    %3037 = vmatpush2.xpose.msra.mxu0 0.0
    %3038 = vmatprep.subr.mxu0 0.0
    %3039 = vmatpush2.xpose.msra.mxu0 0.0
    %3040 = vmatprep.subr.mxu0 0.0
    %3041 = vmatpush2.xpose.msra.mxu0 0.0
    %3042 = vmatprep.subr.mxu0 0.0
    %3043 = vmatpush2.xpose.msra.mxu0 0.0
    %3044 = vmatprep.subr.mxu0 0.0
    %3045 = vmatpush2.xpose.msra.mxu0 0.0
    %3046 = vmatprep.subr.mxu0 0.0
    %3047 = vmatpush2.xpose.msra.mxu0 0.0
    %3048 = vmatprep.subr.mxu0 0.0
    %3049 = vmatpush2.xpose.msra.mxu0 0.0
    %3050 = vmatprep.mubr.f32.mxu0 0.0
    %3051 = vmatmul.mubr.f32.gmra.mxu0 %v2982
    %v3052 = vpop.f32.mrf.mxu0
    %v3053 = vadd.f32 0.0, %v3052
    %v3054 = vpop.f32.mrf.mxu0
    %3055 = vdwg.mxu0
    %3057 = vrot.lane.b32.xlu0 %v1245, 96
    %v3058 = vpop.permute.xlu0 %3057
    %v3060 = vsel %vm301, %v701, 0
    %v3062 = vsel %vm301, %v3058, 0
    %3064 = vmatprep.subr.mxu0 0.0
    %3065 = vmatpush1.xpose.msra.mxu0 0.0
    %3066 = vmatprep.subr.mxu0 0.0
    %3067 = vmatpush1.xpose.msra.mxu0 0.0
    %3068 = vmatprep.subr.mxu0 0.0
    %3069 = vmatpush1.xpose.msra.mxu0 0.0
    %3070 = vmatprep.subr.mxu0 0.0
    %3071 = vmatpush1.xpose.msra.mxu0 0.0
    %3072 = vmatprep.subr.mxu0 0.0
    %3073 = vmatpush1.xpose.msra.mxu0 0.0
    %3074 = vmatprep.subr.mxu0 0.0
    %3075 = vmatpush1.xpose.msra.mxu0 0.0
    %3076 = vmatprep.subr.mxu0 0.0
    %3077 = vmatpush1.xpose.msra.mxu0 0.0
    %3078 = vmatprep.subr.mxu0 0.0
    %3079 = vmatpush1.xpose.msra.mxu0 0.0
    %3080 = vmatprep.subr.mxu0 0.0
    %3081 = vmatpush1.xpose.msra.mxu0 0.0
    %3082 = vmatprep.subr.mxu0 0.0
    %3083 = vmatpush1.xpose.msra.mxu0 0.0
    %3084 = vmatprep.subr.mxu0 0.0
    %3085 = vmatpush1.xpose.msra.mxu0 0.0
    %3086 = vmatprep.subr.mxu0 0.0
    %3087 = vmatpush1.xpose.msra.mxu0 0.0
    %3088 = vmatprep.subr.mxu0 0.0
    %3089 = vmatpush1.xpose.msra.mxu0 0.0
    %3090 = vmatprep.subr.mxu0 0.0
    %3091 = vmatpush1.xpose.msra.mxu0 0.0
    %3092 = vmatprep.subr.mxu0 0.0
    %3093 = vmatpush1.xpose.msra.mxu0 0.0
    %3094 = vmatprep.subr.mxu0 0.0
    %3095 = vmatpush1.xpose.msra.mxu0 %v3062
    %3096 = vmatprep.subr.mxu0 0.0
    %3097 = vmatpush2.xpose.msra.mxu0 0.0
    %3098 = vmatprep.subr.mxu0 0.0
    %3099 = vmatpush2.xpose.msra.mxu0 0.0
    %3100 = vmatprep.subr.mxu0 0.0
    %3101 = vmatpush2.xpose.msra.mxu0 0.0
    %3102 = vmatprep.subr.mxu0 0.0
    %3103 = vmatpush2.xpose.msra.mxu0 0.0
    %3104 = vmatprep.subr.mxu0 0.0
    %3105 = vmatpush2.xpose.msra.mxu0 0.0
    %3106 = vmatprep.subr.mxu0 0.0
    %3107 = vmatpush2.xpose.msra.mxu0 0.0
    %3108 = vmatprep.subr.mxu0 0.0
    %3109 = vmatpush2.xpose.msra.mxu0 0.0
    %3110 = vmatprep.subr.mxu0 0.0
    %3111 = vmatpush2.xpose.msra.mxu0 0.0
    %3112 = vmatprep.subr.mxu0 0.0
    %3113 = vmatpush2.xpose.msra.mxu0 0.0
    %3114 = vmatprep.subr.mxu0 0.0
    %3115 = vmatpush2.xpose.msra.mxu0 0.0
    %3116 = vmatprep.subr.mxu0 0.0
    %3117 = vmatpush2.xpose.msra.mxu0 0.0
    %3118 = vmatprep.subr.mxu0 0.0
    %3119 = vmatpush2.xpose.msra.mxu0 0.0
    %3120 = vmatprep.subr.mxu0 0.0
    %3121 = vmatpush2.xpose.msra.mxu0 0.0
    %3122 = vmatprep.subr.mxu0 0.0
    %3123 = vmatpush2.xpose.msra.mxu0 0.0
    %3124 = vmatprep.subr.mxu0 0.0
    %3125 = vmatpush2.xpose.msra.mxu0 0.0
    %3126 = vmatprep.subr.mxu0 0.0
    %3127 = vmatpush2.xpose.msra.mxu0 0.0
    %3128 = vmatprep.mubr.f32.mxu0 0.0
    %3129 = vmatmul.mubr.f32.gmra.mxu0 %v3060
    %v3130 = vpop.f32.mrf.mxu0
    %v3131 = vadd.f32 0.0, %v3130
    %v3132 = vpop.f32.mrf.mxu0
    %3133 = vdwg.mxu0
    %3135 = vrot.lane.b32.xlu0 %v1247, 96
    %v3136 = vpop.permute.xlu0 %3135
    %v3138 = vsel %vm301, %v703, 0
    %v3140 = vsel %vm301, %v3136, 0
    %3142 = vmatprep.subr.mxu0 0.0
    %3143 = vmatpush1.xpose.msra.mxu0 0.0
    %3144 = vmatprep.subr.mxu0 0.0
    %3145 = vmatpush1.xpose.msra.mxu0 0.0
    %3146 = vmatprep.subr.mxu0 0.0
    %3147 = vmatpush1.xpose.msra.mxu0 0.0
    %3148 = vmatprep.subr.mxu0 0.0
    %3149 = vmatpush1.xpose.msra.mxu0 0.0
    %3150 = vmatprep.subr.mxu0 0.0
    %3151 = vmatpush1.xpose.msra.mxu0 0.0
    %3152 = vmatprep.subr.mxu0 0.0
    %3153 = vmatpush1.xpose.msra.mxu0 0.0
    %3154 = vmatprep.subr.mxu0 0.0
    %3155 = vmatpush1.xpose.msra.mxu0 0.0
    %3156 = vmatprep.subr.mxu0 0.0
    %3157 = vmatpush1.xpose.msra.mxu0 0.0
    %3158 = vmatprep.subr.mxu0 0.0
    %3159 = vmatpush1.xpose.msra.mxu0 0.0
    %3160 = vmatprep.subr.mxu0 0.0
    %3161 = vmatpush1.xpose.msra.mxu0 0.0
    %3162 = vmatprep.subr.mxu0 0.0
    %3163 = vmatpush1.xpose.msra.mxu0 0.0
    %3164 = vmatprep.subr.mxu0 0.0
    %3165 = vmatpush1.xpose.msra.mxu0 0.0
    %3166 = vmatprep.subr.mxu0 0.0
    %3167 = vmatpush1.xpose.msra.mxu0 0.0
    %3168 = vmatprep.subr.mxu0 0.0
    %3169 = vmatpush1.xpose.msra.mxu0 0.0
    %3170 = vmatprep.subr.mxu0 0.0
    %3171 = vmatpush1.xpose.msra.mxu0 0.0
    %3172 = vmatprep.subr.mxu0 0.0
    %3173 = vmatpush1.xpose.msra.mxu0 %v3140
    %3174 = vmatprep.subr.mxu0 0.0
    %3175 = vmatpush2.xpose.msra.mxu0 0.0
    %3176 = vmatprep.subr.mxu0 0.0
    %3177 = vmatpush2.xpose.msra.mxu0 0.0
    %3178 = vmatprep.subr.mxu0 0.0
    %3179 = vmatpush2.xpose.msra.mxu0 0.0
    %3180 = vmatprep.subr.mxu0 0.0
    %3181 = vmatpush2.xpose.msra.mxu0 0.0
    %3182 = vmatprep.subr.mxu0 0.0
    %3183 = vmatpush2.xpose.msra.mxu0 0.0
    %3184 = vmatprep.subr.mxu0 0.0
    %3185 = vmatpush2.xpose.msra.mxu0 0.0
    %3186 = vmatprep.subr.mxu0 0.0
    %3187 = vmatpush2.xpose.msra.mxu0 0.0
    %3188 = vmatprep.subr.mxu0 0.0
    %3189 = vmatpush2.xpose.msra.mxu0 0.0
    %3190 = vmatprep.subr.mxu0 0.0
    %3191 = vmatpush2.xpose.msra.mxu0 0.0
    %3192 = vmatprep.subr.mxu0 0.0
    %3193 = vmatpush2.xpose.msra.mxu0 0.0
    %3194 = vmatprep.subr.mxu0 0.0
    %3195 = vmatpush2.xpose.msra.mxu0 0.0
    %3196 = vmatprep.subr.mxu0 0.0
    %3197 = vmatpush2.xpose.msra.mxu0 0.0
    %3198 = vmatprep.subr.mxu0 0.0
    %3199 = vmatpush2.xpose.msra.mxu0 0.0
    %3200 = vmatprep.subr.mxu0 0.0
    %3201 = vmatpush2.xpose.msra.mxu0 0.0
    %3202 = vmatprep.subr.mxu0 0.0
    %3203 = vmatpush2.xpose.msra.mxu0 0.0
    %3204 = vmatprep.subr.mxu0 0.0
    %3205 = vmatpush2.xpose.msra.mxu0 0.0
    %3206 = vmatprep.mubr.f32.mxu0 0.0
    %3207 = vmatmul.mubr.f32.gmra.mxu0 %v3138
    %v3208 = vpop.f32.mrf.mxu0
    %v3209 = vadd.f32 0.0, %v3208
    %v3210 = vpop.f32.mrf.mxu0
    %3211 = vdwg.mxu0
    %3213 = vrot.lane.b32.xlu0 %v1249, 96
    %v3214 = vpop.permute.xlu0 %3213
    %v3216 = vsel %vm301, %v705, 0
    %v3218 = vsel %vm301, %v3214, 0
    %3220 = vmatprep.subr.mxu0 0.0
    %3221 = vmatpush1.xpose.msra.mxu0 0.0
    %3222 = vmatprep.subr.mxu0 0.0
    %3223 = vmatpush1.xpose.msra.mxu0 0.0
    %3224 = vmatprep.subr.mxu0 0.0
    %3225 = vmatpush1.xpose.msra.mxu0 0.0
    %3226 = vmatprep.subr.mxu0 0.0
    %3227 = vmatpush1.xpose.msra.mxu0 0.0
    %3228 = vmatprep.subr.mxu0 0.0
    %3229 = vmatpush1.xpose.msra.mxu0 0.0
    %3230 = vmatprep.subr.mxu0 0.0
    %3231 = vmatpush1.xpose.msra.mxu0 0.0
    %3232 = vmatprep.subr.mxu0 0.0
    %3233 = vmatpush1.xpose.msra.mxu0 0.0
    %3234 = vmatprep.subr.mxu0 0.0
    %3235 = vmatpush1.xpose.msra.mxu0 0.0
    %3236 = vmatprep.subr.mxu0 0.0
    %3237 = vmatpush1.xpose.msra.mxu0 0.0
    %3238 = vmatprep.subr.mxu0 0.0
    %3239 = vmatpush1.xpose.msra.mxu0 0.0
    %3240 = vmatprep.subr.mxu0 0.0
    %3241 = vmatpush1.xpose.msra.mxu0 0.0
    %3242 = vmatprep.subr.mxu0 0.0
    %3243 = vmatpush1.xpose.msra.mxu0 0.0
    %3244 = vmatprep.subr.mxu0 0.0
    %3245 = vmatpush1.xpose.msra.mxu0 0.0
    %3246 = vmatprep.subr.mxu0 0.0
    %3247 = vmatpush1.xpose.msra.mxu0 0.0
    %3248 = vmatprep.subr.mxu0 0.0
    %3249 = vmatpush1.xpose.msra.mxu0 0.0
    %3250 = vmatprep.subr.mxu0 0.0
    %3251 = vmatpush1.xpose.msra.mxu0 %v3218
    %3252 = vmatprep.subr.mxu0 0.0
    %3253 = vmatpush2.xpose.msra.mxu0 0.0
    %3254 = vmatprep.subr.mxu0 0.0
    %3255 = vmatpush2.xpose.msra.mxu0 0.0
    %3256 = vmatprep.subr.mxu0 0.0
    %3257 = vmatpush2.xpose.msra.mxu0 0.0
    %3258 = vmatprep.subr.mxu0 0.0
    %3259 = vmatpush2.xpose.msra.mxu0 0.0
    %3260 = vmatprep.subr.mxu0 0.0
    %3261 = vmatpush2.xpose.msra.mxu0 0.0
    %3262 = vmatprep.subr.mxu0 0.0
    %3263 = vmatpush2.xpose.msra.mxu0 0.0
    %3264 = vmatprep.subr.mxu0 0.0
    %3265 = vmatpush2.xpose.msra.mxu0 0.0
    %3266 = vmatprep.subr.mxu0 0.0
    %3267 = vmatpush2.xpose.msra.mxu0 0.0
    %3268 = vmatprep.subr.mxu0 0.0
    %3269 = vmatpush2.xpose.msra.mxu0 0.0
    %3270 = vmatprep.subr.mxu0 0.0
    %3271 = vmatpush2.xpose.msra.mxu0 0.0
    %3272 = vmatprep.subr.mxu0 0.0
    %3273 = vmatpush2.xpose.msra.mxu0 0.0
    %3274 = vmatprep.subr.mxu0 0.0
    %3275 = vmatpush2.xpose.msra.mxu0 0.0
    %3276 = vmatprep.subr.mxu0 0.0
    %3277 = vmatpush2.xpose.msra.mxu0 0.0
    %3278 = vmatprep.subr.mxu0 0.0
    %3279 = vmatpush2.xpose.msra.mxu0 0.0
    %3280 = vmatprep.subr.mxu0 0.0
    %3281 = vmatpush2.xpose.msra.mxu0 0.0
    %3282 = vmatprep.subr.mxu0 0.0
    %3283 = vmatpush2.xpose.msra.mxu0 0.0
    %3284 = vmatprep.mubr.f32.mxu0 0.0
    %3285 = vmatmul.mubr.f32.gmra.mxu0 %v3216
    %v3286 = vpop.f32.mrf.mxu0
    %v3287 = vadd.f32 0.0, %v3286
    %v3288 = vpop.f32.mrf.mxu0
    %3289 = vdwg.mxu0
    %3291 = vrot.lane.b32.xlu0 %v1251, 96
    %v3292 = vpop.permute.xlu0 %3291
    %v3294 = vsel %vm301, %v707, 0
    %v3296 = vsel %vm301, %v3292, 0
    %3298 = vmatprep.subr.mxu0 0.0
    %3299 = vmatpush1.xpose.msra.mxu0 0.0
    %3300 = vmatprep.subr.mxu0 0.0
    %3301 = vmatpush1.xpose.msra.mxu0 0.0
    %3302 = vmatprep.subr.mxu0 0.0
    %3303 = vmatpush1.xpose.msra.mxu0 0.0
    %3304 = vmatprep.subr.mxu0 0.0
    %3305 = vmatpush1.xpose.msra.mxu0 0.0
    %3306 = vmatprep.subr.mxu0 0.0
    %3307 = vmatpush1.xpose.msra.mxu0 0.0
    %3308 = vmatprep.subr.mxu0 0.0
    %3309 = vmatpush1.xpose.msra.mxu0 0.0
    %3310 = vmatprep.subr.mxu0 0.0
    %3311 = vmatpush1.xpose.msra.mxu0 0.0
    %3312 = vmatprep.subr.mxu0 0.0
    %3313 = vmatpush1.xpose.msra.mxu0 0.0
    %3314 = vmatprep.subr.mxu0 0.0
    %3315 = vmatpush1.xpose.msra.mxu0 0.0
    %3316 = vmatprep.subr.mxu0 0.0
    %3317 = vmatpush1.xpose.msra.mxu0 0.0
    %3318 = vmatprep.subr.mxu0 0.0
    %3319 = vmatpush1.xpose.msra.mxu0 0.0
    %3320 = vmatprep.subr.mxu0 0.0
    %3321 = vmatpush1.xpose.msra.mxu0 0.0
    %3322 = vmatprep.subr.mxu0 0.0
    %3323 = vmatpush1.xpose.msra.mxu0 0.0
    %3324 = vmatprep.subr.mxu0 0.0
    %3325 = vmatpush1.xpose.msra.mxu0 0.0
    %3326 = vmatprep.subr.mxu0 0.0
    %3327 = vmatpush1.xpose.msra.mxu0 0.0
    %3328 = vmatprep.subr.mxu0 0.0
    %3329 = vmatpush1.xpose.msra.mxu0 %v3296
    %3330 = vmatprep.subr.mxu0 0.0
    %3331 = vmatpush2.xpose.msra.mxu0 0.0
    %3332 = vmatprep.subr.mxu0 0.0
    %3333 = vmatpush2.xpose.msra.mxu0 0.0
    %3334 = vmatprep.subr.mxu0 0.0
    %3335 = vmatpush2.xpose.msra.mxu0 0.0
    %3336 = vmatprep.subr.mxu0 0.0
    %3337 = vmatpush2.xpose.msra.mxu0 0.0
    %3338 = vmatprep.subr.mxu0 0.0
    %3339 = vmatpush2.xpose.msra.mxu0 0.0
    %3340 = vmatprep.subr.mxu0 0.0
    %3341 = vmatpush2.xpose.msra.mxu0 0.0
    %3342 = vmatprep.subr.mxu0 0.0
    %3343 = vmatpush2.xpose.msra.mxu0 0.0
    %3344 = vmatprep.subr.mxu0 0.0
    %3345 = vmatpush2.xpose.msra.mxu0 0.0
    %3346 = vmatprep.subr.mxu0 0.0
    %3347 = vmatpush2.xpose.msra.mxu0 0.0
    %3348 = vmatprep.subr.mxu0 0.0
    %3349 = vmatpush2.xpose.msra.mxu0 0.0
    %3350 = vmatprep.subr.mxu0 0.0
    %3351 = vmatpush2.xpose.msra.mxu0 0.0
    %3352 = vmatprep.subr.mxu0 0.0
    %3353 = vmatpush2.xpose.msra.mxu0 0.0
    %3354 = vmatprep.subr.mxu0 0.0
    %3355 = vmatpush2.xpose.msra.mxu0 0.0
    %3356 = vmatprep.subr.mxu0 0.0
    %3357 = vmatpush2.xpose.msra.mxu0 0.0
    %3358 = vmatprep.subr.mxu0 0.0
    %3359 = vmatpush2.xpose.msra.mxu0 0.0
    %3360 = vmatprep.subr.mxu0 0.0
    %3361 = vmatpush2.xpose.msra.mxu0 0.0
    %3362 = vmatprep.mubr.f32.mxu0 0.0
    %3363 = vmatmul.mubr.f32.gmra.mxu0 %v3294
    %v3364 = vpop.f32.mrf.mxu0
    %v3365 = vadd.f32 0.0, %v3364
    %v3366 = vpop.f32.mrf.mxu0
    %3367 = vdwg.mxu0
    %3369 = vrot.lane.b32.xlu0 %v1253, 96
    %v3370 = vpop.permute.xlu0 %3369
    %v3372 = vsel %vm301, %v709, 0
    %v3374 = vsel %vm301, %v3370, 0
    %3376 = vmatprep.subr.mxu0 0.0
    %3377 = vmatpush1.xpose.msra.mxu0 0.0
    %3378 = vmatprep.subr.mxu0 0.0
    %3379 = vmatpush1.xpose.msra.mxu0 0.0
    %3380 = vmatprep.subr.mxu0 0.0
    %3381 = vmatpush1.xpose.msra.mxu0 0.0
    %3382 = vmatprep.subr.mxu0 0.0
    %3383 = vmatpush1.xpose.msra.mxu0 0.0
    %3384 = vmatprep.subr.mxu0 0.0
    %3385 = vmatpush1.xpose.msra.mxu0 0.0
    %3386 = vmatprep.subr.mxu0 0.0
    %3387 = vmatpush1.xpose.msra.mxu0 0.0
    %3388 = vmatprep.subr.mxu0 0.0
    %3389 = vmatpush1.xpose.msra.mxu0 0.0
    %3390 = vmatprep.subr.mxu0 0.0
    %3391 = vmatpush1.xpose.msra.mxu0 0.0
    %3392 = vmatprep.subr.mxu0 0.0
    %3393 = vmatpush1.xpose.msra.mxu0 0.0
    %3394 = vmatprep.subr.mxu0 0.0
    %3395 = vmatpush1.xpose.msra.mxu0 0.0
    %3396 = vmatprep.subr.mxu0 0.0
    %3397 = vmatpush1.xpose.msra.mxu0 0.0
    %3398 = vmatprep.subr.mxu0 0.0
    %3399 = vmatpush1.xpose.msra.mxu0 0.0
    %3400 = vmatprep.subr.mxu0 0.0
    %3401 = vmatpush1.xpose.msra.mxu0 0.0
    %3402 = vmatprep.subr.mxu0 0.0
    %3403 = vmatpush1.xpose.msra.mxu0 0.0
    %3404 = vmatprep.subr.mxu0 0.0
    %3405 = vmatpush1.xpose.msra.mxu0 0.0
    %3406 = vmatprep.subr.mxu0 0.0
    %3407 = vmatpush1.xpose.msra.mxu0 %v3374
    %3408 = vmatprep.subr.mxu0 0.0
    %3409 = vmatpush2.xpose.msra.mxu0 0.0
    %3410 = vmatprep.subr.mxu0 0.0
    %3411 = vmatpush2.xpose.msra.mxu0 0.0
    %3412 = vmatprep.subr.mxu0 0.0
    %3413 = vmatpush2.xpose.msra.mxu0 0.0
    %3414 = vmatprep.subr.mxu0 0.0
    %3415 = vmatpush2.xpose.msra.mxu0 0.0
    %3416 = vmatprep.subr.mxu0 0.0
    %3417 = vmatpush2.xpose.msra.mxu0 0.0
    %3418 = vmatprep.subr.mxu0 0.0
    %3419 = vmatpush2.xpose.msra.mxu0 0.0
    %3420 = vmatprep.subr.mxu0 0.0
    %3421 = vmatpush2.xpose.msra.mxu0 0.0
    %3422 = vmatprep.subr.mxu0 0.0
    %3423 = vmatpush2.xpose.msra.mxu0 0.0
    %3424 = vmatprep.subr.mxu0 0.0
    %3425 = vmatpush2.xpose.msra.mxu0 0.0
    %3426 = vmatprep.subr.mxu0 0.0
    %3427 = vmatpush2.xpose.msra.mxu0 0.0
    %3428 = vmatprep.subr.mxu0 0.0
    %3429 = vmatpush2.xpose.msra.mxu0 0.0
    %3430 = vmatprep.subr.mxu0 0.0
    %3431 = vmatpush2.xpose.msra.mxu0 0.0
    %3432 = vmatprep.subr.mxu0 0.0
    %3433 = vmatpush2.xpose.msra.mxu0 0.0
    %3434 = vmatprep.subr.mxu0 0.0
    %3435 = vmatpush2.xpose.msra.mxu0 0.0
    %3436 = vmatprep.subr.mxu0 0.0
    %3437 = vmatpush2.xpose.msra.mxu0 0.0
    %3438 = vmatprep.subr.mxu0 0.0
    %3439 = vmatpush2.xpose.msra.mxu0 0.0
    %3440 = vmatprep.mubr.f32.mxu0 0.0
    %3441 = vmatmul.mubr.f32.gmra.mxu0 %v3372
    %v3442 = vpop.f32.mrf.mxu0
    %v3443 = vadd.f32 0.0, %v3442
    %v3444 = vpop.f32.mrf.mxu0
    %3445 = vdwg.mxu0
    %3447 = vrot.lane.b32.xlu0 %v1255, 96
    %v3448 = vpop.permute.xlu0 %3447
    %v3450 = vsel %vm301, %v711, 0
    %v3452 = vsel %vm301, %v3448, 0
    %3454 = vmatprep.subr.mxu0 0.0
    %3455 = vmatpush1.xpose.msra.mxu0 0.0
    %3456 = vmatprep.subr.mxu0 0.0
    %3457 = vmatpush1.xpose.msra.mxu0 0.0
    %3458 = vmatprep.subr.mxu0 0.0
    %3459 = vmatpush1.xpose.msra.mxu0 0.0
    %3460 = vmatprep.subr.mxu0 0.0
    %3461 = vmatpush1.xpose.msra.mxu0 0.0
    %3462 = vmatprep.subr.mxu0 0.0
    %3463 = vmatpush1.xpose.msra.mxu0 0.0
    %3464 = vmatprep.subr.mxu0 0.0
    %3465 = vmatpush1.xpose.msra.mxu0 0.0
    %3466 = vmatprep.subr.mxu0 0.0
    %3467 = vmatpush1.xpose.msra.mxu0 0.0
    %3468 = vmatprep.subr.mxu0 0.0
    %3469 = vmatpush1.xpose.msra.mxu0 0.0
    %3470 = vmatprep.subr.mxu0 0.0
    %3471 = vmatpush1.xpose.msra.mxu0 0.0
    %3472 = vmatprep.subr.mxu0 0.0
    %3473 = vmatpush1.xpose.msra.mxu0 0.0
    %3474 = vmatprep.subr.mxu0 0.0
    %3475 = vmatpush1.xpose.msra.mxu0 0.0
    %3476 = vmatprep.subr.mxu0 0.0
    %3477 = vmatpush1.xpose.msra.mxu0 0.0
    %3478 = vmatprep.subr.mxu0 0.0
    %3479 = vmatpush1.xpose.msra.mxu0 0.0
    %3480 = vmatprep.subr.mxu0 0.0
    %3481 = vmatpush1.xpose.msra.mxu0 0.0
    %3482 = vmatprep.subr.mxu0 0.0
    %3483 = vmatpush1.xpose.msra.mxu0 0.0
    %3484 = vmatprep.subr.mxu0 0.0
    %3485 = vmatpush1.xpose.msra.mxu0 %v3452
    %3486 = vmatprep.subr.mxu0 0.0
    %3487 = vmatpush2.xpose.msra.mxu0 0.0
    %3488 = vmatprep.subr.mxu0 0.0
    %3489 = vmatpush2.xpose.msra.mxu0 0.0
    %3490 = vmatprep.subr.mxu0 0.0
    %3491 = vmatpush2.xpose.msra.mxu0 0.0
    %3492 = vmatprep.subr.mxu0 0.0
    %3493 = vmatpush2.xpose.msra.mxu0 0.0
    %3494 = vmatprep.subr.mxu0 0.0
    %3495 = vmatpush2.xpose.msra.mxu0 0.0
    %3496 = vmatprep.subr.mxu0 0.0
    %3497 = vmatpush2.xpose.msra.mxu0 0.0
    %3498 = vmatprep.subr.mxu0 0.0
    %3499 = vmatpush2.xpose.msra.mxu0 0.0
    %3500 = vmatprep.subr.mxu0 0.0
    %3501 = vmatpush2.xpose.msra.mxu0 0.0
    %3502 = vmatprep.subr.mxu0 0.0
    %3503 = vmatpush2.xpose.msra.mxu0 0.0
    %3504 = vmatprep.subr.mxu0 0.0
    %3505 = vmatpush2.xpose.msra.mxu0 0.0
    %3506 = vmatprep.subr.mxu0 0.0
    %3507 = vmatpush2.xpose.msra.mxu0 0.0
    %3508 = vmatprep.subr.mxu0 0.0
    %3509 = vmatpush2.xpose.msra.mxu0 0.0
    %3510 = vmatprep.subr.mxu0 0.0
    %3511 = vmatpush2.xpose.msra.mxu0 0.0
    %3512 = vmatprep.subr.mxu0 0.0
    %3513 = vmatpush2.xpose.msra.mxu0 0.0
    %3514 = vmatprep.subr.mxu0 0.0
    %3515 = vmatpush2.xpose.msra.mxu0 0.0
    %3516 = vmatprep.subr.mxu0 0.0
    %3517 = vmatpush2.xpose.msra.mxu0 0.0
    %3518 = vmatprep.mubr.f32.mxu0 0.0
    %3519 = vmatmul.mubr.f32.gmra.mxu0 %v3450
    %v3520 = vpop.f32.mrf.mxu0
    %v3521 = vadd.f32 0.0, %v3520
    %v3522 = vpop.f32.mrf.mxu0
    %3523 = vdwg.mxu0
    %3525 = vrot.lane.b32.xlu0 %v1257, 96
    %v3526 = vpop.permute.xlu0 %3525
    %v3528 = vsel %vm301, %v713, 0
    %v3530 = vsel %vm301, %v3526, 0
    %3532 = vmatprep.subr.mxu0 0.0
    %3533 = vmatpush1.xpose.msra.mxu0 0.0
    %3534 = vmatprep.subr.mxu0 0.0
    %3535 = vmatpush1.xpose.msra.mxu0 0.0
    %3536 = vmatprep.subr.mxu0 0.0
    %3537 = vmatpush1.xpose.msra.mxu0 0.0
    %3538 = vmatprep.subr.mxu0 0.0
    %3539 = vmatpush1.xpose.msra.mxu0 0.0
    %3540 = vmatprep.subr.mxu0 0.0
    %3541 = vmatpush1.xpose.msra.mxu0 0.0
    %3542 = vmatprep.subr.mxu0 0.0
    %3543 = vmatpush1.xpose.msra.mxu0 0.0
    %3544 = vmatprep.subr.mxu0 0.0
    %3545 = vmatpush1.xpose.msra.mxu0 0.0
    %3546 = vmatprep.subr.mxu0 0.0
    %3547 = vmatpush1.xpose.msra.mxu0 0.0
    %3548 = vmatprep.subr.mxu0 0.0
    %3549 = vmatpush1.xpose.msra.mxu0 0.0
    %3550 = vmatprep.subr.mxu0 0.0
    %3551 = vmatpush1.xpose.msra.mxu0 0.0
    %3552 = vmatprep.subr.mxu0 0.0
    %3553 = vmatpush1.xpose.msra.mxu0 0.0
    %3554 = vmatprep.subr.mxu0 0.0
    %3555 = vmatpush1.xpose.msra.mxu0 0.0
    %3556 = vmatprep.subr.mxu0 0.0
    %3557 = vmatpush1.xpose.msra.mxu0 0.0
    %3558 = vmatprep.subr.mxu0 0.0
    %3559 = vmatpush1.xpose.msra.mxu0 0.0
    %3560 = vmatprep.subr.mxu0 0.0
    %3561 = vmatpush1.xpose.msra.mxu0 0.0
    %3562 = vmatprep.subr.mxu0 0.0
    %3563 = vmatpush1.xpose.msra.mxu0 %v3530
    %3564 = vmatprep.subr.mxu0 0.0
    %3565 = vmatpush2.xpose.msra.mxu0 0.0
    %3566 = vmatprep.subr.mxu0 0.0
    %3567 = vmatpush2.xpose.msra.mxu0 0.0
    %3568 = vmatprep.subr.mxu0 0.0
    %3569 = vmatpush2.xpose.msra.mxu0 0.0
    %3570 = vmatprep.subr.mxu0 0.0
    %3571 = vmatpush2.xpose.msra.mxu0 0.0
    %3572 = vmatprep.subr.mxu0 0.0
    %3573 = vmatpush2.xpose.msra.mxu0 0.0
    %3574 = vmatprep.subr.mxu0 0.0
    %3575 = vmatpush2.xpose.msra.mxu0 0.0
    %3576 = vmatprep.subr.mxu0 0.0
    %3577 = vmatpush2.xpose.msra.mxu0 0.0
    %3578 = vmatprep.subr.mxu0 0.0
    %3579 = vmatpush2.xpose.msra.mxu0 0.0
    %3580 = vmatprep.subr.mxu0 0.0
    %3581 = vmatpush2.xpose.msra.mxu0 0.0
    %3582 = vmatprep.subr.mxu0 0.0
    %3583 = vmatpush2.xpose.msra.mxu0 0.0
    %3584 = vmatprep.subr.mxu0 0.0
    %3585 = vmatpush2.xpose.msra.mxu0 0.0
    %3586 = vmatprep.subr.mxu0 0.0
    %3587 = vmatpush2.xpose.msra.mxu0 0.0
    %3588 = vmatprep.subr.mxu0 0.0
    %3589 = vmatpush2.xpose.msra.mxu0 0.0
    %3590 = vmatprep.subr.mxu0 0.0
    %3591 = vmatpush2.xpose.msra.mxu0 0.0
    %3592 = vmatprep.subr.mxu0 0.0
    %3593 = vmatpush2.xpose.msra.mxu0 0.0
    %3594 = vmatprep.subr.mxu0 0.0
    %3595 = vmatpush2.xpose.msra.mxu0 0.0
    %3596 = vmatprep.mubr.f32.mxu0 0.0
    %3597 = vmatmul.mubr.f32.gmra.mxu0 %v3528
    %v3598 = vpop.f32.mrf.mxu0
    %v3599 = vadd.f32 0.0, %v3598
    %v3600 = vpop.f32.mrf.mxu0
    %3601 = vdwg.mxu0
    %3603 = vrot.lane.b32.xlu0 %v1259, 96
    %v3604 = vpop.permute.xlu0 %3603
    %v3606 = vsel %vm301, %v715, 0
    %v3608 = vsel %vm301, %v3604, 0
    %3610 = vmatprep.subr.mxu0 0.0
    %3611 = vmatpush1.xpose.msra.mxu0 0.0
    %3612 = vmatprep.subr.mxu0 0.0
    %3613 = vmatpush1.xpose.msra.mxu0 0.0
    %3614 = vmatprep.subr.mxu0 0.0
    %3615 = vmatpush1.xpose.msra.mxu0 0.0
    %3616 = vmatprep.subr.mxu0 0.0
    %3617 = vmatpush1.xpose.msra.mxu0 0.0
    %3618 = vmatprep.subr.mxu0 0.0
    %3619 = vmatpush1.xpose.msra.mxu0 0.0
    %3620 = vmatprep.subr.mxu0 0.0
    %3621 = vmatpush1.xpose.msra.mxu0 0.0
    %3622 = vmatprep.subr.mxu0 0.0
    %3623 = vmatpush1.xpose.msra.mxu0 0.0
    %3624 = vmatprep.subr.mxu0 0.0
    %3625 = vmatpush1.xpose.msra.mxu0 0.0
    %3626 = vmatprep.subr.mxu0 0.0
    %3627 = vmatpush1.xpose.msra.mxu0 0.0
    %3628 = vmatprep.subr.mxu0 0.0
    %3629 = vmatpush1.xpose.msra.mxu0 0.0
    %3630 = vmatprep.subr.mxu0 0.0
    %3631 = vmatpush1.xpose.msra.mxu0 0.0
    %3632 = vmatprep.subr.mxu0 0.0
    %3633 = vmatpush1.xpose.msra.mxu0 0.0
    %3634 = vmatprep.subr.mxu0 0.0
    %3635 = vmatpush1.xpose.msra.mxu0 0.0
    %3636 = vmatprep.subr.mxu0 0.0
    %3637 = vmatpush1.xpose.msra.mxu0 0.0
    %3638 = vmatprep.subr.mxu0 0.0
    %3639 = vmatpush1.xpose.msra.mxu0 0.0
    %3640 = vmatprep.subr.mxu0 0.0
    %3641 = vmatpush1.xpose.msra.mxu0 %v3608
    %3642 = vmatprep.subr.mxu0 0.0
    %3643 = vmatpush2.xpose.msra.mxu0 0.0
    %3644 = vmatprep.subr.mxu0 0.0
    %3645 = vmatpush2.xpose.msra.mxu0 0.0
    %3646 = vmatprep.subr.mxu0 0.0
    %3647 = vmatpush2.xpose.msra.mxu0 0.0
    %3648 = vmatprep.subr.mxu0 0.0
    %3649 = vmatpush2.xpose.msra.mxu0 0.0
    %3650 = vmatprep.subr.mxu0 0.0
    %3651 = vmatpush2.xpose.msra.mxu0 0.0
    %3652 = vmatprep.subr.mxu0 0.0
    %3653 = vmatpush2.xpose.msra.mxu0 0.0
    %3654 = vmatprep.subr.mxu0 0.0
    %3655 = vmatpush2.xpose.msra.mxu0 0.0
    %3656 = vmatprep.subr.mxu0 0.0
    %3657 = vmatpush2.xpose.msra.mxu0 0.0
    %3658 = vmatprep.subr.mxu0 0.0
    %3659 = vmatpush2.xpose.msra.mxu0 0.0
    %3660 = vmatprep.subr.mxu0 0.0
    %3661 = vmatpush2.xpose.msra.mxu0 0.0
    %3662 = vmatprep.subr.mxu0 0.0
    %3663 = vmatpush2.xpose.msra.mxu0 0.0
    %3664 = vmatprep.subr.mxu0 0.0
    %3665 = vmatpush2.xpose.msra.mxu0 0.0
    %3666 = vmatprep.subr.mxu0 0.0
    %3667 = vmatpush2.xpose.msra.mxu0 0.0
    %3668 = vmatprep.subr.mxu0 0.0
    %3669 = vmatpush2.xpose.msra.mxu0 0.0
    %3670 = vmatprep.subr.mxu0 0.0
    %3671 = vmatpush2.xpose.msra.mxu0 0.0
    %3672 = vmatprep.subr.mxu0 0.0
    %3673 = vmatpush2.xpose.msra.mxu0 0.0
    %3674 = vmatprep.mubr.f32.mxu0 0.0
    %3675 = vmatmul.mubr.f32.gmra.mxu0 %v3606
    %v3676 = vpop.f32.mrf.mxu0
    %v3677 = vadd.f32 0.0, %v3676
    %v3678 = vpop.f32.mrf.mxu0
    %3679 = vdwg.mxu0
    %3681 = vrot.lane.b32.xlu0 %v1261, 96
    %v3682 = vpop.permute.xlu0 %3681
    %v3684 = vsel %vm301, %v717, 0
    %v3686 = vsel %vm301, %v3682, 0
    %3688 = vmatprep.subr.mxu0 0.0
    %3689 = vmatpush1.xpose.msra.mxu0 0.0
    %3690 = vmatprep.subr.mxu0 0.0
    %3691 = vmatpush1.xpose.msra.mxu0 0.0
    %3692 = vmatprep.subr.mxu0 0.0
    %3693 = vmatpush1.xpose.msra.mxu0 0.0
    %3694 = vmatprep.subr.mxu0 0.0
    %3695 = vmatpush1.xpose.msra.mxu0 0.0
    %3696 = vmatprep.subr.mxu0 0.0
    %3697 = vmatpush1.xpose.msra.mxu0 0.0
    %3698 = vmatprep.subr.mxu0 0.0
    %3699 = vmatpush1.xpose.msra.mxu0 0.0
    %3700 = vmatprep.subr.mxu0 0.0
    %3701 = vmatpush1.xpose.msra.mxu0 0.0
    %3702 = vmatprep.subr.mxu0 0.0
    %3703 = vmatpush1.xpose.msra.mxu0 0.0
    %3704 = vmatprep.subr.mxu0 0.0
    %3705 = vmatpush1.xpose.msra.mxu0 0.0
    %3706 = vmatprep.subr.mxu0 0.0
    %3707 = vmatpush1.xpose.msra.mxu0 0.0
    %3708 = vmatprep.subr.mxu0 0.0
    %3709 = vmatpush1.xpose.msra.mxu0 0.0
    %3710 = vmatprep.subr.mxu0 0.0
    %3711 = vmatpush1.xpose.msra.mxu0 0.0
    %3712 = vmatprep.subr.mxu0 0.0
    %3713 = vmatpush1.xpose.msra.mxu0 0.0
    %3714 = vmatprep.subr.mxu0 0.0
    %3715 = vmatpush1.xpose.msra.mxu0 0.0
    %3716 = vmatprep.subr.mxu0 0.0
    %3717 = vmatpush1.xpose.msra.mxu0 0.0
    %3718 = vmatprep.subr.mxu0 0.0
    %3719 = vmatpush1.xpose.msra.mxu0 %v3686
    %3720 = vmatprep.subr.mxu0 0.0
    %3721 = vmatpush2.xpose.msra.mxu0 0.0
    %3722 = vmatprep.subr.mxu0 0.0
    %3723 = vmatpush2.xpose.msra.mxu0 0.0
    %3724 = vmatprep.subr.mxu0 0.0
    %3725 = vmatpush2.xpose.msra.mxu0 0.0
    %3726 = vmatprep.subr.mxu0 0.0
    %3727 = vmatpush2.xpose.msra.mxu0 0.0
    %3728 = vmatprep.subr.mxu0 0.0
    %3729 = vmatpush2.xpose.msra.mxu0 0.0
    %3730 = vmatprep.subr.mxu0 0.0
    %3731 = vmatpush2.xpose.msra.mxu0 0.0
    %3732 = vmatprep.subr.mxu0 0.0
    %3733 = vmatpush2.xpose.msra.mxu0 0.0
    %3734 = vmatprep.subr.mxu0 0.0
    %3735 = vmatpush2.xpose.msra.mxu0 0.0
    %3736 = vmatprep.subr.mxu0 0.0
    %3737 = vmatpush2.xpose.msra.mxu0 0.0
    %3738 = vmatprep.subr.mxu0 0.0
    %3739 = vmatpush2.xpose.msra.mxu0 0.0
    %3740 = vmatprep.subr.mxu0 0.0
    %3741 = vmatpush2.xpose.msra.mxu0 0.0
    %3742 = vmatprep.subr.mxu0 0.0
    %3743 = vmatpush2.xpose.msra.mxu0 0.0
    %3744 = vmatprep.subr.mxu0 0.0
    %3745 = vmatpush2.xpose.msra.mxu0 0.0
    %3746 = vmatprep.subr.mxu0 0.0
    %3747 = vmatpush2.xpose.msra.mxu0 0.0
    %3748 = vmatprep.subr.mxu0 0.0
    %3749 = vmatpush2.xpose.msra.mxu0 0.0
    %3750 = vmatprep.subr.mxu0 0.0
    %3751 = vmatpush2.xpose.msra.mxu0 0.0
    %3752 = vmatprep.mubr.f32.mxu0 0.0
    %3753 = vmatmul.mubr.f32.gmra.mxu0 %v3684
    %v3754 = vpop.f32.mrf.mxu0
    %v3755 = vadd.f32 0.0, %v3754
    %v3756 = vpop.f32.mrf.mxu0
    %3757 = vdwg.mxu0
    %v3758 = vld [vmem:[%s3] sm:$0xff]
    %v3759 = vld [vmem:[%s3 + $0x8] sm:$0xff]
    %v3760 = vld [vmem:[%s3 + $0x10] sm:$0xff]
    %v3761 = vld [vmem:[%s3 + $0x18] sm:$0xff]
    %v3762 = vmul.f32 %v1337, %v3758
    %v3763 = vmul.f32 %v1415, %v3758
    %v3764 = vmul.f32 %v1493, %v3758
    %v3765 = vmul.f32 %v1571, %v3758
    %v3766 = vmul.f32 %v1649, %v3758
    %v3767 = vmul.f32 %v1727, %v3758
    %v3768 = vmul.f32 %v1805, %v3758
    %v3769 = vmul.f32 %v1883, %v3758
    %v3770 = vmul.f32 %v1961, %v3759
    %v3771 = vmul.f32 %v2039, %v3759
    %v3772 = vmul.f32 %v2117, %v3759
    %v3773 = vmul.f32 %v2195, %v3759
    %v3774 = vmul.f32 %v2273, %v3759
    %v3775 = vmul.f32 %v2351, %v3759
    %v3776 = vmul.f32 %v2429, %v3759
    %v3777 = vmul.f32 %v2507, %v3759
    %v3778 = vmul.f32 %v2585, %v3760
    %v3779 = vmul.f32 %v2663, %v3760
    %v3780 = vmul.f32 %v2741, %v3760
    %v3781 = vmul.f32 %v2819, %v3760
    %v3782 = vmul.f32 %v2897, %v3760
    %v3783 = vmul.f32 %v2975, %v3760
    %v3784 = vmul.f32 %v3053, %v3760
    %v3785 = vmul.f32 %v3131, %v3760
    %v3786 = vmul.f32 %v3209, %v3761
    %v3787 = vmul.f32 %v3287, %v3761
    %v3788 = vmul.f32 %v3365, %v3761
    %v3789 = vmul.f32 %v3443, %v3761
    %v3790 = vmul.f32 %v3521, %v3761
    %v3791 = vmul.f32 %v3599, %v3761
    %v3792 = vmul.f32 %v3677, %v3761
    %v3793 = vmul.f32 %v3755, %v3761
    %v3794 = vld [vmem:[%s4] sm:$0xff]
    %v3795 = vld [vmem:[%s4 + $0x8] sm:$0xff]
    %v3796 = vld [vmem:[%s4 + $0x10] sm:$0xff]
    %v3797 = vld [vmem:[%s4 + $0x18] sm:$0xff]
    %v3798 = vadd.f32 %v3762, %v3794
    %v3799 = vadd.f32 %v3763, %v3794
    %v3800 = vadd.f32 %v3764, %v3794
    %v3801 = vadd.f32 %v3765, %v3794
    %v3802 = vadd.f32 %v3766, %v3794
    %v3803 = vadd.f32 %v3767, %v3794
    %v3804 = vadd.f32 %v3768, %v3794
    %v3805 = vadd.f32 %v3769, %v3794
    %v3806 = vadd.f32 %v3770, %v3795
    %v3807 = vadd.f32 %v3771, %v3795
    %v3808 = vadd.f32 %v3772, %v3795
    %v3809 = vadd.f32 %v3773, %v3795
    %v3810 = vadd.f32 %v3774, %v3795
    %v3811 = vadd.f32 %v3775, %v3795
    %v3812 = vadd.f32 %v3776, %v3795
    %v3813 = vadd.f32 %v3777, %v3795
    %v3814 = vadd.f32 %v3778, %v3796
    %v3815 = vadd.f32 %v3779, %v3796
    %v3816 = vadd.f32 %v3780, %v3796
    %v3817 = vadd.f32 %v3781, %v3796
    %v3818 = vadd.f32 %v3782, %v3796
    %v3819 = vadd.f32 %v3783, %v3796
    %v3820 = vadd.f32 %v3784, %v3796
    %v3821 = vadd.f32 %v3785, %v3796
    %v3822 = vadd.f32 %v3786, %v3797
    %v3823 = vadd.f32 %v3787, %v3797
    %v3824 = vadd.f32 %v3788, %v3797
    %v3825 = vadd.f32 %v3789, %v3797
    %v3826 = vadd.f32 %v3790, %v3797
    %v3827 = vadd.f32 %v3791, %v3797
    %v3828 = vadd.f32 %v3792, %v3797
    %v3829 = vadd.f32 %v3793, %v3797
    %v3830 = vsel %vm301, %v3798, -inf
    %3831 = vmax.xlane.f32.xlu0 %v3830
    %v3832 = vpop.xlane.xlu0 %3831
    %v3833 = vsel %vm301, %v3799, -inf
    %3834 = vmax.xlane.f32.xlu0 %v3833
    %v3835 = vpop.xlane.xlu0 %3834
    %v3836 = vsel %vm301, %v3800, -inf
    %3837 = vmax.xlane.f32.xlu0 %v3836
    %v3838 = vpop.xlane.xlu0 %3837
    %v3839 = vsel %vm301, %v3801, -inf
    %3840 = vmax.xlane.f32.xlu0 %v3839
    %v3841 = vpop.xlane.xlu0 %3840
    %v3842 = vsel %vm301, %v3802, -inf
    %3843 = vmax.xlane.f32.xlu0 %v3842
    %v3844 = vpop.xlane.xlu0 %3843
    %v3845 = vsel %vm301, %v3803, -inf
    %3846 = vmax.xlane.f32.xlu0 %v3845
    %v3847 = vpop.xlane.xlu0 %3846
    %v3848 = vsel %vm301, %v3804, -inf
    %3849 = vmax.xlane.f32.xlu0 %v3848
    %v3850 = vpop.xlane.xlu0 %3849
    %v3851 = vsel %vm301, %v3805, -inf
    %3852 = vmax.xlane.f32.xlu0 %v3851
    %v3853 = vpop.xlane.xlu0 %3852
    %v3854 = vsel %vm301, %v3806, -inf
    %3855 = vmax.xlane.f32.xlu0 %v3854
    %v3856 = vpop.xlane.xlu0 %3855
    %v3857 = vsel %vm301, %v3807, -inf
    %3858 = vmax.xlane.f32.xlu0 %v3857
    %v3859 = vpop.xlane.xlu0 %3858
    %v3860 = vsel %vm301, %v3808, -inf
    %3861 = vmax.xlane.f32.xlu0 %v3860
    %v3862 = vpop.xlane.xlu0 %3861
    %v3863 = vsel %vm301, %v3809, -inf
    %3864 = vmax.xlane.f32.xlu0 %v3863
    %v3865 = vpop.xlane.xlu0 %3864
    %v3866 = vsel %vm301, %v3810, -inf
    %3867 = vmax.xlane.f32.xlu0 %v3866
    %v3868 = vpop.xlane.xlu0 %3867
    %v3869 = vsel %vm301, %v3811, -inf
    %3870 = vmax.xlane.f32.xlu0 %v3869
    %v3871 = vpop.xlane.xlu0 %3870
    %v3872 = vsel %vm301, %v3812, -inf
    %3873 = vmax.xlane.f32.xlu0 %v3872
    %v3874 = vpop.xlane.xlu0 %3873
    %v3875 = vsel %vm301, %v3813, -inf
    %3876 = vmax.xlane.f32.xlu0 %v3875
    %v3877 = vpop.xlane.xlu0 %3876
    %v3878 = vsel %vm301, %v3814, -inf
    %3879 = vmax.xlane.f32.xlu0 %v3878
    %v3880 = vpop.xlane.xlu0 %3879
    %v3881 = vsel %vm301, %v3815, -inf
    %3882 = vmax.xlane.f32.xlu0 %v3881
    %v3883 = vpop.xlane.xlu0 %3882
    %v3884 = vsel %vm301, %v3816, -inf
    %3885 = vmax.xlane.f32.xlu0 %v3884
    %v3886 = vpop.xlane.xlu0 %3885
    %v3887 = vsel %vm301, %v3817, -inf
    %3888 = vmax.xlane.f32.xlu0 %v3887
    %v3889 = vpop.xlane.xlu0 %3888
    %v3890 = vsel %vm301, %v3818, -inf
    %3891 = vmax.xlane.f32.xlu0 %v3890
    %v3892 = vpop.xlane.xlu0 %3891
    %v3893 = vsel %vm301, %v3819, -inf
    %3894 = vmax.xlane.f32.xlu0 %v3893
    %v3895 = vpop.xlane.xlu0 %3894
    %v3896 = vsel %vm301, %v3820, -inf
    %3897 = vmax.xlane.f32.xlu0 %v3896
    %v3898 = vpop.xlane.xlu0 %3897
    %v3899 = vsel %vm301, %v3821, -inf
    %3900 = vmax.xlane.f32.xlu0 %v3899
    %v3901 = vpop.xlane.xlu0 %3900
    %v3902 = vsel %vm301, %v3822, -inf
    %3903 = vmax.xlane.f32.xlu0 %v3902
    %v3904 = vpop.xlane.xlu0 %3903
    %v3905 = vsel %vm301, %v3823, -inf
    %3906 = vmax.xlane.f32.xlu0 %v3905
    %v3907 = vpop.xlane.xlu0 %3906
    %v3908 = vsel %vm301, %v3824, -inf
    %3909 = vmax.xlane.f32.xlu0 %v3908
    %v3910 = vpop.xlane.xlu0 %3909
    %v3911 = vsel %vm301, %v3825, -inf
    %3912 = vmax.xlane.f32.xlu0 %v3911
    %v3913 = vpop.xlane.xlu0 %3912
    %v3914 = vsel %vm301, %v3826, -inf
    %3915 = vmax.xlane.f32.xlu0 %v3914
    %v3916 = vpop.xlane.xlu0 %3915
    %v3917 = vsel %vm301, %v3827, -inf
    %3918 = vmax.xlane.f32.xlu0 %v3917
    %v3919 = vpop.xlane.xlu0 %3918
    %v3920 = vsel %vm301, %v3828, -inf
    %3921 = vmax.xlane.f32.xlu0 %v3920
    %v3922 = vpop.xlane.xlu0 %3921
    %v3923 = vsel %vm301, %v3829, -inf
    %3924 = vmax.xlane.f32.xlu0 %v3923
    %v3925 = vpop.xlane.xlu0 %3924
    %v3926 = vsub.f32 %v3798, %v3832
    %v3927 = vsub.f32 %v3799, %v3835
    %v3928 = vsub.f32 %v3800, %v3838
    %v3929 = vsub.f32 %v3801, %v3841
    %v3930 = vsub.f32 %v3802, %v3844
    %v3931 = vsub.f32 %v3803, %v3847
    %v3932 = vsub.f32 %v3804, %v3850
    %v3933 = vsub.f32 %v3805, %v3853
    %v3934 = vsub.f32 %v3806, %v3856
    %v3935 = vsub.f32 %v3807, %v3859
    %v3936 = vsub.f32 %v3808, %v3862
    %v3937 = vsub.f32 %v3809, %v3865
    %v3938 = vsub.f32 %v3810, %v3868
    %v3939 = vsub.f32 %v3811, %v3871
    %v3940 = vsub.f32 %v3812, %v3874
    %v3941 = vsub.f32 %v3813, %v3877
    %v3942 = vsub.f32 %v3814, %v3880
    %v3943 = vsub.f32 %v3815, %v3883
    %v3944 = vsub.f32 %v3816, %v3886
    %v3945 = vsub.f32 %v3817, %v3889
    %v3946 = vsub.f32 %v3818, %v3892
    %v3947 = vsub.f32 %v3819, %v3895
    %v3948 = vsub.f32 %v3820, %v3898
    %v3949 = vsub.f32 %v3821, %v3901
    %v3950 = vsub.f32 %v3822, %v3904
    %v3951 = vsub.f32 %v3823, %v3907
    %v3952 = vsub.f32 %v3824, %v3910
    %v3953 = vsub.f32 %v3825, %v3913
    %v3954 = vsub.f32 %v3826, %v3916
    %v3955 = vsub.f32 %v3827, %v3919
    %v3956 = vsub.f32 %v3828, %v3922
    %v3957 = vsub.f32 %v3829, %v3925
    %v3958 = vmul.f32 %v3926, 1.442695
    %v3959 = vpow.pop %v3958
    %v3960 = vmul.f32 %v3927, 1.442695
    %v3961 = vpow.pop %v3960
    %v3962 = vmul.f32 %v3928, 1.442695
    %v3963 = vpow.pop %v3962
    %v3964 = vmul.f32 %v3929, 1.442695
    %v3965 = vpow.pop %v3964
    %v3966 = vmul.f32 %v3930, 1.442695
    %v3967 = vpow.pop %v3966
    %v3968 = vmul.f32 %v3931, 1.442695
    %v3969 = vpow.pop %v3968
    %v3970 = vmul.f32 %v3932, 1.442695
    %v3971 = vpow.pop %v3970
    %v3972 = vmul.f32 %v3933, 1.442695
    %v3973 = vpow.pop %v3972
    %v3974 = vmul.f32 %v3934, 1.442695
    %v3975 = vpow.pop %v3974
    %v3976 = vmul.f32 %v3935, 1.442695
    %v3977 = vpow.pop %v3976
    %v3978 = vmul.f32 %v3936, 1.442695
    %v3979 = vpow.pop %v3978
    %v3980 = vmul.f32 %v3937, 1.442695
    %v3981 = vpow.pop %v3980
    %v3982 = vmul.f32 %v3938, 1.442695
    %v3983 = vpow.pop %v3982
    %v3984 = vmul.f32 %v3939, 1.442695
    %v3985 = vpow.pop %v3984
    %v3986 = vmul.f32 %v3940, 1.442695
    %v3987 = vpow.pop %v3986
    %v3988 = vmul.f32 %v3941, 1.442695
    %v3989 = vpow.pop %v3988
    %v3990 = vmul.f32 %v3942, 1.442695
    %v3991 = vpow.pop %v3990
    %v3992 = vmul.f32 %v3943, 1.442695
    %v3993 = vpow.pop %v3992
    %v3994 = vmul.f32 %v3944, 1.442695
    %v3995 = vpow.pop %v3994
    %v3996 = vmul.f32 %v3945, 1.442695
    %v3997 = vpow.pop %v3996
    %v3998 = vmul.f32 %v3946, 1.442695
    %v3999 = vpow.pop %v3998
    %v4000 = vmul.f32 %v3947, 1.442695
    %v4001 = vpow.pop %v4000
    %v4002 = vmul.f32 %v3948, 1.442695
    %v4003 = vpow.pop %v4002
    %v4004 = vmul.f32 %v3949, 1.442695
    %v4005 = vpow.pop %v4004
    %v4006 = vmul.f32 %v3950, 1.442695
    %v4007 = vpow.pop %v4006
    %v4008 = vmul.f32 %v3951, 1.442695
    %v4009 = vpow.pop %v4008
    %v4010 = vmul.f32 %v3952, 1.442695
    %v4011 = vpow.pop %v4010
    %v4012 = vmul.f32 %v3953, 1.442695
    %v4013 = vpow.pop %v4012
    %v4014 = vmul.f32 %v3954, 1.442695
    %v4015 = vpow.pop %v4014
    %v4016 = vmul.f32 %v3955, 1.442695
    %v4017 = vpow.pop %v4016
    %v4018 = vmul.f32 %v3956, 1.442695
    %v4019 = vpow.pop %v4018
    %v4020 = vmul.f32 %v3957, 1.442695
    %v4021 = vpow.pop %v4020
    %v4022 = vsel %vm301, %v3959, 0.0
    %4023 = vadd.xlane.f32.xlu0 %v4022
    %v4024 = vpop.xlane.xlu0 %4023
    %v4025 = vsel %vm301, %v3961, 0.0
    %4026 = vadd.xlane.f32.xlu0 %v4025
    %v4027 = vpop.xlane.xlu0 %4026
    %v4028 = vsel %vm301, %v3963, 0.0
    %4029 = vadd.xlane.f32.xlu0 %v4028
    %v4030 = vpop.xlane.xlu0 %4029
    %v4031 = vsel %vm301, %v3965, 0.0
    %4032 = vadd.xlane.f32.xlu0 %v4031
    %v4033 = vpop.xlane.xlu0 %4032
    %v4034 = vsel %vm301, %v3967, 0.0
    %4035 = vadd.xlane.f32.xlu0 %v4034
    %v4036 = vpop.xlane.xlu0 %4035
    %v4037 = vsel %vm301, %v3969, 0.0
    %4038 = vadd.xlane.f32.xlu0 %v4037
    %v4039 = vpop.xlane.xlu0 %4038
    %v4040 = vsel %vm301, %v3971, 0.0
    %4041 = vadd.xlane.f32.xlu0 %v4040
    %v4042 = vpop.xlane.xlu0 %4041
    %v4043 = vsel %vm301, %v3973, 0.0
    %4044 = vadd.xlane.f32.xlu0 %v4043
    %v4045 = vpop.xlane.xlu0 %4044
    %v4046 = vsel %vm301, %v3975, 0.0
    %4047 = vadd.xlane.f32.xlu0 %v4046
    %v4048 = vpop.xlane.xlu0 %4047
    %v4049 = vsel %vm301, %v3977, 0.0
    %4050 = vadd.xlane.f32.xlu0 %v4049
    %v4051 = vpop.xlane.xlu0 %4050
    %v4052 = vsel %vm301, %v3979, 0.0
    %4053 = vadd.xlane.f32.xlu0 %v4052
    %v4054 = vpop.xlane.xlu0 %4053
    %v4055 = vsel %vm301, %v3981, 0.0
    %4056 = vadd.xlane.f32.xlu0 %v4055
    %v4057 = vpop.xlane.xlu0 %4056
    %v4058 = vsel %vm301, %v3983, 0.0
    %4059 = vadd.xlane.f32.xlu0 %v4058
    %v4060 = vpop.xlane.xlu0 %4059
    %v4061 = vsel %vm301, %v3985, 0.0
    %4062 = vadd.xlane.f32.xlu0 %v4061
    %v4063 = vpop.xlane.xlu0 %4062
    %v4064 = vsel %vm301, %v3987, 0.0
    %4065 = vadd.xlane.f32.xlu0 %v4064
    %v4066 = vpop.xlane.xlu0 %4065
    %v4067 = vsel %vm301, %v3989, 0.0
    %4068 = vadd.xlane.f32.xlu0 %v4067
    %v4069 = vpop.xlane.xlu0 %4068
    %v4070 = vsel %vm301, %v3991, 0.0
    %4071 = vadd.xlane.f32.xlu0 %v4070
    %v4072 = vpop.xlane.xlu0 %4071
    %v4073 = vsel %vm301, %v3993, 0.0
    %4074 = vadd.xlane.f32.xlu0 %v4073
    %v4075 = vpop.xlane.xlu0 %4074
    %v4076 = vsel %vm301, %v3995, 0.0
    %4077 = vadd.xlane.f32.xlu0 %v4076
    %v4078 = vpop.xlane.xlu0 %4077
    %v4079 = vsel %vm301, %v3997, 0.0
    %4080 = vadd.xlane.f32.xlu0 %v4079
    %v4081 = vpop.xlane.xlu0 %4080
    %v4082 = vsel %vm301, %v3999, 0.0
    %4083 = vadd.xlane.f32.xlu0 %v4082
    %v4084 = vpop.xlane.xlu0 %4083
    %v4085 = vsel %vm301, %v4001, 0.0
    %4086 = vadd.xlane.f32.xlu0 %v4085
    %v4087 = vpop.xlane.xlu0 %4086
    %v4088 = vsel %vm301, %v4003, 0.0
    %4089 = vadd.xlane.f32.xlu0 %v4088
    %v4090 = vpop.xlane.xlu0 %4089
    %v4091 = vsel %vm301, %v4005, 0.0
    %4092 = vadd.xlane.f32.xlu0 %v4091
    %v4093 = vpop.xlane.xlu0 %4092
    %v4094 = vsel %vm301, %v4007, 0.0
    %4095 = vadd.xlane.f32.xlu0 %v4094
    %v4096 = vpop.xlane.xlu0 %4095
    %v4097 = vsel %vm301, %v4009, 0.0
    %4098 = vadd.xlane.f32.xlu0 %v4097
    %v4099 = vpop.xlane.xlu0 %4098
    %v4100 = vsel %vm301, %v4011, 0.0
    %4101 = vadd.xlane.f32.xlu0 %v4100
    %v4102 = vpop.xlane.xlu0 %4101
    %v4103 = vsel %vm301, %v4013, 0.0
    %4104 = vadd.xlane.f32.xlu0 %v4103
    %v4105 = vpop.xlane.xlu0 %4104
    %v4106 = vsel %vm301, %v4015, 0.0
    %4107 = vadd.xlane.f32.xlu0 %v4106
    %v4108 = vpop.xlane.xlu0 %4107
    %v4109 = vsel %vm301, %v4017, 0.0
    %4110 = vadd.xlane.f32.xlu0 %v4109
    %v4111 = vpop.xlane.xlu0 %4110
    %v4112 = vsel %vm301, %v4019, 0.0
    %4113 = vadd.xlane.f32.xlu0 %v4112
    %v4114 = vpop.xlane.xlu0 %4113
    %v4115 = vsel %vm301, %v4021, 0.0
    %4116 = vadd.xlane.f32.xlu0 %v4115
    %v4117 = vpop.xlane.xlu0 %4116
    %v4118 = vrcp.pop %v4024
    %v4119 = vmul.f32 %v3959, %v4118
    %v4120 = vrcp.pop %v4027
    %v4121 = vmul.f32 %v3961, %v4120
    %v4122 = vrcp.pop %v4030
    %v4123 = vmul.f32 %v3963, %v4122
    %v4124 = vrcp.pop %v4033
    %v4125 = vmul.f32 %v3965, %v4124
    %v4126 = vrcp.pop %v4036
    %v4127 = vmul.f32 %v3967, %v4126
    %v4128 = vrcp.pop %v4039
    %v4129 = vmul.f32 %v3969, %v4128
    %v4130 = vrcp.pop %v4042
    %v4131 = vmul.f32 %v3971, %v4130
    %v4132 = vrcp.pop %v4045
    %v4133 = vmul.f32 %v3973, %v4132
    %v4134 = vrcp.pop %v4048
    %v4135 = vmul.f32 %v3975, %v4134
    %v4136 = vrcp.pop %v4051
    %v4137 = vmul.f32 %v3977, %v4136
    %v4138 = vrcp.pop %v4054
    %v4139 = vmul.f32 %v3979, %v4138
    %v4140 = vrcp.pop %v4057
    %v4141 = vmul.f32 %v3981, %v4140
    %v4142 = vrcp.pop %v4060
    %v4143 = vmul.f32 %v3983, %v4142
    %v4144 = vrcp.pop %v4063
    %v4145 = vmul.f32 %v3985, %v4144
    %v4146 = vrcp.pop %v4066
    %v4147 = vmul.f32 %v3987, %v4146
    %v4148 = vrcp.pop %v4069
    %v4149 = vmul.f32 %v3989, %v4148
    %v4150 = vrcp.pop %v4072
    %v4151 = vmul.f32 %v3991, %v4150
    %v4152 = vrcp.pop %v4075
    %v4153 = vmul.f32 %v3993, %v4152
    %v4154 = vrcp.pop %v4078
    %v4155 = vmul.f32 %v3995, %v4154
    %v4156 = vrcp.pop %v4081
    %v4157 = vmul.f32 %v3997, %v4156
    %v4158 = vrcp.pop %v4084
    %v4159 = vmul.f32 %v3999, %v4158
    %v4160 = vrcp.pop %v4087
    %v4161 = vmul.f32 %v4001, %v4160
    %v4162 = vrcp.pop %v4090
    %v4163 = vmul.f32 %v4003, %v4162
    %v4164 = vrcp.pop %v4093
    %v4165 = vmul.f32 %v4005, %v4164
    %v4166 = vrcp.pop %v4096
    %v4167 = vmul.f32 %v4007, %v4166
    %v4168 = vrcp.pop %v4099
    %v4169 = vmul.f32 %v4009, %v4168
    %v4170 = vrcp.pop %v4102
    %v4171 = vmul.f32 %v4011, %v4170
    %v4172 = vrcp.pop %v4105
    %v4173 = vmul.f32 %v4013, %v4172
    %v4174 = vrcp.pop %v4108
    %v4175 = vmul.f32 %v4015, %v4174
    %v4176 = vrcp.pop %v4111
    %v4177 = vmul.f32 %v4017, %v4176
    %v4178 = vrcp.pop %v4114
    %v4179 = vmul.f32 %v4019, %v4178
    %v4180 = vrcp.pop %v4117
    %v4181 = vmul.f32 %v4021, %v4180
    %4182 = vrot.lane.b32.xlu0 %v151, 64
    %v4183 = vpop.permute.xlu0 %4182
    %v4186 = vsel %vm301, %v4119, 0
    %4188 = vmatprep.subr.mxu0 0.0
    %4189 = vmatpush1.msra.mxu0 0.0
    %4190 = vmatprep.subr.mxu0 0.0
    %4191 = vmatpush1.msra.mxu0 0.0
    %4192 = vmatprep.subr.mxu0 0.0
    %4193 = vmatpush1.msra.mxu0 0.0
    %4194 = vmatprep.subr.mxu0 0.0
    %4195 = vmatpush1.msra.mxu0 0.0
    %4196 = vmatprep.subr.mxu0 0.0
    %4197 = vmatpush1.msra.mxu0 0.0
    %4198 = vmatprep.subr.mxu0 0.0
    %4199 = vmatpush1.msra.mxu0 0.0
    %4200 = vmatprep.subr.mxu0 0.0
    %4201 = vmatpush1.msra.mxu0 0.0
    %4202 = vmatprep.subr.mxu0 0.0
    %4203 = vmatpush1.msra.mxu0 0.0
    %4204 = vmatprep.subr.mxu0 0.0
    %4205 = vmatpush1.msra.mxu0 0.0
    %4206 = vmatprep.subr.mxu0 0.0
    %4207 = vmatpush1.msra.mxu0 0.0
    %4208 = vmatprep.subr.mxu0 0.0
    %4209 = vmatpush1.msra.mxu0 0.0
    %4210 = vmatprep.subr.mxu0 0.0
    %4211 = vmatpush1.msra.mxu0 0.0
    %4212 = vmatprep.subr.mxu0 0.0
    %4213 = vmatpush1.msra.mxu0 0.0
    %4214 = vmatprep.subr.mxu0 0.0
    %4215 = vmatpush1.msra.mxu0 0.0
    %4216 = vmatprep.subr.mxu0 0.0
    %4217 = vmatpush1.msra.mxu0 0.0
    %4218 = vmatprep.subr.mxu0 0.0
    %4219 = vmatpush1.msra.mxu0 %v4183
    %4220 = vmatprep.subr.mxu0 0.0
    %4221 = vmatpush2.msra.mxu0 0.0
    %4222 = vmatprep.subr.mxu0 0.0
    %4223 = vmatpush2.msra.mxu0 0.0
    %4224 = vmatprep.subr.mxu0 0.0
    %4225 = vmatpush2.msra.mxu0 0.0
    %4226 = vmatprep.subr.mxu0 0.0
    %4227 = vmatpush2.msra.mxu0 0.0
    %4228 = vmatprep.subr.mxu0 0.0
    %4229 = vmatpush2.msra.mxu0 0.0
    %4230 = vmatprep.subr.mxu0 0.0
    %4231 = vmatpush2.msra.mxu0 0.0
    %4232 = vmatprep.subr.mxu0 0.0
    %4233 = vmatpush2.msra.mxu0 0.0
    %4234 = vmatprep.subr.mxu0 0.0
    %4235 = vmatpush2.msra.mxu0 0.0
    %4236 = vmatprep.subr.mxu0 0.0
    %4237 = vmatpush2.msra.mxu0 0.0
    %4238 = vmatprep.subr.mxu0 0.0
    %4239 = vmatpush2.msra.mxu0 0.0
    %4240 = vmatprep.subr.mxu0 0.0
    %4241 = vmatpush2.msra.mxu0 0.0
    %4242 = vmatprep.subr.mxu0 0.0
    %4243 = vmatpush2.msra.mxu0 0.0
    %4244 = vmatprep.subr.mxu0 0.0
    %4245 = vmatpush2.msra.mxu0 0.0
    %4246 = vmatprep.subr.mxu0 0.0
    %4247 = vmatpush2.msra.mxu0 0.0
    %4248 = vmatprep.subr.mxu0 0.0
    %4249 = vmatpush2.msra.mxu0 0.0
    %4250 = vmatprep.subr.mxu0 0.0
    %4251 = vmatpush2.msra.mxu0 0.0
    %4252 = vmatprep.mubr.f32.mxu0 0.0
    %4253 = vmatmul.mubr.f32.gmra.mxu0 %v4186
    %v4254 = vpop.f32.mrf.mxu0
    %v4255 = vadd.f32 0.0, %v4254
    %v4256 = vpop.f32.mrf.mxu0
    %4257 = vdwg.mxu0
    %4258 = vrot.lane.b32.xlu0 %v156, 64
    %v4259 = vpop.permute.xlu0 %4258
    %v4262 = vsel %vm301, %v4121, 0
    %4264 = vmatprep.subr.mxu0 0.0
    %4265 = vmatpush1.msra.mxu0 0.0
    %4266 = vmatprep.subr.mxu0 0.0
    %4267 = vmatpush1.msra.mxu0 0.0
    %4268 = vmatprep.subr.mxu0 0.0
    %4269 = vmatpush1.msra.mxu0 0.0
    %4270 = vmatprep.subr.mxu0 0.0
    %4271 = vmatpush1.msra.mxu0 0.0
    %4272 = vmatprep.subr.mxu0 0.0
    %4273 = vmatpush1.msra.mxu0 0.0
    %4274 = vmatprep.subr.mxu0 0.0
    %4275 = vmatpush1.msra.mxu0 0.0
    %4276 = vmatprep.subr.mxu0 0.0
    %4277 = vmatpush1.msra.mxu0 0.0
    %4278 = vmatprep.subr.mxu0 0.0
    %4279 = vmatpush1.msra.mxu0 0.0
    %4280 = vmatprep.subr.mxu0 0.0
    %4281 = vmatpush1.msra.mxu0 0.0
    %4282 = vmatprep.subr.mxu0 0.0
    %4283 = vmatpush1.msra.mxu0 0.0
    %4284 = vmatprep.subr.mxu0 0.0
    %4285 = vmatpush1.msra.mxu0 0.0
    %4286 = vmatprep.subr.mxu0 0.0
    %4287 = vmatpush1.msra.mxu0 0.0
    %4288 = vmatprep.subr.mxu0 0.0
    %4289 = vmatpush1.msra.mxu0 0.0
    %4290 = vmatprep.subr.mxu0 0.0
    %4291 = vmatpush1.msra.mxu0 0.0
    %4292 = vmatprep.subr.mxu0 0.0
    %4293 = vmatpush1.msra.mxu0 0.0
    %4294 = vmatprep.subr.mxu0 0.0
    %4295 = vmatpush1.msra.mxu0 %v4259
    %4296 = vmatprep.subr.mxu0 0.0
    %4297 = vmatpush2.msra.mxu0 0.0
    %4298 = vmatprep.subr.mxu0 0.0
    %4299 = vmatpush2.msra.mxu0 0.0
    %4300 = vmatprep.subr.mxu0 0.0
    %4301 = vmatpush2.msra.mxu0 0.0
    %4302 = vmatprep.subr.mxu0 0.0
    %4303 = vmatpush2.msra.mxu0 0.0
    %4304 = vmatprep.subr.mxu0 0.0
    %4305 = vmatpush2.msra.mxu0 0.0
    %4306 = vmatprep.subr.mxu0 0.0
    %4307 = vmatpush2.msra.mxu0 0.0
    %4308 = vmatprep.subr.mxu0 0.0
    %4309 = vmatpush2.msra.mxu0 0.0
    %4310 = vmatprep.subr.mxu0 0.0
    %4311 = vmatpush2.msra.mxu0 0.0
    %4312 = vmatprep.subr.mxu0 0.0
    %4313 = vmatpush2.msra.mxu0 0.0
    %4314 = vmatprep.subr.mxu0 0.0
    %4315 = vmatpush2.msra.mxu0 0.0
    %4316 = vmatprep.subr.mxu0 0.0
    %4317 = vmatpush2.msra.mxu0 0.0
    %4318 = vmatprep.subr.mxu0 0.0
    %4319 = vmatpush2.msra.mxu0 0.0
    %4320 = vmatprep.subr.mxu0 0.0
    %4321 = vmatpush2.msra.mxu0 0.0
    %4322 = vmatprep.subr.mxu0 0.0
    %4323 = vmatpush2.msra.mxu0 0.0
    %4324 = vmatprep.subr.mxu0 0.0
    %4325 = vmatpush2.msra.mxu0 0.0
    %4326 = vmatprep.subr.mxu0 0.0
    %4327 = vmatpush2.msra.mxu0 0.0
    %4328 = vmatprep.mubr.f32.mxu0 0.0
    %4329 = vmatmul.mubr.f32.gmra.mxu0 %v4262
    %v4330 = vpop.f32.mrf.mxu0
    %v4331 = vadd.f32 0.0, %v4330
    %v4332 = vpop.f32.mrf.mxu0
    %4333 = vdwg.mxu0
    %4334 = vrot.lane.b32.xlu0 %v161, 64
    %v4335 = vpop.permute.xlu0 %4334
    %v4338 = vsel %vm301, %v4123, 0
    %4340 = vmatprep.subr.mxu0 0.0
    %4341 = vmatpush1.msra.mxu0 0.0
    %4342 = vmatprep.subr.mxu0 0.0
    %4343 = vmatpush1.msra.mxu0 0.0
    %4344 = vmatprep.subr.mxu0 0.0
    %4345 = vmatpush1.msra.mxu0 0.0
    %4346 = vmatprep.subr.mxu0 0.0
    %4347 = vmatpush1.msra.mxu0 0.0
    %4348 = vmatprep.subr.mxu0 0.0
    %4349 = vmatpush1.msra.mxu0 0.0
    %4350 = vmatprep.subr.mxu0 0.0
    %4351 = vmatpush1.msra.mxu0 0.0
    %4352 = vmatprep.subr.mxu0 0.0
    %4353 = vmatpush1.msra.mxu0 0.0
    %4354 = vmatprep.subr.mxu0 0.0
    %4355 = vmatpush1.msra.mxu0 0.0
    %4356 = vmatprep.subr.mxu0 0.0
    %4357 = vmatpush1.msra.mxu0 0.0
    %4358 = vmatprep.subr.mxu0 0.0
    %4359 = vmatpush1.msra.mxu0 0.0
    %4360 = vmatprep.subr.mxu0 0.0
    %4361 = vmatpush1.msra.mxu0 0.0
    %4362 = vmatprep.subr.mxu0 0.0
    %4363 = vmatpush1.msra.mxu0 0.0
    %4364 = vmatprep.subr.mxu0 0.0
    %4365 = vmatpush1.msra.mxu0 0.0
    %4366 = vmatprep.subr.mxu0 0.0
    %4367 = vmatpush1.msra.mxu0 0.0
    %4368 = vmatprep.subr.mxu0 0.0
    %4369 = vmatpush1.msra.mxu0 0.0
    %4370 = vmatprep.subr.mxu0 0.0
    %4371 = vmatpush1.msra.mxu0 %v4335
    %4372 = vmatprep.subr.mxu0 0.0
    %4373 = vmatpush2.msra.mxu0 0.0
    %4374 = vmatprep.subr.mxu0 0.0
    %4375 = vmatpush2.msra.mxu0 0.0
    %4376 = vmatprep.subr.mxu0 0.0
    %4377 = vmatpush2.msra.mxu0 0.0
    %4378 = vmatprep.subr.mxu0 0.0
    %4379 = vmatpush2.msra.mxu0 0.0
    %4380 = vmatprep.subr.mxu0 0.0
    %4381 = vmatpush2.msra.mxu0 0.0
    %4382 = vmatprep.subr.mxu0 0.0
    %4383 = vmatpush2.msra.mxu0 0.0
    %4384 = vmatprep.subr.mxu0 0.0
    %4385 = vmatpush2.msra.mxu0 0.0
    %4386 = vmatprep.subr.mxu0 0.0
    %4387 = vmatpush2.msra.mxu0 0.0
    %4388 = vmatprep.subr.mxu0 0.0
    %4389 = vmatpush2.msra.mxu0 0.0
    %4390 = vmatprep.subr.mxu0 0.0
    %4391 = vmatpush2.msra.mxu0 0.0
    %4392 = vmatprep.subr.mxu0 0.0
    %4393 = vmatpush2.msra.mxu0 0.0
    %4394 = vmatprep.subr.mxu0 0.0
    %4395 = vmatpush2.msra.mxu0 0.0
    %4396 = vmatprep.subr.mxu0 0.0
    %4397 = vmatpush2.msra.mxu0 0.0
    %4398 = vmatprep.subr.mxu0 0.0
    %4399 = vmatpush2.msra.mxu0 0.0
    %4400 = vmatprep.subr.mxu0 0.0
    %4401 = vmatpush2.msra.mxu0 0.0
    %4402 = vmatprep.subr.mxu0 0.0
    %4403 = vmatpush2.msra.mxu0 0.0
    %4404 = vmatprep.mubr.f32.mxu0 0.0
    %4405 = vmatmul.mubr.f32.gmra.mxu0 %v4338
    %v4406 = vpop.f32.mrf.mxu0
    %v4407 = vadd.f32 0.0, %v4406
    %v4408 = vpop.f32.mrf.mxu0
    %4409 = vdwg.mxu0
    %4410 = vrot.lane.b32.xlu0 %v166, 64
    %v4411 = vpop.permute.xlu0 %4410
    %v4414 = vsel %vm301, %v4125, 0
    %4416 = vmatprep.subr.mxu0 0.0
    %4417 = vmatpush1.msra.mxu0 0.0
    %4418 = vmatprep.subr.mxu0 0.0
    %4419 = vmatpush1.msra.mxu0 0.0
    %4420 = vmatprep.subr.mxu0 0.0
    %4421 = vmatpush1.msra.mxu0 0.0
    %4422 = vmatprep.subr.mxu0 0.0
    %4423 = vmatpush1.msra.mxu0 0.0
    %4424 = vmatprep.subr.mxu0 0.0
    %4425 = vmatpush1.msra.mxu0 0.0
    %4426 = vmatprep.subr.mxu0 0.0
    %4427 = vmatpush1.msra.mxu0 0.0
    %4428 = vmatprep.subr.mxu0 0.0
    %4429 = vmatpush1.msra.mxu0 0.0
    %4430 = vmatprep.subr.mxu0 0.0
    %4431 = vmatpush1.msra.mxu0 0.0
    %4432 = vmatprep.subr.mxu0 0.0
    %4433 = vmatpush1.msra.mxu0 0.0
    %4434 = vmatprep.subr.mxu0 0.0
    %4435 = vmatpush1.msra.mxu0 0.0
    %4436 = vmatprep.subr.mxu0 0.0
    %4437 = vmatpush1.msra.mxu0 0.0
    %4438 = vmatprep.subr.mxu0 0.0
    %4439 = vmatpush1.msra.mxu0 0.0
    %4440 = vmatprep.subr.mxu0 0.0
    %4441 = vmatpush1.msra.mxu0 0.0
    %4442 = vmatprep.subr.mxu0 0.0
    %4443 = vmatpush1.msra.mxu0 0.0
    %4444 = vmatprep.subr.mxu0 0.0
    %4445 = vmatpush1.msra.mxu0 0.0
    %4446 = vmatprep.subr.mxu0 0.0
    %4447 = vmatpush1.msra.mxu0 %v4411
    %4448 = vmatprep.subr.mxu0 0.0
    %4449 = vmatpush2.msra.mxu0 0.0
    %4450 = vmatprep.subr.mxu0 0.0
    %4451 = vmatpush2.msra.mxu0 0.0
    %4452 = vmatprep.subr.mxu0 0.0
    %4453 = vmatpush2.msra.mxu0 0.0
    %4454 = vmatprep.subr.mxu0 0.0
    %4455 = vmatpush2.msra.mxu0 0.0
    %4456 = vmatprep.subr.mxu0 0.0
    %4457 = vmatpush2.msra.mxu0 0.0
    %4458 = vmatprep.subr.mxu0 0.0
    %4459 = vmatpush2.msra.mxu0 0.0
    %4460 = vmatprep.subr.mxu0 0.0
    %4461 = vmatpush2.msra.mxu0 0.0
    %4462 = vmatprep.subr.mxu0 0.0
    %4463 = vmatpush2.msra.mxu0 0.0
    %4464 = vmatprep.subr.mxu0 0.0
    %4465 = vmatpush2.msra.mxu0 0.0
    %4466 = vmatprep.subr.mxu0 0.0
    %4467 = vmatpush2.msra.mxu0 0.0
    %4468 = vmatprep.subr.mxu0 0.0
    %4469 = vmatpush2.msra.mxu0 0.0
    %4470 = vmatprep.subr.mxu0 0.0
    %4471 = vmatpush2.msra.mxu0 0.0
    %4472 = vmatprep.subr.mxu0 0.0
    %4473 = vmatpush2.msra.mxu0 0.0
    %4474 = vmatprep.subr.mxu0 0.0
    %4475 = vmatpush2.msra.mxu0 0.0
    %4476 = vmatprep.subr.mxu0 0.0
    %4477 = vmatpush2.msra.mxu0 0.0
    %4478 = vmatprep.subr.mxu0 0.0
    %4479 = vmatpush2.msra.mxu0 0.0
    %4480 = vmatprep.mubr.f32.mxu0 0.0
    %4481 = vmatmul.mubr.f32.gmra.mxu0 %v4414
    %v4482 = vpop.f32.mrf.mxu0
    %v4483 = vadd.f32 0.0, %v4482
    %v4484 = vpop.f32.mrf.mxu0
    %4485 = vdwg.mxu0
    %4486 = vrot.lane.b32.xlu0 %v171, 64
    %v4487 = vpop.permute.xlu0 %4486
    %v4490 = vsel %vm301, %v4127, 0
    %4492 = vmatprep.subr.mxu0 0.0
    %4493 = vmatpush1.msra.mxu0 0.0
    %4494 = vmatprep.subr.mxu0 0.0
    %4495 = vmatpush1.msra.mxu0 0.0
    %4496 = vmatprep.subr.mxu0 0.0
    %4497 = vmatpush1.msra.mxu0 0.0
    %4498 = vmatprep.subr.mxu0 0.0
    %4499 = vmatpush1.msra.mxu0 0.0
    %4500 = vmatprep.subr.mxu0 0.0
    %4501 = vmatpush1.msra.mxu0 0.0
    %4502 = vmatprep.subr.mxu0 0.0
    %4503 = vmatpush1.msra.mxu0 0.0
    %4504 = vmatprep.subr.mxu0 0.0
    %4505 = vmatpush1.msra.mxu0 0.0
    %4506 = vmatprep.subr.mxu0 0.0
    %4507 = vmatpush1.msra.mxu0 0.0
    %4508 = vmatprep.subr.mxu0 0.0
    %4509 = vmatpush1.msra.mxu0 0.0
    %4510 = vmatprep.subr.mxu0 0.0
    %4511 = vmatpush1.msra.mxu0 0.0
    %4512 = vmatprep.subr.mxu0 0.0
    %4513 = vmatpush1.msra.mxu0 0.0
    %4514 = vmatprep.subr.mxu0 0.0
    %4515 = vmatpush1.msra.mxu0 0.0
    %4516 = vmatprep.subr.mxu0 0.0
    %4517 = vmatpush1.msra.mxu0 0.0
    %4518 = vmatprep.subr.mxu0 0.0
    %4519 = vmatpush1.msra.mxu0 0.0
    %4520 = vmatprep.subr.mxu0 0.0
    %4521 = vmatpush1.msra.mxu0 0.0
    %4522 = vmatprep.subr.mxu0 0.0
    %4523 = vmatpush1.msra.mxu0 %v4487
    %4524 = vmatprep.subr.mxu0 0.0
    %4525 = vmatpush2.msra.mxu0 0.0
    %4526 = vmatprep.subr.mxu0 0.0
    %4527 = vmatpush2.msra.mxu0 0.0
    %4528 = vmatprep.subr.mxu0 0.0
    %4529 = vmatpush2.msra.mxu0 0.0
    %4530 = vmatprep.subr.mxu0 0.0
    %4531 = vmatpush2.msra.mxu0 0.0
    %4532 = vmatprep.subr.mxu0 0.0
    %4533 = vmatpush2.msra.mxu0 0.0
    %4534 = vmatprep.subr.mxu0 0.0
    %4535 = vmatpush2.msra.mxu0 0.0
    %4536 = vmatprep.subr.mxu0 0.0
    %4537 = vmatpush2.msra.mxu0 0.0
    %4538 = vmatprep.subr.mxu0 0.0
    %4539 = vmatpush2.msra.mxu0 0.0
    %4540 = vmatprep.subr.mxu0 0.0
    %4541 = vmatpush2.msra.mxu0 0.0
    %4542 = vmatprep.subr.mxu0 0.0
    %4543 = vmatpush2.msra.mxu0 0.0
    %4544 = vmatprep.subr.mxu0 0.0
    %4545 = vmatpush2.msra.mxu0 0.0
    %4546 = vmatprep.subr.mxu0 0.0
    %4547 = vmatpush2.msra.mxu0 0.0
    %4548 = vmatprep.subr.mxu0 0.0
    %4549 = vmatpush2.msra.mxu0 0.0
    %4550 = vmatprep.subr.mxu0 0.0
    %4551 = vmatpush2.msra.mxu0 0.0
    %4552 = vmatprep.subr.mxu0 0.0
    %4553 = vmatpush2.msra.mxu0 0.0
    %4554 = vmatprep.subr.mxu0 0.0
    %4555 = vmatpush2.msra.mxu0 0.0
    %4556 = vmatprep.mubr.f32.mxu0 0.0
    %4557 = vmatmul.mubr.f32.gmra.mxu0 %v4490
    %v4558 = vpop.f32.mrf.mxu0
    %v4559 = vadd.f32 0.0, %v4558
    %v4560 = vpop.f32.mrf.mxu0
    %4561 = vdwg.mxu0
    %4562 = vrot.lane.b32.xlu0 %v176, 64
    %v4563 = vpop.permute.xlu0 %4562
    %v4566 = vsel %vm301, %v4129, 0
    %4568 = vmatprep.subr.mxu0 0.0
    %4569 = vmatpush1.msra.mxu0 0.0
    %4570 = vmatprep.subr.mxu0 0.0
    %4571 = vmatpush1.msra.mxu0 0.0
    %4572 = vmatprep.subr.mxu0 0.0
    %4573 = vmatpush1.msra.mxu0 0.0
    %4574 = vmatprep.subr.mxu0 0.0
    %4575 = vmatpush1.msra.mxu0 0.0
    %4576 = vmatprep.subr.mxu0 0.0
    %4577 = vmatpush1.msra.mxu0 0.0
    %4578 = vmatprep.subr.mxu0 0.0
    %4579 = vmatpush1.msra.mxu0 0.0
    %4580 = vmatprep.subr.mxu0 0.0
    %4581 = vmatpush1.msra.mxu0 0.0
    %4582 = vmatprep.subr.mxu0 0.0
    %4583 = vmatpush1.msra.mxu0 0.0
    %4584 = vmatprep.subr.mxu0 0.0
    %4585 = vmatpush1.msra.mxu0 0.0
    %4586 = vmatprep.subr.mxu0 0.0
    %4587 = vmatpush1.msra.mxu0 0.0
    %4588 = vmatprep.subr.mxu0 0.0
    %4589 = vmatpush1.msra.mxu0 0.0
    %4590 = vmatprep.subr.mxu0 0.0
    %4591 = vmatpush1.msra.mxu0 0.0
    %4592 = vmatprep.subr.mxu0 0.0
    %4593 = vmatpush1.msra.mxu0 0.0
    %4594 = vmatprep.subr.mxu0 0.0
    %4595 = vmatpush1.msra.mxu0 0.0
    %4596 = vmatprep.subr.mxu0 0.0
    %4597 = vmatpush1.msra.mxu0 0.0
    %4598 = vmatprep.subr.mxu0 0.0
    %4599 = vmatpush1.msra.mxu0 %v4563
    %4600 = vmatprep.subr.mxu0 0.0
    %4601 = vmatpush2.msra.mxu0 0.0
    %4602 = vmatprep.subr.mxu0 0.0
    %4603 = vmatpush2.msra.mxu0 0.0
    %4604 = vmatprep.subr.mxu0 0.0
    %4605 = vmatpush2.msra.mxu0 0.0
    %4606 = vmatprep.subr.mxu0 0.0
    %4607 = vmatpush2.msra.mxu0 0.0
    %4608 = vmatprep.subr.mxu0 0.0
    %4609 = vmatpush2.msra.mxu0 0.0
    %4610 = vmatprep.subr.mxu0 0.0
    %4611 = vmatpush2.msra.mxu0 0.0
    %4612 = vmatprep.subr.mxu0 0.0
    %4613 = vmatpush2.msra.mxu0 0.0
    %4614 = vmatprep.subr.mxu0 0.0
    %4615 = vmatpush2.msra.mxu0 0.0
    %4616 = vmatprep.subr.mxu0 0.0
    %4617 = vmatpush2.msra.mxu0 0.0
    %4618 = vmatprep.subr.mxu0 0.0
    %4619 = vmatpush2.msra.mxu0 0.0
    %4620 = vmatprep.subr.mxu0 0.0
    %4621 = vmatpush2.msra.mxu0 0.0
    %4622 = vmatprep.subr.mxu0 0.0
    %4623 = vmatpush2.msra.mxu0 0.0
    %4624 = vmatprep.subr.mxu0 0.0
    %4625 = vmatpush2.msra.mxu0 0.0
    %4626 = vmatprep.subr.mxu0 0.0
    %4627 = vmatpush2.msra.mxu0 0.0
    %4628 = vmatprep.subr.mxu0 0.0
    %4629 = vmatpush2.msra.mxu0 0.0
    %4630 = vmatprep.subr.mxu0 0.0
    %4631 = vmatpush2.msra.mxu0 0.0
    %4632 = vmatprep.mubr.f32.mxu0 0.0
    %4633 = vmatmul.mubr.f32.gmra.mxu0 %v4566
    %v4634 = vpop.f32.mrf.mxu0
    %v4635 = vadd.f32 0.0, %v4634
    %v4636 = vpop.f32.mrf.mxu0
    %4637 = vdwg.mxu0
    %4638 = vrot.lane.b32.xlu0 %v181, 64
    %v4639 = vpop.permute.xlu0 %4638
    %v4642 = vsel %vm301, %v4131, 0
    %4644 = vmatprep.subr.mxu0 0.0
    %4645 = vmatpush1.msra.mxu0 0.0
    %4646 = vmatprep.subr.mxu0 0.0
    %4647 = vmatpush1.msra.mxu0 0.0
    %4648 = vmatprep.subr.mxu0 0.0
    %4649 = vmatpush1.msra.mxu0 0.0
    %4650 = vmatprep.subr.mxu0 0.0
    %4651 = vmatpush1.msra.mxu0 0.0
    %4652 = vmatprep.subr.mxu0 0.0
    %4653 = vmatpush1.msra.mxu0 0.0
    %4654 = vmatprep.subr.mxu0 0.0
    %4655 = vmatpush1.msra.mxu0 0.0
    %4656 = vmatprep.subr.mxu0 0.0
    %4657 = vmatpush1.msra.mxu0 0.0
    %4658 = vmatprep.subr.mxu0 0.0
    %4659 = vmatpush1.msra.mxu0 0.0
    %4660 = vmatprep.subr.mxu0 0.0
    %4661 = vmatpush1.msra.mxu0 0.0
    %4662 = vmatprep.subr.mxu0 0.0
    %4663 = vmatpush1.msra.mxu0 0.0
    %4664 = vmatprep.subr.mxu0 0.0
    %4665 = vmatpush1.msra.mxu0 0.0
    %4666 = vmatprep.subr.mxu0 0.0
    %4667 = vmatpush1.msra.mxu0 0.0
    %4668 = vmatprep.subr.mxu0 0.0
    %4669 = vmatpush1.msra.mxu0 0.0
    %4670 = vmatprep.subr.mxu0 0.0
    %4671 = vmatpush1.msra.mxu0 0.0
    %4672 = vmatprep.subr.mxu0 0.0
    %4673 = vmatpush1.msra.mxu0 0.0
    %4674 = vmatprep.subr.mxu0 0.0
    %4675 = vmatpush1.msra.mxu0 %v4639
    %4676 = vmatprep.subr.mxu0 0.0
    %4677 = vmatpush2.msra.mxu0 0.0
    %4678 = vmatprep.subr.mxu0 0.0
    %4679 = vmatpush2.msra.mxu0 0.0
    %4680 = vmatprep.subr.mxu0 0.0
    %4681 = vmatpush2.msra.mxu0 0.0
    %4682 = vmatprep.subr.mxu0 0.0
    %4683 = vmatpush2.msra.mxu0 0.0
    %4684 = vmatprep.subr.mxu0 0.0
    %4685 = vmatpush2.msra.mxu0 0.0
    %4686 = vmatprep.subr.mxu0 0.0
    %4687 = vmatpush2.msra.mxu0 0.0
    %4688 = vmatprep.subr.mxu0 0.0
    %4689 = vmatpush2.msra.mxu0 0.0
    %4690 = vmatprep.subr.mxu0 0.0
    %4691 = vmatpush2.msra.mxu0 0.0
    %4692 = vmatprep.subr.mxu0 0.0
    %4693 = vmatpush2.msra.mxu0 0.0
    %4694 = vmatprep.subr.mxu0 0.0
    %4695 = vmatpush2.msra.mxu0 0.0
    %4696 = vmatprep.subr.mxu0 0.0
    %4697 = vmatpush2.msra.mxu0 0.0
    %4698 = vmatprep.subr.mxu0 0.0
    %4699 = vmatpush2.msra.mxu0 0.0
    %4700 = vmatprep.subr.mxu0 0.0
    %4701 = vmatpush2.msra.mxu0 0.0
    %4702 = vmatprep.subr.mxu0 0.0
    %4703 = vmatpush2.msra.mxu0 0.0
    %4704 = vmatprep.subr.mxu0 0.0
    %4705 = vmatpush2.msra.mxu0 0.0
    %4706 = vmatprep.subr.mxu0 0.0
    %4707 = vmatpush2.msra.mxu0 0.0
    %4708 = vmatprep.mubr.f32.mxu0 0.0
    %4709 = vmatmul.mubr.f32.gmra.mxu0 %v4642
    %v4710 = vpop.f32.mrf.mxu0
    %v4711 = vadd.f32 0.0, %v4710
    %v4712 = vpop.f32.mrf.mxu0
    %4713 = vdwg.mxu0
    %4714 = vrot.lane.b32.xlu0 %v186, 64
    %v4715 = vpop.permute.xlu0 %4714
    %v4718 = vsel %vm301, %v4133, 0
    %4720 = vmatprep.subr.mxu0 0.0
    %4721 = vmatpush1.msra.mxu0 0.0
    %4722 = vmatprep.subr.mxu0 0.0
    %4723 = vmatpush1.msra.mxu0 0.0
    %4724 = vmatprep.subr.mxu0 0.0
    %4725 = vmatpush1.msra.mxu0 0.0
    %4726 = vmatprep.subr.mxu0 0.0
    %4727 = vmatpush1.msra.mxu0 0.0
    %4728 = vmatprep.subr.mxu0 0.0
    %4729 = vmatpush1.msra.mxu0 0.0
    %4730 = vmatprep.subr.mxu0 0.0
    %4731 = vmatpush1.msra.mxu0 0.0
    %4732 = vmatprep.subr.mxu0 0.0
    %4733 = vmatpush1.msra.mxu0 0.0
    %4734 = vmatprep.subr.mxu0 0.0
    %4735 = vmatpush1.msra.mxu0 0.0
    %4736 = vmatprep.subr.mxu0 0.0
    %4737 = vmatpush1.msra.mxu0 0.0
    %4738 = vmatprep.subr.mxu0 0.0
    %4739 = vmatpush1.msra.mxu0 0.0
    %4740 = vmatprep.subr.mxu0 0.0
    %4741 = vmatpush1.msra.mxu0 0.0
    %4742 = vmatprep.subr.mxu0 0.0
    %4743 = vmatpush1.msra.mxu0 0.0
    %4744 = vmatprep.subr.mxu0 0.0
    %4745 = vmatpush1.msra.mxu0 0.0
    %4746 = vmatprep.subr.mxu0 0.0
    %4747 = vmatpush1.msra.mxu0 0.0
    %4748 = vmatprep.subr.mxu0 0.0
    %4749 = vmatpush1.msra.mxu0 0.0
    %4750 = vmatprep.subr.mxu0 0.0
    %4751 = vmatpush1.msra.mxu0 %v4715
    %4752 = vmatprep.subr.mxu0 0.0
    %4753 = vmatpush2.msra.mxu0 0.0
    %4754 = vmatprep.subr.mxu0 0.0
    %4755 = vmatpush2.msra.mxu0 0.0
    %4756 = vmatprep.subr.mxu0 0.0
    %4757 = vmatpush2.msra.mxu0 0.0
    %4758 = vmatprep.subr.mxu0 0.0
    %4759 = vmatpush2.msra.mxu0 0.0
    %4760 = vmatprep.subr.mxu0 0.0
    %4761 = vmatpush2.msra.mxu0 0.0
    %4762 = vmatprep.subr.mxu0 0.0
    %4763 = vmatpush2.msra.mxu0 0.0
    %4764 = vmatprep.subr.mxu0 0.0
    %4765 = vmatpush2.msra.mxu0 0.0
    %4766 = vmatprep.subr.mxu0 0.0
    %4767 = vmatpush2.msra.mxu0 0.0
    %4768 = vmatprep.subr.mxu0 0.0
    %4769 = vmatpush2.msra.mxu0 0.0
    %4770 = vmatprep.subr.mxu0 0.0
    %4771 = vmatpush2.msra.mxu0 0.0
    %4772 = vmatprep.subr.mxu0 0.0
    %4773 = vmatpush2.msra.mxu0 0.0
    %4774 = vmatprep.subr.mxu0 0.0
    %4775 = vmatpush2.msra.mxu0 0.0
    %4776 = vmatprep.subr.mxu0 0.0
    %4777 = vmatpush2.msra.mxu0 0.0
    %4778 = vmatprep.subr.mxu0 0.0
    %4779 = vmatpush2.msra.mxu0 0.0
    %4780 = vmatprep.subr.mxu0 0.0
    %4781 = vmatpush2.msra.mxu0 0.0
    %4782 = vmatprep.subr.mxu0 0.0
    %4783 = vmatpush2.msra.mxu0 0.0
    %4784 = vmatprep.mubr.f32.mxu0 0.0
    %4785 = vmatmul.mubr.f32.gmra.mxu0 %v4718
    %v4786 = vpop.f32.mrf.mxu0
    %v4787 = vadd.f32 0.0, %v4786
    %v4788 = vpop.f32.mrf.mxu0
    %4789 = vdwg.mxu0
    %4790 = vrot.lane.b32.xlu0 %v198, 64
    %v4791 = vpop.permute.xlu0 %4790
    %v4794 = vsel %vm301, %v4135, 0
    %4796 = vmatprep.subr.mxu0 0.0
    %4797 = vmatpush1.msra.mxu0 0.0
    %4798 = vmatprep.subr.mxu0 0.0
    %4799 = vmatpush1.msra.mxu0 0.0
    %4800 = vmatprep.subr.mxu0 0.0
    %4801 = vmatpush1.msra.mxu0 0.0
    %4802 = vmatprep.subr.mxu0 0.0
    %4803 = vmatpush1.msra.mxu0 0.0
    %4804 = vmatprep.subr.mxu0 0.0
    %4805 = vmatpush1.msra.mxu0 0.0
    %4806 = vmatprep.subr.mxu0 0.0
    %4807 = vmatpush1.msra.mxu0 0.0
    %4808 = vmatprep.subr.mxu0 0.0
    %4809 = vmatpush1.msra.mxu0 0.0
    %4810 = vmatprep.subr.mxu0 0.0
    %4811 = vmatpush1.msra.mxu0 0.0
    %4812 = vmatprep.subr.mxu0 0.0
    %4813 = vmatpush1.msra.mxu0 0.0
    %4814 = vmatprep.subr.mxu0 0.0
    %4815 = vmatpush1.msra.mxu0 0.0
    %4816 = vmatprep.subr.mxu0 0.0
    %4817 = vmatpush1.msra.mxu0 0.0
    %4818 = vmatprep.subr.mxu0 0.0
    %4819 = vmatpush1.msra.mxu0 0.0
    %4820 = vmatprep.subr.mxu0 0.0
    %4821 = vmatpush1.msra.mxu0 0.0
    %4822 = vmatprep.subr.mxu0 0.0
    %4823 = vmatpush1.msra.mxu0 0.0
    %4824 = vmatprep.subr.mxu0 0.0
    %4825 = vmatpush1.msra.mxu0 0.0
    %4826 = vmatprep.subr.mxu0 0.0
    %4827 = vmatpush1.msra.mxu0 %v4791
    %4828 = vmatprep.subr.mxu0 0.0
    %4829 = vmatpush2.msra.mxu0 0.0
    %4830 = vmatprep.subr.mxu0 0.0
    %4831 = vmatpush2.msra.mxu0 0.0
    %4832 = vmatprep.subr.mxu0 0.0
    %4833 = vmatpush2.msra.mxu0 0.0
    %4834 = vmatprep.subr.mxu0 0.0
    %4835 = vmatpush2.msra.mxu0 0.0
    %4836 = vmatprep.subr.mxu0 0.0
    %4837 = vmatpush2.msra.mxu0 0.0
    %4838 = vmatprep.subr.mxu0 0.0
    %4839 = vmatpush2.msra.mxu0 0.0
    %4840 = vmatprep.subr.mxu0 0.0
    %4841 = vmatpush2.msra.mxu0 0.0
    %4842 = vmatprep.subr.mxu0 0.0
    %4843 = vmatpush2.msra.mxu0 0.0
    %4844 = vmatprep.subr.mxu0 0.0
    %4845 = vmatpush2.msra.mxu0 0.0
    %4846 = vmatprep.subr.mxu0 0.0
    %4847 = vmatpush2.msra.mxu0 0.0
    %4848 = vmatprep.subr.mxu0 0.0
    %4849 = vmatpush2.msra.mxu0 0.0
    %4850 = vmatprep.subr.mxu0 0.0
    %4851 = vmatpush2.msra.mxu0 0.0
    %4852 = vmatprep.subr.mxu0 0.0
    %4853 = vmatpush2.msra.mxu0 0.0
    %4854 = vmatprep.subr.mxu0 0.0
    %4855 = vmatpush2.msra.mxu0 0.0
    %4856 = vmatprep.subr.mxu0 0.0
    %4857 = vmatpush2.msra.mxu0 0.0
    %4858 = vmatprep.subr.mxu0 0.0
    %4859 = vmatpush2.msra.mxu0 0.0
    %4860 = vmatprep.mubr.f32.mxu0 0.0
    %4861 = vmatmul.mubr.f32.gmra.mxu0 %v4794
    %v4862 = vpop.f32.mrf.mxu0
    %v4863 = vadd.f32 0.0, %v4862
    %v4864 = vpop.f32.mrf.mxu0
    %4865 = vdwg.mxu0
    %4866 = vrot.lane.b32.xlu0 %v200, 64
    %v4867 = vpop.permute.xlu0 %4866
    %v4870 = vsel %vm301, %v4137, 0
    %4872 = vmatprep.subr.mxu0 0.0
    %4873 = vmatpush1.msra.mxu0 0.0
    %4874 = vmatprep.subr.mxu0 0.0
    %4875 = vmatpush1.msra.mxu0 0.0
    %4876 = vmatprep.subr.mxu0 0.0
    %4877 = vmatpush1.msra.mxu0 0.0
    %4878 = vmatprep.subr.mxu0 0.0
    %4879 = vmatpush1.msra.mxu0 0.0
    %4880 = vmatprep.subr.mxu0 0.0
    %4881 = vmatpush1.msra.mxu0 0.0
    %4882 = vmatprep.subr.mxu0 0.0
    %4883 = vmatpush1.msra.mxu0 0.0
    %4884 = vmatprep.subr.mxu0 0.0
    %4885 = vmatpush1.msra.mxu0 0.0
    %4886 = vmatprep.subr.mxu0 0.0
    %4887 = vmatpush1.msra.mxu0 0.0
    %4888 = vmatprep.subr.mxu0 0.0
    %4889 = vmatpush1.msra.mxu0 0.0
    %4890 = vmatprep.subr.mxu0 0.0
    %4891 = vmatpush1.msra.mxu0 0.0
    %4892 = vmatprep.subr.mxu0 0.0
    %4893 = vmatpush1.msra.mxu0 0.0
    %4894 = vmatprep.subr.mxu0 0.0
    %4895 = vmatpush1.msra.mxu0 0.0
    %4896 = vmatprep.subr.mxu0 0.0
    %4897 = vmatpush1.msra.mxu0 0.0
    %4898 = vmatprep.subr.mxu0 0.0
    %4899 = vmatpush1.msra.mxu0 0.0
    %4900 = vmatprep.subr.mxu0 0.0
    %4901 = vmatpush1.msra.mxu0 0.0
    %4902 = vmatprep.subr.mxu0 0.0
    %4903 = vmatpush1.msra.mxu0 %v4867
    %4904 = vmatprep.subr.mxu0 0.0
    %4905 = vmatpush2.msra.mxu0 0.0
    %4906 = vmatprep.subr.mxu0 0.0
    %4907 = vmatpush2.msra.mxu0 0.0
    %4908 = vmatprep.subr.mxu0 0.0
    %4909 = vmatpush2.msra.mxu0 0.0
    %4910 = vmatprep.subr.mxu0 0.0
    %4911 = vmatpush2.msra.mxu0 0.0
    %4912 = vmatprep.subr.mxu0 0.0
    %4913 = vmatpush2.msra.mxu0 0.0
    %4914 = vmatprep.subr.mxu0 0.0
    %4915 = vmatpush2.msra.mxu0 0.0
    %4916 = vmatprep.subr.mxu0 0.0
    %4917 = vmatpush2.msra.mxu0 0.0
    %4918 = vmatprep.subr.mxu0 0.0
    %4919 = vmatpush2.msra.mxu0 0.0
    %4920 = vmatprep.subr.mxu0 0.0
    %4921 = vmatpush2.msra.mxu0 0.0
    %4922 = vmatprep.subr.mxu0 0.0
    %4923 = vmatpush2.msra.mxu0 0.0
    %4924 = vmatprep.subr.mxu0 0.0
    %4925 = vmatpush2.msra.mxu0 0.0
    %4926 = vmatprep.subr.mxu0 0.0
    %4927 = vmatpush2.msra.mxu0 0.0
    %4928 = vmatprep.subr.mxu0 0.0
    %4929 = vmatpush2.msra.mxu0 0.0
    %4930 = vmatprep.subr.mxu0 0.0
    %4931 = vmatpush2.msra.mxu0 0.0
    %4932 = vmatprep.subr.mxu0 0.0
    %4933 = vmatpush2.msra.mxu0 0.0
    %4934 = vmatprep.subr.mxu0 0.0
    %4935 = vmatpush2.msra.mxu0 0.0
    %4936 = vmatprep.mubr.f32.mxu0 0.0
    %4937 = vmatmul.mubr.f32.gmra.mxu0 %v4870
    %v4938 = vpop.f32.mrf.mxu0
    %v4939 = vadd.f32 0.0, %v4938
    %v4940 = vpop.f32.mrf.mxu0
    %4941 = vdwg.mxu0
    %4942 = vrot.lane.b32.xlu0 %v202, 64
    %v4943 = vpop.permute.xlu0 %4942
    %v4946 = vsel %vm301, %v4139, 0
    %4948 = vmatprep.subr.mxu0 0.0
    %4949 = vmatpush1.msra.mxu0 0.0
    %4950 = vmatprep.subr.mxu0 0.0
    %4951 = vmatpush1.msra.mxu0 0.0
    %4952 = vmatprep.subr.mxu0 0.0
    %4953 = vmatpush1.msra.mxu0 0.0
    %4954 = vmatprep.subr.mxu0 0.0
    %4955 = vmatpush1.msra.mxu0 0.0
    %4956 = vmatprep.subr.mxu0 0.0
    %4957 = vmatpush1.msra.mxu0 0.0
    %4958 = vmatprep.subr.mxu0 0.0
    %4959 = vmatpush1.msra.mxu0 0.0
    %4960 = vmatprep.subr.mxu0 0.0
    %4961 = vmatpush1.msra.mxu0 0.0
    %4962 = vmatprep.subr.mxu0 0.0
    %4963 = vmatpush1.msra.mxu0 0.0
    %4964 = vmatprep.subr.mxu0 0.0
    %4965 = vmatpush1.msra.mxu0 0.0
    %4966 = vmatprep.subr.mxu0 0.0
    %4967 = vmatpush1.msra.mxu0 0.0
    %4968 = vmatprep.subr.mxu0 0.0
    %4969 = vmatpush1.msra.mxu0 0.0
    %4970 = vmatprep.subr.mxu0 0.0
    %4971 = vmatpush1.msra.mxu0 0.0
    %4972 = vmatprep.subr.mxu0 0.0
    %4973 = vmatpush1.msra.mxu0 0.0
    %4974 = vmatprep.subr.mxu0 0.0
    %4975 = vmatpush1.msra.mxu0 0.0
    %4976 = vmatprep.subr.mxu0 0.0
    %4977 = vmatpush1.msra.mxu0 0.0
    %4978 = vmatprep.subr.mxu0 0.0
    %4979 = vmatpush1.msra.mxu0 %v4943
    %4980 = vmatprep.subr.mxu0 0.0
    %4981 = vmatpush2.msra.mxu0 0.0
    %4982 = vmatprep.subr.mxu0 0.0
    %4983 = vmatpush2.msra.mxu0 0.0
    %4984 = vmatprep.subr.mxu0 0.0
    %4985 = vmatpush2.msra.mxu0 0.0
    %4986 = vmatprep.subr.mxu0 0.0
    %4987 = vmatpush2.msra.mxu0 0.0
    %4988 = vmatprep.subr.mxu0 0.0
    %4989 = vmatpush2.msra.mxu0 0.0
    %4990 = vmatprep.subr.mxu0 0.0
    %4991 = vmatpush2.msra.mxu0 0.0
    %4992 = vmatprep.subr.mxu0 0.0
    %4993 = vmatpush2.msra.mxu0 0.0
    %4994 = vmatprep.subr.mxu0 0.0
    %4995 = vmatpush2.msra.mxu0 0.0
    %4996 = vmatprep.subr.mxu0 0.0
    %4997 = vmatpush2.msra.mxu0 0.0
    %4998 = vmatprep.subr.mxu0 0.0
    %4999 = vmatpush2.msra.mxu0 0.0
    %5000 = vmatprep.subr.mxu0 0.0
    %5001 = vmatpush2.msra.mxu0 0.0
    %5002 = vmatprep.subr.mxu0 0.0
    %5003 = vmatpush2.msra.mxu0 0.0
    %5004 = vmatprep.subr.mxu0 0.0
    %5005 = vmatpush2.msra.mxu0 0.0
    %5006 = vmatprep.subr.mxu0 0.0
    %5007 = vmatpush2.msra.mxu0 0.0
    %5008 = vmatprep.subr.mxu0 0.0
    %5009 = vmatpush2.msra.mxu0 0.0
    %5010 = vmatprep.subr.mxu0 0.0
    %5011 = vmatpush2.msra.mxu0 0.0
    %5012 = vmatprep.mubr.f32.mxu0 0.0
    %5013 = vmatmul.mubr.f32.gmra.mxu0 %v4946
    %v5014 = vpop.f32.mrf.mxu0
    %v5015 = vadd.f32 0.0, %v5014
    %v5016 = vpop.f32.mrf.mxu0
    %5017 = vdwg.mxu0
    %5018 = vrot.lane.b32.xlu0 %v204, 64
    %v5019 = vpop.permute.xlu0 %5018
    %v5022 = vsel %vm301, %v4141, 0
    %5024 = vmatprep.subr.mxu0 0.0
    %5025 = vmatpush1.msra.mxu0 0.0
    %5026 = vmatprep.subr.mxu0 0.0
    %5027 = vmatpush1.msra.mxu0 0.0
    %5028 = vmatprep.subr.mxu0 0.0
    %5029 = vmatpush1.msra.mxu0 0.0
    %5030 = vmatprep.subr.mxu0 0.0
    %5031 = vmatpush1.msra.mxu0 0.0
    %5032 = vmatprep.subr.mxu0 0.0
    %5033 = vmatpush1.msra.mxu0 0.0
    %5034 = vmatprep.subr.mxu0 0.0
    %5035 = vmatpush1.msra.mxu0 0.0
    %5036 = vmatprep.subr.mxu0 0.0
    %5037 = vmatpush1.msra.mxu0 0.0
    %5038 = vmatprep.subr.mxu0 0.0
    %5039 = vmatpush1.msra.mxu0 0.0
    %5040 = vmatprep.subr.mxu0 0.0
    %5041 = vmatpush1.msra.mxu0 0.0
    %5042 = vmatprep.subr.mxu0 0.0
    %5043 = vmatpush1.msra.mxu0 0.0
    %5044 = vmatprep.subr.mxu0 0.0
    %5045 = vmatpush1.msra.mxu0 0.0
    %5046 = vmatprep.subr.mxu0 0.0
    %5047 = vmatpush1.msra.mxu0 0.0
    %5048 = vmatprep.subr.mxu0 0.0
    %5049 = vmatpush1.msra.mxu0 0.0
    %5050 = vmatprep.subr.mxu0 0.0
    %5051 = vmatpush1.msra.mxu0 0.0
    %5052 = vmatprep.subr.mxu0 0.0
    %5053 = vmatpush1.msra.mxu0 0.0
    %5054 = vmatprep.subr.mxu0 0.0
    %5055 = vmatpush1.msra.mxu0 %v5019
    %5056 = vmatprep.subr.mxu0 0.0
    %5057 = vmatpush2.msra.mxu0 0.0
    %5058 = vmatprep.subr.mxu0 0.0
    %5059 = vmatpush2.msra.mxu0 0.0
    %5060 = vmatprep.subr.mxu0 0.0
    %5061 = vmatpush2.msra.mxu0 0.0
    %5062 = vmatprep.subr.mxu0 0.0
    %5063 = vmatpush2.msra.mxu0 0.0
    %5064 = vmatprep.subr.mxu0 0.0
    %5065 = vmatpush2.msra.mxu0 0.0
    %5066 = vmatprep.subr.mxu0 0.0
    %5067 = vmatpush2.msra.mxu0 0.0
    %5068 = vmatprep.subr.mxu0 0.0
    %5069 = vmatpush2.msra.mxu0 0.0
    %5070 = vmatprep.subr.mxu0 0.0
    %5071 = vmatpush2.msra.mxu0 0.0
    %5072 = vmatprep.subr.mxu0 0.0
    %5073 = vmatpush2.msra.mxu0 0.0
    %5074 = vmatprep.subr.mxu0 0.0
    %5075 = vmatpush2.msra.mxu0 0.0
    %5076 = vmatprep.subr.mxu0 0.0
    %5077 = vmatpush2.msra.mxu0 0.0
    %5078 = vmatprep.subr.mxu0 0.0
    %5079 = vmatpush2.msra.mxu0 0.0
    %5080 = vmatprep.subr.mxu0 0.0
    %5081 = vmatpush2.msra.mxu0 0.0
    %5082 = vmatprep.subr.mxu0 0.0
    %5083 = vmatpush2.msra.mxu0 0.0
    %5084 = vmatprep.subr.mxu0 0.0
    %5085 = vmatpush2.msra.mxu0 0.0
    %5086 = vmatprep.subr.mxu0 0.0
    %5087 = vmatpush2.msra.mxu0 0.0
    %5088 = vmatprep.mubr.f32.mxu0 0.0
    %5089 = vmatmul.mubr.f32.gmra.mxu0 %v5022
    %v5090 = vpop.f32.mrf.mxu0
    %v5091 = vadd.f32 0.0, %v5090
    %v5092 = vpop.f32.mrf.mxu0
    %5093 = vdwg.mxu0
    %5094 = vrot.lane.b32.xlu0 %v206, 64
    %v5095 = vpop.permute.xlu0 %5094
    %v5098 = vsel %vm301, %v4143, 0
    %5100 = vmatprep.subr.mxu0 0.0
    %5101 = vmatpush1.msra.mxu0 0.0
    %5102 = vmatprep.subr.mxu0 0.0
    %5103 = vmatpush1.msra.mxu0 0.0
    %5104 = vmatprep.subr.mxu0 0.0
    %5105 = vmatpush1.msra.mxu0 0.0
    %5106 = vmatprep.subr.mxu0 0.0
    %5107 = vmatpush1.msra.mxu0 0.0
    %5108 = vmatprep.subr.mxu0 0.0
    %5109 = vmatpush1.msra.mxu0 0.0
    %5110 = vmatprep.subr.mxu0 0.0
    %5111 = vmatpush1.msra.mxu0 0.0
    %5112 = vmatprep.subr.mxu0 0.0
    %5113 = vmatpush1.msra.mxu0 0.0
    %5114 = vmatprep.subr.mxu0 0.0
    %5115 = vmatpush1.msra.mxu0 0.0
    %5116 = vmatprep.subr.mxu0 0.0
    %5117 = vmatpush1.msra.mxu0 0.0
    %5118 = vmatprep.subr.mxu0 0.0
    %5119 = vmatpush1.msra.mxu0 0.0
    %5120 = vmatprep.subr.mxu0 0.0
    %5121 = vmatpush1.msra.mxu0 0.0
    %5122 = vmatprep.subr.mxu0 0.0
    %5123 = vmatpush1.msra.mxu0 0.0
    %5124 = vmatprep.subr.mxu0 0.0
    %5125 = vmatpush1.msra.mxu0 0.0
    %5126 = vmatprep.subr.mxu0 0.0
    %5127 = vmatpush1.msra.mxu0 0.0
    %5128 = vmatprep.subr.mxu0 0.0
    %5129 = vmatpush1.msra.mxu0 0.0
    %5130 = vmatprep.subr.mxu0 0.0
    %5131 = vmatpush1.msra.mxu0 %v5095
    %5132 = vmatprep.subr.mxu0 0.0
    %5133 = vmatpush2.msra.mxu0 0.0
    %5134 = vmatprep.subr.mxu0 0.0
    %5135 = vmatpush2.msra.mxu0 0.0
    %5136 = vmatprep.subr.mxu0 0.0
    %5137 = vmatpush2.msra.mxu0 0.0
    %5138 = vmatprep.subr.mxu0 0.0
    %5139 = vmatpush2.msra.mxu0 0.0
    %5140 = vmatprep.subr.mxu0 0.0
    %5141 = vmatpush2.msra.mxu0 0.0
    %5142 = vmatprep.subr.mxu0 0.0
    %5143 = vmatpush2.msra.mxu0 0.0
    %5144 = vmatprep.subr.mxu0 0.0
    %5145 = vmatpush2.msra.mxu0 0.0
    %5146 = vmatprep.subr.mxu0 0.0
    %5147 = vmatpush2.msra.mxu0 0.0
    %5148 = vmatprep.subr.mxu0 0.0
    %5149 = vmatpush2.msra.mxu0 0.0
    %5150 = vmatprep.subr.mxu0 0.0
    %5151 = vmatpush2.msra.mxu0 0.0
    %5152 = vmatprep.subr.mxu0 0.0
    %5153 = vmatpush2.msra.mxu0 0.0
    %5154 = vmatprep.subr.mxu0 0.0
    %5155 = vmatpush2.msra.mxu0 0.0
    %5156 = vmatprep.subr.mxu0 0.0
    %5157 = vmatpush2.msra.mxu0 0.0
    %5158 = vmatprep.subr.mxu0 0.0
    %5159 = vmatpush2.msra.mxu0 0.0
    %5160 = vmatprep.subr.mxu0 0.0
    %5161 = vmatpush2.msra.mxu0 0.0
    %5162 = vmatprep.subr.mxu0 0.0
    %5163 = vmatpush2.msra.mxu0 0.0
    %5164 = vmatprep.mubr.f32.mxu0 0.0
    %5165 = vmatmul.mubr.f32.gmra.mxu0 %v5098
    %v5166 = vpop.f32.mrf.mxu0
    %v5167 = vadd.f32 0.0, %v5166
    %v5168 = vpop.f32.mrf.mxu0
    %5169 = vdwg.mxu0
    %5170 = vrot.lane.b32.xlu0 %v208, 64
    %v5171 = vpop.permute.xlu0 %5170
    %v5174 = vsel %vm301, %v4145, 0
    %5176 = vmatprep.subr.mxu0 0.0
    %5177 = vmatpush1.msra.mxu0 0.0
    %5178 = vmatprep.subr.mxu0 0.0
    %5179 = vmatpush1.msra.mxu0 0.0
    %5180 = vmatprep.subr.mxu0 0.0
    %5181 = vmatpush1.msra.mxu0 0.0
    %5182 = vmatprep.subr.mxu0 0.0
    %5183 = vmatpush1.msra.mxu0 0.0
    %5184 = vmatprep.subr.mxu0 0.0
    %5185 = vmatpush1.msra.mxu0 0.0
    %5186 = vmatprep.subr.mxu0 0.0
    %5187 = vmatpush1.msra.mxu0 0.0
    %5188 = vmatprep.subr.mxu0 0.0
    %5189 = vmatpush1.msra.mxu0 0.0
    %5190 = vmatprep.subr.mxu0 0.0
    %5191 = vmatpush1.msra.mxu0 0.0
    %5192 = vmatprep.subr.mxu0 0.0
    %5193 = vmatpush1.msra.mxu0 0.0
    %5194 = vmatprep.subr.mxu0 0.0
    %5195 = vmatpush1.msra.mxu0 0.0
    %5196 = vmatprep.subr.mxu0 0.0
    %5197 = vmatpush1.msra.mxu0 0.0
    %5198 = vmatprep.subr.mxu0 0.0
    %5199 = vmatpush1.msra.mxu0 0.0
    %5200 = vmatprep.subr.mxu0 0.0
    %5201 = vmatpush1.msra.mxu0 0.0
    %5202 = vmatprep.subr.mxu0 0.0
    %5203 = vmatpush1.msra.mxu0 0.0
    %5204 = vmatprep.subr.mxu0 0.0
    %5205 = vmatpush1.msra.mxu0 0.0
    %5206 = vmatprep.subr.mxu0 0.0
    %5207 = vmatpush1.msra.mxu0 %v5171
    %5208 = vmatprep.subr.mxu0 0.0
    %5209 = vmatpush2.msra.mxu0 0.0
    %5210 = vmatprep.subr.mxu0 0.0
    %5211 = vmatpush2.msra.mxu0 0.0
    %5212 = vmatprep.subr.mxu0 0.0
    %5213 = vmatpush2.msra.mxu0 0.0
    %5214 = vmatprep.subr.mxu0 0.0
    %5215 = vmatpush2.msra.mxu0 0.0
    %5216 = vmatprep.subr.mxu0 0.0
    %5217 = vmatpush2.msra.mxu0 0.0
    %5218 = vmatprep.subr.mxu0 0.0
    %5219 = vmatpush2.msra.mxu0 0.0
    %5220 = vmatprep.subr.mxu0 0.0
    %5221 = vmatpush2.msra.mxu0 0.0
    %5222 = vmatprep.subr.mxu0 0.0
    %5223 = vmatpush2.msra.mxu0 0.0
    %5224 = vmatprep.subr.mxu0 0.0
    %5225 = vmatpush2.msra.mxu0 0.0
    %5226 = vmatprep.subr.mxu0 0.0
    %5227 = vmatpush2.msra.mxu0 0.0
    %5228 = vmatprep.subr.mxu0 0.0
    %5229 = vmatpush2.msra.mxu0 0.0
    %5230 = vmatprep.subr.mxu0 0.0
    %5231 = vmatpush2.msra.mxu0 0.0
    %5232 = vmatprep.subr.mxu0 0.0
    %5233 = vmatpush2.msra.mxu0 0.0
    %5234 = vmatprep.subr.mxu0 0.0
    %5235 = vmatpush2.msra.mxu0 0.0
    %5236 = vmatprep.subr.mxu0 0.0
    %5237 = vmatpush2.msra.mxu0 0.0
    %5238 = vmatprep.subr.mxu0 0.0
    %5239 = vmatpush2.msra.mxu0 0.0
    %5240 = vmatprep.mubr.f32.mxu0 0.0
    %5241 = vmatmul.mubr.f32.gmra.mxu0 %v5174
    %v5242 = vpop.f32.mrf.mxu0
    %v5243 = vadd.f32 0.0, %v5242
    %v5244 = vpop.f32.mrf.mxu0
    %5245 = vdwg.mxu0
    %5246 = vrot.lane.b32.xlu0 %v210, 64
    %v5247 = vpop.permute.xlu0 %5246
    %v5250 = vsel %vm301, %v4147, 0
    %5252 = vmatprep.subr.mxu0 0.0
    %5253 = vmatpush1.msra.mxu0 0.0
    %5254 = vmatprep.subr.mxu0 0.0
    %5255 = vmatpush1.msra.mxu0 0.0
    %5256 = vmatprep.subr.mxu0 0.0
    %5257 = vmatpush1.msra.mxu0 0.0
    %5258 = vmatprep.subr.mxu0 0.0
    %5259 = vmatpush1.msra.mxu0 0.0
    %5260 = vmatprep.subr.mxu0 0.0
    %5261 = vmatpush1.msra.mxu0 0.0
    %5262 = vmatprep.subr.mxu0 0.0
    %5263 = vmatpush1.msra.mxu0 0.0
    %5264 = vmatprep.subr.mxu0 0.0
    %5265 = vmatpush1.msra.mxu0 0.0
    %5266 = vmatprep.subr.mxu0 0.0
    %5267 = vmatpush1.msra.mxu0 0.0
    %5268 = vmatprep.subr.mxu0 0.0
    %5269 = vmatpush1.msra.mxu0 0.0
    %5270 = vmatprep.subr.mxu0 0.0
    %5271 = vmatpush1.msra.mxu0 0.0
    %5272 = vmatprep.subr.mxu0 0.0
    %5273 = vmatpush1.msra.mxu0 0.0
    %5274 = vmatprep.subr.mxu0 0.0
    %5275 = vmatpush1.msra.mxu0 0.0
    %5276 = vmatprep.subr.mxu0 0.0
    %5277 = vmatpush1.msra.mxu0 0.0
    %5278 = vmatprep.subr.mxu0 0.0
    %5279 = vmatpush1.msra.mxu0 0.0
    %5280 = vmatprep.subr.mxu0 0.0
    %5281 = vmatpush1.msra.mxu0 0.0
    %5282 = vmatprep.subr.mxu0 0.0
    %5283 = vmatpush1.msra.mxu0 %v5247
    %5284 = vmatprep.subr.mxu0 0.0
    %5285 = vmatpush2.msra.mxu0 0.0
    %5286 = vmatprep.subr.mxu0 0.0
    %5287 = vmatpush2.msra.mxu0 0.0
    %5288 = vmatprep.subr.mxu0 0.0
    %5289 = vmatpush2.msra.mxu0 0.0
    %5290 = vmatprep.subr.mxu0 0.0
    %5291 = vmatpush2.msra.mxu0 0.0
    %5292 = vmatprep.subr.mxu0 0.0
    %5293 = vmatpush2.msra.mxu0 0.0
    %5294 = vmatprep.subr.mxu0 0.0
    %5295 = vmatpush2.msra.mxu0 0.0
    %5296 = vmatprep.subr.mxu0 0.0
    %5297 = vmatpush2.msra.mxu0 0.0
    %5298 = vmatprep.subr.mxu0 0.0
    %5299 = vmatpush2.msra.mxu0 0.0
    %5300 = vmatprep.subr.mxu0 0.0
    %5301 = vmatpush2.msra.mxu0 0.0
    %5302 = vmatprep.subr.mxu0 0.0
    %5303 = vmatpush2.msra.mxu0 0.0
    %5304 = vmatprep.subr.mxu0 0.0
    %5305 = vmatpush2.msra.mxu0 0.0
    %5306 = vmatprep.subr.mxu0 0.0
    %5307 = vmatpush2.msra.mxu0 0.0
    %5308 = vmatprep.subr.mxu0 0.0
    %5309 = vmatpush2.msra.mxu0 0.0
    %5310 = vmatprep.subr.mxu0 0.0
    %5311 = vmatpush2.msra.mxu0 0.0
    %5312 = vmatprep.subr.mxu0 0.0
    %5313 = vmatpush2.msra.mxu0 0.0
    %5314 = vmatprep.subr.mxu0 0.0
    %5315 = vmatpush2.msra.mxu0 0.0
    %5316 = vmatprep.mubr.f32.mxu0 0.0
    %5317 = vmatmul.mubr.f32.gmra.mxu0 %v5250
    %v5318 = vpop.f32.mrf.mxu0
    %v5319 = vadd.f32 0.0, %v5318
    %v5320 = vpop.f32.mrf.mxu0
    %5321 = vdwg.mxu0
    %5322 = vrot.lane.b32.xlu0 %v212, 64
    %v5323 = vpop.permute.xlu0 %5322
    %v5326 = vsel %vm301, %v4149, 0
    %5328 = vmatprep.subr.mxu0 0.0
    %5329 = vmatpush1.msra.mxu0 0.0
    %5330 = vmatprep.subr.mxu0 0.0
    %5331 = vmatpush1.msra.mxu0 0.0
    %5332 = vmatprep.subr.mxu0 0.0
    %5333 = vmatpush1.msra.mxu0 0.0
    %5334 = vmatprep.subr.mxu0 0.0
    %5335 = vmatpush1.msra.mxu0 0.0
    %5336 = vmatprep.subr.mxu0 0.0
    %5337 = vmatpush1.msra.mxu0 0.0
    %5338 = vmatprep.subr.mxu0 0.0
    %5339 = vmatpush1.msra.mxu0 0.0
    %5340 = vmatprep.subr.mxu0 0.0
    %5341 = vmatpush1.msra.mxu0 0.0
    %5342 = vmatprep.subr.mxu0 0.0
    %5343 = vmatpush1.msra.mxu0 0.0
    %5344 = vmatprep.subr.mxu0 0.0
    %5345 = vmatpush1.msra.mxu0 0.0
    %5346 = vmatprep.subr.mxu0 0.0
    %5347 = vmatpush1.msra.mxu0 0.0
    %5348 = vmatprep.subr.mxu0 0.0
    %5349 = vmatpush1.msra.mxu0 0.0
    %5350 = vmatprep.subr.mxu0 0.0
    %5351 = vmatpush1.msra.mxu0 0.0
    %5352 = vmatprep.subr.mxu0 0.0
    %5353 = vmatpush1.msra.mxu0 0.0
    %5354 = vmatprep.subr.mxu0 0.0
    %5355 = vmatpush1.msra.mxu0 0.0
    %5356 = vmatprep.subr.mxu0 0.0
    %5357 = vmatpush1.msra.mxu0 0.0
    %5358 = vmatprep.subr.mxu0 0.0
    %5359 = vmatpush1.msra.mxu0 %v5323
    %5360 = vmatprep.subr.mxu0 0.0
    %5361 = vmatpush2.msra.mxu0 0.0
    %5362 = vmatprep.subr.mxu0 0.0
    %5363 = vmatpush2.msra.mxu0 0.0
    %5364 = vmatprep.subr.mxu0 0.0
    %5365 = vmatpush2.msra.mxu0 0.0
    %5366 = vmatprep.subr.mxu0 0.0
    %5367 = vmatpush2.msra.mxu0 0.0
    %5368 = vmatprep.subr.mxu0 0.0
    %5369 = vmatpush2.msra.mxu0 0.0
    %5370 = vmatprep.subr.mxu0 0.0
    %5371 = vmatpush2.msra.mxu0 0.0
    %5372 = vmatprep.subr.mxu0 0.0
    %5373 = vmatpush2.msra.mxu0 0.0
    %5374 = vmatprep.subr.mxu0 0.0
    %5375 = vmatpush2.msra.mxu0 0.0
    %5376 = vmatprep.subr.mxu0 0.0
    %5377 = vmatpush2.msra.mxu0 0.0
    %5378 = vmatprep.subr.mxu0 0.0
    %5379 = vmatpush2.msra.mxu0 0.0
    %5380 = vmatprep.subr.mxu0 0.0
    %5381 = vmatpush2.msra.mxu0 0.0
    %5382 = vmatprep.subr.mxu0 0.0
    %5383 = vmatpush2.msra.mxu0 0.0
    %5384 = vmatprep.subr.mxu0 0.0
    %5385 = vmatpush2.msra.mxu0 0.0
    %5386 = vmatprep.subr.mxu0 0.0
    %5387 = vmatpush2.msra.mxu0 0.0
    %5388 = vmatprep.subr.mxu0 0.0
    %5389 = vmatpush2.msra.mxu0 0.0
    %5390 = vmatprep.subr.mxu0 0.0
    %5391 = vmatpush2.msra.mxu0 0.0
    %5392 = vmatprep.mubr.f32.mxu0 0.0
    %5393 = vmatmul.mubr.f32.gmra.mxu0 %v5326
    %v5394 = vpop.f32.mrf.mxu0
    %v5395 = vadd.f32 0.0, %v5394
    %v5396 = vpop.f32.mrf.mxu0
    %5397 = vdwg.mxu0
    %5398 = vrot.lane.b32.xlu0 %v222, 64
    %v5399 = vpop.permute.xlu0 %5398
    %v5402 = vsel %vm301, %v4151, 0
    %5404 = vmatprep.subr.mxu0 0.0
    %5405 = vmatpush1.msra.mxu0 0.0
    %5406 = vmatprep.subr.mxu0 0.0
    %5407 = vmatpush1.msra.mxu0 0.0
    %5408 = vmatprep.subr.mxu0 0.0
    %5409 = vmatpush1.msra.mxu0 0.0
    %5410 = vmatprep.subr.mxu0 0.0
    %5411 = vmatpush1.msra.mxu0 0.0
    %5412 = vmatprep.subr.mxu0 0.0
    %5413 = vmatpush1.msra.mxu0 0.0
    %5414 = vmatprep.subr.mxu0 0.0
    %5415 = vmatpush1.msra.mxu0 0.0
    %5416 = vmatprep.subr.mxu0 0.0
    %5417 = vmatpush1.msra.mxu0 0.0
    %5418 = vmatprep.subr.mxu0 0.0
    %5419 = vmatpush1.msra.mxu0 0.0
    %5420 = vmatprep.subr.mxu0 0.0
    %5421 = vmatpush1.msra.mxu0 0.0
    %5422 = vmatprep.subr.mxu0 0.0
    %5423 = vmatpush1.msra.mxu0 0.0
    %5424 = vmatprep.subr.mxu0 0.0
    %5425 = vmatpush1.msra.mxu0 0.0
    %5426 = vmatprep.subr.mxu0 0.0
    %5427 = vmatpush1.msra.mxu0 0.0
    %5428 = vmatprep.subr.mxu0 0.0
    %5429 = vmatpush1.msra.mxu0 0.0
    %5430 = vmatprep.subr.mxu0 0.0
    %5431 = vmatpush1.msra.mxu0 0.0
    %5432 = vmatprep.subr.mxu0 0.0
    %5433 = vmatpush1.msra.mxu0 0.0
    %5434 = vmatprep.subr.mxu0 0.0
    %5435 = vmatpush1.msra.mxu0 %v5399
    %5436 = vmatprep.subr.mxu0 0.0
    %5437 = vmatpush2.msra.mxu0 0.0
    %5438 = vmatprep.subr.mxu0 0.0
    %5439 = vmatpush2.msra.mxu0 0.0
    %5440 = vmatprep.subr.mxu0 0.0
    %5441 = vmatpush2.msra.mxu0 0.0
    %5442 = vmatprep.subr.mxu0 0.0
    %5443 = vmatpush2.msra.mxu0 0.0
    %5444 = vmatprep.subr.mxu0 0.0
    %5445 = vmatpush2.msra.mxu0 0.0
    %5446 = vmatprep.subr.mxu0 0.0
    %5447 = vmatpush2.msra.mxu0 0.0
    %5448 = vmatprep.subr.mxu0 0.0
    %5449 = vmatpush2.msra.mxu0 0.0
    %5450 = vmatprep.subr.mxu0 0.0
    %5451 = vmatpush2.msra.mxu0 0.0
    %5452 = vmatprep.subr.mxu0 0.0
    %5453 = vmatpush2.msra.mxu0 0.0
    %5454 = vmatprep.subr.mxu0 0.0
    %5455 = vmatpush2.msra.mxu0 0.0
    %5456 = vmatprep.subr.mxu0 0.0
    %5457 = vmatpush2.msra.mxu0 0.0
    %5458 = vmatprep.subr.mxu0 0.0
    %5459 = vmatpush2.msra.mxu0 0.0
    %5460 = vmatprep.subr.mxu0 0.0
    %5461 = vmatpush2.msra.mxu0 0.0
    %5462 = vmatprep.subr.mxu0 0.0
    %5463 = vmatpush2.msra.mxu0 0.0
    %5464 = vmatprep.subr.mxu0 0.0
    %5465 = vmatpush2.msra.mxu0 0.0
    %5466 = vmatprep.subr.mxu0 0.0
    %5467 = vmatpush2.msra.mxu0 0.0
    %5468 = vmatprep.mubr.f32.mxu0 0.0
    %5469 = vmatmul.mubr.f32.gmra.mxu0 %v5402
    %v5470 = vpop.f32.mrf.mxu0
    %v5471 = vadd.f32 0.0, %v5470
    %v5472 = vpop.f32.mrf.mxu0
    %5473 = vdwg.mxu0
    %5474 = vrot.lane.b32.xlu0 %v224, 64
    %v5475 = vpop.permute.xlu0 %5474
    %v5478 = vsel %vm301, %v4153, 0
    %5480 = vmatprep.subr.mxu0 0.0
    %5481 = vmatpush1.msra.mxu0 0.0
    %5482 = vmatprep.subr.mxu0 0.0
    %5483 = vmatpush1.msra.mxu0 0.0
    %5484 = vmatprep.subr.mxu0 0.0
    %5485 = vmatpush1.msra.mxu0 0.0
    %5486 = vmatprep.subr.mxu0 0.0
    %5487 = vmatpush1.msra.mxu0 0.0
    %5488 = vmatprep.subr.mxu0 0.0
    %5489 = vmatpush1.msra.mxu0 0.0
    %5490 = vmatprep.subr.mxu0 0.0
    %5491 = vmatpush1.msra.mxu0 0.0
    %5492 = vmatprep.subr.mxu0 0.0
    %5493 = vmatpush1.msra.mxu0 0.0
    %5494 = vmatprep.subr.mxu0 0.0
    %5495 = vmatpush1.msra.mxu0 0.0
    %5496 = vmatprep.subr.mxu0 0.0
    %5497 = vmatpush1.msra.mxu0 0.0
    %5498 = vmatprep.subr.mxu0 0.0
    %5499 = vmatpush1.msra.mxu0 0.0
    %5500 = vmatprep.subr.mxu0 0.0
    %5501 = vmatpush1.msra.mxu0 0.0
    %5502 = vmatprep.subr.mxu0 0.0
    %5503 = vmatpush1.msra.mxu0 0.0
    %5504 = vmatprep.subr.mxu0 0.0
    %5505 = vmatpush1.msra.mxu0 0.0
    %5506 = vmatprep.subr.mxu0 0.0
    %5507 = vmatpush1.msra.mxu0 0.0
    %5508 = vmatprep.subr.mxu0 0.0
    %5509 = vmatpush1.msra.mxu0 0.0
    %5510 = vmatprep.subr.mxu0 0.0
    %5511 = vmatpush1.msra.mxu0 %v5475
    %5512 = vmatprep.subr.mxu0 0.0
    %5513 = vmatpush2.msra.mxu0 0.0
    %5514 = vmatprep.subr.mxu0 0.0
    %5515 = vmatpush2.msra.mxu0 0.0
    %5516 = vmatprep.subr.mxu0 0.0
    %5517 = vmatpush2.msra.mxu0 0.0
    %5518 = vmatprep.subr.mxu0 0.0
    %5519 = vmatpush2.msra.mxu0 0.0
    %5520 = vmatprep.subr.mxu0 0.0
    %5521 = vmatpush2.msra.mxu0 0.0
    %5522 = vmatprep.subr.mxu0 0.0
    %5523 = vmatpush2.msra.mxu0 0.0
    %5524 = vmatprep.subr.mxu0 0.0
    %5525 = vmatpush2.msra.mxu0 0.0
    %5526 = vmatprep.subr.mxu0 0.0
    %5527 = vmatpush2.msra.mxu0 0.0
    %5528 = vmatprep.subr.mxu0 0.0
    %5529 = vmatpush2.msra.mxu0 0.0
    %5530 = vmatprep.subr.mxu0 0.0
    %5531 = vmatpush2.msra.mxu0 0.0
    %5532 = vmatprep.subr.mxu0 0.0
    %5533 = vmatpush2.msra.mxu0 0.0
    %5534 = vmatprep.subr.mxu0 0.0
    %5535 = vmatpush2.msra.mxu0 0.0
    %5536 = vmatprep.subr.mxu0 0.0
    %5537 = vmatpush2.msra.mxu0 0.0
    %5538 = vmatprep.subr.mxu0 0.0
    %5539 = vmatpush2.msra.mxu0 0.0
    %5540 = vmatprep.subr.mxu0 0.0
    %5541 = vmatpush2.msra.mxu0 0.0
    %5542 = vmatprep.subr.mxu0 0.0
    %5543 = vmatpush2.msra.mxu0 0.0
    %5544 = vmatprep.mubr.f32.mxu0 0.0
    %5545 = vmatmul.mubr.f32.gmra.mxu0 %v5478
    %v5546 = vpop.f32.mrf.mxu0
    %v5547 = vadd.f32 0.0, %v5546
    %v5548 = vpop.f32.mrf.mxu0
    %5549 = vdwg.mxu0
    %5550 = vrot.lane.b32.xlu0 %v226, 64
    %v5551 = vpop.permute.xlu0 %5550
    %v5554 = vsel %vm301, %v4155, 0
    %5556 = vmatprep.subr.mxu0 0.0
    %5557 = vmatpush1.msra.mxu0 0.0
    %5558 = vmatprep.subr.mxu0 0.0
    %5559 = vmatpush1.msra.mxu0 0.0
    %5560 = vmatprep.subr.mxu0 0.0
    %5561 = vmatpush1.msra.mxu0 0.0
    %5562 = vmatprep.subr.mxu0 0.0
    %5563 = vmatpush1.msra.mxu0 0.0
    %5564 = vmatprep.subr.mxu0 0.0
    %5565 = vmatpush1.msra.mxu0 0.0
    %5566 = vmatprep.subr.mxu0 0.0
    %5567 = vmatpush1.msra.mxu0 0.0
    %5568 = vmatprep.subr.mxu0 0.0
    %5569 = vmatpush1.msra.mxu0 0.0
    %5570 = vmatprep.subr.mxu0 0.0
    %5571 = vmatpush1.msra.mxu0 0.0
    %5572 = vmatprep.subr.mxu0 0.0
    %5573 = vmatpush1.msra.mxu0 0.0
    %5574 = vmatprep.subr.mxu0 0.0
    %5575 = vmatpush1.msra.mxu0 0.0
    %5576 = vmatprep.subr.mxu0 0.0
    %5577 = vmatpush1.msra.mxu0 0.0
    %5578 = vmatprep.subr.mxu0 0.0
    %5579 = vmatpush1.msra.mxu0 0.0
    %5580 = vmatprep.subr.mxu0 0.0
    %5581 = vmatpush1.msra.mxu0 0.0
    %5582 = vmatprep.subr.mxu0 0.0
    %5583 = vmatpush1.msra.mxu0 0.0
    %5584 = vmatprep.subr.mxu0 0.0
    %5585 = vmatpush1.msra.mxu0 0.0
    %5586 = vmatprep.subr.mxu0 0.0
    %5587 = vmatpush1.msra.mxu0 %v5551
    %5588 = vmatprep.subr.mxu0 0.0
    %5589 = vmatpush2.msra.mxu0 0.0
    %5590 = vmatprep.subr.mxu0 0.0
    %5591 = vmatpush2.msra.mxu0 0.0
    %5592 = vmatprep.subr.mxu0 0.0
    %5593 = vmatpush2.msra.mxu0 0.0
    %5594 = vmatprep.subr.mxu0 0.0
    %5595 = vmatpush2.msra.mxu0 0.0
    %5596 = vmatprep.subr.mxu0 0.0
    %5597 = vmatpush2.msra.mxu0 0.0
    %5598 = vmatprep.subr.mxu0 0.0
    %5599 = vmatpush2.msra.mxu0 0.0
    %5600 = vmatprep.subr.mxu0 0.0
    %5601 = vmatpush2.msra.mxu0 0.0
    %5602 = vmatprep.subr.mxu0 0.0
    %5603 = vmatpush2.msra.mxu0 0.0
    %5604 = vmatprep.subr.mxu0 0.0
    %5605 = vmatpush2.msra.mxu0 0.0
    %5606 = vmatprep.subr.mxu0 0.0
    %5607 = vmatpush2.msra.mxu0 0.0
    %5608 = vmatprep.subr.mxu0 0.0
    %5609 = vmatpush2.msra.mxu0 0.0
    %5610 = vmatprep.subr.mxu0 0.0
    %5611 = vmatpush2.msra.mxu0 0.0
    %5612 = vmatprep.subr.mxu0 0.0
    %5613 = vmatpush2.msra.mxu0 0.0
    %5614 = vmatprep.subr.mxu0 0.0
    %5615 = vmatpush2.msra.mxu0 0.0
    %5616 = vmatprep.subr.mxu0 0.0
    %5617 = vmatpush2.msra.mxu0 0.0
    %5618 = vmatprep.subr.mxu0 0.0
    %5619 = vmatpush2.msra.mxu0 0.0
    %5620 = vmatprep.mubr.f32.mxu0 0.0
    %5621 = vmatmul.mubr.f32.gmra.mxu0 %v5554
    %v5622 = vpop.f32.mrf.mxu0
    %v5623 = vadd.f32 0.0, %v5622
    %v5624 = vpop.f32.mrf.mxu0
    %5625 = vdwg.mxu0
    %5626 = vrot.lane.b32.xlu0 %v228, 64
    %v5627 = vpop.permute.xlu0 %5626
    %v5630 = vsel %vm301, %v4157, 0
    %5632 = vmatprep.subr.mxu0 0.0
    %5633 = vmatpush1.msra.mxu0 0.0
    %5634 = vmatprep.subr.mxu0 0.0
    %5635 = vmatpush1.msra.mxu0 0.0
    %5636 = vmatprep.subr.mxu0 0.0
    %5637 = vmatpush1.msra.mxu0 0.0
    %5638 = vmatprep.subr.mxu0 0.0
    %5639 = vmatpush1.msra.mxu0 0.0
    %5640 = vmatprep.subr.mxu0 0.0
    %5641 = vmatpush1.msra.mxu0 0.0
    %5642 = vmatprep.subr.mxu0 0.0
    %5643 = vmatpush1.msra.mxu0 0.0
    %5644 = vmatprep.subr.mxu0 0.0
    %5645 = vmatpush1.msra.mxu0 0.0
    %5646 = vmatprep.subr.mxu0 0.0
    %5647 = vmatpush1.msra.mxu0 0.0
    %5648 = vmatprep.subr.mxu0 0.0
    %5649 = vmatpush1.msra.mxu0 0.0
    %5650 = vmatprep.subr.mxu0 0.0
    %5651 = vmatpush1.msra.mxu0 0.0
    %5652 = vmatprep.subr.mxu0 0.0
    %5653 = vmatpush1.msra.mxu0 0.0
    %5654 = vmatprep.subr.mxu0 0.0
    %5655 = vmatpush1.msra.mxu0 0.0
    %5656 = vmatprep.subr.mxu0 0.0
    %5657 = vmatpush1.msra.mxu0 0.0
    %5658 = vmatprep.subr.mxu0 0.0
    %5659 = vmatpush1.msra.mxu0 0.0
    %5660 = vmatprep.subr.mxu0 0.0
    %5661 = vmatpush1.msra.mxu0 0.0
    %5662 = vmatprep.subr.mxu0 0.0
    %5663 = vmatpush1.msra.mxu0 %v5627
    %5664 = vmatprep.subr.mxu0 0.0
    %5665 = vmatpush2.msra.mxu0 0.0
    %5666 = vmatprep.subr.mxu0 0.0
    %5667 = vmatpush2.msra.mxu0 0.0
    %5668 = vmatprep.subr.mxu0 0.0
    %5669 = vmatpush2.msra.mxu0 0.0
    %5670 = vmatprep.subr.mxu0 0.0
    %5671 = vmatpush2.msra.mxu0 0.0
    %5672 = vmatprep.subr.mxu0 0.0
    %5673 = vmatpush2.msra.mxu0 0.0
    %5674 = vmatprep.subr.mxu0 0.0
    %5675 = vmatpush2.msra.mxu0 0.0
    %5676 = vmatprep.subr.mxu0 0.0
    %5677 = vmatpush2.msra.mxu0 0.0
    %5678 = vmatprep.subr.mxu0 0.0
    %5679 = vmatpush2.msra.mxu0 0.0
    %5680 = vmatprep.subr.mxu0 0.0
    %5681 = vmatpush2.msra.mxu0 0.0
    %5682 = vmatprep.subr.mxu0 0.0
    %5683 = vmatpush2.msra.mxu0 0.0
    %5684 = vmatprep.subr.mxu0 0.0
    %5685 = vmatpush2.msra.mxu0 0.0
    %5686 = vmatprep.subr.mxu0 0.0
    %5687 = vmatpush2.msra.mxu0 0.0
    %5688 = vmatprep.subr.mxu0 0.0
    %5689 = vmatpush2.msra.mxu0 0.0
    %5690 = vmatprep.subr.mxu0 0.0
    %5691 = vmatpush2.msra.mxu0 0.0
    %5692 = vmatprep.subr.mxu0 0.0
    %5693 = vmatpush2.msra.mxu0 0.0
    %5694 = vmatprep.subr.mxu0 0.0
    %5695 = vmatpush2.msra.mxu0 0.0
    %5696 = vmatprep.mubr.f32.mxu0 0.0
    %5697 = vmatmul.mubr.f32.gmra.mxu0 %v5630
    %v5698 = vpop.f32.mrf.mxu0
    %v5699 = vadd.f32 0.0, %v5698
    %v5700 = vpop.f32.mrf.mxu0
    %5701 = vdwg.mxu0
    %5702 = vrot.lane.b32.xlu0 %v230, 64
    %v5703 = vpop.permute.xlu0 %5702
    %v5706 = vsel %vm301, %v4159, 0
    %5708 = vmatprep.subr.mxu0 0.0
    %5709 = vmatpush1.msra.mxu0 0.0
    %5710 = vmatprep.subr.mxu0 0.0
    %5711 = vmatpush1.msra.mxu0 0.0
    %5712 = vmatprep.subr.mxu0 0.0
    %5713 = vmatpush1.msra.mxu0 0.0
    %5714 = vmatprep.subr.mxu0 0.0
    %5715 = vmatpush1.msra.mxu0 0.0
    %5716 = vmatprep.subr.mxu0 0.0
    %5717 = vmatpush1.msra.mxu0 0.0
    %5718 = vmatprep.subr.mxu0 0.0
    %5719 = vmatpush1.msra.mxu0 0.0
    %5720 = vmatprep.subr.mxu0 0.0
    %5721 = vmatpush1.msra.mxu0 0.0
    %5722 = vmatprep.subr.mxu0 0.0
    %5723 = vmatpush1.msra.mxu0 0.0
    %5724 = vmatprep.subr.mxu0 0.0
    %5725 = vmatpush1.msra.mxu0 0.0
    %5726 = vmatprep.subr.mxu0 0.0
    %5727 = vmatpush1.msra.mxu0 0.0
    %5728 = vmatprep.subr.mxu0 0.0
    %5729 = vmatpush1.msra.mxu0 0.0
    %5730 = vmatprep.subr.mxu0 0.0
    %5731 = vmatpush1.msra.mxu0 0.0
    %5732 = vmatprep.subr.mxu0 0.0
    %5733 = vmatpush1.msra.mxu0 0.0
    %5734 = vmatprep.subr.mxu0 0.0
    %5735 = vmatpush1.msra.mxu0 0.0
    %5736 = vmatprep.subr.mxu0 0.0
    %5737 = vmatpush1.msra.mxu0 0.0
    %5738 = vmatprep.subr.mxu0 0.0
    %5739 = vmatpush1.msra.mxu0 %v5703
    %5740 = vmatprep.subr.mxu0 0.0
    %5741 = vmatpush2.msra.mxu0 0.0
    %5742 = vmatprep.subr.mxu0 0.0
    %5743 = vmatpush2.msra.mxu0 0.0
    %5744 = vmatprep.subr.mxu0 0.0
    %5745 = vmatpush2.msra.mxu0 0.0
    %5746 = vmatprep.subr.mxu0 0.0
    %5747 = vmatpush2.msra.mxu0 0.0
    %5748 = vmatprep.subr.mxu0 0.0
    %5749 = vmatpush2.msra.mxu0 0.0
    %5750 = vmatprep.subr.mxu0 0.0
    %5751 = vmatpush2.msra.mxu0 0.0
    %5752 = vmatprep.subr.mxu0 0.0
    %5753 = vmatpush2.msra.mxu0 0.0
    %5754 = vmatprep.subr.mxu0 0.0
    %5755 = vmatpush2.msra.mxu0 0.0
    %5756 = vmatprep.subr.mxu0 0.0
    %5757 = vmatpush2.msra.mxu0 0.0
    %5758 = vmatprep.subr.mxu0 0.0
    %5759 = vmatpush2.msra.mxu0 0.0
    %5760 = vmatprep.subr.mxu0 0.0
    %5761 = vmatpush2.msra.mxu0 0.0
    %5762 = vmatprep.subr.mxu0 0.0
    %5763 = vmatpush2.msra.mxu0 0.0
    %5764 = vmatprep.subr.mxu0 0.0
    %5765 = vmatpush2.msra.mxu0 0.0
    %5766 = vmatprep.subr.mxu0 0.0
    %5767 = vmatpush2.msra.mxu0 0.0
    %5768 = vmatprep.subr.mxu0 0.0
    %5769 = vmatpush2.msra.mxu0 0.0
    %5770 = vmatprep.subr.mxu0 0.0
    %5771 = vmatpush2.msra.mxu0 0.0
    %5772 = vmatprep.mubr.f32.mxu0 0.0
    %5773 = vmatmul.mubr.f32.gmra.mxu0 %v5706
    %v5774 = vpop.f32.mrf.mxu0
    %v5775 = vadd.f32 0.0, %v5774
    %v5776 = vpop.f32.mrf.mxu0
    %5777 = vdwg.mxu0
    %5778 = vrot.lane.b32.xlu0 %v232, 64
    %v5779 = vpop.permute.xlu0 %5778
    %v5782 = vsel %vm301, %v4161, 0
    %5784 = vmatprep.subr.mxu0 0.0
    %5785 = vmatpush1.msra.mxu0 0.0
    %5786 = vmatprep.subr.mxu0 0.0
    %5787 = vmatpush1.msra.mxu0 0.0
    %5788 = vmatprep.subr.mxu0 0.0
    %5789 = vmatpush1.msra.mxu0 0.0
    %5790 = vmatprep.subr.mxu0 0.0
    %5791 = vmatpush1.msra.mxu0 0.0
    %5792 = vmatprep.subr.mxu0 0.0
    %5793 = vmatpush1.msra.mxu0 0.0
    %5794 = vmatprep.subr.mxu0 0.0
    %5795 = vmatpush1.msra.mxu0 0.0
    %5796 = vmatprep.subr.mxu0 0.0
    %5797 = vmatpush1.msra.mxu0 0.0
    %5798 = vmatprep.subr.mxu0 0.0
    %5799 = vmatpush1.msra.mxu0 0.0
    %5800 = vmatprep.subr.mxu0 0.0
    %5801 = vmatpush1.msra.mxu0 0.0
    %5802 = vmatprep.subr.mxu0 0.0
    %5803 = vmatpush1.msra.mxu0 0.0
    %5804 = vmatprep.subr.mxu0 0.0
    %5805 = vmatpush1.msra.mxu0 0.0
    %5806 = vmatprep.subr.mxu0 0.0
    %5807 = vmatpush1.msra.mxu0 0.0
    %5808 = vmatprep.subr.mxu0 0.0
    %5809 = vmatpush1.msra.mxu0 0.0
    %5810 = vmatprep.subr.mxu0 0.0
    %5811 = vmatpush1.msra.mxu0 0.0
    %5812 = vmatprep.subr.mxu0 0.0
    %5813 = vmatpush1.msra.mxu0 0.0
    %5814 = vmatprep.subr.mxu0 0.0
    %5815 = vmatpush1.msra.mxu0 %v5779
    %5816 = vmatprep.subr.mxu0 0.0
    %5817 = vmatpush2.msra.mxu0 0.0
    %5818 = vmatprep.subr.mxu0 0.0
    %5819 = vmatpush2.msra.mxu0 0.0
    %5820 = vmatprep.subr.mxu0 0.0
    %5821 = vmatpush2.msra.mxu0 0.0
    %5822 = vmatprep.subr.mxu0 0.0
    %5823 = vmatpush2.msra.mxu0 0.0
    %5824 = vmatprep.subr.mxu0 0.0
    %5825 = vmatpush2.msra.mxu0 0.0
    %5826 = vmatprep.subr.mxu0 0.0
    %5827 = vmatpush2.msra.mxu0 0.0
    %5828 = vmatprep.subr.mxu0 0.0
    %5829 = vmatpush2.msra.mxu0 0.0
    %5830 = vmatprep.subr.mxu0 0.0
    %5831 = vmatpush2.msra.mxu0 0.0
    %5832 = vmatprep.subr.mxu0 0.0
    %5833 = vmatpush2.msra.mxu0 0.0
    %5834 = vmatprep.subr.mxu0 0.0
    %5835 = vmatpush2.msra.mxu0 0.0
    %5836 = vmatprep.subr.mxu0 0.0
    %5837 = vmatpush2.msra.mxu0 0.0
    %5838 = vmatprep.subr.mxu0 0.0
    %5839 = vmatpush2.msra.mxu0 0.0
    %5840 = vmatprep.subr.mxu0 0.0
    %5841 = vmatpush2.msra.mxu0 0.0
    %5842 = vmatprep.subr.mxu0 0.0
    %5843 = vmatpush2.msra.mxu0 0.0
    %5844 = vmatprep.subr.mxu0 0.0
    %5845 = vmatpush2.msra.mxu0 0.0
    %5846 = vmatprep.subr.mxu0 0.0
    %5847 = vmatpush2.msra.mxu0 0.0
    %5848 = vmatprep.mubr.f32.mxu0 0.0
    %5849 = vmatmul.mubr.f32.gmra.mxu0 %v5782
    %v5850 = vpop.f32.mrf.mxu0
    %v5851 = vadd.f32 0.0, %v5850
    %v5852 = vpop.f32.mrf.mxu0
    %5853 = vdwg.mxu0
    %5854 = vrot.lane.b32.xlu0 %v234, 64
    %v5855 = vpop.permute.xlu0 %5854
    %v5858 = vsel %vm301, %v4163, 0
    %5860 = vmatprep.subr.mxu0 0.0
    %5861 = vmatpush1.msra.mxu0 0.0
    %5862 = vmatprep.subr.mxu0 0.0
    %5863 = vmatpush1.msra.mxu0 0.0
    %5864 = vmatprep.subr.mxu0 0.0
    %5865 = vmatpush1.msra.mxu0 0.0
    %5866 = vmatprep.subr.mxu0 0.0
    %5867 = vmatpush1.msra.mxu0 0.0
    %5868 = vmatprep.subr.mxu0 0.0
    %5869 = vmatpush1.msra.mxu0 0.0
    %5870 = vmatprep.subr.mxu0 0.0
    %5871 = vmatpush1.msra.mxu0 0.0
    %5872 = vmatprep.subr.mxu0 0.0
    %5873 = vmatpush1.msra.mxu0 0.0
    %5874 = vmatprep.subr.mxu0 0.0
    %5875 = vmatpush1.msra.mxu0 0.0
    %5876 = vmatprep.subr.mxu0 0.0
    %5877 = vmatpush1.msra.mxu0 0.0
    %5878 = vmatprep.subr.mxu0 0.0
    %5879 = vmatpush1.msra.mxu0 0.0
    %5880 = vmatprep.subr.mxu0 0.0
    %5881 = vmatpush1.msra.mxu0 0.0
    %5882 = vmatprep.subr.mxu0 0.0
    %5883 = vmatpush1.msra.mxu0 0.0
    %5884 = vmatprep.subr.mxu0 0.0
    %5885 = vmatpush1.msra.mxu0 0.0
    %5886 = vmatprep.subr.mxu0 0.0
    %5887 = vmatpush1.msra.mxu0 0.0
    %5888 = vmatprep.subr.mxu0 0.0
    %5889 = vmatpush1.msra.mxu0 0.0
    %5890 = vmatprep.subr.mxu0 0.0
    %5891 = vmatpush1.msra.mxu0 %v5855
    %5892 = vmatprep.subr.mxu0 0.0
    %5893 = vmatpush2.msra.mxu0 0.0
    %5894 = vmatprep.subr.mxu0 0.0
    %5895 = vmatpush2.msra.mxu0 0.0
    %5896 = vmatprep.subr.mxu0 0.0
    %5897 = vmatpush2.msra.mxu0 0.0
    %5898 = vmatprep.subr.mxu0 0.0
    %5899 = vmatpush2.msra.mxu0 0.0
    %5900 = vmatprep.subr.mxu0 0.0
    %5901 = vmatpush2.msra.mxu0 0.0
    %5902 = vmatprep.subr.mxu0 0.0
    %5903 = vmatpush2.msra.mxu0 0.0
    %5904 = vmatprep.subr.mxu0 0.0
    %5905 = vmatpush2.msra.mxu0 0.0
    %5906 = vmatprep.subr.mxu0 0.0
    %5907 = vmatpush2.msra.mxu0 0.0
    %5908 = vmatprep.subr.mxu0 0.0
    %5909 = vmatpush2.msra.mxu0 0.0
    %5910 = vmatprep.subr.mxu0 0.0
    %5911 = vmatpush2.msra.mxu0 0.0
    %5912 = vmatprep.subr.mxu0 0.0
    %5913 = vmatpush2.msra.mxu0 0.0
    %5914 = vmatprep.subr.mxu0 0.0
    %5915 = vmatpush2.msra.mxu0 0.0
    %5916 = vmatprep.subr.mxu0 0.0
    %5917 = vmatpush2.msra.mxu0 0.0
    %5918 = vmatprep.subr.mxu0 0.0
    %5919 = vmatpush2.msra.mxu0 0.0
    %5920 = vmatprep.subr.mxu0 0.0
    %5921 = vmatpush2.msra.mxu0 0.0
    %5922 = vmatprep.subr.mxu0 0.0
    %5923 = vmatpush2.msra.mxu0 0.0
    %5924 = vmatprep.mubr.f32.mxu0 0.0
    %5925 = vmatmul.mubr.f32.gmra.mxu0 %v5858
    %v5926 = vpop.f32.mrf.mxu0
    %v5927 = vadd.f32 0.0, %v5926
    %v5928 = vpop.f32.mrf.mxu0
    %5929 = vdwg.mxu0
    %5930 = vrot.lane.b32.xlu0 %v236, 64
    %v5931 = vpop.permute.xlu0 %5930
    %v5934 = vsel %vm301, %v4165, 0
    %5936 = vmatprep.subr.mxu0 0.0
    %5937 = vmatpush1.msra.mxu0 0.0
    %5938 = vmatprep.subr.mxu0 0.0
    %5939 = vmatpush1.msra.mxu0 0.0
    %5940 = vmatprep.subr.mxu0 0.0
    %5941 = vmatpush1.msra.mxu0 0.0
    %5942 = vmatprep.subr.mxu0 0.0
    %5943 = vmatpush1.msra.mxu0 0.0
    %5944 = vmatprep.subr.mxu0 0.0
    %5945 = vmatpush1.msra.mxu0 0.0
    %5946 = vmatprep.subr.mxu0 0.0
    %5947 = vmatpush1.msra.mxu0 0.0
    %5948 = vmatprep.subr.mxu0 0.0
    %5949 = vmatpush1.msra.mxu0 0.0
    %5950 = vmatprep.subr.mxu0 0.0
    %5951 = vmatpush1.msra.mxu0 0.0
    %5952 = vmatprep.subr.mxu0 0.0
    %5953 = vmatpush1.msra.mxu0 0.0
    %5954 = vmatprep.subr.mxu0 0.0
    %5955 = vmatpush1.msra.mxu0 0.0
    %5956 = vmatprep.subr.mxu0 0.0
    %5957 = vmatpush1.msra.mxu0 0.0
    %5958 = vmatprep.subr.mxu0 0.0
    %5959 = vmatpush1.msra.mxu0 0.0
    %5960 = vmatprep.subr.mxu0 0.0
    %5961 = vmatpush1.msra.mxu0 0.0
    %5962 = vmatprep.subr.mxu0 0.0
    %5963 = vmatpush1.msra.mxu0 0.0
    %5964 = vmatprep.subr.mxu0 0.0
    %5965 = vmatpush1.msra.mxu0 0.0
    %5966 = vmatprep.subr.mxu0 0.0
    %5967 = vmatpush1.msra.mxu0 %v5931
    %5968 = vmatprep.subr.mxu0 0.0
    %5969 = vmatpush2.msra.mxu0 0.0
    %5970 = vmatprep.subr.mxu0 0.0
    %5971 = vmatpush2.msra.mxu0 0.0
    %5972 = vmatprep.subr.mxu0 0.0
    %5973 = vmatpush2.msra.mxu0 0.0
    %5974 = vmatprep.subr.mxu0 0.0
    %5975 = vmatpush2.msra.mxu0 0.0
    %5976 = vmatprep.subr.mxu0 0.0
    %5977 = vmatpush2.msra.mxu0 0.0
    %5978 = vmatprep.subr.mxu0 0.0
    %5979 = vmatpush2.msra.mxu0 0.0
    %5980 = vmatprep.subr.mxu0 0.0
    %5981 = vmatpush2.msra.mxu0 0.0
    %5982 = vmatprep.subr.mxu0 0.0
    %5983 = vmatpush2.msra.mxu0 0.0
    %5984 = vmatprep.subr.mxu0 0.0
    %5985 = vmatpush2.msra.mxu0 0.0
    %5986 = vmatprep.subr.mxu0 0.0
    %5987 = vmatpush2.msra.mxu0 0.0
    %5988 = vmatprep.subr.mxu0 0.0
    %5989 = vmatpush2.msra.mxu0 0.0
    %5990 = vmatprep.subr.mxu0 0.0
    %5991 = vmatpush2.msra.mxu0 0.0
    %5992 = vmatprep.subr.mxu0 0.0
    %5993 = vmatpush2.msra.mxu0 0.0
    %5994 = vmatprep.subr.mxu0 0.0
    %5995 = vmatpush2.msra.mxu0 0.0
    %5996 = vmatprep.subr.mxu0 0.0
    %5997 = vmatpush2.msra.mxu0 0.0
    %5998 = vmatprep.subr.mxu0 0.0
    %5999 = vmatpush2.msra.mxu0 0.0
    %6000 = vmatprep.mubr.f32.mxu0 0.0
    %6001 = vmatmul.mubr.f32.gmra.mxu0 %v5934
    %v6002 = vpop.f32.mrf.mxu0
    %v6003 = vadd.f32 0.0, %v6002
    %v6004 = vpop.f32.mrf.mxu0
    %6005 = vdwg.mxu0
    %6006 = vrot.lane.b32.xlu0 %v246, 64
    %v6007 = vpop.permute.xlu0 %6006
    %v6010 = vsel %vm301, %v4167, 0
    %6012 = vmatprep.subr.mxu0 0.0
    %6013 = vmatpush1.msra.mxu0 0.0
    %6014 = vmatprep.subr.mxu0 0.0
    %6015 = vmatpush1.msra.mxu0 0.0
    %6016 = vmatprep.subr.mxu0 0.0
    %6017 = vmatpush1.msra.mxu0 0.0
    %6018 = vmatprep.subr.mxu0 0.0
    %6019 = vmatpush1.msra.mxu0 0.0
    %6020 = vmatprep.subr.mxu0 0.0
    %6021 = vmatpush1.msra.mxu0 0.0
    %6022 = vmatprep.subr.mxu0 0.0
    %6023 = vmatpush1.msra.mxu0 0.0
    %6024 = vmatprep.subr.mxu0 0.0
    %6025 = vmatpush1.msra.mxu0 0.0
    %6026 = vmatprep.subr.mxu0 0.0
    %6027 = vmatpush1.msra.mxu0 0.0
    %6028 = vmatprep.subr.mxu0 0.0
    %6029 = vmatpush1.msra.mxu0 0.0
    %6030 = vmatprep.subr.mxu0 0.0
    %6031 = vmatpush1.msra.mxu0 0.0
    %6032 = vmatprep.subr.mxu0 0.0
    %6033 = vmatpush1.msra.mxu0 0.0
    %6034 = vmatprep.subr.mxu0 0.0
    %6035 = vmatpush1.msra.mxu0 0.0
    %6036 = vmatprep.subr.mxu0 0.0
    %6037 = vmatpush1.msra.mxu0 0.0
    %6038 = vmatprep.subr.mxu0 0.0
    %6039 = vmatpush1.msra.mxu0 0.0
    %6040 = vmatprep.subr.mxu0 0.0
    %6041 = vmatpush1.msra.mxu0 0.0
    %6042 = vmatprep.subr.mxu0 0.0
    %6043 = vmatpush1.msra.mxu0 %v6007
    %6044 = vmatprep.subr.mxu0 0.0
    %6045 = vmatpush2.msra.mxu0 0.0
    %6046 = vmatprep.subr.mxu0 0.0
    %6047 = vmatpush2.msra.mxu0 0.0
    %6048 = vmatprep.subr.mxu0 0.0
    %6049 = vmatpush2.msra.mxu0 0.0
    %6050 = vmatprep.subr.mxu0 0.0
    %6051 = vmatpush2.msra.mxu0 0.0
    %6052 = vmatprep.subr.mxu0 0.0
    %6053 = vmatpush2.msra.mxu0 0.0
    %6054 = vmatprep.subr.mxu0 0.0
    %6055 = vmatpush2.msra.mxu0 0.0
    %6056 = vmatprep.subr.mxu0 0.0
    %6057 = vmatpush2.msra.mxu0 0.0
    %6058 = vmatprep.subr.mxu0 0.0
    %6059 = vmatpush2.msra.mxu0 0.0
    %6060 = vmatprep.subr.mxu0 0.0
    %6061 = vmatpush2.msra.mxu0 0.0
    %6062 = vmatprep.subr.mxu0 0.0
    %6063 = vmatpush2.msra.mxu0 0.0
    %6064 = vmatprep.subr.mxu0 0.0
    %6065 = vmatpush2.msra.mxu0 0.0
    %6066 = vmatprep.subr.mxu0 0.0
    %6067 = vmatpush2.msra.mxu0 0.0
    %6068 = vmatprep.subr.mxu0 0.0
    %6069 = vmatpush2.msra.mxu0 0.0
    %6070 = vmatprep.subr.mxu0 0.0
    %6071 = vmatpush2.msra.mxu0 0.0
    %6072 = vmatprep.subr.mxu0 0.0
    %6073 = vmatpush2.msra.mxu0 0.0
    %6074 = vmatprep.subr.mxu0 0.0
    %6075 = vmatpush2.msra.mxu0 0.0
    %6076 = vmatprep.mubr.f32.mxu0 0.0
    %6077 = vmatmul.mubr.f32.gmra.mxu0 %v6010
    %v6078 = vpop.f32.mrf.mxu0
    %v6079 = vadd.f32 0.0, %v6078
    %v6080 = vpop.f32.mrf.mxu0
    %6081 = vdwg.mxu0
    %6082 = vrot.lane.b32.xlu0 %v248, 64
    %v6083 = vpop.permute.xlu0 %6082
    %v6086 = vsel %vm301, %v4169, 0
    %6088 = vmatprep.subr.mxu0 0.0
    %6089 = vmatpush1.msra.mxu0 0.0
    %6090 = vmatprep.subr.mxu0 0.0
    %6091 = vmatpush1.msra.mxu0 0.0
    %6092 = vmatprep.subr.mxu0 0.0
    %6093 = vmatpush1.msra.mxu0 0.0
    %6094 = vmatprep.subr.mxu0 0.0
    %6095 = vmatpush1.msra.mxu0 0.0
    %6096 = vmatprep.subr.mxu0 0.0
    %6097 = vmatpush1.msra.mxu0 0.0
    %6098 = vmatprep.subr.mxu0 0.0
    %6099 = vmatpush1.msra.mxu0 0.0
    %6100 = vmatprep.subr.mxu0 0.0
    %6101 = vmatpush1.msra.mxu0 0.0
    %6102 = vmatprep.subr.mxu0 0.0
    %6103 = vmatpush1.msra.mxu0 0.0
    %6104 = vmatprep.subr.mxu0 0.0
    %6105 = vmatpush1.msra.mxu0 0.0
    %6106 = vmatprep.subr.mxu0 0.0
    %6107 = vmatpush1.msra.mxu0 0.0
    %6108 = vmatprep.subr.mxu0 0.0
    %6109 = vmatpush1.msra.mxu0 0.0
    %6110 = vmatprep.subr.mxu0 0.0
    %6111 = vmatpush1.msra.mxu0 0.0
    %6112 = vmatprep.subr.mxu0 0.0
    %6113 = vmatpush1.msra.mxu0 0.0
    %6114 = vmatprep.subr.mxu0 0.0
    %6115 = vmatpush1.msra.mxu0 0.0
    %6116 = vmatprep.subr.mxu0 0.0
    %6117 = vmatpush1.msra.mxu0 0.0
    %6118 = vmatprep.subr.mxu0 0.0
    %6119 = vmatpush1.msra.mxu0 %v6083
    %6120 = vmatprep.subr.mxu0 0.0
    %6121 = vmatpush2.msra.mxu0 0.0
    %6122 = vmatprep.subr.mxu0 0.0
    %6123 = vmatpush2.msra.mxu0 0.0
    %6124 = vmatprep.subr.mxu0 0.0
    %6125 = vmatpush2.msra.mxu0 0.0
    %6126 = vmatprep.subr.mxu0 0.0
    %6127 = vmatpush2.msra.mxu0 0.0
    %6128 = vmatprep.subr.mxu0 0.0
    %6129 = vmatpush2.msra.mxu0 0.0
    %6130 = vmatprep.subr.mxu0 0.0
    %6131 = vmatpush2.msra.mxu0 0.0
    %6132 = vmatprep.subr.mxu0 0.0
    %6133 = vmatpush2.msra.mxu0 0.0
    %6134 = vmatprep.subr.mxu0 0.0
    %6135 = vmatpush2.msra.mxu0 0.0
    %6136 = vmatprep.subr.mxu0 0.0
    %6137 = vmatpush2.msra.mxu0 0.0
    %6138 = vmatprep.subr.mxu0 0.0
    %6139 = vmatpush2.msra.mxu0 0.0
    %6140 = vmatprep.subr.mxu0 0.0
    %6141 = vmatpush2.msra.mxu0 0.0
    %6142 = vmatprep.subr.mxu0 0.0
    %6143 = vmatpush2.msra.mxu0 0.0
    %6144 = vmatprep.subr.mxu0 0.0
    %6145 = vmatpush2.msra.mxu0 0.0
    %6146 = vmatprep.subr.mxu0 0.0
    %6147 = vmatpush2.msra.mxu0 0.0
    %6148 = vmatprep.subr.mxu0 0.0
    %6149 = vmatpush2.msra.mxu0 0.0
    %6150 = vmatprep.subr.mxu0 0.0
    %6151 = vmatpush2.msra.mxu0 0.0
    %6152 = vmatprep.mubr.f32.mxu0 0.0
    %6153 = vmatmul.mubr.f32.gmra.mxu0 %v6086
    %v6154 = vpop.f32.mrf.mxu0
    %v6155 = vadd.f32 0.0, %v6154
    %v6156 = vpop.f32.mrf.mxu0
    %6157 = vdwg.mxu0
    %6158 = vrot.lane.b32.xlu0 %v250, 64
    %v6159 = vpop.permute.xlu0 %6158
    %v6162 = vsel %vm301, %v4171, 0
    %6164 = vmatprep.subr.mxu0 0.0
    %6165 = vmatpush1.msra.mxu0 0.0
    %6166 = vmatprep.subr.mxu0 0.0
    %6167 = vmatpush1.msra.mxu0 0.0
    %6168 = vmatprep.subr.mxu0 0.0
    %6169 = vmatpush1.msra.mxu0 0.0
    %6170 = vmatprep.subr.mxu0 0.0
    %6171 = vmatpush1.msra.mxu0 0.0
    %6172 = vmatprep.subr.mxu0 0.0
    %6173 = vmatpush1.msra.mxu0 0.0
    %6174 = vmatprep.subr.mxu0 0.0
    %6175 = vmatpush1.msra.mxu0 0.0
    %6176 = vmatprep.subr.mxu0 0.0
    %6177 = vmatpush1.msra.mxu0 0.0
    %6178 = vmatprep.subr.mxu0 0.0
    %6179 = vmatpush1.msra.mxu0 0.0
    %6180 = vmatprep.subr.mxu0 0.0
    %6181 = vmatpush1.msra.mxu0 0.0
    %6182 = vmatprep.subr.mxu0 0.0
    %6183 = vmatpush1.msra.mxu0 0.0
    %6184 = vmatprep.subr.mxu0 0.0
    %6185 = vmatpush1.msra.mxu0 0.0
    %6186 = vmatprep.subr.mxu0 0.0
    %6187 = vmatpush1.msra.mxu0 0.0
    %6188 = vmatprep.subr.mxu0 0.0
    %6189 = vmatpush1.msra.mxu0 0.0
    %6190 = vmatprep.subr.mxu0 0.0
    %6191 = vmatpush1.msra.mxu0 0.0
    %6192 = vmatprep.subr.mxu0 0.0
    %6193 = vmatpush1.msra.mxu0 0.0
    %6194 = vmatprep.subr.mxu0 0.0
    %6195 = vmatpush1.msra.mxu0 %v6159
    %6196 = vmatprep.subr.mxu0 0.0
    %6197 = vmatpush2.msra.mxu0 0.0
    %6198 = vmatprep.subr.mxu0 0.0
    %6199 = vmatpush2.msra.mxu0 0.0
    %6200 = vmatprep.subr.mxu0 0.0
    %6201 = vmatpush2.msra.mxu0 0.0
    %6202 = vmatprep.subr.mxu0 0.0
    %6203 = vmatpush2.msra.mxu0 0.0
    %6204 = vmatprep.subr.mxu0 0.0
    %6205 = vmatpush2.msra.mxu0 0.0
    %6206 = vmatprep.subr.mxu0 0.0
    %6207 = vmatpush2.msra.mxu0 0.0
    %6208 = vmatprep.subr.mxu0 0.0
    %6209 = vmatpush2.msra.mxu0 0.0
    %6210 = vmatprep.subr.mxu0 0.0
    %6211 = vmatpush2.msra.mxu0 0.0
    %6212 = vmatprep.subr.mxu0 0.0
    %6213 = vmatpush2.msra.mxu0 0.0
    %6214 = vmatprep.subr.mxu0 0.0
    %6215 = vmatpush2.msra.mxu0 0.0
    %6216 = vmatprep.subr.mxu0 0.0
    %6217 = vmatpush2.msra.mxu0 0.0
    %6218 = vmatprep.subr.mxu0 0.0
    %6219 = vmatpush2.msra.mxu0 0.0
    %6220 = vmatprep.subr.mxu0 0.0
    %6221 = vmatpush2.msra.mxu0 0.0
    %6222 = vmatprep.subr.mxu0 0.0
    %6223 = vmatpush2.msra.mxu0 0.0
    %6224 = vmatprep.subr.mxu0 0.0
    %6225 = vmatpush2.msra.mxu0 0.0
    %6226 = vmatprep.subr.mxu0 0.0
    %6227 = vmatpush2.msra.mxu0 0.0
    %6228 = vmatprep.mubr.f32.mxu0 0.0
    %6229 = vmatmul.mubr.f32.gmra.mxu0 %v6162
    %v6230 = vpop.f32.mrf.mxu0
    %v6231 = vadd.f32 0.0, %v6230
    %v6232 = vpop.f32.mrf.mxu0
    %6233 = vdwg.mxu0
    %6234 = vrot.lane.b32.xlu0 %v252, 64
    %v6235 = vpop.permute.xlu0 %6234
    %v6238 = vsel %vm301, %v4173, 0
    %6240 = vmatprep.subr.mxu0 0.0
    %6241 = vmatpush1.msra.mxu0 0.0
    %6242 = vmatprep.subr.mxu0 0.0
    %6243 = vmatpush1.msra.mxu0 0.0
    %6244 = vmatprep.subr.mxu0 0.0
    %6245 = vmatpush1.msra.mxu0 0.0
    %6246 = vmatprep.subr.mxu0 0.0
    %6247 = vmatpush1.msra.mxu0 0.0
    %6248 = vmatprep.subr.mxu0 0.0
    %6249 = vmatpush1.msra.mxu0 0.0
    %6250 = vmatprep.subr.mxu0 0.0
    %6251 = vmatpush1.msra.mxu0 0.0
    %6252 = vmatprep.subr.mxu0 0.0
    %6253 = vmatpush1.msra.mxu0 0.0
    %6254 = vmatprep.subr.mxu0 0.0
    %6255 = vmatpush1.msra.mxu0 0.0
    %6256 = vmatprep.subr.mxu0 0.0
    %6257 = vmatpush1.msra.mxu0 0.0
    %6258 = vmatprep.subr.mxu0 0.0
    %6259 = vmatpush1.msra.mxu0 0.0
    %6260 = vmatprep.subr.mxu0 0.0
    %6261 = vmatpush1.msra.mxu0 0.0
    %6262 = vmatprep.subr.mxu0 0.0
    %6263 = vmatpush1.msra.mxu0 0.0
    %6264 = vmatprep.subr.mxu0 0.0
    %6265 = vmatpush1.msra.mxu0 0.0
    %6266 = vmatprep.subr.mxu0 0.0
    %6267 = vmatpush1.msra.mxu0 0.0
    %6268 = vmatprep.subr.mxu0 0.0
    %6269 = vmatpush1.msra.mxu0 0.0
    %6270 = vmatprep.subr.mxu0 0.0
    %6271 = vmatpush1.msra.mxu0 %v6235
    %6272 = vmatprep.subr.mxu0 0.0
    %6273 = vmatpush2.msra.mxu0 0.0
    %6274 = vmatprep.subr.mxu0 0.0
    %6275 = vmatpush2.msra.mxu0 0.0
    %6276 = vmatprep.subr.mxu0 0.0
    %6277 = vmatpush2.msra.mxu0 0.0
    %6278 = vmatprep.subr.mxu0 0.0
    %6279 = vmatpush2.msra.mxu0 0.0
    %6280 = vmatprep.subr.mxu0 0.0
    %6281 = vmatpush2.msra.mxu0 0.0
    %6282 = vmatprep.subr.mxu0 0.0
    %6283 = vmatpush2.msra.mxu0 0.0
    %6284 = vmatprep.subr.mxu0 0.0
    %6285 = vmatpush2.msra.mxu0 0.0
    %6286 = vmatprep.subr.mxu0 0.0
    %6287 = vmatpush2.msra.mxu0 0.0
    %6288 = vmatprep.subr.mxu0 0.0
    %6289 = vmatpush2.msra.mxu0 0.0
    %6290 = vmatprep.subr.mxu0 0.0
    %6291 = vmatpush2.msra.mxu0 0.0
    %6292 = vmatprep.subr.mxu0 0.0
    %6293 = vmatpush2.msra.mxu0 0.0
    %6294 = vmatprep.subr.mxu0 0.0
    %6295 = vmatpush2.msra.mxu0 0.0
    %6296 = vmatprep.subr.mxu0 0.0
    %6297 = vmatpush2.msra.mxu0 0.0
    %6298 = vmatprep.subr.mxu0 0.0
    %6299 = vmatpush2.msra.mxu0 0.0
    %6300 = vmatprep.subr.mxu0 0.0
    %6301 = vmatpush2.msra.mxu0 0.0
    %6302 = vmatprep.subr.mxu0 0.0
    %6303 = vmatpush2.msra.mxu0 0.0
    %6304 = vmatprep.mubr.f32.mxu0 0.0
    %6305 = vmatmul.mubr.f32.gmra.mxu0 %v6238
    %v6306 = vpop.f32.mrf.mxu0
    %v6307 = vadd.f32 0.0, %v6306
    %v6308 = vpop.f32.mrf.mxu0
    %6309 = vdwg.mxu0
    %6310 = vrot.lane.b32.xlu0 %v254, 64
    %v6311 = vpop.permute.xlu0 %6310
    %v6314 = vsel %vm301, %v4175, 0
    %6316 = vmatprep.subr.mxu0 0.0
    %6317 = vmatpush1.msra.mxu0 0.0
    %6318 = vmatprep.subr.mxu0 0.0
    %6319 = vmatpush1.msra.mxu0 0.0
    %6320 = vmatprep.subr.mxu0 0.0
    %6321 = vmatpush1.msra.mxu0 0.0
    %6322 = vmatprep.subr.mxu0 0.0
    %6323 = vmatpush1.msra.mxu0 0.0
    %6324 = vmatprep.subr.mxu0 0.0
    %6325 = vmatpush1.msra.mxu0 0.0
    %6326 = vmatprep.subr.mxu0 0.0
    %6327 = vmatpush1.msra.mxu0 0.0
    %6328 = vmatprep.subr.mxu0 0.0
    %6329 = vmatpush1.msra.mxu0 0.0
    %6330 = vmatprep.subr.mxu0 0.0
    %6331 = vmatpush1.msra.mxu0 0.0
    %6332 = vmatprep.subr.mxu0 0.0
    %6333 = vmatpush1.msra.mxu0 0.0
    %6334 = vmatprep.subr.mxu0 0.0
    %6335 = vmatpush1.msra.mxu0 0.0
    %6336 = vmatprep.subr.mxu0 0.0
    %6337 = vmatpush1.msra.mxu0 0.0
    %6338 = vmatprep.subr.mxu0 0.0
    %6339 = vmatpush1.msra.mxu0 0.0
    %6340 = vmatprep.subr.mxu0 0.0
    %6341 = vmatpush1.msra.mxu0 0.0
    %6342 = vmatprep.subr.mxu0 0.0
    %6343 = vmatpush1.msra.mxu0 0.0
    %6344 = vmatprep.subr.mxu0 0.0
    %6345 = vmatpush1.msra.mxu0 0.0
    %6346 = vmatprep.subr.mxu0 0.0
    %6347 = vmatpush1.msra.mxu0 %v6311
    %6348 = vmatprep.subr.mxu0 0.0
    %6349 = vmatpush2.msra.mxu0 0.0
    %6350 = vmatprep.subr.mxu0 0.0
    %6351 = vmatpush2.msra.mxu0 0.0
    %6352 = vmatprep.subr.mxu0 0.0
    %6353 = vmatpush2.msra.mxu0 0.0
    %6354 = vmatprep.subr.mxu0 0.0
    %6355 = vmatpush2.msra.mxu0 0.0
    %6356 = vmatprep.subr.mxu0 0.0
    %6357 = vmatpush2.msra.mxu0 0.0
    %6358 = vmatprep.subr.mxu0 0.0
    %6359 = vmatpush2.msra.mxu0 0.0
    %6360 = vmatprep.subr.mxu0 0.0
    %6361 = vmatpush2.msra.mxu0 0.0
    %6362 = vmatprep.subr.mxu0 0.0
    %6363 = vmatpush2.msra.mxu0 0.0
    %6364 = vmatprep.subr.mxu0 0.0
    %6365 = vmatpush2.msra.mxu0 0.0
    %6366 = vmatprep.subr.mxu0 0.0
    %6367 = vmatpush2.msra.mxu0 0.0
    %6368 = vmatprep.subr.mxu0 0.0
    %6369 = vmatpush2.msra.mxu0 0.0
    %6370 = vmatprep.subr.mxu0 0.0
    %6371 = vmatpush2.msra.mxu0 0.0
    %6372 = vmatprep.subr.mxu0 0.0
    %6373 = vmatpush2.msra.mxu0 0.0
    %6374 = vmatprep.subr.mxu0 0.0
    %6375 = vmatpush2.msra.mxu0 0.0
    %6376 = vmatprep.subr.mxu0 0.0
    %6377 = vmatpush2.msra.mxu0 0.0
    %6378 = vmatprep.subr.mxu0 0.0
    %6379 = vmatpush2.msra.mxu0 0.0
    %6380 = vmatprep.mubr.f32.mxu0 0.0
    %6381 = vmatmul.mubr.f32.gmra.mxu0 %v6314
    %v6382 = vpop.f32.mrf.mxu0
    %v6383 = vadd.f32 0.0, %v6382
    %v6384 = vpop.f32.mrf.mxu0
    %6385 = vdwg.mxu0
    %6386 = vrot.lane.b32.xlu0 %v256, 64
    %v6387 = vpop.permute.xlu0 %6386
    %v6390 = vsel %vm301, %v4177, 0
    %6392 = vmatprep.subr.mxu0 0.0
    %6393 = vmatpush1.msra.mxu0 0.0
    %6394 = vmatprep.subr.mxu0 0.0
    %6395 = vmatpush1.msra.mxu0 0.0
    %6396 = vmatprep.subr.mxu0 0.0
    %6397 = vmatpush1.msra.mxu0 0.0
    %6398 = vmatprep.subr.mxu0 0.0
    %6399 = vmatpush1.msra.mxu0 0.0
    %6400 = vmatprep.subr.mxu0 0.0
    %6401 = vmatpush1.msra.mxu0 0.0
    %6402 = vmatprep.subr.mxu0 0.0
    %6403 = vmatpush1.msra.mxu0 0.0
    %6404 = vmatprep.subr.mxu0 0.0
    %6405 = vmatpush1.msra.mxu0 0.0
    %6406 = vmatprep.subr.mxu0 0.0
    %6407 = vmatpush1.msra.mxu0 0.0
    %6408 = vmatprep.subr.mxu0 0.0
    %6409 = vmatpush1.msra.mxu0 0.0
    %6410 = vmatprep.subr.mxu0 0.0
    %6411 = vmatpush1.msra.mxu0 0.0
    %6412 = vmatprep.subr.mxu0 0.0
    %6413 = vmatpush1.msra.mxu0 0.0
    %6414 = vmatprep.subr.mxu0 0.0
    %6415 = vmatpush1.msra.mxu0 0.0
    %6416 = vmatprep.subr.mxu0 0.0
    %6417 = vmatpush1.msra.mxu0 0.0
    %6418 = vmatprep.subr.mxu0 0.0
    %6419 = vmatpush1.msra.mxu0 0.0
    %6420 = vmatprep.subr.mxu0 0.0
    %6421 = vmatpush1.msra.mxu0 0.0
    %6422 = vmatprep.subr.mxu0 0.0
    %6423 = vmatpush1.msra.mxu0 %v6387
    %6424 = vmatprep.subr.mxu0 0.0
    %6425 = vmatpush2.msra.mxu0 0.0
    %6426 = vmatprep.subr.mxu0 0.0
    %6427 = vmatpush2.msra.mxu0 0.0
    %6428 = vmatprep.subr.mxu0 0.0
    %6429 = vmatpush2.msra.mxu0 0.0
    %6430 = vmatprep.subr.mxu0 0.0
    %6431 = vmatpush2.msra.mxu0 0.0
    %6432 = vmatprep.subr.mxu0 0.0
    %6433 = vmatpush2.msra.mxu0 0.0
    %6434 = vmatprep.subr.mxu0 0.0
    %6435 = vmatpush2.msra.mxu0 0.0
    %6436 = vmatprep.subr.mxu0 0.0
    %6437 = vmatpush2.msra.mxu0 0.0
    %6438 = vmatprep.subr.mxu0 0.0
    %6439 = vmatpush2.msra.mxu0 0.0
    %6440 = vmatprep.subr.mxu0 0.0
    %6441 = vmatpush2.msra.mxu0 0.0
    %6442 = vmatprep.subr.mxu0 0.0
    %6443 = vmatpush2.msra.mxu0 0.0
    %6444 = vmatprep.subr.mxu0 0.0
    %6445 = vmatpush2.msra.mxu0 0.0
    %6446 = vmatprep.subr.mxu0 0.0
    %6447 = vmatpush2.msra.mxu0 0.0
    %6448 = vmatprep.subr.mxu0 0.0
    %6449 = vmatpush2.msra.mxu0 0.0
    %6450 = vmatprep.subr.mxu0 0.0
    %6451 = vmatpush2.msra.mxu0 0.0
    %6452 = vmatprep.subr.mxu0 0.0
    %6453 = vmatpush2.msra.mxu0 0.0
    %6454 = vmatprep.subr.mxu0 0.0
    %6455 = vmatpush2.msra.mxu0 0.0
    %6456 = vmatprep.mubr.f32.mxu0 0.0
    %6457 = vmatmul.mubr.f32.gmra.mxu0 %v6390
    %v6458 = vpop.f32.mrf.mxu0
    %v6459 = vadd.f32 0.0, %v6458
    %v6460 = vpop.f32.mrf.mxu0
    %6461 = vdwg.mxu0
    %6462 = vrot.lane.b32.xlu0 %v258, 64
    %v6463 = vpop.permute.xlu0 %6462
    %v6466 = vsel %vm301, %v4179, 0
    %6468 = vmatprep.subr.mxu0 0.0
    %6469 = vmatpush1.msra.mxu0 0.0
    %6470 = vmatprep.subr.mxu0 0.0
    %6471 = vmatpush1.msra.mxu0 0.0
    %6472 = vmatprep.subr.mxu0 0.0
    %6473 = vmatpush1.msra.mxu0 0.0
    %6474 = vmatprep.subr.mxu0 0.0
    %6475 = vmatpush1.msra.mxu0 0.0
    %6476 = vmatprep.subr.mxu0 0.0
    %6477 = vmatpush1.msra.mxu0 0.0
    %6478 = vmatprep.subr.mxu0 0.0
    %6479 = vmatpush1.msra.mxu0 0.0
    %6480 = vmatprep.subr.mxu0 0.0
    %6481 = vmatpush1.msra.mxu0 0.0
    %6482 = vmatprep.subr.mxu0 0.0
    %6483 = vmatpush1.msra.mxu0 0.0
    %6484 = vmatprep.subr.mxu0 0.0
    %6485 = vmatpush1.msra.mxu0 0.0
    %6486 = vmatprep.subr.mxu0 0.0
    %6487 = vmatpush1.msra.mxu0 0.0
    %6488 = vmatprep.subr.mxu0 0.0
    %6489 = vmatpush1.msra.mxu0 0.0
    %6490 = vmatprep.subr.mxu0 0.0
    %6491 = vmatpush1.msra.mxu0 0.0
    %6492 = vmatprep.subr.mxu0 0.0
    %6493 = vmatpush1.msra.mxu0 0.0
    %6494 = vmatprep.subr.mxu0 0.0
    %6495 = vmatpush1.msra.mxu0 0.0
    %6496 = vmatprep.subr.mxu0 0.0
    %6497 = vmatpush1.msra.mxu0 0.0
    %6498 = vmatprep.subr.mxu0 0.0
    %6499 = vmatpush1.msra.mxu0 %v6463
    %6500 = vmatprep.subr.mxu0 0.0
    %6501 = vmatpush2.msra.mxu0 0.0
    %6502 = vmatprep.subr.mxu0 0.0
    %6503 = vmatpush2.msra.mxu0 0.0
    %6504 = vmatprep.subr.mxu0 0.0
    %6505 = vmatpush2.msra.mxu0 0.0
    %6506 = vmatprep.subr.mxu0 0.0
    %6507 = vmatpush2.msra.mxu0 0.0
    %6508 = vmatprep.subr.mxu0 0.0
    %6509 = vmatpush2.msra.mxu0 0.0
    %6510 = vmatprep.subr.mxu0 0.0
    %6511 = vmatpush2.msra.mxu0 0.0
    %6512 = vmatprep.subr.mxu0 0.0
    %6513 = vmatpush2.msra.mxu0 0.0
    %6514 = vmatprep.subr.mxu0 0.0
    %6515 = vmatpush2.msra.mxu0 0.0
    %6516 = vmatprep.subr.mxu0 0.0
    %6517 = vmatpush2.msra.mxu0 0.0
    %6518 = vmatprep.subr.mxu0 0.0
    %6519 = vmatpush2.msra.mxu0 0.0
    %6520 = vmatprep.subr.mxu0 0.0
    %6521 = vmatpush2.msra.mxu0 0.0
    %6522 = vmatprep.subr.mxu0 0.0
    %6523 = vmatpush2.msra.mxu0 0.0
    %6524 = vmatprep.subr.mxu0 0.0
    %6525 = vmatpush2.msra.mxu0 0.0
    %6526 = vmatprep.subr.mxu0 0.0
    %6527 = vmatpush2.msra.mxu0 0.0
    %6528 = vmatprep.subr.mxu0 0.0
    %6529 = vmatpush2.msra.mxu0 0.0
    %6530 = vmatprep.subr.mxu0 0.0
    %6531 = vmatpush2.msra.mxu0 0.0
    %6532 = vmatprep.mubr.f32.mxu0 0.0
    %6533 = vmatmul.mubr.f32.gmra.mxu0 %v6466
    %v6534 = vpop.f32.mrf.mxu0
    %v6535 = vadd.f32 0.0, %v6534
    %v6536 = vpop.f32.mrf.mxu0
    %6537 = vdwg.mxu0
    %6538 = vrot.lane.b32.xlu0 %v260, 64
    %v6539 = vpop.permute.xlu0 %6538
    %v6542 = vsel %vm301, %v4181, 0
    %6544 = vmatprep.subr.mxu0 0.0
    %6545 = vmatpush1.msra.mxu0 0.0
    %6546 = vmatprep.subr.mxu0 0.0
    %6547 = vmatpush1.msra.mxu0 0.0
    %6548 = vmatprep.subr.mxu0 0.0
    %6549 = vmatpush1.msra.mxu0 0.0
    %6550 = vmatprep.subr.mxu0 0.0
    %6551 = vmatpush1.msra.mxu0 0.0
    %6552 = vmatprep.subr.mxu0 0.0
    %6553 = vmatpush1.msra.mxu0 0.0
    %6554 = vmatprep.subr.mxu0 0.0
    %6555 = vmatpush1.msra.mxu0 0.0
    %6556 = vmatprep.subr.mxu0 0.0
    %6557 = vmatpush1.msra.mxu0 0.0
    %6558 = vmatprep.subr.mxu0 0.0
    %6559 = vmatpush1.msra.mxu0 0.0
    %6560 = vmatprep.subr.mxu0 0.0
    %6561 = vmatpush1.msra.mxu0 0.0
    %6562 = vmatprep.subr.mxu0 0.0
    %6563 = vmatpush1.msra.mxu0 0.0
    %6564 = vmatprep.subr.mxu0 0.0
    %6565 = vmatpush1.msra.mxu0 0.0
    %6566 = vmatprep.subr.mxu0 0.0
    %6567 = vmatpush1.msra.mxu0 0.0
    %6568 = vmatprep.subr.mxu0 0.0
    %6569 = vmatpush1.msra.mxu0 0.0
    %6570 = vmatprep.subr.mxu0 0.0
    %6571 = vmatpush1.msra.mxu0 0.0
    %6572 = vmatprep.subr.mxu0 0.0
    %6573 = vmatpush1.msra.mxu0 0.0
    %6574 = vmatprep.subr.mxu0 0.0
    %6575 = vmatpush1.msra.mxu0 %v6539
    %6576 = vmatprep.subr.mxu0 0.0
    %6577 = vmatpush2.msra.mxu0 0.0
    %6578 = vmatprep.subr.mxu0 0.0
    %6579 = vmatpush2.msra.mxu0 0.0
    %6580 = vmatprep.subr.mxu0 0.0
    %6581 = vmatpush2.msra.mxu0 0.0
    %6582 = vmatprep.subr.mxu0 0.0
    %6583 = vmatpush2.msra.mxu0 0.0
    %6584 = vmatprep.subr.mxu0 0.0
    %6585 = vmatpush2.msra.mxu0 0.0
    %6586 = vmatprep.subr.mxu0 0.0
    %6587 = vmatpush2.msra.mxu0 0.0
    %6588 = vmatprep.subr.mxu0 0.0
    %6589 = vmatpush2.msra.mxu0 0.0
    %6590 = vmatprep.subr.mxu0 0.0
    %6591 = vmatpush2.msra.mxu0 0.0
    %6592 = vmatprep.subr.mxu0 0.0
    %6593 = vmatpush2.msra.mxu0 0.0
    %6594 = vmatprep.subr.mxu0 0.0
    %6595 = vmatpush2.msra.mxu0 0.0
    %6596 = vmatprep.subr.mxu0 0.0
    %6597 = vmatpush2.msra.mxu0 0.0
    %6598 = vmatprep.subr.mxu0 0.0
    %6599 = vmatpush2.msra.mxu0 0.0
    %6600 = vmatprep.subr.mxu0 0.0
    %6601 = vmatpush2.msra.mxu0 0.0
    %6602 = vmatprep.subr.mxu0 0.0
    %6603 = vmatpush2.msra.mxu0 0.0
    %6604 = vmatprep.subr.mxu0 0.0
    %6605 = vmatpush2.msra.mxu0 0.0
    %6606 = vmatprep.subr.mxu0 0.0
    %6607 = vmatpush2.msra.mxu0 0.0
    %6608 = vmatprep.mubr.f32.mxu0 0.0
    %6609 = vmatmul.mubr.f32.gmra.mxu0 %v6542
    %v6610 = vpop.f32.mrf.mxu0
    %v6611 = vadd.f32 0.0, %v6610
    %v6612 = vpop.f32.mrf.mxu0
    %6613 = vdwg.mxu0
    %6622 = vrot.lane.b32.xlu0 %v4863, 8
    %v6623 = vpop.permute.xlu0 %6622
    %6624 = vrot.lane.b32.xlu0 %v4939, 8
    %v6625 = vpop.permute.xlu0 %6624
    %6626 = vrot.lane.b32.xlu0 %v5015, 8
    %v6627 = vpop.permute.xlu0 %6626
    %6628 = vrot.lane.b32.xlu0 %v5091, 8
    %v6629 = vpop.permute.xlu0 %6628
    %6630 = vrot.lane.b32.xlu0 %v5167, 8
    %v6631 = vpop.permute.xlu0 %6630
    %6632 = vrot.lane.b32.xlu0 %v5243, 8
    %v6633 = vpop.permute.xlu0 %6632
    %6634 = vrot.lane.b32.xlu0 %v5319, 8
    %v6635 = vpop.permute.xlu0 %6634
    %6636 = vrot.lane.b32.xlu0 %v5395, 8
    %v6637 = vpop.permute.xlu0 %6636
    %6654 = vrot.lane.b32.xlu0 %v5471, 16
    %v6655 = vpop.permute.xlu0 %6654
    %6656 = vrot.lane.b32.xlu0 %v5547, 16
    %v6657 = vpop.permute.xlu0 %6656
    %6658 = vrot.lane.b32.xlu0 %v5623, 16
    %v6659 = vpop.permute.xlu0 %6658
    %6660 = vrot.lane.b32.xlu0 %v5699, 16
    %v6661 = vpop.permute.xlu0 %6660
    %6662 = vrot.lane.b32.xlu0 %v5775, 16
    %v6663 = vpop.permute.xlu0 %6662
    %6664 = vrot.lane.b32.xlu0 %v5851, 16
    %v6665 = vpop.permute.xlu0 %6664
    %6666 = vrot.lane.b32.xlu0 %v5927, 16
    %v6667 = vpop.permute.xlu0 %6666
    %6668 = vrot.lane.b32.xlu0 %v6003, 16
    %v6669 = vpop.permute.xlu0 %6668
    %6686 = vrot.lane.b32.xlu0 %v6079, 24
    %v6687 = vpop.permute.xlu0 %6686
    %6688 = vrot.lane.b32.xlu0 %v6155, 24
    %v6689 = vpop.permute.xlu0 %6688
    %6690 = vrot.lane.b32.xlu0 %v6231, 24
    %v6691 = vpop.permute.xlu0 %6690
    %6692 = vrot.lane.b32.xlu0 %v6307, 24
    %v6693 = vpop.permute.xlu0 %6692
    %6694 = vrot.lane.b32.xlu0 %v6383, 24
    %v6695 = vpop.permute.xlu0 %6694
    %6696 = vrot.lane.b32.xlu0 %v6459, 24
    %v6697 = vpop.permute.xlu0 %6696
    %6698 = vrot.lane.b32.xlu0 %v6535, 24
    %v6699 = vpop.permute.xlu0 %6698
    %6700 = vrot.lane.b32.xlu0 %v6611, 24
    %v6701 = vpop.permute.xlu0 %6700
    %v6710 = vsel %vm301, %v4255, %v6623
    %v6711 = vsel %vm301, %v4331, %v6625
    %v6712 = vsel %vm301, %v4407, %v6627
    %v6713 = vsel %vm301, %v4483, %v6629
    %v6714 = vsel %vm301, %v4559, %v6631
    %v6715 = vsel %vm301, %v4635, %v6633
    %v6716 = vsel %vm301, %v4711, %v6635
    %v6717 = vsel %vm301, %v4787, %v6637
    %vm6718 = vcmask 130048
    %v6719 = vsel %vm6718, %v6710, %v6655
    %v6720 = vsel %vm6718, %v6711, %v6657
    %v6721 = vsel %vm6718, %v6712, %v6659
    %v6722 = vsel %vm6718, %v6713, %v6661
    %v6723 = vsel %vm6718, %v6714, %v6663
    %v6724 = vsel %vm6718, %v6715, %v6665
    %v6725 = vsel %vm6718, %v6716, %v6667
    %v6726 = vsel %vm6718, %v6717, %v6669
    %vm6727 = vcmask 195584
    %v6728 = vsel %vm6727, %v6719, %v6687
    %v6729 = vsel %vm6727, %v6720, %v6689
    %v6730 = vsel %vm6727, %v6721, %v6691
    %v6731 = vsel %vm6727, %v6722, %v6693
    %v6732 = vsel %vm6727, %v6723, %v6695
    %v6733 = vsel %vm6727, %v6724, %v6697
    %v6734 = vsel %vm6727, %v6725, %v6699
    %v6735 = vsel %vm6727, %v6726, %v6701
    %v6736 = vld [vmem:[#allocation2] sm:$0xff]
    %v6737 = vld [vmem:[#allocation2 + $0x8] sm:$0xff]
    %v6738 = vld [vmem:[#allocation2 + $0x10] sm:$0xff]
    %v6739 = vld [vmem:[#allocation2 + $0x18] sm:$0xff]
    %v6740 = vld [vmem:[%s6] sm:$0x1]
    %v6742 = vlaneseq
    %v6743 = vshrl.u32 %v6742, 7
    %v6744 = vsub.s32 0, %v6743
    %v6745 = vrot.slane %v6740, %v6744
    %v6748 = vsel %vm59, %v6728, 0
    %v6751 = vsel %vm59, %v6729, 0
    %v6754 = vsel %vm59, %v6730, 0
    %v6757 = vsel %vm59, %v6731, 0
    %v6760 = vsel %vm59, %v6732, 0
    %v6763 = vsel %vm59, %v6733, 0
    %v6766 = vsel %vm59, %v6734, 0
    %v6769 = vsel %vm59, %v6735, 0
    %6771 = vmatprep.subr.mxu0 0.0
    %6772 = vmatpush1.msra.mxu0 0.0
    %6773 = vmatprep.subr.mxu0 0.0
    %6774 = vmatpush1.msra.mxu0 0.0
    %6775 = vmatprep.subr.mxu0 0.0
    %6776 = vmatpush1.msra.mxu0 0.0
    %6777 = vmatprep.subr.mxu0 0.0
    %6778 = vmatpush1.msra.mxu0 0.0
    %6779 = vmatprep.subr.mxu0 0.0
    %6780 = vmatpush1.msra.mxu0 0.0
    %6781 = vmatprep.subr.mxu0 0.0
    %6782 = vmatpush1.msra.mxu0 0.0
    %6783 = vmatprep.subr.mxu0 0.0
    %6784 = vmatpush1.msra.mxu0 0.0
    %6785 = vmatprep.subr.mxu0 0.0
    %6786 = vmatpush1.msra.mxu0 0.0
    %6787 = vmatprep.subr.mxu0 0.0
    %6788 = vmatpush1.msra.mxu0 0.0
    %6789 = vmatprep.subr.mxu0 0.0
    %6790 = vmatpush1.msra.mxu0 0.0
    %6791 = vmatprep.subr.mxu0 0.0
    %6792 = vmatpush1.msra.mxu0 0.0
    %6793 = vmatprep.subr.mxu0 0.0
    %6794 = vmatpush1.msra.mxu0 0.0
    %6795 = vmatprep.subr.mxu0 0.0
    %6796 = vmatpush1.msra.mxu0 %v6739
    %6797 = vmatprep.subr.mxu0 0.0
    %6798 = vmatpush1.msra.mxu0 %v6738
    %6799 = vmatprep.subr.mxu0 0.0
    %6800 = vmatpush1.msra.mxu0 %v6737
    %6801 = vmatprep.subr.mxu0 0.0
    %6802 = vmatpush1.msra.mxu0 %v6736
    %6803 = vmatprep.subr.mxu0 0.0
    %6804 = vmatpush2.msra.mxu0 0.0
    %6805 = vmatprep.subr.mxu0 0.0
    %6806 = vmatpush2.msra.mxu0 0.0
    %6807 = vmatprep.subr.mxu0 0.0
    %6808 = vmatpush2.msra.mxu0 0.0
    %6809 = vmatprep.subr.mxu0 0.0
    %6810 = vmatpush2.msra.mxu0 0.0
    %6811 = vmatprep.subr.mxu0 0.0
    %6812 = vmatpush2.msra.mxu0 0.0
    %6813 = vmatprep.subr.mxu0 0.0
    %6814 = vmatpush2.msra.mxu0 0.0
    %6815 = vmatprep.subr.mxu0 0.0
    %6816 = vmatpush2.msra.mxu0 0.0
    %6817 = vmatprep.subr.mxu0 0.0
    %6818 = vmatpush2.msra.mxu0 0.0
    %6819 = vmatprep.subr.mxu0 0.0
    %6820 = vmatpush2.msra.mxu0 0.0
    %6821 = vmatprep.subr.mxu0 0.0
    %6822 = vmatpush2.msra.mxu0 0.0
    %6823 = vmatprep.subr.mxu0 0.0
    %6824 = vmatpush2.msra.mxu0 0.0
    %6825 = vmatprep.subr.mxu0 0.0
    %6826 = vmatpush2.msra.mxu0 0.0
    %6827 = vmatprep.subr.mxu0 0.0
    %6828 = vmatpush2.msra.mxu0 0.0
    %6829 = vmatprep.subr.mxu0 0.0
    %6830 = vmatpush2.msra.mxu0 0.0
    %6831 = vmatprep.subr.mxu0 0.0
    %6832 = vmatpush2.msra.mxu0 0.0
    %6833 = vmatprep.subr.mxu0 0.0
    %6834 = vmatpush2.msra.mxu0 0.0
    %6835 = vmatprep.mubr.f32.mxu0 0.0
    %6836 = vmatmul.mubr.f32.gmra.mxu0 %v6748
    %v6837 = vpop.f32.mrf.mxu0
    %v6838 = vadd.f32 %v6745, %v6837
    %v6839 = vpop.f32.mrf.mxu0
    %6840 = vmatprep.mubr.f32.mxu0 0.0
    %6841 = vmatmul.mubr.f32.gmra.mxu0 %v6751
    %v6842 = vpop.f32.mrf.mxu0
    %v6843 = vadd.f32 %v6745, %v6842
    %v6844 = vpop.f32.mrf.mxu0
    %6845 = vmatprep.mubr.f32.mxu0 0.0
    %6846 = vmatmul.mubr.f32.gmra.mxu0 %v6754
    %v6847 = vpop.f32.mrf.mxu0
    %v6848 = vadd.f32 %v6745, %v6847
    %v6849 = vpop.f32.mrf.mxu0
    %6850 = vmatprep.mubr.f32.mxu0 0.0
    %6851 = vmatmul.mubr.f32.gmra.mxu0 %v6757
    %v6852 = vpop.f32.mrf.mxu0
    %v6853 = vadd.f32 %v6745, %v6852
    %v6854 = vpop.f32.mrf.mxu0
    %6855 = vmatprep.mubr.f32.mxu0 0.0
    %6856 = vmatmul.mubr.f32.gmra.mxu0 %v6760
    %v6857 = vpop.f32.mrf.mxu0
    %v6858 = vadd.f32 %v6745, %v6857
    %v6859 = vpop.f32.mrf.mxu0
    %6860 = vmatprep.mubr.f32.mxu0 0.0
    %6861 = vmatmul.mubr.f32.gmra.mxu0 %v6763
    %v6862 = vpop.f32.mrf.mxu0
    %v6863 = vadd.f32 %v6745, %v6862
    %v6864 = vpop.f32.mrf.mxu0
    %6865 = vmatprep.mubr.f32.mxu0 0.0
    %6866 = vmatmul.mubr.f32.gmra.mxu0 %v6766
    %v6867 = vpop.f32.mrf.mxu0
    %v6868 = vadd.f32 %v6745, %v6867
    %v6869 = vpop.f32.mrf.mxu0
    %6870 = vmatprep.mubr.f32.mxu0 0.0
    %6871 = vmatmul.mubr.f32.gmra.mxu0 %v6769
    %v6872 = vpop.f32.mrf.mxu0
    %v6873 = vadd.f32 %v6745, %v6872
    %v6874 = vpop.f32.mrf.mxu0
    %6875 = vdwg.mxu0
    %6876 = vst.msk [vmem:[%s7] sm:$0xff] %vm59, %v6838
    %6877 = vst.msk [vmem:[%s7 + $0x8] sm:$0xff] %vm59, %v6843
    %6878 = vst.msk [vmem:[%s7 + $0x10] sm:$0xff] %vm59, %v6848
    %6879 = vst.msk [vmem:[%s7 + $0x18] sm:$0xff] %vm59, %v6853
    %6880 = vst.msk [vmem:[%s7 + $0x20] sm:$0xff] %vm59, %v6858
    %6881 = vst.msk [vmem:[%s7 + $0x28] sm:$0xff] %vm59, %v6863
    %6882 = vst.msk [vmem:[%s7 + $0x30] sm:$0xff] %vm59, %v6868
    %6883 = vst.msk [vmem:[%s7 + $0x38] sm:$0xff] %vm59, %v6873
    // Predicated region
    $region34: #{tpu_custom_call.1} parent=1 // pred_check
      _
    $region35: #{tpu_custom_call.1} parent=1 // pred_check_branch
      %6885 = sbr.rel (0) target = $region37
    $region36: #{tpu_custom_call.1} parent=1 // pred_region
      _
    $region37: #{tpu_custom_call.1} parent=1 // pred_fallthru
      _
    // Predicated region
    $region38: #{tpu_custom_call.1} parent=1 // pred_check
      _
    $region39: #{tpu_custom_call.1} parent=1 // pred_check_branch
      %6887 = sbr.rel (0) target = $region41
    $region40: #{tpu_custom_call.1} parent=1 // pred_region
      _
    $region41: #{tpu_custom_call.1} parent=1 // pred_fallthru
      _
    %6888 = vsyncpa [#allocation3], 1

</llo_original>
